<compile_context>
chip_gen: v6e
topology: v6e:2x2x1
jax: 0.10.0
libtpu: 0.0.40
codegen_flags: <defaults>
</compile_context>

<pallas_src>
import jax
import jax.numpy as jnp
from jax.experimental import pallas as pl
from jax.experimental.pallas import tpu as pltpu

BIAS_ROW_W = 512  # lane width of the packed bias operand


# ----------------------------------------------------------------------------
# Fused per-instance kernel: encoder GRU (statically unrolled over T) +
# attention decoder.  Runs once per grid step (one independent instance).
# ----------------------------------------------------------------------------
def fused_kernel(x_ref, st_ref,
                 enc_wih_ref, enc_whh_ref,
                 aW1_ref, aW2_ref, aW3_ref, aW4_ref,
                 cW1_ref, cW2_ref, cW3_ref, cW4_ref,
                 dec_wih_ref, dec_whh_ref, oW_ref,
                 bias_ref,
                 out_ref):
    TN, _ = x_ref.shape
    N = st_ref.shape[0]
    T = TN // N
    H = enc_whh_ref.shape[0]
    G = 3 * H
    O = out_ref.shape[1]

    # ---- unpack the single packed bias operand (rows of a (16, 512) slab) ----
    b = bias_ref[...]
    enc_bih = b[0:1, :G]
    enc_bhh = b[1:2, :G]
    ab1 = b[2:3, :512]
    ab2 = b[3:4, :512]
    ab3 = b[4:5, :256]
    ab4 = b[5:6, :H]
    cb1 = b[6:7, :512]
    cb2 = b[7:8, :512]
    cb3 = b[8:9, :256]
    cb4 = b[9:10, :H]
    bn_g = b[10:11, :2 * H]
    bn_b = b[11:12, :2 * H]
    dec_bih = b[12:13, :G]
    dec_bhh = b[13:14, :G]
    out_b = b[14:15, :O]

    def dot(a, w):                    # f32 MXU matmul
        return jnp.dot(a, w, preferred_element_type=jnp.float32)

    def mdot(a, w):                   # MLP matmul; follows the weight dtype
        return jnp.dot(a.astype(w.dtype), w, preferred_element_type=jnp.float32)

    def leaky(v):                     # LeakyReLU(negative_slope=0.5)
        return jnp.where(v > 0, v, 0.5 * v)

    # ---------------- encoder GRU ----------------
    # Input projection hoisted out of the recurrence; x arrives time-major and
    # pre-flattened to (T*N, D), so gi per step is a static sublane slice.
    gi_all = dot(x_ref[...], enc_wih_ref[...]) + enc_bih   # (T*N, 3H)

    enc_whh = enc_whh_ref[...]
    h = jnp.zeros((N, H), jnp.float32)
    for t in range(T):                # static unroll: full scheduler visibility
        gi = gi_all[t * N:(t + 1) * N, :]                  # (N, 3H)
        gh = dot(h, enc_whh) + enc_bhh
        rz = jax.nn.sigmoid(gi[:, :2 * H] + gh[:, :2 * H])  # r|z in one EUP pass
        r = rz[:, :H]
        z = rz[:, H:2 * H]
        n = jnp.tanh(gi[:, 2 * H:] + r * gh[:, 2 * H:])
        h = (1.0 - z) * n + z * h     # == encoderOutput[:, -1, :] == hn
    # TODO(synk): holding enc_whh in the MXU staging registers across the
    # unrolled recurrence (matmul_push_rhs / matmul_acc_lhs / matmul_pop) would
    # shave the repeated RHS push off the serial chain; kept on jnp.dot for
    # robustness.

    st = st_ref[...]                  # (N, S)

    # ---------------- attention MLP on cat(h, h, status) ----------------
    # (the duplicated h-part is pre-folded into aW1's rows in pack_params)
    hs = jnp.concatenate([h, st], axis=1)                  # (N, H+S)
    a = leaky(mdot(hs, aW1_ref[...]) + ab1)
    a = leaky(mdot(a, aW2_ref[...]) + ab2)
    a = leaky(mdot(a, aW3_ref[...]) + ab3)
    logits = mdot(a, aW4_ref[...]) + ab4                   # (N, H)

    # softmax over features (exact divide: BN downstream amplifies errors)
    m = jnp.max(logits, axis=1, keepdims=True)
    e = jnp.exp(logits - m)
    attn_w = e / jnp.sum(e, axis=1, keepdims=True)
    applied = attn_w * h                                   # (N, H)

    # ---------------- BatchNorm1d(2H), training-mode batch stats, fused ------
    cat = jnp.concatenate([h, applied], axis=1)            # (N, 2H)
    mu = jnp.mean(cat, axis=0, keepdims=True)
    var = jnp.mean((cat - mu) * (cat - mu), axis=0, keepdims=True)
    norm = (cat - mu) * jax.lax.rsqrt(var + 1e-5) * bn_g + bn_b

    # ---------------- attn_combine MLP + relu ----------------
    c = leaky(mdot(norm, cW1_ref[...]) + cb1)
    c = leaky(mdot(c, cW2_ref[...]) + cb2)
    c = leaky(mdot(c, cW3_ref[...]) + cb3)
    gru_in = jnp.maximum(mdot(c, cW4_ref[...]) + cb4, 0.0)  # (N, H)

    # ---------------- single decoder GRU step (hidden = encoder hn) ----------
    gi = dot(gru_in, dec_wih_ref[...]) + dec_bih
    gh = dot(h, dec_whh_ref[...]) + dec_bhh
    rz = jax.nn.sigmoid(gi[:, :2 * H] + gh[:, :2 * H])
    r = rz[:, :H]
    z = rz[:, H:2 * H]
    n = jnp.tanh(gi[:, 2 * H:] + r * gh[:, 2 * H:])
    h_new = (1.0 - z) * n + z * h

    out_ref[...] = dot(h_new, oW_ref[...]) + out_b         # (N, O)


# ----------------------------------------------------------------------------
# One-time parameter packing (fold weights, pack biases).  Done OUTSIDE the
# forward so the forward is one pallas_call plus a tiny input transpose.
# ----------------------------------------------------------------------------
def pack_params(p, *, use_bf16_mxu=False):
    H = p['enc_whh_t'].shape[0]

    def row(v):
        v = jnp.asarray(v, jnp.float32).reshape(-1)
        return jnp.pad(v, (0, BIAS_ROW_W - v.shape[0]))

    bias_pack = jnp.stack([
        row(p['enc_bih']), row(p['enc_bhh']),
        row(p['attn_b1']), row(p['attn_b2']), row(p['attn_b3']), row(p['attn_b4']),
        row(p['comb_b1']), row(p['comb_b2']), row(p['comb_b3']), row(p['comb_b4']),
        row(p['bn_gamma']), row(p['bn_beta']),
        row(p['dec_bih']), row(p['dec_bhh']),
        row(p['out_b']), jnp.zeros((BIAS_ROW_W,), jnp.float32),
    ], axis=0)                                             # (16, 512)

    # cat(h, h, status) @ W1  ==  cat(h, status) @ [W1[:H]+W1[H:2H] ; W1[2H:]]
    aW1 = jnp.concatenate([p['attn_W1_t'][:H] + p['attn_W1_t'][H:2 * H],
                           p['attn_W1_t'][2 * H:]], axis=0)

    # Optional bf16 for the four large middle MLP weights only (~3 MB of the
    # 3.5 MB).  BN-adjacent cW1, the softmax-logits layer aW4, the first layers
    # and all GRU weights stay f32 so the tight numeric check holds.
    mid_dt = jnp.bfloat16 if use_bf16_mxu else jnp.float32
    mid = lambda w: w.astype(mid_dt)

    packed = {
        'enc_wih_t': p['enc_wih_t'], 'enc_whh_t': p['enc_whh_t'],
        'aW1': aW1, 'aW2': mid(p['attn_W2_t']),
        'aW3': mid(p['attn_W3_t']), 'aW4': p['attn_W4_t'],
        'cW1': p['comb_W1_t'], 'cW2': mid(p['comb_W2_t']),
        'cW3': mid(p['comb_W3_t']), 'cW4': p['comb_W4_t'],
        'dec_wih_t': p['dec_wih_t'], 'dec_whh_t': p['dec_whh_t'],
        'out_W_t': p['out_W_t'], 'bias_pack': bias_pack,
    }
    return jax.tree_util.tree_map(jax.device_put, packed)


# ----------------------------------------------------------------------------
# Forward over a batch of B independent instances:
#   enc_in: (B, N, T, D),  status: (B, N, S)  ->  out: (B, N, O)
# Weights are DMA'd once per call (resident blocks); instances are a "parallel"
# grid axis (v7x megacore splits it across the two TensorCores).
# ----------------------------------------------------------------------------
def attention_time_series(enc_in, status, packed):
    B, N, T, D = enc_in.shape
    S = status.shape[2]
    O = packed['out_W_t'].shape[1]

    # time-major + pre-flattened input-projection operand: (B, T*N, D)
    x_tm = jnp.swapaxes(enc_in, 1, 2).reshape(B, T * N, D)

    weights = [packed['enc_wih_t'], packed['enc_whh_t'],
               packed['aW1'], packed['aW2'], packed['aW3'], packed['aW4'],
               packed['cW1'], packed['cW2'], packed['cW3'], packed['cW4'],
               packed['dec_wih_t'], packed['dec_whh_t'], packed['out_W_t'],
               packed['bias_pack']]

    def resident(w):
        # Constant block index across the instance grid axis => the weight is
        # fetched HBM->VMEM once per call and reused by every grid step.
        return pl.BlockSpec(w.shape, lambda b: (0, 0))

    in_specs = ([pl.BlockSpec((None, T * N, D), lambda b: (b, 0, 0)),
                 pl.BlockSpec((None, N, S), lambda b: (b, 0, 0))]
                + [resident(w) for w in weights])

    return pl.pallas_call(
        fused_kernel,
        out_shape=jax.ShapeDtypeStruct((B, N, O), jnp.float32),
        grid=(B,),
        in_specs=in_specs,
        out_specs=pl.BlockSpec((None, N, O), lambda b: (b, 0, 0)),
        compiler_params=pltpu.CompilerParams(
            dimension_semantics=("parallel",)),
    )(x_tm, status, *weights)


# ----------------------------------------------------------------------------
# Pure-JAX reference (mirrors the PyTorch forward exactly) for validation.
# ----------------------------------------------------------------------------
def _gru_cell(h, x, wih_t, whh_t, bih, bhh):
    H = h.shape[1]
    gi = x @ wih_t + bih
    gh = h @ whh_t + bhh
    r = jax.nn.sigmoid(gi[:, :H] + gh[:, :H])
    z = jax.nn.sigmoid(gi[:, H:2 * H] + gh[:, H:2 * H])
    n = jnp.tanh(gi[:, 2 * H:] + r * gh[:, 2 * H:])
    return (1.0 - z) * n + z * h


def reference_forward(enc_in, status, p):
    N = enc_in.shape[0]
    H = p['enc_whh_t'].shape[0]
    h0 = jnp.zeros((N, H), jnp.float32)

    def step(h, x):
        h = _gru_cell(h, x, p['enc_wih_t'], p['enc_whh_t'], p['enc_bih'], p['enc_bhh'])
        return h, h

    h_last, _ = jax.lax.scan(step, h0, jnp.transpose(enc_in, (1, 0, 2)))

    def leaky(x):
        return jnp.where(x > 0, x, 0.5 * x)

    concat_vec = jnp.concatenate([h_last, h_last, status], axis=1)
    a = leaky(concat_vec @ p['attn_W1_t'] + p['attn_b1'])
    a = leaky(a @ p['attn_W2_t'] + p['attn_b2'])
    a = leaky(a @ p['attn_W3_t'] + p['attn_b3'])
    attn_w = jax.nn.softmax(a @ p['attn_W4_t'] + p['attn_b4'], axis=1)
    applied = attn_w * h_last

    cat = jnp.concatenate([h_last, applied], axis=1)
    mu = jnp.mean(cat, axis=0, keepdims=True)
    var = jnp.mean((cat - mu) ** 2, axis=0, keepdims=True)
    norm = (cat - mu) / jnp.sqrt(var + 1e-5) * p['bn_gamma'] + p['bn_beta']

    c = leaky(norm @ p['comb_W1_t'] + p['comb_b1'])
    c = leaky(c @ p['comb_W2_t'] + p['comb_b2'])
    c = leaky(c @ p['comb_W3_t'] + p['comb_b3'])
    comb = c @ p['comb_W4_t'] + p['comb_b4']
    gru_in = jnp.maximum(comb, 0.0)

    h_new = _gru_cell(h_last, gru_in, p['dec_wih_t'], p['dec_whh_t'],
                      p['dec_bih'], p['dec_bhh'])
    return h_new @ p['out_W_t'] + p['out_b']


# ----------------------------------------------------------------------------
# Deterministic parameter init (PyTorch-style uniform bounds, synthetic values).
# ----------------------------------------------------------------------------
def _linear(key, fan_in, fan_out):
    k1, k2 = jax.random.split(key)
    bound = 1.0 / (fan_in ** 0.5)
    w_t = jax.random.uniform(k1, (fan_in, fan_out), jnp.float32, -bound, bound)
    b = jax.random.uniform(k2, (1, fan_out), jnp.float32, -bound, bound)
    return w_t, b


def make_params(key, hiddenSize, inputSize, outputSize, statusSize):
    H, D, O, S = hiddenSize, inputSize, outputSize, statusSize
    keys = jax.random.split(key, 20)
    p = {}
    b = 1.0 / (H ** 0.5)
    # encoder GRU
    p['enc_wih_t'] = jax.random.uniform(keys[0], (D, 3 * H), jnp.float32, -b, b)
    p['enc_whh_t'] = jax.random.uniform(keys[1], (H, 3 * H), jnp.float32, -b, b)
    p['enc_bih'] = jax.random.uniform(keys[2], (1, 3 * H), jnp.float32, -b, b)
    p['enc_bhh'] = jax.random.uniform(keys[3], (1, 3 * H), jnp.float32, -b, b)
    # attn MLP: (2H+S) -> 512 -> 512 -> 256 -> H
    p['attn_W1_t'], p['attn_b1'] = _linear(keys[4], 2 * H + S, 512)
    p['attn_W2_t'], p['attn_b2'] = _linear(keys[5], 512, 512)
    p['attn_W3_t'], p['attn_b3'] = _linear(keys[6], 512, 256)
    p['attn_W4_t'], p['attn_b4'] = _linear(keys[7], 256, H)
    # attn_combine MLP: 2H -> 512 -> 512 -> 256 -> H
    p['comb_W1_t'], p['comb_b1'] = _linear(keys[8], 2 * H, 512)
    p['comb_W2_t'], p['comb_b2'] = _linear(keys[9], 512, 512)
    p['comb_W3_t'], p['comb_b3'] = _linear(keys[10], 512, 256)
    p['comb_W4_t'], p['comb_b4'] = _linear(keys[11], 256, H)
    # BatchNorm1d(2H) affine params (perturbed from default 1/0 to exercise math)
    p['bn_gamma'] = 1.0 + 0.1 * jax.random.normal(keys[12], (1, 2 * H), jnp.float32)
    p['bn_beta'] = 0.1 * jax.random.normal(keys[13], (1, 2 * H), jnp.float32)
    # decoder GRU
    p['dec_wih_t'] = jax.random.uniform(keys[14], (H, 3 * H), jnp.float32, -b, b)
    p['dec_whh_t'] = jax.random.uniform(keys[15], (H, 3 * H), jnp.float32, -b, b)
    p['dec_bih'] = jax.random.uniform(keys[16], (1, 3 * H), jnp.float32, -b, b)
    p['dec_bhh'] = jax.random.uniform(keys[17], (1, 3 * H), jnp.float32, -b, b)
    # output linear
    p['out_W_t'], p['out_b'] = _linear(keys[18], H, O)
    return p


if __name__ == "__main__":
    hiddenSize, inputSize, seqLen = 32, 8, 8
    batchSize, outputSize, statusSize = 2, 4, 2
    T = seqLen * 2                      # encoderInput is (N, L*2, H_in)
    B = 4                               # independent instances per pallas_call

    key = jax.random.PRNGKey(0)
    kp, kx, ks = jax.random.split(key, 3)
    params = make_params(kp, hiddenSize, inputSize, outputSize, statusSize)
    # use_bf16_mxu=True halves the bytes of the four big MLP weights on
    # v5e/v6e/v7x; kept off here to hold the tight 1e-3 numeric check.
    packed = pack_params(params, use_bf16_mxu=False)

    encoder_input = jax.random.normal(kx, (B, batchSize, T, inputSize), jnp.float32)
    status = jax.random.normal(ks, (B, batchSize, statusSize), jnp.float32)

    out = attention_time_series(encoder_input, status, packed)
    out = jax.block_until_ready(out)

    ref = jax.vmap(reference_forward, in_axes=(0, 0, None))(
        encoder_input, status, params)
    assert out.shape == (B, batchSize, outputSize)
    assert jnp.allclose(out, ref, rtol=1e-3, atol=1e-3), (out, ref)

    print("KERNEL_OK")
</pallas_src>

<mosaic_0001>
module attributes {stable_mosaic.version = 11 : i64} {
  func.func @fused_kernel(%arg0: i32, %arg1: memref<1x32x8xf32, #tpu.memory_space<vmem>>, %arg2: memref<1x2x2xf32, #tpu.memory_space<vmem>>, %arg3: memref<8x96xf32, #tpu.memory_space<vmem>>, %arg4: memref<32x96xf32, #tpu.memory_space<vmem>>, %arg5: memref<34x512xf32, #tpu.memory_space<vmem>>, %arg6: memref<512x512xf32, #tpu.memory_space<vmem>>, %arg7: memref<512x256xf32, #tpu.memory_space<vmem>>, %arg8: memref<256x32xf32, #tpu.memory_space<vmem>>, %arg9: memref<64x512xf32, #tpu.memory_space<vmem>>, %arg10: memref<512x512xf32, #tpu.memory_space<vmem>>, %arg11: memref<512x256xf32, #tpu.memory_space<vmem>>, %arg12: memref<256x32xf32, #tpu.memory_space<vmem>>, %arg13: memref<32x96xf32, #tpu.memory_space<vmem>>, %arg14: memref<32x96xf32, #tpu.memory_space<vmem>>, %arg15: memref<32x4xf32, #tpu.memory_space<vmem>>, %arg16: memref<16x512xf32, #tpu.memory_space<vmem>>, %arg17: memref<1x2x4xf32, #tpu.memory_space<vmem>>) attributes {dimension_semantics = [#tpu.dimension_semantics<parallel>], iteration_bounds = array<i64: 4>, scalar_prefetch = 0 : i64, scratch_operands = 0 : i64, tpu.core_type = #tpu.core_type<tc>, window_params = [{transform_indices = @transform_0, window_bounds = array<i64: 1, 32, 8>}, {transform_indices = @transform_1, window_bounds = array<i64: 1, 2, 2>}, {pipeline_mode = #tpu.pipeline_mode<synchronous>, transform_indices = @transform_2, window_bounds = array<i64: 8, 96>}, {pipeline_mode = #tpu.pipeline_mode<synchronous>, transform_indices = @transform_3, window_bounds = array<i64: 32, 96>}, {pipeline_mode = #tpu.pipeline_mode<synchronous>, transform_indices = @transform_4, window_bounds = array<i64: 34, 512>}, {pipeline_mode = #tpu.pipeline_mode<synchronous>, transform_indices = @transform_5, window_bounds = array<i64: 512, 512>}, {pipeline_mode = #tpu.pipeline_mode<synchronous>, transform_indices = @transform_6, window_bounds = array<i64: 512, 256>}, {pipeline_mode = #tpu.pipeline_mode<synchronous>, transform_indices = @transform_7, window_bounds = array<i64: 256, 32>}, {pipeline_mode = #tpu.pipeline_mode<synchronous>, transform_indices = @transform_8, window_bounds = array<i64: 64, 512>}, {pipeline_mode = #tpu.pipeline_mode<synchronous>, transform_indices = @transform_9, window_bounds = array<i64: 512, 512>}, {pipeline_mode = #tpu.pipeline_mode<synchronous>, transform_indices = @transform_10, window_bounds = array<i64: 512, 256>}, {pipeline_mode = #tpu.pipeline_mode<synchronous>, transform_indices = @transform_11, window_bounds = array<i64: 256, 32>}, {pipeline_mode = #tpu.pipeline_mode<synchronous>, transform_indices = @transform_12, window_bounds = array<i64: 32, 96>}, {pipeline_mode = #tpu.pipeline_mode<synchronous>, transform_indices = @transform_13, window_bounds = array<i64: 32, 96>}, {pipeline_mode = #tpu.pipeline_mode<synchronous>, transform_indices = @transform_14, window_bounds = array<i64: 32, 4>}, {pipeline_mode = #tpu.pipeline_mode<synchronous>, transform_indices = @transform_15, window_bounds = array<i64: 16, 512>}, {transform_indices = @transform_16, window_bounds = array<i64: 1, 2, 4>}]} {
    %c0 = arith.constant 0 : index
    %c0_0 = arith.constant 0 : index
    %0 = vector.load %arg16[%c0, %c0_0] : memref<16x512xf32, #tpu.memory_space<vmem>>, vector<16x512xf32>
    %1 = vector.extract_strided_slice %0 {offsets = [0, 0], sizes = [1, 96], strides = [1, 1]} : vector<16x512xf32> to vector<1x96xf32>
    %2 = vector.extract_strided_slice %0 {offsets = [1, 0], sizes = [1, 96], strides = [1, 1]} : vector<16x512xf32> to vector<1x96xf32>
    %3 = vector.extract_strided_slice %0 {offsets = [2, 0], sizes = [1, 512], strides = [1, 1]} : vector<16x512xf32> to vector<1x512xf32>
    %4 = vector.extract_strided_slice %0 {offsets = [3, 0], sizes = [1, 512], strides = [1, 1]} : vector<16x512xf32> to vector<1x512xf32>
    %5 = vector.extract_strided_slice %0 {offsets = [4, 0], sizes = [1, 256], strides = [1, 1]} : vector<16x512xf32> to vector<1x256xf32>
    %6 = vector.extract_strided_slice %0 {offsets = [5, 0], sizes = [1, 32], strides = [1, 1]} : vector<16x512xf32> to vector<1x32xf32>
    %7 = vector.extract_strided_slice %0 {offsets = [6, 0], sizes = [1, 512], strides = [1, 1]} : vector<16x512xf32> to vector<1x512xf32>
    %8 = vector.extract_strided_slice %0 {offsets = [7, 0], sizes = [1, 512], strides = [1, 1]} : vector<16x512xf32> to vector<1x512xf32>
    %9 = vector.extract_strided_slice %0 {offsets = [8, 0], sizes = [1, 256], strides = [1, 1]} : vector<16x512xf32> to vector<1x256xf32>
    %10 = vector.extract_strided_slice %0 {offsets = [9, 0], sizes = [1, 32], strides = [1, 1]} : vector<16x512xf32> to vector<1x32xf32>
    %11 = vector.extract_strided_slice %0 {offsets = [10, 0], sizes = [1, 64], strides = [1, 1]} : vector<16x512xf32> to vector<1x64xf32>
    %12 = vector.extract_strided_slice %0 {offsets = [11, 0], sizes = [1, 64], strides = [1, 1]} : vector<16x512xf32> to vector<1x64xf32>
    %13 = vector.extract_strided_slice %0 {offsets = [12, 0], sizes = [1, 96], strides = [1, 1]} : vector<16x512xf32> to vector<1x96xf32>
    %14 = vector.extract_strided_slice %0 {offsets = [13, 0], sizes = [1, 96], strides = [1, 1]} : vector<16x512xf32> to vector<1x96xf32>
    %15 = vector.extract_strided_slice %0 {offsets = [14, 0], sizes = [1, 4], strides = [1, 1]} : vector<16x512xf32> to vector<1x4xf32>
    %c0_1 = arith.constant 0 : index
    %c0_2 = arith.constant 0 : index
    %c0_3 = arith.constant 0 : index
    %16 = vector.load %arg1[%c0_1, %c0_2, %c0_3] : memref<1x32x8xf32, #tpu.memory_space<vmem>>, vector<1x32x8xf32>
    %17 = vector.shape_cast %16 : vector<1x32x8xf32> to vector<32x8xf32>
    %c0_4 = arith.constant 0 : index
    %c0_5 = arith.constant 0 : index
    %18 = vector.load %arg3[%c0_4, %c0_5] : memref<8x96xf32, #tpu.memory_space<vmem>>, vector<8x96xf32>
    %cst = arith.constant dense<0.000000e+00> : vector<32x96xf32>
    %19 = tpu.matmul %17, %18, %cst {dimension_numbers = #tpu.dot_dimension_numbers<[1], [0], [0], [1], [0, 0, 1, 1], [], []>} : vector<32x8xf32>, vector<8x96xf32>, vector<32x96xf32> -> vector<32x96xf32>
    %20 = vector.broadcast %1 : vector<1x96xf32> to vector<32x96xf32>
    %21 = arith.addf %19, %20 : vector<32x96xf32>
    %c0_6 = arith.constant 0 : index
    %c0_7 = arith.constant 0 : index
    %22 = vector.load %arg4[%c0_6, %c0_7] : memref<32x96xf32, #tpu.memory_space<vmem>>, vector<32x96xf32>
    %cst_8 = arith.constant 0.000000e+00 : f32
    %23 = vector.broadcast %cst_8 : f32 to vector<2x32xf32>
    %24 = vector.extract_strided_slice %21 {offsets = [0, 0], sizes = [2, 96], strides = [1, 1]} : vector<32x96xf32> to vector<2x96xf32>
    %cst_9 = arith.constant dense<0.000000e+00> : vector<2x96xf32>
    %25 = tpu.matmul %23, %22, %cst_9 {dimension_numbers = #tpu.dot_dimension_numbers<[1], [0], [0], [1], [0, 0, 1, 1], [], []>} : vector<2x32xf32>, vector<32x96xf32>, vector<2x96xf32> -> vector<2x96xf32>
    %26 = vector.broadcast %2 : vector<1x96xf32> to vector<2x96xf32>
    %27 = arith.addf %25, %26 : vector<2x96xf32>
    %28 = vector.extract_strided_slice %24 {offsets = [0, 0], sizes = [2, 64], strides = [1, 1]} : vector<2x96xf32> to vector<2x64xf32>
    %29 = vector.extract_strided_slice %27 {offsets = [0, 0], sizes = [2, 64], strides = [1, 1]} : vector<2x96xf32> to vector<2x64xf32>
    %30 = arith.addf %28, %29 : vector<2x64xf32>
    %31 = arith.negf %30 : vector<2x64xf32>
    %32 = math.exp %31 : vector<2x64xf32>
    %cst_10 = arith.constant 1.000000e+00 : f32
    %33 = vector.broadcast %cst_10 : f32 to vector<2x64xf32>
    %34 = arith.addf %33, %32 : vector<2x64xf32>
    %35 = arith.divf %33, %34 : vector<2x64xf32>
    %36 = vector.extract_strided_slice %35 {offsets = [0, 0], sizes = [2, 32], strides = [1, 1]} : vector<2x64xf32> to vector<2x32xf32>
    %37 = vector.extract_strided_slice %35 {offsets = [0, 32], sizes = [2, 32], strides = [1, 1]} : vector<2x64xf32> to vector<2x32xf32>
    %38 = vector.extract_strided_slice %24 {offsets = [0, 64], sizes = [2, 32], strides = [1, 1]} : vector<2x96xf32> to vector<2x32xf32>
    %39 = vector.extract_strided_slice %27 {offsets = [0, 64], sizes = [2, 32], strides = [1, 1]} : vector<2x96xf32> to vector<2x32xf32>
    %40 = arith.mulf %36, %39 : vector<2x32xf32>
    %41 = arith.addf %38, %40 : vector<2x32xf32>
    %42 = math.tanh %41 : vector<2x32xf32>
    %cst_11 = arith.constant 1.000000e+00 : f32
    %43 = vector.broadcast %cst_11 : f32 to vector<2x32xf32>
    %44 = arith.subf %43, %37 : vector<2x32xf32>
    %45 = arith.mulf %44, %42 : vector<2x32xf32>
    %46 = arith.mulf %37, %23 : vector<2x32xf32>
    %47 = arith.addf %45, %46 : vector<2x32xf32>
    %48 = vector.extract_strided_slice %21 {offsets = [2, 0], sizes = [2, 96], strides = [1, 1]} : vector<32x96xf32> to vector<2x96xf32>
    %cst_12 = arith.constant dense<0.000000e+00> : vector<2x96xf32>
    %49 = tpu.matmul %47, %22, %cst_12 {dimension_numbers = #tpu.dot_dimension_numbers<[1], [0], [0], [1], [0, 0, 1, 1], [], []>} : vector<2x32xf32>, vector<32x96xf32>, vector<2x96xf32> -> vector<2x96xf32>
    %50 = vector.broadcast %2 : vector<1x96xf32> to vector<2x96xf32>
    %51 = arith.addf %49, %50 : vector<2x96xf32>
    %52 = vector.extract_strided_slice %48 {offsets = [0, 0], sizes = [2, 64], strides = [1, 1]} : vector<2x96xf32> to vector<2x64xf32>
    %53 = vector.extract_strided_slice %51 {offsets = [0, 0], sizes = [2, 64], strides = [1, 1]} : vector<2x96xf32> to vector<2x64xf32>
    %54 = arith.addf %52, %53 : vector<2x64xf32>
    %55 = arith.negf %54 : vector<2x64xf32>
    %56 = math.exp %55 : vector<2x64xf32>
    %cst_13 = arith.constant 1.000000e+00 : f32
    %57 = vector.broadcast %cst_13 : f32 to vector<2x64xf32>
    %58 = arith.addf %57, %56 : vector<2x64xf32>
    %59 = arith.divf %57, %58 : vector<2x64xf32>
    %60 = vector.extract_strided_slice %59 {offsets = [0, 0], sizes = [2, 32], strides = [1, 1]} : vector<2x64xf32> to vector<2x32xf32>
    %61 = vector.extract_strided_slice %59 {offsets = [0, 32], sizes = [2, 32], strides = [1, 1]} : vector<2x64xf32> to vector<2x32xf32>
    %62 = vector.extract_strided_slice %48 {offsets = [0, 64], sizes = [2, 32], strides = [1, 1]} : vector<2x96xf32> to vector<2x32xf32>
    %63 = vector.extract_strided_slice %51 {offsets = [0, 64], sizes = [2, 32], strides = [1, 1]} : vector<2x96xf32> to vector<2x32xf32>
    %64 = arith.mulf %60, %63 : vector<2x32xf32>
    %65 = arith.addf %62, %64 : vector<2x32xf32>
    %66 = math.tanh %65 : vector<2x32xf32>
    %cst_14 = arith.constant 1.000000e+00 : f32
    %67 = vector.broadcast %cst_14 : f32 to vector<2x32xf32>
    %68 = arith.subf %67, %61 : vector<2x32xf32>
    %69 = arith.mulf %68, %66 : vector<2x32xf32>
    %70 = arith.mulf %61, %47 : vector<2x32xf32>
    %71 = arith.addf %69, %70 : vector<2x32xf32>
    %72 = vector.extract_strided_slice %21 {offsets = [4, 0], sizes = [2, 96], strides = [1, 1]} : vector<32x96xf32> to vector<2x96xf32>
    %cst_15 = arith.constant dense<0.000000e+00> : vector<2x96xf32>
    %73 = tpu.matmul %71, %22, %cst_15 {dimension_numbers = #tpu.dot_dimension_numbers<[1], [0], [0], [1], [0, 0, 1, 1], [], []>} : vector<2x32xf32>, vector<32x96xf32>, vector<2x96xf32> -> vector<2x96xf32>
    %74 = vector.broadcast %2 : vector<1x96xf32> to vector<2x96xf32>
    %75 = arith.addf %73, %74 : vector<2x96xf32>
    %76 = vector.extract_strided_slice %72 {offsets = [0, 0], sizes = [2, 64], strides = [1, 1]} : vector<2x96xf32> to vector<2x64xf32>
    %77 = vector.extract_strided_slice %75 {offsets = [0, 0], sizes = [2, 64], strides = [1, 1]} : vector<2x96xf32> to vector<2x64xf32>
    %78 = arith.addf %76, %77 : vector<2x64xf32>
    %79 = arith.negf %78 : vector<2x64xf32>
    %80 = math.exp %79 : vector<2x64xf32>
    %cst_16 = arith.constant 1.000000e+00 : f32
    %81 = vector.broadcast %cst_16 : f32 to vector<2x64xf32>
    %82 = arith.addf %81, %80 : vector<2x64xf32>
    %83 = arith.divf %81, %82 : vector<2x64xf32>
    %84 = vector.extract_strided_slice %83 {offsets = [0, 0], sizes = [2, 32], strides = [1, 1]} : vector<2x64xf32> to vector<2x32xf32>
    %85 = vector.extract_strided_slice %83 {offsets = [0, 32], sizes = [2, 32], strides = [1, 1]} : vector<2x64xf32> to vector<2x32xf32>
    %86 = vector.extract_strided_slice %72 {offsets = [0, 64], sizes = [2, 32], strides = [1, 1]} : vector<2x96xf32> to vector<2x32xf32>
    %87 = vector.extract_strided_slice %75 {offsets = [0, 64], sizes = [2, 32], strides = [1, 1]} : vector<2x96xf32> to vector<2x32xf32>
    %88 = arith.mulf %84, %87 : vector<2x32xf32>
    %89 = arith.addf %86, %88 : vector<2x32xf32>
    %90 = math.tanh %89 : vector<2x32xf32>
    %cst_17 = arith.constant 1.000000e+00 : f32
    %91 = vector.broadcast %cst_17 : f32 to vector<2x32xf32>
    %92 = arith.subf %91, %85 : vector<2x32xf32>
    %93 = arith.mulf %92, %90 : vector<2x32xf32>
    %94 = arith.mulf %85, %71 : vector<2x32xf32>
    %95 = arith.addf %93, %94 : vector<2x32xf32>
    %96 = vector.extract_strided_slice %21 {offsets = [6, 0], sizes = [2, 96], strides = [1, 1]} : vector<32x96xf32> to vector<2x96xf32>
    %cst_18 = arith.constant dense<0.000000e+00> : vector<2x96xf32>
    %97 = tpu.matmul %95, %22, %cst_18 {dimension_numbers = #tpu.dot_dimension_numbers<[1], [0], [0], [1], [0, 0, 1, 1], [], []>} : vector<2x32xf32>, vector<32x96xf32>, vector<2x96xf32> -> vector<2x96xf32>
    %98 = vector.broadcast %2 : vector<1x96xf32> to vector<2x96xf32>
    %99 = arith.addf %97, %98 : vector<2x96xf32>
    %100 = vector.extract_strided_slice %96 {offsets = [0, 0], sizes = [2, 64], strides = [1, 1]} : vector<2x96xf32> to vector<2x64xf32>
    %101 = vector.extract_strided_slice %99 {offsets = [0, 0], sizes = [2, 64], strides = [1, 1]} : vector<2x96xf32> to vector<2x64xf32>
    %102 = arith.addf %100, %101 : vector<2x64xf32>
    %103 = arith.negf %102 : vector<2x64xf32>
    %104 = math.exp %103 : vector<2x64xf32>
    %cst_19 = arith.constant 1.000000e+00 : f32
    %105 = vector.broadcast %cst_19 : f32 to vector<2x64xf32>
    %106 = arith.addf %105, %104 : vector<2x64xf32>
    %107 = arith.divf %105, %106 : vector<2x64xf32>
    %108 = vector.extract_strided_slice %107 {offsets = [0, 0], sizes = [2, 32], strides = [1, 1]} : vector<2x64xf32> to vector<2x32xf32>
    %109 = vector.extract_strided_slice %107 {offsets = [0, 32], sizes = [2, 32], strides = [1, 1]} : vector<2x64xf32> to vector<2x32xf32>
    %110 = vector.extract_strided_slice %96 {offsets = [0, 64], sizes = [2, 32], strides = [1, 1]} : vector<2x96xf32> to vector<2x32xf32>
    %111 = vector.extract_strided_slice %99 {offsets = [0, 64], sizes = [2, 32], strides = [1, 1]} : vector<2x96xf32> to vector<2x32xf32>
    %112 = arith.mulf %108, %111 : vector<2x32xf32>
    %113 = arith.addf %110, %112 : vector<2x32xf32>
    %114 = math.tanh %113 : vector<2x32xf32>
    %cst_20 = arith.constant 1.000000e+00 : f32
    %115 = vector.broadcast %cst_20 : f32 to vector<2x32xf32>
    %116 = arith.subf %115, %109 : vector<2x32xf32>
    %117 = arith.mulf %116, %114 : vector<2x32xf32>
    %118 = arith.mulf %109, %95 : vector<2x32xf32>
    %119 = arith.addf %117, %118 : vector<2x32xf32>
    %120 = vector.extract_strided_slice %21 {offsets = [8, 0], sizes = [2, 96], strides = [1, 1]} : vector<32x96xf32> to vector<2x96xf32>
    %cst_21 = arith.constant dense<0.000000e+00> : vector<2x96xf32>
    %121 = tpu.matmul %119, %22, %cst_21 {dimension_numbers = #tpu.dot_dimension_numbers<[1], [0], [0], [1], [0, 0, 1, 1], [], []>} : vector<2x32xf32>, vector<32x96xf32>, vector<2x96xf32> -> vector<2x96xf32>
    %122 = vector.broadcast %2 : vector<1x96xf32> to vector<2x96xf32>
    %123 = arith.addf %121, %122 : vector<2x96xf32>
    %124 = vector.extract_strided_slice %120 {offsets = [0, 0], sizes = [2, 64], strides = [1, 1]} : vector<2x96xf32> to vector<2x64xf32>
    %125 = vector.extract_strided_slice %123 {offsets = [0, 0], sizes = [2, 64], strides = [1, 1]} : vector<2x96xf32> to vector<2x64xf32>
    %126 = arith.addf %124, %125 : vector<2x64xf32>
    %127 = arith.negf %126 : vector<2x64xf32>
    %128 = math.exp %127 : vector<2x64xf32>
    %cst_22 = arith.constant 1.000000e+00 : f32
    %129 = vector.broadcast %cst_22 : f32 to vector<2x64xf32>
    %130 = arith.addf %129, %128 : vector<2x64xf32>
    %131 = arith.divf %129, %130 : vector<2x64xf32>
    %132 = vector.extract_strided_slice %131 {offsets = [0, 0], sizes = [2, 32], strides = [1, 1]} : vector<2x64xf32> to vector<2x32xf32>
    %133 = vector.extract_strided_slice %131 {offsets = [0, 32], sizes = [2, 32], strides = [1, 1]} : vector<2x64xf32> to vector<2x32xf32>
    %134 = vector.extract_strided_slice %120 {offsets = [0, 64], sizes = [2, 32], strides = [1, 1]} : vector<2x96xf32> to vector<2x32xf32>
    %135 = vector.extract_strided_slice %123 {offsets = [0, 64], sizes = [2, 32], strides = [1, 1]} : vector<2x96xf32> to vector<2x32xf32>
    %136 = arith.mulf %132, %135 : vector<2x32xf32>
    %137 = arith.addf %134, %136 : vector<2x32xf32>
    %138 = math.tanh %137 : vector<2x32xf32>
    %cst_23 = arith.constant 1.000000e+00 : f32
    %139 = vector.broadcast %cst_23 : f32 to vector<2x32xf32>
    %140 = arith.subf %139, %133 : vector<2x32xf32>
    %141 = arith.mulf %140, %138 : vector<2x32xf32>
    %142 = arith.mulf %133, %119 : vector<2x32xf32>
    %143 = arith.addf %141, %142 : vector<2x32xf32>
    %144 = vector.extract_strided_slice %21 {offsets = [10, 0], sizes = [2, 96], strides = [1, 1]} : vector<32x96xf32> to vector<2x96xf32>
    %cst_24 = arith.constant dense<0.000000e+00> : vector<2x96xf32>
    %145 = tpu.matmul %143, %22, %cst_24 {dimension_numbers = #tpu.dot_dimension_numbers<[1], [0], [0], [1], [0, 0, 1, 1], [], []>} : vector<2x32xf32>, vector<32x96xf32>, vector<2x96xf32> -> vector<2x96xf32>
    %146 = vector.broadcast %2 : vector<1x96xf32> to vector<2x96xf32>
    %147 = arith.addf %145, %146 : vector<2x96xf32>
    %148 = vector.extract_strided_slice %144 {offsets = [0, 0], sizes = [2, 64], strides = [1, 1]} : vector<2x96xf32> to vector<2x64xf32>
    %149 = vector.extract_strided_slice %147 {offsets = [0, 0], sizes = [2, 64], strides = [1, 1]} : vector<2x96xf32> to vector<2x64xf32>
    %150 = arith.addf %148, %149 : vector<2x64xf32>
    %151 = arith.negf %150 : vector<2x64xf32>
    %152 = math.exp %151 : vector<2x64xf32>
    %cst_25 = arith.constant 1.000000e+00 : f32
    %153 = vector.broadcast %cst_25 : f32 to vector<2x64xf32>
    %154 = arith.addf %153, %152 : vector<2x64xf32>
    %155 = arith.divf %153, %154 : vector<2x64xf32>
    %156 = vector.extract_strided_slice %155 {offsets = [0, 0], sizes = [2, 32], strides = [1, 1]} : vector<2x64xf32> to vector<2x32xf32>
    %157 = vector.extract_strided_slice %155 {offsets = [0, 32], sizes = [2, 32], strides = [1, 1]} : vector<2x64xf32> to vector<2x32xf32>
    %158 = vector.extract_strided_slice %144 {offsets = [0, 64], sizes = [2, 32], strides = [1, 1]} : vector<2x96xf32> to vector<2x32xf32>
    %159 = vector.extract_strided_slice %147 {offsets = [0, 64], sizes = [2, 32], strides = [1, 1]} : vector<2x96xf32> to vector<2x32xf32>
    %160 = arith.mulf %156, %159 : vector<2x32xf32>
    %161 = arith.addf %158, %160 : vector<2x32xf32>
    %162 = math.tanh %161 : vector<2x32xf32>
    %cst_26 = arith.constant 1.000000e+00 : f32
    %163 = vector.broadcast %cst_26 : f32 to vector<2x32xf32>
    %164 = arith.subf %163, %157 : vector<2x32xf32>
    %165 = arith.mulf %164, %162 : vector<2x32xf32>
    %166 = arith.mulf %157, %143 : vector<2x32xf32>
    %167 = arith.addf %165, %166 : vector<2x32xf32>
    %168 = vector.extract_strided_slice %21 {offsets = [12, 0], sizes = [2, 96], strides = [1, 1]} : vector<32x96xf32> to vector<2x96xf32>
    %cst_27 = arith.constant dense<0.000000e+00> : vector<2x96xf32>
    %169 = tpu.matmul %167, %22, %cst_27 {dimension_numbers = #tpu.dot_dimension_numbers<[1], [0], [0], [1], [0, 0, 1, 1], [], []>} : vector<2x32xf32>, vector<32x96xf32>, vector<2x96xf32> -> vector<2x96xf32>
    %170 = vector.broadcast %2 : vector<1x96xf32> to vector<2x96xf32>
    %171 = arith.addf %169, %170 : vector<2x96xf32>
    %172 = vector.extract_strided_slice %168 {offsets = [0, 0], sizes = [2, 64], strides = [1, 1]} : vector<2x96xf32> to vector<2x64xf32>
    %173 = vector.extract_strided_slice %171 {offsets = [0, 0], sizes = [2, 64], strides = [1, 1]} : vector<2x96xf32> to vector<2x64xf32>
    %174 = arith.addf %172, %173 : vector<2x64xf32>
    %175 = arith.negf %174 : vector<2x64xf32>
    %176 = math.exp %175 : vector<2x64xf32>
    %cst_28 = arith.constant 1.000000e+00 : f32
    %177 = vector.broadcast %cst_28 : f32 to vector<2x64xf32>
    %178 = arith.addf %177, %176 : vector<2x64xf32>
    %179 = arith.divf %177, %178 : vector<2x64xf32>
    %180 = vector.extract_strided_slice %179 {offsets = [0, 0], sizes = [2, 32], strides = [1, 1]} : vector<2x64xf32> to vector<2x32xf32>
    %181 = vector.extract_strided_slice %179 {offsets = [0, 32], sizes = [2, 32], strides = [1, 1]} : vector<2x64xf32> to vector<2x32xf32>
    %182 = vector.extract_strided_slice %168 {offsets = [0, 64], sizes = [2, 32], strides = [1, 1]} : vector<2x96xf32> to vector<2x32xf32>
    %183 = vector.extract_strided_slice %171 {offsets = [0, 64], sizes = [2, 32], strides = [1, 1]} : vector<2x96xf32> to vector<2x32xf32>
    %184 = arith.mulf %180, %183 : vector<2x32xf32>
    %185 = arith.addf %182, %184 : vector<2x32xf32>
    %186 = math.tanh %185 : vector<2x32xf32>
    %cst_29 = arith.constant 1.000000e+00 : f32
    %187 = vector.broadcast %cst_29 : f32 to vector<2x32xf32>
    %188 = arith.subf %187, %181 : vector<2x32xf32>
    %189 = arith.mulf %188, %186 : vector<2x32xf32>
    %190 = arith.mulf %181, %167 : vector<2x32xf32>
    %191 = arith.addf %189, %190 : vector<2x32xf32>
    %192 = vector.extract_strided_slice %21 {offsets = [14, 0], sizes = [2, 96], strides = [1, 1]} : vector<32x96xf32> to vector<2x96xf32>
    %cst_30 = arith.constant dense<0.000000e+00> : vector<2x96xf32>
    %193 = tpu.matmul %191, %22, %cst_30 {dimension_numbers = #tpu.dot_dimension_numbers<[1], [0], [0], [1], [0, 0, 1, 1], [], []>} : vector<2x32xf32>, vector<32x96xf32>, vector<2x96xf32> -> vector<2x96xf32>
    %194 = vector.broadcast %2 : vector<1x96xf32> to vector<2x96xf32>
    %195 = arith.addf %193, %194 : vector<2x96xf32>
    %196 = vector.extract_strided_slice %192 {offsets = [0, 0], sizes = [2, 64], strides = [1, 1]} : vector<2x96xf32> to vector<2x64xf32>
    %197 = vector.extract_strided_slice %195 {offsets = [0, 0], sizes = [2, 64], strides = [1, 1]} : vector<2x96xf32> to vector<2x64xf32>
    %198 = arith.addf %196, %197 : vector<2x64xf32>
    %199 = arith.negf %198 : vector<2x64xf32>
    %200 = math.exp %199 : vector<2x64xf32>
    %cst_31 = arith.constant 1.000000e+00 : f32
    %201 = vector.broadcast %cst_31 : f32 to vector<2x64xf32>
    %202 = arith.addf %201, %200 : vector<2x64xf32>
    %203 = arith.divf %201, %202 : vector<2x64xf32>
    %204 = vector.extract_strided_slice %203 {offsets = [0, 0], sizes = [2, 32], strides = [1, 1]} : vector<2x64xf32> to vector<2x32xf32>
    %205 = vector.extract_strided_slice %203 {offsets = [0, 32], sizes = [2, 32], strides = [1, 1]} : vector<2x64xf32> to vector<2x32xf32>
    %206 = vector.extract_strided_slice %192 {offsets = [0, 64], sizes = [2, 32], strides = [1, 1]} : vector<2x96xf32> to vector<2x32xf32>
    %207 = vector.extract_strided_slice %195 {offsets = [0, 64], sizes = [2, 32], strides = [1, 1]} : vector<2x96xf32> to vector<2x32xf32>
    %208 = arith.mulf %204, %207 : vector<2x32xf32>
    %209 = arith.addf %206, %208 : vector<2x32xf32>
    %210 = math.tanh %209 : vector<2x32xf32>
    %cst_32 = arith.constant 1.000000e+00 : f32
    %211 = vector.broadcast %cst_32 : f32 to vector<2x32xf32>
    %212 = arith.subf %211, %205 : vector<2x32xf32>
    %213 = arith.mulf %212, %210 : vector<2x32xf32>
    %214 = arith.mulf %205, %191 : vector<2x32xf32>
    %215 = arith.addf %213, %214 : vector<2x32xf32>
    %216 = vector.extract_strided_slice %21 {offsets = [16, 0], sizes = [2, 96], strides = [1, 1]} : vector<32x96xf32> to vector<2x96xf32>
    %cst_33 = arith.constant dense<0.000000e+00> : vector<2x96xf32>
    %217 = tpu.matmul %215, %22, %cst_33 {dimension_numbers = #tpu.dot_dimension_numbers<[1], [0], [0], [1], [0, 0, 1, 1], [], []>} : vector<2x32xf32>, vector<32x96xf32>, vector<2x96xf32> -> vector<2x96xf32>
    %218 = vector.broadcast %2 : vector<1x96xf32> to vector<2x96xf32>
    %219 = arith.addf %217, %218 : vector<2x96xf32>
    %220 = vector.extract_strided_slice %216 {offsets = [0, 0], sizes = [2, 64], strides = [1, 1]} : vector<2x96xf32> to vector<2x64xf32>
    %221 = vector.extract_strided_slice %219 {offsets = [0, 0], sizes = [2, 64], strides = [1, 1]} : vector<2x96xf32> to vector<2x64xf32>
    %222 = arith.addf %220, %221 : vector<2x64xf32>
    %223 = arith.negf %222 : vector<2x64xf32>
    %224 = math.exp %223 : vector<2x64xf32>
    %cst_34 = arith.constant 1.000000e+00 : f32
    %225 = vector.broadcast %cst_34 : f32 to vector<2x64xf32>
    %226 = arith.addf %225, %224 : vector<2x64xf32>
    %227 = arith.divf %225, %226 : vector<2x64xf32>
    %228 = vector.extract_strided_slice %227 {offsets = [0, 0], sizes = [2, 32], strides = [1, 1]} : vector<2x64xf32> to vector<2x32xf32>
    %229 = vector.extract_strided_slice %227 {offsets = [0, 32], sizes = [2, 32], strides = [1, 1]} : vector<2x64xf32> to vector<2x32xf32>
    %230 = vector.extract_strided_slice %216 {offsets = [0, 64], sizes = [2, 32], strides = [1, 1]} : vector<2x96xf32> to vector<2x32xf32>
    %231 = vector.extract_strided_slice %219 {offsets = [0, 64], sizes = [2, 32], strides = [1, 1]} : vector<2x96xf32> to vector<2x32xf32>
    %232 = arith.mulf %228, %231 : vector<2x32xf32>
    %233 = arith.addf %230, %232 : vector<2x32xf32>
    %234 = math.tanh %233 : vector<2x32xf32>
    %cst_35 = arith.constant 1.000000e+00 : f32
    %235 = vector.broadcast %cst_35 : f32 to vector<2x32xf32>
    %236 = arith.subf %235, %229 : vector<2x32xf32>
    %237 = arith.mulf %236, %234 : vector<2x32xf32>
    %238 = arith.mulf %229, %215 : vector<2x32xf32>
    %239 = arith.addf %237, %238 : vector<2x32xf32>
    %240 = vector.extract_strided_slice %21 {offsets = [18, 0], sizes = [2, 96], strides = [1, 1]} : vector<32x96xf32> to vector<2x96xf32>
    %cst_36 = arith.constant dense<0.000000e+00> : vector<2x96xf32>
    %241 = tpu.matmul %239, %22, %cst_36 {dimension_numbers = #tpu.dot_dimension_numbers<[1], [0], [0], [1], [0, 0, 1, 1], [], []>} : vector<2x32xf32>, vector<32x96xf32>, vector<2x96xf32> -> vector<2x96xf32>
    %242 = vector.broadcast %2 : vector<1x96xf32> to vector<2x96xf32>
    %243 = arith.addf %241, %242 : vector<2x96xf32>
    %244 = vector.extract_strided_slice %240 {offsets = [0, 0], sizes = [2, 64], strides = [1, 1]} : vector<2x96xf32> to vector<2x64xf32>
    %245 = vector.extract_strided_slice %243 {offsets = [0, 0], sizes = [2, 64], strides = [1, 1]} : vector<2x96xf32> to vector<2x64xf32>
    %246 = arith.addf %244, %245 : vector<2x64xf32>
    %247 = arith.negf %246 : vector<2x64xf32>
    %248 = math.exp %247 : vector<2x64xf32>
    %cst_37 = arith.constant 1.000000e+00 : f32
    %249 = vector.broadcast %cst_37 : f32 to vector<2x64xf32>
    %250 = arith.addf %249, %248 : vector<2x64xf32>
    %251 = arith.divf %249, %250 : vector<2x64xf32>
    %252 = vector.extract_strided_slice %251 {offsets = [0, 0], sizes = [2, 32], strides = [1, 1]} : vector<2x64xf32> to vector<2x32xf32>
    %253 = vector.extract_strided_slice %251 {offsets = [0, 32], sizes = [2, 32], strides = [1, 1]} : vector<2x64xf32> to vector<2x32xf32>
    %254 = vector.extract_strided_slice %240 {offsets = [0, 64], sizes = [2, 32], strides = [1, 1]} : vector<2x96xf32> to vector<2x32xf32>
    %255 = vector.extract_strided_slice %243 {offsets = [0, 64], sizes = [2, 32], strides = [1, 1]} : vector<2x96xf32> to vector<2x32xf32>
    %256 = arith.mulf %252, %255 : vector<2x32xf32>
    %257 = arith.addf %254, %256 : vector<2x32xf32>
    %258 = math.tanh %257 : vector<2x32xf32>
    %cst_38 = arith.constant 1.000000e+00 : f32
    %259 = vector.broadcast %cst_38 : f32 to vector<2x32xf32>
    %260 = arith.subf %259, %253 : vector<2x32xf32>
    %261 = arith.mulf %260, %258 : vector<2x32xf32>
    %262 = arith.mulf %253, %239 : vector<2x32xf32>
    %263 = arith.addf %261, %262 : vector<2x32xf32>
    %264 = vector.extract_strided_slice %21 {offsets = [20, 0], sizes = [2, 96], strides = [1, 1]} : vector<32x96xf32> to vector<2x96xf32>
    %cst_39 = arith.constant dense<0.000000e+00> : vector<2x96xf32>
    %265 = tpu.matmul %263, %22, %cst_39 {dimension_numbers = #tpu.dot_dimension_numbers<[1], [0], [0], [1], [0, 0, 1, 1], [], []>} : vector<2x32xf32>, vector<32x96xf32>, vector<2x96xf32> -> vector<2x96xf32>
    %266 = vector.broadcast %2 : vector<1x96xf32> to vector<2x96xf32>
    %267 = arith.addf %265, %266 : vector<2x96xf32>
    %268 = vector.extract_strided_slice %264 {offsets = [0, 0], sizes = [2, 64], strides = [1, 1]} : vector<2x96xf32> to vector<2x64xf32>
    %269 = vector.extract_strided_slice %267 {offsets = [0, 0], sizes = [2, 64], strides = [1, 1]} : vector<2x96xf32> to vector<2x64xf32>
    %270 = arith.addf %268, %269 : vector<2x64xf32>
    %271 = arith.negf %270 : vector<2x64xf32>
    %272 = math.exp %271 : vector<2x64xf32>
    %cst_40 = arith.constant 1.000000e+00 : f32
    %273 = vector.broadcast %cst_40 : f32 to vector<2x64xf32>
    %274 = arith.addf %273, %272 : vector<2x64xf32>
    %275 = arith.divf %273, %274 : vector<2x64xf32>
    %276 = vector.extract_strided_slice %275 {offsets = [0, 0], sizes = [2, 32], strides = [1, 1]} : vector<2x64xf32> to vector<2x32xf32>
    %277 = vector.extract_strided_slice %275 {offsets = [0, 32], sizes = [2, 32], strides = [1, 1]} : vector<2x64xf32> to vector<2x32xf32>
    %278 = vector.extract_strided_slice %264 {offsets = [0, 64], sizes = [2, 32], strides = [1, 1]} : vector<2x96xf32> to vector<2x32xf32>
    %279 = vector.extract_strided_slice %267 {offsets = [0, 64], sizes = [2, 32], strides = [1, 1]} : vector<2x96xf32> to vector<2x32xf32>
    %280 = arith.mulf %276, %279 : vector<2x32xf32>
    %281 = arith.addf %278, %280 : vector<2x32xf32>
    %282 = math.tanh %281 : vector<2x32xf32>
    %cst_41 = arith.constant 1.000000e+00 : f32
    %283 = vector.broadcast %cst_41 : f32 to vector<2x32xf32>
    %284 = arith.subf %283, %277 : vector<2x32xf32>
    %285 = arith.mulf %284, %282 : vector<2x32xf32>
    %286 = arith.mulf %277, %263 : vector<2x32xf32>
    %287 = arith.addf %285, %286 : vector<2x32xf32>
    %288 = vector.extract_strided_slice %21 {offsets = [22, 0], sizes = [2, 96], strides = [1, 1]} : vector<32x96xf32> to vector<2x96xf32>
    %cst_42 = arith.constant dense<0.000000e+00> : vector<2x96xf32>
    %289 = tpu.matmul %287, %22, %cst_42 {dimension_numbers = #tpu.dot_dimension_numbers<[1], [0], [0], [1], [0, 0, 1, 1], [], []>} : vector<2x32xf32>, vector<32x96xf32>, vector<2x96xf32> -> vector<2x96xf32>
    %290 = vector.broadcast %2 : vector<1x96xf32> to vector<2x96xf32>
    %291 = arith.addf %289, %290 : vector<2x96xf32>
    %292 = vector.extract_strided_slice %288 {offsets = [0, 0], sizes = [2, 64], strides = [1, 1]} : vector<2x96xf32> to vector<2x64xf32>
    %293 = vector.extract_strided_slice %291 {offsets = [0, 0], sizes = [2, 64], strides = [1, 1]} : vector<2x96xf32> to vector<2x64xf32>
    %294 = arith.addf %292, %293 : vector<2x64xf32>
    %295 = arith.negf %294 : vector<2x64xf32>
    %296 = math.exp %295 : vector<2x64xf32>
    %cst_43 = arith.constant 1.000000e+00 : f32
    %297 = vector.broadcast %cst_43 : f32 to vector<2x64xf32>
    %298 = arith.addf %297, %296 : vector<2x64xf32>
    %299 = arith.divf %297, %298 : vector<2x64xf32>
    %300 = vector.extract_strided_slice %299 {offsets = [0, 0], sizes = [2, 32], strides = [1, 1]} : vector<2x64xf32> to vector<2x32xf32>
    %301 = vector.extract_strided_slice %299 {offsets = [0, 32], sizes = [2, 32], strides = [1, 1]} : vector<2x64xf32> to vector<2x32xf32>
    %302 = vector.extract_strided_slice %288 {offsets = [0, 64], sizes = [2, 32], strides = [1, 1]} : vector<2x96xf32> to vector<2x32xf32>
    %303 = vector.extract_strided_slice %291 {offsets = [0, 64], sizes = [2, 32], strides = [1, 1]} : vector<2x96xf32> to vector<2x32xf32>
    %304 = arith.mulf %300, %303 : vector<2x32xf32>
    %305 = arith.addf %302, %304 : vector<2x32xf32>
    %306 = math.tanh %305 : vector<2x32xf32>
    %cst_44 = arith.constant 1.000000e+00 : f32
    %307 = vector.broadcast %cst_44 : f32 to vector<2x32xf32>
    %308 = arith.subf %307, %301 : vector<2x32xf32>
    %309 = arith.mulf %308, %306 : vector<2x32xf32>
    %310 = arith.mulf %301, %287 : vector<2x32xf32>
    %311 = arith.addf %309, %310 : vector<2x32xf32>
    %312 = vector.extract_strided_slice %21 {offsets = [24, 0], sizes = [2, 96], strides = [1, 1]} : vector<32x96xf32> to vector<2x96xf32>
    %cst_45 = arith.constant dense<0.000000e+00> : vector<2x96xf32>
    %313 = tpu.matmul %311, %22, %cst_45 {dimension_numbers = #tpu.dot_dimension_numbers<[1], [0], [0], [1], [0, 0, 1, 1], [], []>} : vector<2x32xf32>, vector<32x96xf32>, vector<2x96xf32> -> vector<2x96xf32>
    %314 = vector.broadcast %2 : vector<1x96xf32> to vector<2x96xf32>
    %315 = arith.addf %313, %314 : vector<2x96xf32>
    %316 = vector.extract_strided_slice %312 {offsets = [0, 0], sizes = [2, 64], strides = [1, 1]} : vector<2x96xf32> to vector<2x64xf32>
    %317 = vector.extract_strided_slice %315 {offsets = [0, 0], sizes = [2, 64], strides = [1, 1]} : vector<2x96xf32> to vector<2x64xf32>
    %318 = arith.addf %316, %317 : vector<2x64xf32>
    %319 = arith.negf %318 : vector<2x64xf32>
    %320 = math.exp %319 : vector<2x64xf32>
    %cst_46 = arith.constant 1.000000e+00 : f32
    %321 = vector.broadcast %cst_46 : f32 to vector<2x64xf32>
    %322 = arith.addf %321, %320 : vector<2x64xf32>
    %323 = arith.divf %321, %322 : vector<2x64xf32>
    %324 = vector.extract_strided_slice %323 {offsets = [0, 0], sizes = [2, 32], strides = [1, 1]} : vector<2x64xf32> to vector<2x32xf32>
    %325 = vector.extract_strided_slice %323 {offsets = [0, 32], sizes = [2, 32], strides = [1, 1]} : vector<2x64xf32> to vector<2x32xf32>
    %326 = vector.extract_strided_slice %312 {offsets = [0, 64], sizes = [2, 32], strides = [1, 1]} : vector<2x96xf32> to vector<2x32xf32>
    %327 = vector.extract_strided_slice %315 {offsets = [0, 64], sizes = [2, 32], strides = [1, 1]} : vector<2x96xf32> to vector<2x32xf32>
    %328 = arith.mulf %324, %327 : vector<2x32xf32>
    %329 = arith.addf %326, %328 : vector<2x32xf32>
    %330 = math.tanh %329 : vector<2x32xf32>
    %cst_47 = arith.constant 1.000000e+00 : f32
    %331 = vector.broadcast %cst_47 : f32 to vector<2x32xf32>
    %332 = arith.subf %331, %325 : vector<2x32xf32>
    %333 = arith.mulf %332, %330 : vector<2x32xf32>
    %334 = arith.mulf %325, %311 : vector<2x32xf32>
    %335 = arith.addf %333, %334 : vector<2x32xf32>
    %336 = vector.extract_strided_slice %21 {offsets = [26, 0], sizes = [2, 96], strides = [1, 1]} : vector<32x96xf32> to vector<2x96xf32>
    %cst_48 = arith.constant dense<0.000000e+00> : vector<2x96xf32>
    %337 = tpu.matmul %335, %22, %cst_48 {dimension_numbers = #tpu.dot_dimension_numbers<[1], [0], [0], [1], [0, 0, 1, 1], [], []>} : vector<2x32xf32>, vector<32x96xf32>, vector<2x96xf32> -> vector<2x96xf32>
    %338 = vector.broadcast %2 : vector<1x96xf32> to vector<2x96xf32>
    %339 = arith.addf %337, %338 : vector<2x96xf32>
    %340 = vector.extract_strided_slice %336 {offsets = [0, 0], sizes = [2, 64], strides = [1, 1]} : vector<2x96xf32> to vector<2x64xf32>
    %341 = vector.extract_strided_slice %339 {offsets = [0, 0], sizes = [2, 64], strides = [1, 1]} : vector<2x96xf32> to vector<2x64xf32>
    %342 = arith.addf %340, %341 : vector<2x64xf32>
    %343 = arith.negf %342 : vector<2x64xf32>
    %344 = math.exp %343 : vector<2x64xf32>
    %cst_49 = arith.constant 1.000000e+00 : f32
    %345 = vector.broadcast %cst_49 : f32 to vector<2x64xf32>
    %346 = arith.addf %345, %344 : vector<2x64xf32>
    %347 = arith.divf %345, %346 : vector<2x64xf32>
    %348 = vector.extract_strided_slice %347 {offsets = [0, 0], sizes = [2, 32], strides = [1, 1]} : vector<2x64xf32> to vector<2x32xf32>
    %349 = vector.extract_strided_slice %347 {offsets = [0, 32], sizes = [2, 32], strides = [1, 1]} : vector<2x64xf32> to vector<2x32xf32>
    %350 = vector.extract_strided_slice %336 {offsets = [0, 64], sizes = [2, 32], strides = [1, 1]} : vector<2x96xf32> to vector<2x32xf32>
    %351 = vector.extract_strided_slice %339 {offsets = [0, 64], sizes = [2, 32], strides = [1, 1]} : vector<2x96xf32> to vector<2x32xf32>
    %352 = arith.mulf %348, %351 : vector<2x32xf32>
    %353 = arith.addf %350, %352 : vector<2x32xf32>
    %354 = math.tanh %353 : vector<2x32xf32>
    %cst_50 = arith.constant 1.000000e+00 : f32
    %355 = vector.broadcast %cst_50 : f32 to vector<2x32xf32>
    %356 = arith.subf %355, %349 : vector<2x32xf32>
    %357 = arith.mulf %356, %354 : vector<2x32xf32>
    %358 = arith.mulf %349, %335 : vector<2x32xf32>
    %359 = arith.addf %357, %358 : vector<2x32xf32>
    %360 = vector.extract_strided_slice %21 {offsets = [28, 0], sizes = [2, 96], strides = [1, 1]} : vector<32x96xf32> to vector<2x96xf32>
    %cst_51 = arith.constant dense<0.000000e+00> : vector<2x96xf32>
    %361 = tpu.matmul %359, %22, %cst_51 {dimension_numbers = #tpu.dot_dimension_numbers<[1], [0], [0], [1], [0, 0, 1, 1], [], []>} : vector<2x32xf32>, vector<32x96xf32>, vector<2x96xf32> -> vector<2x96xf32>
    %362 = vector.broadcast %2 : vector<1x96xf32> to vector<2x96xf32>
    %363 = arith.addf %361, %362 : vector<2x96xf32>
    %364 = vector.extract_strided_slice %360 {offsets = [0, 0], sizes = [2, 64], strides = [1, 1]} : vector<2x96xf32> to vector<2x64xf32>
    %365 = vector.extract_strided_slice %363 {offsets = [0, 0], sizes = [2, 64], strides = [1, 1]} : vector<2x96xf32> to vector<2x64xf32>
    %366 = arith.addf %364, %365 : vector<2x64xf32>
    %367 = arith.negf %366 : vector<2x64xf32>
    %368 = math.exp %367 : vector<2x64xf32>
    %cst_52 = arith.constant 1.000000e+00 : f32
    %369 = vector.broadcast %cst_52 : f32 to vector<2x64xf32>
    %370 = arith.addf %369, %368 : vector<2x64xf32>
    %371 = arith.divf %369, %370 : vector<2x64xf32>
    %372 = vector.extract_strided_slice %371 {offsets = [0, 0], sizes = [2, 32], strides = [1, 1]} : vector<2x64xf32> to vector<2x32xf32>
    %373 = vector.extract_strided_slice %371 {offsets = [0, 32], sizes = [2, 32], strides = [1, 1]} : vector<2x64xf32> to vector<2x32xf32>
    %374 = vector.extract_strided_slice %360 {offsets = [0, 64], sizes = [2, 32], strides = [1, 1]} : vector<2x96xf32> to vector<2x32xf32>
    %375 = vector.extract_strided_slice %363 {offsets = [0, 64], sizes = [2, 32], strides = [1, 1]} : vector<2x96xf32> to vector<2x32xf32>
    %376 = arith.mulf %372, %375 : vector<2x32xf32>
    %377 = arith.addf %374, %376 : vector<2x32xf32>
    %378 = math.tanh %377 : vector<2x32xf32>
    %cst_53 = arith.constant 1.000000e+00 : f32
    %379 = vector.broadcast %cst_53 : f32 to vector<2x32xf32>
    %380 = arith.subf %379, %373 : vector<2x32xf32>
    %381 = arith.mulf %380, %378 : vector<2x32xf32>
    %382 = arith.mulf %373, %359 : vector<2x32xf32>
    %383 = arith.addf %381, %382 : vector<2x32xf32>
    %384 = vector.extract_strided_slice %21 {offsets = [30, 0], sizes = [2, 96], strides = [1, 1]} : vector<32x96xf32> to vector<2x96xf32>
    %cst_54 = arith.constant dense<0.000000e+00> : vector<2x96xf32>
    %385 = tpu.matmul %383, %22, %cst_54 {dimension_numbers = #tpu.dot_dimension_numbers<[1], [0], [0], [1], [0, 0, 1, 1], [], []>} : vector<2x32xf32>, vector<32x96xf32>, vector<2x96xf32> -> vector<2x96xf32>
    %386 = vector.broadcast %2 : vector<1x96xf32> to vector<2x96xf32>
    %387 = arith.addf %385, %386 : vector<2x96xf32>
    %388 = vector.extract_strided_slice %384 {offsets = [0, 0], sizes = [2, 64], strides = [1, 1]} : vector<2x96xf32> to vector<2x64xf32>
    %389 = vector.extract_strided_slice %387 {offsets = [0, 0], sizes = [2, 64], strides = [1, 1]} : vector<2x96xf32> to vector<2x64xf32>
    %390 = arith.addf %388, %389 : vector<2x64xf32>
    %391 = arith.negf %390 : vector<2x64xf32>
    %392 = math.exp %391 : vector<2x64xf32>
    %cst_55 = arith.constant 1.000000e+00 : f32
    %393 = vector.broadcast %cst_55 : f32 to vector<2x64xf32>
    %394 = arith.addf %393, %392 : vector<2x64xf32>
    %395 = arith.divf %393, %394 : vector<2x64xf32>
    %396 = vector.extract_strided_slice %395 {offsets = [0, 0], sizes = [2, 32], strides = [1, 1]} : vector<2x64xf32> to vector<2x32xf32>
    %397 = vector.extract_strided_slice %395 {offsets = [0, 32], sizes = [2, 32], strides = [1, 1]} : vector<2x64xf32> to vector<2x32xf32>
    %398 = vector.extract_strided_slice %384 {offsets = [0, 64], sizes = [2, 32], strides = [1, 1]} : vector<2x96xf32> to vector<2x32xf32>
    %399 = vector.extract_strided_slice %387 {offsets = [0, 64], sizes = [2, 32], strides = [1, 1]} : vector<2x96xf32> to vector<2x32xf32>
    %400 = arith.mulf %396, %399 : vector<2x32xf32>
    %401 = arith.addf %398, %400 : vector<2x32xf32>
    %402 = math.tanh %401 : vector<2x32xf32>
    %cst_56 = arith.constant 1.000000e+00 : f32
    %403 = vector.broadcast %cst_56 : f32 to vector<2x32xf32>
    %404 = arith.subf %403, %397 : vector<2x32xf32>
    %405 = arith.mulf %404, %402 : vector<2x32xf32>
    %406 = arith.mulf %397, %383 : vector<2x32xf32>
    %407 = arith.addf %405, %406 : vector<2x32xf32>
    %c0_57 = arith.constant 0 : index
    %c0_58 = arith.constant 0 : index
    %c0_59 = arith.constant 0 : index
    %408 = vector.load %arg2[%c0_57, %c0_58, %c0_59] : memref<1x2x2xf32, #tpu.memory_space<vmem>>, vector<1x2x2xf32>
    %409 = vector.shape_cast %408 : vector<1x2x2xf32> to vector<2x2xf32>
    %410 = tpu.concatenate %407, %409 in 1 : vector<2x32xf32>, vector<2x2xf32> -> vector<2x34xf32>
    %c0_60 = arith.constant 0 : index
    %c0_61 = arith.constant 0 : index
    %411 = vector.load %arg5[%c0_60, %c0_61] : memref<34x512xf32, #tpu.memory_space<vmem>>, vector<34x512xf32>
    %cst_62 = arith.constant dense<0.000000e+00> : vector<2x512xf32>
    %412 = tpu.matmul %410, %411, %cst_62 {dimension_numbers = #tpu.dot_dimension_numbers<[1], [0], [0], [1], [0, 0, 1, 1], [], []>} : vector<2x34xf32>, vector<34x512xf32>, vector<2x512xf32> -> vector<2x512xf32>
    %413 = vector.broadcast %3 : vector<1x512xf32> to vector<2x512xf32>
    %414 = arith.addf %412, %413 : vector<2x512xf32>
    %cst_63 = arith.constant 0.000000e+00 : f32
    %415 = vector.broadcast %cst_63 : f32 to vector<2x512xf32>
    %416 = arith.cmpf ogt, %414, %415 : vector<2x512xf32>
    %cst_64 = arith.constant 5.000000e-01 : f32
    %417 = vector.broadcast %cst_64 : f32 to vector<2x512xf32>
    %418 = arith.mulf %417, %414 : vector<2x512xf32>
    %419 = arith.select %416, %414, %418 : vector<2x512xi1>, vector<2x512xf32>
    %c0_65 = arith.constant 0 : index
    %c0_66 = arith.constant 0 : index
    %420 = vector.load %arg6[%c0_65, %c0_66] : memref<512x512xf32, #tpu.memory_space<vmem>>, vector<512x512xf32>
    %cst_67 = arith.constant dense<0.000000e+00> : vector<2x512xf32>
    %421 = tpu.matmul %419, %420, %cst_67 {dimension_numbers = #tpu.dot_dimension_numbers<[1], [0], [0], [1], [0, 0, 1, 1], [], []>} : vector<2x512xf32>, vector<512x512xf32>, vector<2x512xf32> -> vector<2x512xf32>
    %422 = vector.broadcast %4 : vector<1x512xf32> to vector<2x512xf32>
    %423 = arith.addf %421, %422 : vector<2x512xf32>
    %cst_68 = arith.constant 0.000000e+00 : f32
    %424 = vector.broadcast %cst_68 : f32 to vector<2x512xf32>
    %425 = arith.cmpf ogt, %423, %424 : vector<2x512xf32>
    %cst_69 = arith.constant 5.000000e-01 : f32
    %426 = vector.broadcast %cst_69 : f32 to vector<2x512xf32>
    %427 = arith.mulf %426, %423 : vector<2x512xf32>
    %428 = arith.select %425, %423, %427 : vector<2x512xi1>, vector<2x512xf32>
    %c0_70 = arith.constant 0 : index
    %c0_71 = arith.constant 0 : index
    %429 = vector.load %arg7[%c0_70, %c0_71] : memref<512x256xf32, #tpu.memory_space<vmem>>, vector<512x256xf32>
    %cst_72 = arith.constant dense<0.000000e+00> : vector<2x256xf32>
    %430 = tpu.matmul %428, %429, %cst_72 {dimension_numbers = #tpu.dot_dimension_numbers<[1], [0], [0], [1], [0, 0, 1, 1], [], []>} : vector<2x512xf32>, vector<512x256xf32>, vector<2x256xf32> -> vector<2x256xf32>
    %431 = vector.broadcast %5 : vector<1x256xf32> to vector<2x256xf32>
    %432 = arith.addf %430, %431 : vector<2x256xf32>
    %cst_73 = arith.constant 0.000000e+00 : f32
    %433 = vector.broadcast %cst_73 : f32 to vector<2x256xf32>
    %434 = arith.cmpf ogt, %432, %433 : vector<2x256xf32>
    %cst_74 = arith.constant 5.000000e-01 : f32
    %435 = vector.broadcast %cst_74 : f32 to vector<2x256xf32>
    %436 = arith.mulf %435, %432 : vector<2x256xf32>
    %437 = arith.select %434, %432, %436 : vector<2x256xi1>, vector<2x256xf32>
    %c0_75 = arith.constant 0 : index
    %c0_76 = arith.constant 0 : index
    %438 = vector.load %arg8[%c0_75, %c0_76] : memref<256x32xf32, #tpu.memory_space<vmem>>, vector<256x32xf32>
    %cst_77 = arith.constant dense<0.000000e+00> : vector<2x32xf32>
    %439 = tpu.matmul %437, %438, %cst_77 {dimension_numbers = #tpu.dot_dimension_numbers<[1], [0], [0], [1], [0, 0, 1, 1], [], []>} : vector<2x256xf32>, vector<256x32xf32>, vector<2x32xf32> -> vector<2x32xf32>
    %440 = vector.broadcast %6 : vector<1x32xf32> to vector<2x32xf32>
    %441 = arith.addf %439, %440 : vector<2x32xf32>
    %cst_78 = arith.constant dense<0xFF800000> : vector<2xf32>
    %442 = vector.multi_reduction <maximumf>, %441, %cst_78 [1] : vector<2x32xf32> to vector<2xf32>
    %443 = vector.shape_cast %442 : vector<2xf32> to vector<2x1xf32>
    %444 = vector.broadcast %443 : vector<2x1xf32> to vector<2x32xf32>
    %445 = arith.subf %441, %444 : vector<2x32xf32>
    %446 = math.exp %445 : vector<2x32xf32>
    %cst_79 = arith.constant dense<0.000000e+00> : vector<2xf32>
    %447 = vector.multi_reduction <add>, %446, %cst_79 [1] : vector<2x32xf32> to vector<2xf32>
    %448 = vector.shape_cast %447 : vector<2xf32> to vector<2x1xf32>
    %449 = vector.broadcast %448 : vector<2x1xf32> to vector<2x32xf32>
    %450 = arith.divf %446, %449 : vector<2x32xf32>
    %451 = arith.mulf %450, %407 : vector<2x32xf32>
    %452 = tpu.concatenate %407, %451 in 1 : vector<2x32xf32>, vector<2x32xf32> -> vector<2x64xf32>
    %cst_80 = arith.constant dense<0.000000e+00> : vector<64xf32>
    %453 = vector.multi_reduction <add>, %452, %cst_80 [0] : vector<2x64xf32> to vector<64xf32>
    %454 = vector.shape_cast %453 : vector<64xf32> to vector<1x64xf32>
    %cst_81 = arith.constant 2.000000e+00 : f32
    %455 = vector.broadcast %cst_81 : f32 to vector<1x64xf32>
    %456 = arith.divf %454, %455 : vector<1x64xf32>
    %457 = vector.broadcast %456 : vector<1x64xf32> to vector<2x64xf32>
    %458 = arith.subf %452, %457 : vector<2x64xf32>
    %459 = vector.broadcast %456 : vector<1x64xf32> to vector<2x64xf32>
    %460 = arith.subf %452, %459 : vector<2x64xf32>
    %461 = arith.mulf %458, %460 : vector<2x64xf32>
    %cst_82 = arith.constant dense<0.000000e+00> : vector<64xf32>
    %462 = vector.multi_reduction <add>, %461, %cst_82 [0] : vector<2x64xf32> to vector<64xf32>
    %463 = vector.shape_cast %462 : vector<64xf32> to vector<1x64xf32>
    %cst_83 = arith.constant 2.000000e+00 : f32
    %464 = vector.broadcast %cst_83 : f32 to vector<1x64xf32>
    %465 = arith.divf %463, %464 : vector<1x64xf32>
    %466 = vector.broadcast %456 : vector<1x64xf32> to vector<2x64xf32>
    %467 = arith.subf %452, %466 : vector<2x64xf32>
    %cst_84 = arith.constant 9.99999974E-6 : f32
    %468 = vector.broadcast %cst_84 : f32 to vector<1x64xf32>
    %469 = arith.addf %465, %468 : vector<1x64xf32>
    %470 = math.rsqrt %469 : vector<1x64xf32>
    %471 = vector.broadcast %470 : vector<1x64xf32> to vector<2x64xf32>
    %472 = arith.mulf %467, %471 : vector<2x64xf32>
    %473 = vector.broadcast %11 : vector<1x64xf32> to vector<2x64xf32>
    %474 = arith.mulf %472, %473 : vector<2x64xf32>
    %475 = vector.broadcast %12 : vector<1x64xf32> to vector<2x64xf32>
    %476 = arith.addf %474, %475 : vector<2x64xf32>
    %c0_85 = arith.constant 0 : index
    %c0_86 = arith.constant 0 : index
    %477 = vector.load %arg9[%c0_85, %c0_86] : memref<64x512xf32, #tpu.memory_space<vmem>>, vector<64x512xf32>
    %cst_87 = arith.constant dense<0.000000e+00> : vector<2x512xf32>
    %478 = tpu.matmul %476, %477, %cst_87 {dimension_numbers = #tpu.dot_dimension_numbers<[1], [0], [0], [1], [0, 0, 1, 1], [], []>} : vector<2x64xf32>, vector<64x512xf32>, vector<2x512xf32> -> vector<2x512xf32>
    %479 = vector.broadcast %7 : vector<1x512xf32> to vector<2x512xf32>
    %480 = arith.addf %478, %479 : vector<2x512xf32>
    %cst_88 = arith.constant 0.000000e+00 : f32
    %481 = vector.broadcast %cst_88 : f32 to vector<2x512xf32>
    %482 = arith.cmpf ogt, %480, %481 : vector<2x512xf32>
    %cst_89 = arith.constant 5.000000e-01 : f32
    %483 = vector.broadcast %cst_89 : f32 to vector<2x512xf32>
    %484 = arith.mulf %483, %480 : vector<2x512xf32>
    %485 = arith.select %482, %480, %484 : vector<2x512xi1>, vector<2x512xf32>
    %c0_90 = arith.constant 0 : index
    %c0_91 = arith.constant 0 : index
    %486 = vector.load %arg10[%c0_90, %c0_91] : memref<512x512xf32, #tpu.memory_space<vmem>>, vector<512x512xf32>
    %cst_92 = arith.constant dense<0.000000e+00> : vector<2x512xf32>
    %487 = tpu.matmul %485, %486, %cst_92 {dimension_numbers = #tpu.dot_dimension_numbers<[1], [0], [0], [1], [0, 0, 1, 1], [], []>} : vector<2x512xf32>, vector<512x512xf32>, vector<2x512xf32> -> vector<2x512xf32>
    %488 = vector.broadcast %8 : vector<1x512xf32> to vector<2x512xf32>
    %489 = arith.addf %487, %488 : vector<2x512xf32>
    %cst_93 = arith.constant 0.000000e+00 : f32
    %490 = vector.broadcast %cst_93 : f32 to vector<2x512xf32>
    %491 = arith.cmpf ogt, %489, %490 : vector<2x512xf32>
    %cst_94 = arith.constant 5.000000e-01 : f32
    %492 = vector.broadcast %cst_94 : f32 to vector<2x512xf32>
    %493 = arith.mulf %492, %489 : vector<2x512xf32>
    %494 = arith.select %491, %489, %493 : vector<2x512xi1>, vector<2x512xf32>
    %c0_95 = arith.constant 0 : index
    %c0_96 = arith.constant 0 : index
    %495 = vector.load %arg11[%c0_95, %c0_96] : memref<512x256xf32, #tpu.memory_space<vmem>>, vector<512x256xf32>
    %cst_97 = arith.constant dense<0.000000e+00> : vector<2x256xf32>
    %496 = tpu.matmul %494, %495, %cst_97 {dimension_numbers = #tpu.dot_dimension_numbers<[1], [0], [0], [1], [0, 0, 1, 1], [], []>} : vector<2x512xf32>, vector<512x256xf32>, vector<2x256xf32> -> vector<2x256xf32>
    %497 = vector.broadcast %9 : vector<1x256xf32> to vector<2x256xf32>
    %498 = arith.addf %496, %497 : vector<2x256xf32>
    %cst_98 = arith.constant 0.000000e+00 : f32
    %499 = vector.broadcast %cst_98 : f32 to vector<2x256xf32>
    %500 = arith.cmpf ogt, %498, %499 : vector<2x256xf32>
    %cst_99 = arith.constant 5.000000e-01 : f32
    %501 = vector.broadcast %cst_99 : f32 to vector<2x256xf32>
    %502 = arith.mulf %501, %498 : vector<2x256xf32>
    %503 = arith.select %500, %498, %502 : vector<2x256xi1>, vector<2x256xf32>
    %c0_100 = arith.constant 0 : index
    %c0_101 = arith.constant 0 : index
    %504 = vector.load %arg12[%c0_100, %c0_101] : memref<256x32xf32, #tpu.memory_space<vmem>>, vector<256x32xf32>
    %cst_102 = arith.constant dense<0.000000e+00> : vector<2x32xf32>
    %505 = tpu.matmul %503, %504, %cst_102 {dimension_numbers = #tpu.dot_dimension_numbers<[1], [0], [0], [1], [0, 0, 1, 1], [], []>} : vector<2x256xf32>, vector<256x32xf32>, vector<2x32xf32> -> vector<2x32xf32>
    %506 = vector.broadcast %10 : vector<1x32xf32> to vector<2x32xf32>
    %507 = arith.addf %505, %506 : vector<2x32xf32>
    %cst_103 = arith.constant 0.000000e+00 : f32
    %508 = vector.broadcast %cst_103 : f32 to vector<2x32xf32>
    %509 = arith.maximumf %507, %508 : vector<2x32xf32>
    %c0_104 = arith.constant 0 : index
    %c0_105 = arith.constant 0 : index
    %510 = vector.load %arg13[%c0_104, %c0_105] : memref<32x96xf32, #tpu.memory_space<vmem>>, vector<32x96xf32>
    %cst_106 = arith.constant dense<0.000000e+00> : vector<2x96xf32>
    %511 = tpu.matmul %509, %510, %cst_106 {dimension_numbers = #tpu.dot_dimension_numbers<[1], [0], [0], [1], [0, 0, 1, 1], [], []>} : vector<2x32xf32>, vector<32x96xf32>, vector<2x96xf32> -> vector<2x96xf32>
    %512 = vector.broadcast %13 : vector<1x96xf32> to vector<2x96xf32>
    %513 = arith.addf %511, %512 : vector<2x96xf32>
    %c0_107 = arith.constant 0 : index
    %c0_108 = arith.constant 0 : index
    %514 = vector.load %arg14[%c0_107, %c0_108] : memref<32x96xf32, #tpu.memory_space<vmem>>, vector<32x96xf32>
    %cst_109 = arith.constant dense<0.000000e+00> : vector<2x96xf32>
    %515 = tpu.matmul %407, %514, %cst_109 {dimension_numbers = #tpu.dot_dimension_numbers<[1], [0], [0], [1], [0, 0, 1, 1], [], []>} : vector<2x32xf32>, vector<32x96xf32>, vector<2x96xf32> -> vector<2x96xf32>
    %516 = vector.broadcast %14 : vector<1x96xf32> to vector<2x96xf32>
    %517 = arith.addf %515, %516 : vector<2x96xf32>
    %518 = vector.extract_strided_slice %513 {offsets = [0, 0], sizes = [2, 64], strides = [1, 1]} : vector<2x96xf32> to vector<2x64xf32>
    %519 = vector.extract_strided_slice %517 {offsets = [0, 0], sizes = [2, 64], strides = [1, 1]} : vector<2x96xf32> to vector<2x64xf32>
    %520 = arith.addf %518, %519 : vector<2x64xf32>
    %521 = arith.negf %520 : vector<2x64xf32>
    %522 = math.exp %521 : vector<2x64xf32>
    %cst_110 = arith.constant 1.000000e+00 : f32
    %523 = vector.broadcast %cst_110 : f32 to vector<2x64xf32>
    %524 = arith.addf %523, %522 : vector<2x64xf32>
    %525 = arith.divf %523, %524 : vector<2x64xf32>
    %526 = vector.extract_strided_slice %525 {offsets = [0, 0], sizes = [2, 32], strides = [1, 1]} : vector<2x64xf32> to vector<2x32xf32>
    %527 = vector.extract_strided_slice %525 {offsets = [0, 32], sizes = [2, 32], strides = [1, 1]} : vector<2x64xf32> to vector<2x32xf32>
    %528 = vector.extract_strided_slice %513 {offsets = [0, 64], sizes = [2, 32], strides = [1, 1]} : vector<2x96xf32> to vector<2x32xf32>
    %529 = vector.extract_strided_slice %517 {offsets = [0, 64], sizes = [2, 32], strides = [1, 1]} : vector<2x96xf32> to vector<2x32xf32>
    %530 = arith.mulf %526, %529 : vector<2x32xf32>
    %531 = arith.addf %528, %530 : vector<2x32xf32>
    %532 = math.tanh %531 : vector<2x32xf32>
    %cst_111 = arith.constant 1.000000e+00 : f32
    %533 = vector.broadcast %cst_111 : f32 to vector<2x32xf32>
    %534 = arith.subf %533, %527 : vector<2x32xf32>
    %535 = arith.mulf %534, %532 : vector<2x32xf32>
    %536 = arith.mulf %527, %407 : vector<2x32xf32>
    %537 = arith.addf %535, %536 : vector<2x32xf32>
    %c0_112 = arith.constant 0 : index
    %c0_113 = arith.constant 0 : index
    %538 = vector.load %arg15[%c0_112, %c0_113] : memref<32x4xf32, #tpu.memory_space<vmem>>, vector<32x4xf32>
    %cst_114 = arith.constant dense<0.000000e+00> : vector<2x4xf32>
    %539 = tpu.matmul %537, %538, %cst_114 {dimension_numbers = #tpu.dot_dimension_numbers<[1], [0], [0], [1], [0, 0, 1, 1], [], []>} : vector<2x32xf32>, vector<32x4xf32>, vector<2x4xf32> -> vector<2x4xf32>
    %540 = vector.broadcast %15 : vector<1x4xf32> to vector<2x4xf32>
    %541 = arith.addf %539, %540 : vector<2x4xf32>
    %c0_115 = arith.constant 0 : index
    %c0_116 = arith.constant 0 : index
    %c0_117 = arith.constant 0 : index
    %542 = vector.load %arg17[%c0_115, %c0_116, %c0_117] : memref<1x2x4xf32, #tpu.memory_space<vmem>>, vector<1x2x4xf32>
    %543 = vector.shape_cast %542 : vector<1x2x4xf32> to vector<2x4xf32>
    %544 = vector.shape_cast %541 : vector<2x4xf32> to vector<1x2x4xf32>
    tpu.vector_store %arg17[%c0_115, %c0_116, %c0_117], %544 {strides = array<i32>} : memref<1x2x4xf32, #tpu.memory_space<vmem>>, vector<1x2x4xf32>,
    return
  }
  func.func @transform_0(%arg0: i32) -> (i32, i32, i32) {
    %c0_i32 = arith.constant 0 : i32
    %c0_i32_0 = arith.constant 0 : i32
    %c0_i32_1 = arith.constant 0 : i32
    return %arg0, %c0_i32, %c0_i32_0 : i32, i32, i32
  }
  func.func @transform_1(%arg0: i32) -> (i32, i32, i32) {
    %c0_i32 = arith.constant 0 : i32
    %c0_i32_0 = arith.constant 0 : i32
    %c0_i32_1 = arith.constant 0 : i32
    return %arg0, %c0_i32, %c0_i32_0 : i32, i32, i32
  }
  func.func @transform_2(%arg0: i32) -> (i32, i32) {
    %c0_i32 = arith.constant 0 : i32
    %c0_i32_0 = arith.constant 0 : i32
    %c0_i32_1 = arith.constant 0 : i32
    return %c0_i32, %c0_i32_0 : i32, i32
  }
  func.func @transform_3(%arg0: i32) -> (i32, i32) {
    %c0_i32 = arith.constant 0 : i32
    %c0_i32_0 = arith.constant 0 : i32
    %c0_i32_1 = arith.constant 0 : i32
    return %c0_i32, %c0_i32_0 : i32, i32
  }
  func.func @transform_4(%arg0: i32) -> (i32, i32) {
    %c0_i32 = arith.constant 0 : i32
    %c0_i32_0 = arith.constant 0 : i32
    %c0_i32_1 = arith.constant 0 : i32
    return %c0_i32, %c0_i32_0 : i32, i32
  }
  func.func @transform_5(%arg0: i32) -> (i32, i32) {
    %c0_i32 = arith.constant 0 : i32
    %c0_i32_0 = arith.constant 0 : i32
    %c0_i32_1 = arith.constant 0 : i32
    return %c0_i32, %c0_i32_0 : i32, i32
  }
  func.func @transform_6(%arg0: i32) -> (i32, i32) {
    %c0_i32 = arith.constant 0 : i32
    %c0_i32_0 = arith.constant 0 : i32
    %c0_i32_1 = arith.constant 0 : i32
    return %c0_i32, %c0_i32_0 : i32, i32
  }
  func.func @transform_7(%arg0: i32) -> (i32, i32) {
    %c0_i32 = arith.constant 0 : i32
    %c0_i32_0 = arith.constant 0 : i32
    %c0_i32_1 = arith.constant 0 : i32
    return %c0_i32, %c0_i32_0 : i32, i32
  }
  func.func @transform_8(%arg0: i32) -> (i32, i32) {
    %c0_i32 = arith.constant 0 : i32
    %c0_i32_0 = arith.constant 0 : i32
    %c0_i32_1 = arith.constant 0 : i32
    return %c0_i32, %c0_i32_0 : i32, i32
  }
  func.func @transform_9(%arg0: i32) -> (i32, i32) {
    %c0_i32 = arith.constant 0 : i32
    %c0_i32_0 = arith.constant 0 : i32
    %c0_i32_1 = arith.constant 0 : i32
    return %c0_i32, %c0_i32_0 : i32, i32
  }
  func.func @transform_10(%arg0: i32) -> (i32, i32) {
    %c0_i32 = arith.constant 0 : i32
    %c0_i32_0 = arith.constant 0 : i32
    %c0_i32_1 = arith.constant 0 : i32
    return %c0_i32, %c0_i32_0 : i32, i32
  }
  func.func @transform_11(%arg0: i32) -> (i32, i32) {
    %c0_i32 = arith.constant 0 : i32
    %c0_i32_0 = arith.constant 0 : i32
    %c0_i32_1 = arith.constant 0 : i32
    return %c0_i32, %c0_i32_0 : i32, i32
  }
  func.func @transform_12(%arg0: i32) -> (i32, i32) {
    %c0_i32 = arith.constant 0 : i32
    %c0_i32_0 = arith.constant 0 : i32
    %c0_i32_1 = arith.constant 0 : i32
    return %c0_i32, %c0_i32_0 : i32, i32
  }
  func.func @transform_13(%arg0: i32) -> (i32, i32) {
    %c0_i32 = arith.constant 0 : i32
    %c0_i32_0 = arith.constant 0 : i32
    %c0_i32_1 = arith.constant 0 : i32
    return %c0_i32, %c0_i32_0 : i32, i32
  }
  func.func @transform_14(%arg0: i32) -> (i32, i32) {
    %c0_i32 = arith.constant 0 : i32
    %c0_i32_0 = arith.constant 0 : i32
    %c0_i32_1 = arith.constant 0 : i32
    return %c0_i32, %c0_i32_0 : i32, i32
  }
  func.func @transform_15(%arg0: i32) -> (i32, i32) {
    %c0_i32 = arith.constant 0 : i32
    %c0_i32_0 = arith.constant 0 : i32
    %c0_i32_1 = arith.constant 0 : i32
    return %c0_i32, %c0_i32_0 : i32, i32
  }
  func.func @transform_16(%arg0: i32) -> (i32, i32, i32) {
    %c0_i32 = arith.constant 0 : i32
    %c0_i32_0 = arith.constant 0 : i32
    %c0_i32_1 = arith.constant 0 : i32
    return %arg0, %c0_i32, %c0_i32_0 : i32, i32, i32
  }
}

</mosaic_0001>

<llo_original>
// kernel: tpu_custom_call.1
$region0: #{tpu_custom_call.1}
  #allocation0 [shape = 'u32[]', space=smem, size = 0x4, offset = 0x4, fixed_abs, tag = 'smem constant byte address 0x4 - core index']
  #allocation1 [shape = 'u32[144,128]{1,0:T(1,128)}', space=vmem, size = 0x12000, scoped, tag = 'internal scratch']
  %s0 = inlined_call_operand.vmem [shape: f32[4,32,8], index: 0, kind: input, shape index: {}]
  %s1 = inlined_call_operand.vmem [shape: f32[4,2,2], index: 1, kind: input, shape index: {}]
  %s2 = inlined_call_operand.vmem [shape: f32[8,96], index: 2, kind: input, shape index: {}]
  %s3 = inlined_call_operand.vmem [shape: f32[32,96], index: 3, kind: input, shape index: {}]
  %s4 = inlined_call_operand.vmem [shape: f32[34,512], index: 4, kind: input, shape index: {}]
  %s5 = inlined_call_operand.hbm [shape: f32[512,512], index: 5, kind: input, shape index: {}]
  %s6 = inlined_call_operand.hbm [shape: f32[512,256], index: 6, kind: input, shape index: {}]
  %s7 = inlined_call_operand.vmem [shape: f32[256,32], index: 7, kind: input, shape index: {}]
  %s8 = inlined_call_operand.vmem [shape: f32[64,512], index: 8, kind: input, shape index: {}]
  %s9 = inlined_call_operand.hbm [shape: f32[512,512], index: 9, kind: input, shape index: {}]
  %s10 = inlined_call_operand.hbm [shape: f32[512,256], index: 10, kind: input, shape index: {}]
  %s11 = inlined_call_operand.vmem [shape: f32[256,32], index: 11, kind: input, shape index: {}]
  %s12 = inlined_call_operand.vmem [shape: f32[32,96], index: 12, kind: input, shape index: {}]
  %s13 = inlined_call_operand.vmem [shape: f32[32,96], index: 13, kind: input, shape index: {}]
  %s14 = inlined_call_operand.vmem [shape: f32[32,4], index: 14, kind: input, shape index: {}]
  %s15 = inlined_call_operand.vmem [shape: f32[16,512], index: 15, kind: input, shape index: {}]
  %s16 = inlined_call_operand.hbm [shape: f32[4,2,4], index: 16, kind: output, shape index: {}]
  %s17 = sld [smem:[#allocation0]]
  $region113: #{tpu_custom_call.1} parent=0
    _
  %s19 = ssub.s32 1, %s17
  %s20 = scalar_select 0, %s19, %s17
  $region1: #{tpu_custom_call.1} parent=0
    #allocation2 [shape = 'u8[1048576]{0}', space=vmem, size = 0x100000, scoped, tag = 'input window, operand 5, single buffered']
    #allocation3 [shape = 's32[2]{0}', space=sflag, size = 0x8, scoped, tag = 'scoped memory for tpu_custom_call.1']
    #allocation4 [shape = 's32[2]{0}', space=sflag, size = 0x8, scoped, tag = 'scoped memory for tpu_custom_call.1']
    #allocation5 [shape = 'u8[524288]{0}', space=vmem, size = 0x80000, scoped, tag = 'input window, operand 6, single buffered']
    #allocation6 [shape = 's32[1]{0}', space=sflag, size = 0x4, scoped, tag = 'scoped memory for tpu_custom_call.1']
    #allocation7 [shape = 'u8[1048576]{0}', space=vmem, size = 0x100000, scoped, tag = 'input window, operand 9, single buffered']
    #allocation8 [shape = 'u8[524288]{0}', space=vmem, size = 0x80000, scoped, tag = 'input window, operand 10, single buffered']
    #allocation9 [shape = 's32[1]{0}', space=sflag, size = 0x4, scoped, tag = 'scoped memory for tpu_custom_call.1']
    #allocation10 [shape = 'u8[2048]{0}', space=vmem, size = 0x800, scoped, tag = 'output window, operand 0']
    %21 = vsyncpa [#allocation3], 0
    %22 = vsyncpa [#allocation6], 0
    %23 = vsyncpa [#allocation9], 0
    %24 = vsyncpa [#allocation4], 0
    %s25 = scalar_lea.sflag [#allocation4], 1
    %26 = vsyncpa %s25, 0
    loop: start=0, step=1, limit=6
    $region2: #{tpu_custom_call.1} parent=1 // loop_pre_header
      _
    $region3: #{tpu_custom_call.1} parent=1 // loop_header
      %s28 = sphi 0, %s32
      %p29 = scmp.ge.s32.totalorder %s28, 6
      %s38 = sphi 0, %s40
      %s41 = sphi 0, %s38
      %s42 = sphi 0, %s41
      %s58 = sphi 0, %s42
      %s64 = sphi 0, %s66
      %s67 = sphi 0, %s64
      %s68 = sphi 0, %s67
      %s84 = sphi 0, %s68
      %s88 = sphi 0, %s88
      %s90 = sphi 0, %s88
      %s91 = sphi 0, %s90
      %s105 = sphi 0, %s91
      %s109 = sphi 0, %s109
      %s111 = sphi 0, %s109
      %s112 = sphi 0, %s111
      %s126 = sphi 0, %s112
      %s130 = sphi 0, %s130
      %s132 = sphi 0, %s130
      %s133 = sphi 0, %s132
      %s147 = sphi 0, %s133
      %s151 = sphi 0, %s151
      %s153 = sphi 0, %s151
      %s154 = sphi 0, %s153
      %s168 = sphi 0, %s154
      %s172 = sphi 0, %s172
      %s174 = sphi 0, %s172
      %s175 = sphi 0, %s174
      %s189 = sphi 0, %s175
      %s193 = sphi 0, %s193
      %s195 = sphi 0, %s193
      %s196 = sphi 0, %s195
      %s210 = sphi 0, %s196
      %s214 = sphi 0, %s214
      %s216 = sphi 0, %s214
      %s217 = sphi 0, %s216
      %s231 = sphi 0, %s217
      %s235 = sphi 0, %s235
      %s237 = sphi 0, %s235
      %s238 = sphi 0, %s237
      %s252 = sphi 0, %s238
      %s256 = sphi 0, %s256
      %s258 = sphi 0, %s256
      %s259 = sphi 0, %s258
      %s273 = sphi 0, %s259
      %s277 = sphi 0, %s277
      %s279 = sphi 0, %s277
      %s280 = sphi 0, %s279
      %s294 = sphi 0, %s280
      %s298 = sphi 0, %s298
      %s300 = sphi 0, %s298
      %s301 = sphi 0, %s300
      %s315 = sphi 0, %s301
      %s319 = sphi 0, %s319
      %s321 = sphi 0, %s319
      %s322 = sphi 0, %s321
      %s336 = sphi 0, %s322
      %s340 = sphi 0, %s340
      %s342 = sphi 0, %s340
      %s343 = sphi 0, %s342
      %s357 = sphi 0, %s343
      %s361 = sphi 0, %s361
      %s363 = sphi 0, %s361
      %s364 = sphi 0, %s363
      %s378 = sphi 0, %s364
      %s384 = sphi 0, %s386
      %s387 = sphi 0, %s384
      %s388 = sphi 0, %s387
      %s404 = sphi 0, %s388
    $region4: #{tpu_custom_call.1} parent=1 // loop_header_branch
      %31 = sbr.rel (%p29) target = $region8
    $region5: #{tpu_custom_call.1} parent=1 // loop_body
      %s33 = ssub.s32 %s28, 1
      %s34 = ssub.s32 %s28, 2
      %s35 = sadd.s32 %s28, 1
      %s36 = ssub.s32 %s28, %s35
      %p37 = scmp.eq.s32.totalorder %s36, 0
      %s39 = sadd.s32 %s38, 1
      %s40 = scalar_select %p37, %s38, %s39
      %p43 = pneg %p37
      %p44 = scmp.eq.s32.totalorder %s28, 3
      %p45 = por %p43, %p44
      %p46 = scmp.ne.s32.totalorder %s38, %s41
      %p47 = scmp.eq.s32.totalorder %s28, 0
      %p48 = por %p46, %p47
      %p49 = scmp.ne.s32.totalorder %s38, %s41
      %p50 = scmp.eq.s32.totalorder %s33, 3
      %p51 = por %p49, %p50
      %p52 = scmp.ne.s32.totalorder %s41, %s42
      %p53 = scmp.eq.s32.totalorder %s33, 0
      %p54 = por %p52, %p53
      %p55 = scmp.ne.s32.totalorder %s41, %s42
      %p56 = scmp.eq.s32.totalorder %s34, 3
      %p57 = por %p55, %p56
      %p59 = scmp.ne.s32.totalorder %s42, %s58
      %p60 = scmp.eq.s32.totalorder %s34, 0
      %p61 = por %p59, %p60
      %s62 = ssub.s32 %s28, %s35
      %p63 = scmp.eq.s32.totalorder %s62, 0
      %s65 = sadd.s32 %s64, 1
      %s66 = scalar_select %p63, %s64, %s65
      %p69 = pneg %p63
      %p70 = scmp.eq.s32.totalorder %s28, 3
      %p71 = por %p69, %p70
      %p72 = scmp.ne.s32.totalorder %s64, %s67
      %p73 = scmp.eq.s32.totalorder %s28, 0
      %p74 = por %p72, %p73
      %p75 = scmp.ne.s32.totalorder %s64, %s67
      %p76 = scmp.eq.s32.totalorder %s33, 3
      %p77 = por %p75, %p76
      %p78 = scmp.ne.s32.totalorder %s67, %s68
      %p79 = scmp.eq.s32.totalorder %s33, 0
      %p80 = por %p78, %p79
      %p81 = scmp.ne.s32.totalorder %s67, %s68
      %p82 = scmp.eq.s32.totalorder %s34, 3
      %p83 = por %p81, %p82
      %p85 = scmp.ne.s32.totalorder %s68, %s84
      %p86 = scmp.eq.s32.totalorder %s34, 0
      %p87 = por %p85, %p86
      %s89 = sadd.s32 %s88, 1
      %p92 = scmp.eq.s32.totalorder %s28, 3
      %p93 = scmp.ne.s32.totalorder %s88, %s90
      %p94 = scmp.eq.s32.totalorder %s28, 0
      %p95 = por %p93, %p94
      %p96 = scmp.ne.s32.totalorder %s88, %s90
      %p97 = scmp.eq.s32.totalorder %s33, 3
      %p98 = por %p96, %p97
      %p99 = scmp.ne.s32.totalorder %s90, %s91
      %p100 = scmp.eq.s32.totalorder %s33, 0
      %p101 = por %p99, %p100
      %p102 = scmp.ne.s32.totalorder %s90, %s91
      %p103 = scmp.eq.s32.totalorder %s34, 3
      %p104 = por %p102, %p103
      %p106 = scmp.ne.s32.totalorder %s91, %s105
      %p107 = scmp.eq.s32.totalorder %s34, 0
      %p108 = por %p106, %p107
      %s110 = sadd.s32 %s109, 1
      %p113 = scmp.eq.s32.totalorder %s28, 3
      %p114 = scmp.ne.s32.totalorder %s109, %s111
      %p115 = scmp.eq.s32.totalorder %s28, 0
      %p116 = por %p114, %p115
      %p117 = scmp.ne.s32.totalorder %s109, %s111
      %p118 = scmp.eq.s32.totalorder %s33, 3
      %p119 = por %p117, %p118
      %p120 = scmp.ne.s32.totalorder %s111, %s112
      %p121 = scmp.eq.s32.totalorder %s33, 0
      %p122 = por %p120, %p121
      %p123 = scmp.ne.s32.totalorder %s111, %s112
      %p124 = scmp.eq.s32.totalorder %s34, 3
      %p125 = por %p123, %p124
      %p127 = scmp.ne.s32.totalorder %s112, %s126
      %p128 = scmp.eq.s32.totalorder %s34, 0
      %p129 = por %p127, %p128
      %s131 = sadd.s32 %s130, 1
      %p134 = scmp.eq.s32.totalorder %s28, 3
      %p135 = scmp.ne.s32.totalorder %s130, %s132
      %p136 = scmp.eq.s32.totalorder %s28, 0
      %p137 = por %p135, %p136
      %p138 = scmp.ne.s32.totalorder %s130, %s132
      %p139 = scmp.eq.s32.totalorder %s33, 3
      %p140 = por %p138, %p139
      %p141 = scmp.ne.s32.totalorder %s132, %s133
      %p142 = scmp.eq.s32.totalorder %s33, 0
      %p143 = por %p141, %p142
      %p144 = scmp.ne.s32.totalorder %s132, %s133
      %p145 = scmp.eq.s32.totalorder %s34, 3
      %p146 = por %p144, %p145
      %p148 = scmp.ne.s32.totalorder %s133, %s147
      %p149 = scmp.eq.s32.totalorder %s34, 0
      %p150 = por %p148, %p149
      %s152 = sadd.s32 %s151, 1
      %p155 = scmp.eq.s32.totalorder %s28, 3
      %p156 = scmp.ne.s32.totalorder %s151, %s153
      %p157 = scmp.eq.s32.totalorder %s28, 0
      %p158 = por %p156, %p157
      %p159 = scmp.ne.s32.totalorder %s151, %s153
      %p160 = scmp.eq.s32.totalorder %s33, 3
      %p161 = por %p159, %p160
      %p162 = scmp.ne.s32.totalorder %s153, %s154
      %p163 = scmp.eq.s32.totalorder %s33, 0
      %p164 = por %p162, %p163
      %p165 = scmp.ne.s32.totalorder %s153, %s154
      %p166 = scmp.eq.s32.totalorder %s34, 3
      %p167 = por %p165, %p166
      %p169 = scmp.ne.s32.totalorder %s154, %s168
      %p170 = scmp.eq.s32.totalorder %s34, 0
      %p171 = por %p169, %p170
      %s173 = sadd.s32 %s172, 1
      %p176 = scmp.eq.s32.totalorder %s28, 3
      %p177 = scmp.ne.s32.totalorder %s172, %s174
      %p178 = scmp.eq.s32.totalorder %s28, 0
      %p179 = por %p177, %p178
      %p180 = scmp.ne.s32.totalorder %s172, %s174
      %p181 = scmp.eq.s32.totalorder %s33, 3
      %p182 = por %p180, %p181
      %p183 = scmp.ne.s32.totalorder %s174, %s175
      %p184 = scmp.eq.s32.totalorder %s33, 0
      %p185 = por %p183, %p184
      %p186 = scmp.ne.s32.totalorder %s174, %s175
      %p187 = scmp.eq.s32.totalorder %s34, 3
      %p188 = por %p186, %p187
      %p190 = scmp.ne.s32.totalorder %s175, %s189
      %p191 = scmp.eq.s32.totalorder %s34, 0
      %p192 = por %p190, %p191
      %s194 = sadd.s32 %s193, 1
      %p197 = scmp.eq.s32.totalorder %s28, 3
      %p198 = scmp.ne.s32.totalorder %s193, %s195
      %p199 = scmp.eq.s32.totalorder %s28, 0
      %p200 = por %p198, %p199
      %p201 = scmp.ne.s32.totalorder %s193, %s195
      %p202 = scmp.eq.s32.totalorder %s33, 3
      %p203 = por %p201, %p202
      %p204 = scmp.ne.s32.totalorder %s195, %s196
      %p205 = scmp.eq.s32.totalorder %s33, 0
      %p206 = por %p204, %p205
      %p207 = scmp.ne.s32.totalorder %s195, %s196
      %p208 = scmp.eq.s32.totalorder %s34, 3
      %p209 = por %p207, %p208
      %p211 = scmp.ne.s32.totalorder %s196, %s210
      %p212 = scmp.eq.s32.totalorder %s34, 0
      %p213 = por %p211, %p212
      %s215 = sadd.s32 %s214, 1
      %p218 = scmp.eq.s32.totalorder %s28, 3
      %p219 = scmp.ne.s32.totalorder %s214, %s216
      %p220 = scmp.eq.s32.totalorder %s28, 0
      %p221 = por %p219, %p220
      %p222 = scmp.ne.s32.totalorder %s214, %s216
      %p223 = scmp.eq.s32.totalorder %s33, 3
      %p224 = por %p222, %p223
      %p225 = scmp.ne.s32.totalorder %s216, %s217
      %p226 = scmp.eq.s32.totalorder %s33, 0
      %p227 = por %p225, %p226
      %p228 = scmp.ne.s32.totalorder %s216, %s217
      %p229 = scmp.eq.s32.totalorder %s34, 3
      %p230 = por %p228, %p229
      %p232 = scmp.ne.s32.totalorder %s217, %s231
      %p233 = scmp.eq.s32.totalorder %s34, 0
      %p234 = por %p232, %p233
      %s236 = sadd.s32 %s235, 1
      %p239 = scmp.eq.s32.totalorder %s28, 3
      %p240 = scmp.ne.s32.totalorder %s235, %s237
      %p241 = scmp.eq.s32.totalorder %s28, 0
      %p242 = por %p240, %p241
      %p243 = scmp.ne.s32.totalorder %s235, %s237
      %p244 = scmp.eq.s32.totalorder %s33, 3
      %p245 = por %p243, %p244
      %p246 = scmp.ne.s32.totalorder %s237, %s238
      %p247 = scmp.eq.s32.totalorder %s33, 0
      %p248 = por %p246, %p247
      %p249 = scmp.ne.s32.totalorder %s237, %s238
      %p250 = scmp.eq.s32.totalorder %s34, 3
      %p251 = por %p249, %p250
      %p253 = scmp.ne.s32.totalorder %s238, %s252
      %p254 = scmp.eq.s32.totalorder %s34, 0
      %p255 = por %p253, %p254
      %s257 = sadd.s32 %s256, 1
      %p260 = scmp.eq.s32.totalorder %s28, 3
      %p261 = scmp.ne.s32.totalorder %s256, %s258
      %p262 = scmp.eq.s32.totalorder %s28, 0
      %p263 = por %p261, %p262
      %p264 = scmp.ne.s32.totalorder %s256, %s258
      %p265 = scmp.eq.s32.totalorder %s33, 3
      %p266 = por %p264, %p265
      %p267 = scmp.ne.s32.totalorder %s258, %s259
      %p268 = scmp.eq.s32.totalorder %s33, 0
      %p269 = por %p267, %p268
      %p270 = scmp.ne.s32.totalorder %s258, %s259
      %p271 = scmp.eq.s32.totalorder %s34, 3
      %p272 = por %p270, %p271
      %p274 = scmp.ne.s32.totalorder %s259, %s273
      %p275 = scmp.eq.s32.totalorder %s34, 0
      %p276 = por %p274, %p275
      %s278 = sadd.s32 %s277, 1
      %p281 = scmp.eq.s32.totalorder %s28, 3
      %p282 = scmp.ne.s32.totalorder %s277, %s279
      %p283 = scmp.eq.s32.totalorder %s28, 0
      %p284 = por %p282, %p283
      %p285 = scmp.ne.s32.totalorder %s277, %s279
      %p286 = scmp.eq.s32.totalorder %s33, 3
      %p287 = por %p285, %p286
      %p288 = scmp.ne.s32.totalorder %s279, %s280
      %p289 = scmp.eq.s32.totalorder %s33, 0
      %p290 = por %p288, %p289
      %p291 = scmp.ne.s32.totalorder %s279, %s280
      %p292 = scmp.eq.s32.totalorder %s34, 3
      %p293 = por %p291, %p292
      %p295 = scmp.ne.s32.totalorder %s280, %s294
      %p296 = scmp.eq.s32.totalorder %s34, 0
      %p297 = por %p295, %p296
      %s299 = sadd.s32 %s298, 1
      %p302 = scmp.eq.s32.totalorder %s28, 3
      %p303 = scmp.ne.s32.totalorder %s298, %s300
      %p304 = scmp.eq.s32.totalorder %s28, 0
      %p305 = por %p303, %p304
      %p306 = scmp.ne.s32.totalorder %s298, %s300
      %p307 = scmp.eq.s32.totalorder %s33, 3
      %p308 = por %p306, %p307
      %p309 = scmp.ne.s32.totalorder %s300, %s301
      %p310 = scmp.eq.s32.totalorder %s33, 0
      %p311 = por %p309, %p310
      %p312 = scmp.ne.s32.totalorder %s300, %s301
      %p313 = scmp.eq.s32.totalorder %s34, 3
      %p314 = por %p312, %p313
      %p316 = scmp.ne.s32.totalorder %s301, %s315
      %p317 = scmp.eq.s32.totalorder %s34, 0
      %p318 = por %p316, %p317
      %s320 = sadd.s32 %s319, 1
      %p323 = scmp.eq.s32.totalorder %s28, 3
      %p324 = scmp.ne.s32.totalorder %s319, %s321
      %p325 = scmp.eq.s32.totalorder %s28, 0
      %p326 = por %p324, %p325
      %p327 = scmp.ne.s32.totalorder %s319, %s321
      %p328 = scmp.eq.s32.totalorder %s33, 3
      %p329 = por %p327, %p328
      %p330 = scmp.ne.s32.totalorder %s321, %s322
      %p331 = scmp.eq.s32.totalorder %s33, 0
      %p332 = por %p330, %p331
      %p333 = scmp.ne.s32.totalorder %s321, %s322
      %p334 = scmp.eq.s32.totalorder %s34, 3
      %p335 = por %p333, %p334
      %p337 = scmp.ne.s32.totalorder %s322, %s336
      %p338 = scmp.eq.s32.totalorder %s34, 0
      %p339 = por %p337, %p338
      %s341 = sadd.s32 %s340, 1
      %p344 = scmp.eq.s32.totalorder %s28, 3
      %p345 = scmp.ne.s32.totalorder %s340, %s342
      %p346 = scmp.eq.s32.totalorder %s28, 0
      %p347 = por %p345, %p346
      %p348 = scmp.ne.s32.totalorder %s340, %s342
      %p349 = scmp.eq.s32.totalorder %s33, 3
      %p350 = por %p348, %p349
      %p351 = scmp.ne.s32.totalorder %s342, %s343
      %p352 = scmp.eq.s32.totalorder %s33, 0
      %p353 = por %p351, %p352
      %p354 = scmp.ne.s32.totalorder %s342, %s343
      %p355 = scmp.eq.s32.totalorder %s34, 3
      %p356 = por %p354, %p355
      %p358 = scmp.ne.s32.totalorder %s343, %s357
      %p359 = scmp.eq.s32.totalorder %s34, 0
      %p360 = por %p358, %p359
      %s362 = sadd.s32 %s361, 1
      %p365 = scmp.eq.s32.totalorder %s28, 3
      %p366 = scmp.ne.s32.totalorder %s361, %s363
      %p367 = scmp.eq.s32.totalorder %s28, 0
      %p368 = por %p366, %p367
      %p369 = scmp.ne.s32.totalorder %s361, %s363
      %p370 = scmp.eq.s32.totalorder %s33, 3
      %p371 = por %p369, %p370
      %p372 = scmp.ne.s32.totalorder %s363, %s364
      %p373 = scmp.eq.s32.totalorder %s33, 0
      %p374 = por %p372, %p373
      %p375 = scmp.ne.s32.totalorder %s363, %s364
      %p376 = scmp.eq.s32.totalorder %s34, 3
      %p377 = por %p375, %p376
      %p379 = scmp.ne.s32.totalorder %s364, %s378
      %p380 = scmp.eq.s32.totalorder %s34, 0
      %p381 = por %p379, %p380
      %s382 = ssub.s32 %s28, %s35
      %p383 = scmp.eq.s32.totalorder %s382, 0
      %s385 = sadd.s32 %s384, 1
      %s386 = scalar_select %p383, %s384, %s385
      %p389 = pneg %p383
      %p390 = scmp.eq.s32.totalorder %s28, 3
      %p391 = por %p389, %p390
      %p392 = scmp.ne.s32.totalorder %s384, %s387
      %p393 = scmp.eq.s32.totalorder %s28, 0
      %p394 = por %p392, %p393
      %p395 = scmp.ne.s32.totalorder %s384, %s387
      %p396 = scmp.eq.s32.totalorder %s33, 3
      %p397 = por %p395, %p396
      %p398 = scmp.ne.s32.totalorder %s387, %s388
      %p399 = scmp.eq.s32.totalorder %s33, 0
      %p400 = por %p398, %p399
      %p401 = scmp.ne.s32.totalorder %s387, %s388
      %p402 = scmp.eq.s32.totalorder %s34, 3
      %p403 = por %p401, %p402
      %p405 = scmp.ne.s32.totalorder %s388, %s404
      %p406 = scmp.eq.s32.totalorder %s34, 0
      %p407 = por %p405, %p406
      %p408 = scmp.le.s32.totalorder 1, %s28
      %p409 = scmp.lt.s32.totalorder %s28, 5
      %p410 = pnand %p408, %p409
      %p411 = pneg %p410
      // Predicated region
      $region9: #{tpu_custom_call.1} parent=5 // pred_check
        _
      $region10: #{tpu_custom_call.1} parent=5 // pred_check_branch
        %413 = sbr.rel (%p410) target = $region12
      $region11: #{tpu_custom_call.1} parent=5 // pred_region
        %s414 = ssub.s32 %s28, 1
        // Predicated region
        $region13: #{tpu_custom_call.1} parent=11 // pred_check
          %p415 = pneg %p101
        $region14: #{tpu_custom_call.1} parent=11 // pred_check_branch
          %417 = sbr.rel (%p415) target = $region16
        $region15: #{tpu_custom_call.1} parent=11 // pred_region
          _
        $region16: #{tpu_custom_call.1} parent=11 // pred_fallthru
          _
        // Predicated region
        $region17: #{tpu_custom_call.1} parent=11 // pred_check
          %p418 = pneg %p122
        $region18: #{tpu_custom_call.1} parent=11 // pred_check_branch
          %420 = sbr.rel (%p418) target = $region20
        $region19: #{tpu_custom_call.1} parent=11 // pred_region
          _
        $region20: #{tpu_custom_call.1} parent=11 // pred_fallthru
          _
        // Predicated region
        $region21: #{tpu_custom_call.1} parent=11 // pred_check
          %p421 = pneg %p143
        $region22: #{tpu_custom_call.1} parent=11 // pred_check_branch
          %423 = sbr.rel (%p421) target = $region24
        $region23: #{tpu_custom_call.1} parent=11 // pred_region
          _
        $region24: #{tpu_custom_call.1} parent=11 // pred_fallthru
          _
        // Predicated region
        $region25: #{tpu_custom_call.1} parent=11 // pred_check
          %p424 = pneg %p164
        $region26: #{tpu_custom_call.1} parent=11 // pred_check_branch
          %426 = sbr.rel (%p424) target = $region28
        $region27: #{tpu_custom_call.1} parent=11 // pred_region
          %s428 = ssub.s32 32768, 32768
          %429 = vsyncadd [#allocation3], %s428
          %s430 = sshll.u32 [#allocation2], 4
          %s431 = int_to_ptr.vmem [resolvable:$true] %s430
          %436 = dma.hbm_to_vmem [thread:$0]  %s5, 32768, %s431, [#allocation3], 512, 512, 32
        $region28: #{tpu_custom_call.1} parent=11 // pred_fallthru
          _
        // Predicated region
        $region29: #{tpu_custom_call.1} parent=11 // pred_check
          %p437 = pneg %p185
        $region30: #{tpu_custom_call.1} parent=11 // pred_check_branch
          %439 = sbr.rel (%p437) target = $region32
        $region31: #{tpu_custom_call.1} parent=11 // pred_region
          %s441 = ssub.s32 16384, 16384
          %442 = vsyncadd [#allocation6], %s441
          %s443 = sshll.u32 [#allocation5], 4
          %s444 = int_to_ptr.vmem [resolvable:$true] %s443
          %449 = dma.hbm_to_vmem [thread:$0]  %s6, 16384, %s444, [#allocation6], 256, 256, 16
        $region32: #{tpu_custom_call.1} parent=11 // pred_fallthru
          _
        // Predicated region
        $region33: #{tpu_custom_call.1} parent=11 // pred_check
          %p450 = pneg %p206
        $region34: #{tpu_custom_call.1} parent=11 // pred_check_branch
          %452 = sbr.rel (%p450) target = $region36
        $region35: #{tpu_custom_call.1} parent=11 // pred_region
          _
        $region36: #{tpu_custom_call.1} parent=11 // pred_fallthru
          _
        // Predicated region
        $region37: #{tpu_custom_call.1} parent=11 // pred_check
          %p453 = pneg %p227
        $region38: #{tpu_custom_call.1} parent=11 // pred_check_branch
          %455 = sbr.rel (%p453) target = $region40
        $region39: #{tpu_custom_call.1} parent=11 // pred_region
          _
        $region40: #{tpu_custom_call.1} parent=11 // pred_fallthru
          _
        // Predicated region
        $region41: #{tpu_custom_call.1} parent=11 // pred_check
          %p456 = pneg %p248
        $region42: #{tpu_custom_call.1} parent=11 // pred_check_branch
          %458 = sbr.rel (%p456) target = $region44
        $region43: #{tpu_custom_call.1} parent=11 // pred_region
          %s460 = ssub.s32 32768, 32768
          %461 = vsyncadd [#allocation6], %s460
          %s462 = sshll.u32 [#allocation7], 4
          %s463 = int_to_ptr.vmem [resolvable:$true] %s462
          %468 = dma.hbm_to_vmem [thread:$0]  %s9, 32768, %s463, [#allocation6], 512, 512, 32
        $region44: #{tpu_custom_call.1} parent=11 // pred_fallthru
          _
        // Predicated region
        $region45: #{tpu_custom_call.1} parent=11 // pred_check
          %p469 = pneg %p269
        $region46: #{tpu_custom_call.1} parent=11 // pred_check_branch
          %471 = sbr.rel (%p469) target = $region48
        $region47: #{tpu_custom_call.1} parent=11 // pred_region
          %s473 = ssub.s32 16384, 16384
          %474 = vsyncadd [#allocation9], %s473
          %s475 = sshll.u32 [#allocation8], 4
          %s476 = int_to_ptr.vmem [resolvable:$true] %s475
          %481 = dma.hbm_to_vmem [thread:$0]  %s10, 16384, %s476, [#allocation9], 256, 256, 16
        $region48: #{tpu_custom_call.1} parent=11 // pred_fallthru
          _
        // Predicated region
        $region49: #{tpu_custom_call.1} parent=11 // pred_check
          %p482 = pneg %p290
        $region50: #{tpu_custom_call.1} parent=11 // pred_check_branch
          %484 = sbr.rel (%p482) target = $region52
        $region51: #{tpu_custom_call.1} parent=11 // pred_region
          _
        $region52: #{tpu_custom_call.1} parent=11 // pred_fallthru
          _
        // Predicated region
        $region53: #{tpu_custom_call.1} parent=11 // pred_check
          %p485 = pneg %p311
        $region54: #{tpu_custom_call.1} parent=11 // pred_check_branch
          %487 = sbr.rel (%p485) target = $region56
        $region55: #{tpu_custom_call.1} parent=11 // pred_region
          _
        $region56: #{tpu_custom_call.1} parent=11 // pred_fallthru
          _
        // Predicated region
        $region57: #{tpu_custom_call.1} parent=11 // pred_check
          %p488 = pneg %p332
        $region58: #{tpu_custom_call.1} parent=11 // pred_check_branch
          %490 = sbr.rel (%p488) target = $region60
        $region59: #{tpu_custom_call.1} parent=11 // pred_region
          _
        $region60: #{tpu_custom_call.1} parent=11 // pred_fallthru
          _
        // Predicated region
        $region61: #{tpu_custom_call.1} parent=11 // pred_check
          %p491 = pneg %p353
        $region62: #{tpu_custom_call.1} parent=11 // pred_check_branch
          %493 = sbr.rel (%p491) target = $region64
        $region63: #{tpu_custom_call.1} parent=11 // pred_region
          _
        $region64: #{tpu_custom_call.1} parent=11 // pred_fallthru
          _
        // Predicated region
        $region65: #{tpu_custom_call.1} parent=11 // pred_check
          %p494 = pneg %p374
        $region66: #{tpu_custom_call.1} parent=11 // pred_check_branch
          %496 = sbr.rel (%p494) target = $region68
        $region67: #{tpu_custom_call.1} parent=11 // pred_region
          _
        $region68: #{tpu_custom_call.1} parent=11 // pred_fallthru
          _
      $region12: #{tpu_custom_call.1} parent=5 // pred_fallthru
        _
      %p497 = scmp.lt.s32.totalorder %s28, 4
      // Predicated region
      $region69: #{tpu_custom_call.1} parent=5 // pred_check
        %p498 = pneg %p497
      $region70: #{tpu_custom_call.1} parent=5 // pred_check_branch
        %500 = sbr.rel (%p498) target = $region72
      $region71: #{tpu_custom_call.1} parent=5 // pred_region
        // Predicated region
        $region73: #{tpu_custom_call.1} parent=71 // pred_check
          %p501 = pneg %p48
        $region74: #{tpu_custom_call.1} parent=71 // pred_check_branch
          %503 = sbr.rel (%p501) target = $region76
        $region75: #{tpu_custom_call.1} parent=71 // pred_region
          %p504 = scmp.lt.s32.totalorder %s28, 3
          %s505 = scalar_select %p504, %s28, 3
          %s506 = smul.addr %s505, 4
          %s507 = smul.addr %s506, 8
          %s508 = scalar_lea.vmem %s0, %s507
        $region76: #{tpu_custom_call.1} parent=71 // pred_fallthru
          _
        // Predicated region
        $region77: #{tpu_custom_call.1} parent=71 // pred_check
          %p509 = pneg %p74
        $region78: #{tpu_custom_call.1} parent=71 // pred_check_branch
          %511 = sbr.rel (%p509) target = $region80
        $region79: #{tpu_custom_call.1} parent=71 // pred_region
          %p512 = scmp.lt.s32.totalorder %s28, 3
          %s513 = scalar_select %p512, %s28, 3
          %s514 = smul.addr %s513, 2
          %s515 = scalar_lea.vmem %s1, %s514
        $region80: #{tpu_custom_call.1} parent=71 // pred_fallthru
          _
      $region72: #{tpu_custom_call.1} parent=5 // pred_fallthru
        _
      %p516 = scmp.le.s32.totalorder 1, %s28
      %p517 = scmp.lt.s32.totalorder %s28, 5
      %p518 = pnand %p516, %p517
      %p519 = pneg %p518
      // Predicated region
      $region81: #{tpu_custom_call.1} parent=5 // pred_check
        _
      $region82: #{tpu_custom_call.1} parent=5 // pred_check_branch
        %521 = sbr.rel (%p518) target = $region84
      $region83: #{tpu_custom_call.1} parent=5 // pred_region
        %s522 = ssub.s32 %s28, 1
        // Predicated region
        $region85: #{tpu_custom_call.1} parent=83 // pred_check
          %p523 = pneg %p164
        $region86: #{tpu_custom_call.1} parent=83 // pred_check_branch
          %525 = sbr.rel (%p523) target = $region88
        $region87: #{tpu_custom_call.1} parent=83 // pred_region
          %526 = dma.done [#allocation3], 32768
        $region88: #{tpu_custom_call.1} parent=83 // pred_fallthru
          _
        // Predicated region
        $region89: #{tpu_custom_call.1} parent=83 // pred_check
          %p527 = pneg %p185
        $region90: #{tpu_custom_call.1} parent=83 // pred_check_branch
          %529 = sbr.rel (%p527) target = $region92
        $region91: #{tpu_custom_call.1} parent=83 // pred_region
          %530 = dma.done [#allocation6], 16384
        $region92: #{tpu_custom_call.1} parent=83 // pred_fallthru
          _
        // Predicated region
        $region93: #{tpu_custom_call.1} parent=83 // pred_check
          %p531 = pneg %p248
        $region94: #{tpu_custom_call.1} parent=83 // pred_check_branch
          %533 = sbr.rel (%p531) target = $region96
        $region95: #{tpu_custom_call.1} parent=83 // pred_region
          %534 = dma.done [#allocation6], 32768
        $region96: #{tpu_custom_call.1} parent=83 // pred_fallthru
          _
        // Predicated region
        $region97: #{tpu_custom_call.1} parent=83 // pred_check
          %p535 = pneg %p269
        $region98: #{tpu_custom_call.1} parent=83 // pred_check_branch
          %537 = sbr.rel (%p535) target = $region100
        $region99: #{tpu_custom_call.1} parent=83 // pred_region
          %538 = dma.done [#allocation9], 16384
        $region100: #{tpu_custom_call.1} parent=83 // pred_fallthru
          _
        %p539 = scmp.lt.s32.totalorder %s33, 3
        %s540 = scalar_select %p539, %s33, 3
        %s541 = smul.addr %s540, 4
        %s542 = smul.addr %s541, 8
        %s543 = scalar_lea.vmem %s0, %s542
        %p544 = pneg %p54
        %p545 = pneg %p51
        %p546 = scmp.lt.s32.totalorder %s33, 3
        %s547 = scalar_select %p546, %s33, 3
        %s548 = smul.addr %s547, 2
        %s549 = scalar_lea.vmem %s1, %s548
        %p550 = pneg %p80
        %p551 = pneg %p77
        %p552 = pneg %p101
        %p553 = pneg %p98
        %p554 = pneg %p122
        %p555 = pneg %p119
        %p556 = pneg %p143
        %p557 = pneg %p140
        %p558 = pneg %p164
        %p559 = pneg %p161
        %p560 = pneg %p185
        %p561 = pneg %p182
        %p562 = pneg %p206
        %p563 = pneg %p203
        %p564 = pneg %p227
        %p565 = pneg %p224
        %p566 = pneg %p248
        %p567 = pneg %p245
        %p568 = pneg %p269
        %p569 = pneg %p266
        %p570 = pneg %p290
        %p571 = pneg %p287
        %p572 = pneg %p311
        %p573 = pneg %p308
        %p574 = pneg %p332
        %p575 = pneg %p329
        %p576 = pneg %p353
        %p577 = pneg %p350
        %p578 = pneg %p374
        %p579 = pneg %p371
        %p580 = pneg %p400
        %p581 = pneg %p397
        %s582 = sand.u32 %s387, 1
        %s583 = scalar_lea.sflag [#allocation4], %s582
        %s584 = sand.u32 %s387, 1
        %s585 = smul.addr %s584, 2
        %s586 = scalar_lea.vmem [#allocation10], %s585
        %p587 = scmp.lt.s32.totalorder %s33, 3
        %s588 = scalar_select %p587, %s33, 3
        %s589 = smul.addr %s588, 4
        %s590 = smul.addr %s589, 8
        %s591 = scalar_lea.vmem %s0, %s590
        %p592 = scmp.lt.s32.totalorder %s33, 3
        %s593 = scalar_select %p592, %s33, 3
        %s594 = smul.addr %s593, 2
        %s595 = scalar_lea.vmem %s1, %s594
        %v596 = vld [vmem:[%s15] sm:$0xff]
        %v597 = vld [vmem:[%s15 + $0x8] sm:$0xff]
        %v598 = vld [vmem:[%s15 + $0x10] sm:$0xff]
        %v599 = vld [vmem:[%s15 + $0x18] sm:$0xff]
        %v600 = vld [vmem:[%s15 + $0x20] sm:$0xff]
        %v601 = vld [vmem:[%s15 + $0x28] sm:$0xff]
        %v602 = vld [vmem:[%s591] sm:$0xff]
        %v603 = vld [vmem:[%s591 + $0x8] sm:$0xff]
        %v604 = vld [vmem:[%s591 + $0x10] sm:$0xff]
        %v605 = vld [vmem:[%s591 + $0x18] sm:$0xff]
        %v606 = vld [vmem:[%s2] sm:$0xff]
        %v607 = vlaneseq
        %v608 = vshrl.u32 %v607, 7
        %v609 = vsub.s32 0, %v608
        %v610 = vrot.slane %v596, %v609
        %vm611 = vcmask 64512
        %v613 = vsel %vm611, %v602, 0
        %v616 = vsel %vm611, %v603, 0
        %v619 = vsel %vm611, %v604, 0
        %v622 = vsel %vm611, %v605, 0
        %624 = vmatprep.subr.mxu0 0.0
        %625 = vmatpush1.msra.mxu0 0.0
        %626 = vmatprep.subr.mxu0 0.0
        %627 = vmatpush1.msra.mxu0 0.0
        %628 = vmatprep.subr.mxu0 0.0
        %629 = vmatpush1.msra.mxu0 0.0
        %630 = vmatprep.subr.mxu0 0.0
        %631 = vmatpush1.msra.mxu0 0.0
        %632 = vmatprep.subr.mxu0 0.0
        %633 = vmatpush1.msra.mxu0 0.0
        %634 = vmatprep.subr.mxu0 0.0
        %635 = vmatpush1.msra.mxu0 0.0
        %636 = vmatprep.subr.mxu0 0.0
        %637 = vmatpush1.msra.mxu0 0.0
        %638 = vmatprep.subr.mxu0 0.0
        %639 = vmatpush1.msra.mxu0 0.0
        %640 = vmatprep.subr.mxu0 0.0
        %641 = vmatpush1.msra.mxu0 0.0
        %642 = vmatprep.subr.mxu0 0.0
        %643 = vmatpush1.msra.mxu0 0.0
        %644 = vmatprep.subr.mxu0 0.0
        %645 = vmatpush1.msra.mxu0 0.0
        %646 = vmatprep.subr.mxu0 0.0
        %647 = vmatpush1.msra.mxu0 0.0
        %648 = vmatprep.subr.mxu0 0.0
        %649 = vmatpush1.msra.mxu0 0.0
        %650 = vmatprep.subr.mxu0 0.0
        %651 = vmatpush1.msra.mxu0 0.0
        %652 = vmatprep.subr.mxu0 0.0
        %653 = vmatpush1.msra.mxu0 0.0
        %654 = vmatprep.subr.mxu0 0.0
        %655 = vmatpush1.msra.mxu0 %v606
        %656 = vmatprep.subr.mxu0 0.0
        %657 = vmatpush2.msra.mxu0 0.0
        %658 = vmatprep.subr.mxu0 0.0
        %659 = vmatpush2.msra.mxu0 0.0
        %660 = vmatprep.subr.mxu0 0.0
        %661 = vmatpush2.msra.mxu0 0.0
        %662 = vmatprep.subr.mxu0 0.0
        %663 = vmatpush2.msra.mxu0 0.0
        %664 = vmatprep.subr.mxu0 0.0
        %665 = vmatpush2.msra.mxu0 0.0
        %666 = vmatprep.subr.mxu0 0.0
        %667 = vmatpush2.msra.mxu0 0.0
        %668 = vmatprep.subr.mxu0 0.0
        %669 = vmatpush2.msra.mxu0 0.0
        %670 = vmatprep.subr.mxu0 0.0
        %671 = vmatpush2.msra.mxu0 0.0
        %672 = vmatprep.subr.mxu0 0.0
        %673 = vmatpush2.msra.mxu0 0.0
        %674 = vmatprep.subr.mxu0 0.0
        %675 = vmatpush2.msra.mxu0 0.0
        %676 = vmatprep.subr.mxu0 0.0
        %677 = vmatpush2.msra.mxu0 0.0
        %678 = vmatprep.subr.mxu0 0.0
        %679 = vmatpush2.msra.mxu0 0.0
        %680 = vmatprep.subr.mxu0 0.0
        %681 = vmatpush2.msra.mxu0 0.0
        %682 = vmatprep.subr.mxu0 0.0
        %683 = vmatpush2.msra.mxu0 0.0
        %684 = vmatprep.subr.mxu0 0.0
        %685 = vmatpush2.msra.mxu0 0.0
        %686 = vmatprep.subr.mxu0 0.0
        %687 = vmatpush2.msra.mxu0 0.0
        %688 = vmatprep.mubr.f32.mxu0 0.0
        %689 = vmatmul.mubr.f32.gmra.mxu0 %v613
        %v690 = vpop.f32.mrf.mxu0
        %v691 = vadd.f32 %v610, %v690
        %v692 = vpop.f32.mrf.mxu0
        %693 = vmatprep.mubr.f32.mxu0 0.0
        %694 = vmatmul.mubr.f32.gmra.mxu0 %v616
        %v695 = vpop.f32.mrf.mxu0
        %v696 = vadd.f32 %v610, %v695
        %v697 = vpop.f32.mrf.mxu0
        %698 = vmatprep.mubr.f32.mxu0 0.0
        %699 = vmatmul.mubr.f32.gmra.mxu0 %v619
        %v700 = vpop.f32.mrf.mxu0
        %v701 = vadd.f32 %v610, %v700
        %v702 = vpop.f32.mrf.mxu0
        %703 = vmatprep.mubr.f32.mxu0 0.0
        %704 = vmatmul.mubr.f32.gmra.mxu0 %v622
        %v705 = vpop.f32.mrf.mxu0
        %v706 = vadd.f32 %v610, %v705
        %v707 = vpop.f32.mrf.mxu0
        %708 = vdwg.mxu0
        %v709 = vld [vmem:[%s3] sm:$0xff]
        %v710 = vld [vmem:[%s3 + $0x8] sm:$0xff]
        %v711 = vld [vmem:[%s3 + $0x10] sm:$0xff]
        %v712 = vld [vmem:[%s3 + $0x18] sm:$0xff]
        %v713 = vlaneseq
        %v714 = vshrl.u32 %v713, 7
        %v715 = vsub.s32 1, %v714
        %v716 = vrot.slane %v596, %v715
        %vm717 = vcmask 261120
        %v719 = vsel %vm717, 0.0, 0
        %721 = vmatprep.subr.mxu0 0.0
        %722 = vmatpush1.msra.mxu0 0.0
        %723 = vmatprep.subr.mxu0 0.0
        %724 = vmatpush1.msra.mxu0 0.0
        %725 = vmatprep.subr.mxu0 0.0
        %726 = vmatpush1.msra.mxu0 0.0
        %727 = vmatprep.subr.mxu0 0.0
        %728 = vmatpush1.msra.mxu0 0.0
        %729 = vmatprep.subr.mxu0 0.0
        %730 = vmatpush1.msra.mxu0 0.0
        %731 = vmatprep.subr.mxu0 0.0
        %732 = vmatpush1.msra.mxu0 0.0
        %733 = vmatprep.subr.mxu0 0.0
        %734 = vmatpush1.msra.mxu0 0.0
        %735 = vmatprep.subr.mxu0 0.0
        %736 = vmatpush1.msra.mxu0 0.0
        %737 = vmatprep.subr.mxu0 0.0
        %738 = vmatpush1.msra.mxu0 0.0
        %739 = vmatprep.subr.mxu0 0.0
        %740 = vmatpush1.msra.mxu0 0.0
        %741 = vmatprep.subr.mxu0 0.0
        %742 = vmatpush1.msra.mxu0 0.0
        %743 = vmatprep.subr.mxu0 0.0
        %744 = vmatpush1.msra.mxu0 0.0
        %745 = vmatprep.subr.mxu0 0.0
        %746 = vmatpush1.msra.mxu0 %v712
        %747 = vmatprep.subr.mxu0 0.0
        %748 = vmatpush1.msra.mxu0 %v711
        %749 = vmatprep.subr.mxu0 0.0
        %750 = vmatpush1.msra.mxu0 %v710
        %751 = vmatprep.subr.mxu0 0.0
        %752 = vmatpush1.msra.mxu0 %v709
        %753 = vmatprep.subr.mxu0 0.0
        %754 = vmatpush2.msra.mxu0 0.0
        %755 = vmatprep.subr.mxu0 0.0
        %756 = vmatpush2.msra.mxu0 0.0
        %757 = vmatprep.subr.mxu0 0.0
        %758 = vmatpush2.msra.mxu0 0.0
        %759 = vmatprep.subr.mxu0 0.0
        %760 = vmatpush2.msra.mxu0 0.0
        %761 = vmatprep.subr.mxu0 0.0
        %762 = vmatpush2.msra.mxu0 0.0
        %763 = vmatprep.subr.mxu0 0.0
        %764 = vmatpush2.msra.mxu0 0.0
        %765 = vmatprep.subr.mxu0 0.0
        %766 = vmatpush2.msra.mxu0 0.0
        %767 = vmatprep.subr.mxu0 0.0
        %768 = vmatpush2.msra.mxu0 0.0
        %769 = vmatprep.subr.mxu0 0.0
        %770 = vmatpush2.msra.mxu0 0.0
        %771 = vmatprep.subr.mxu0 0.0
        %772 = vmatpush2.msra.mxu0 0.0
        %773 = vmatprep.subr.mxu0 0.0
        %774 = vmatpush2.msra.mxu0 0.0
        %775 = vmatprep.subr.mxu0 0.0
        %776 = vmatpush2.msra.mxu0 0.0
        %777 = vmatprep.subr.mxu0 0.0
        %778 = vmatpush2.msra.mxu0 0.0
        %779 = vmatprep.subr.mxu0 0.0
        %780 = vmatpush2.msra.mxu0 0.0
        %781 = vmatprep.subr.mxu0 0.0
        %782 = vmatpush2.msra.mxu0 0.0
        %783 = vmatprep.subr.mxu0 0.0
        %784 = vmatpush2.msra.mxu0 0.0
        %785 = vmatprep.mubr.f32.mxu0 0.0
        %786 = vmatmul.mubr.f32.gmra.mxu0 %v719
        %v787 = vpop.f32.mrf.mxu0
        %v788 = vadd.f32 %v716, %v787
        %v789 = vpop.f32.mrf.mxu0
        %790 = vdwg.mxu0
        %v791 = vadd.f32 %v691, %v788
        %v792 = vxor.u32 %v791, 2147483648
        %v793 = vmul.f32 %v792, 1.442695
        %v794 = vpow.pop %v793
        %v795 = vadd.f32 %v794, 1.0
        %v796 = vrcp.pop %v795
        %v797 = vmul.f32 1.0, %v796
        %799 = vrot.lane.b32.xlu0 %v788, 64
        %v800 = vpop.permute.xlu0 %799
        %v802 = vmul.f32 %v797, %v800
        %804 = vrot.lane.b32.xlu0 %v802, 64
        %v805 = vpop.permute.xlu0 %804
        %v807 = vadd.f32 %v691, %v805
        %v808 = vtanh.pop %v807
        %v809 = vsub.f32 1.0, %v797
        %811 = vrot.lane.b32.xlu0 %v808, 96
        %v812 = vpop.permute.xlu0 %811
        %v814 = vmul.f32 %v809, %v812
        %v815 = vmul.f32 %v797, 0.0
        %v816 = vadd.f32 %v814, %v815
        %818 = vrot.lane.b32.xlu0 %v816, 96
        %v819 = vpop.permute.xlu0 %818
        %v820 = vsel %vm717, %v819, 0
        %822 = vmatprep.subr.mxu0 0.0
        %823 = vmatpush1.msra.mxu0 0.0
        %824 = vmatprep.subr.mxu0 0.0
        %825 = vmatpush1.msra.mxu0 0.0
        %826 = vmatprep.subr.mxu0 0.0
        %827 = vmatpush1.msra.mxu0 0.0
        %828 = vmatprep.subr.mxu0 0.0
        %829 = vmatpush1.msra.mxu0 0.0
        %830 = vmatprep.subr.mxu0 0.0
        %831 = vmatpush1.msra.mxu0 0.0
        %832 = vmatprep.subr.mxu0 0.0
        %833 = vmatpush1.msra.mxu0 0.0
        %834 = vmatprep.subr.mxu0 0.0
        %835 = vmatpush1.msra.mxu0 0.0
        %836 = vmatprep.subr.mxu0 0.0
        %837 = vmatpush1.msra.mxu0 0.0
        %838 = vmatprep.subr.mxu0 0.0
        %839 = vmatpush1.msra.mxu0 0.0
        %840 = vmatprep.subr.mxu0 0.0
        %841 = vmatpush1.msra.mxu0 0.0
        %842 = vmatprep.subr.mxu0 0.0
        %843 = vmatpush1.msra.mxu0 0.0
        %844 = vmatprep.subr.mxu0 0.0
        %845 = vmatpush1.msra.mxu0 0.0
        %846 = vmatprep.subr.mxu0 0.0
        %847 = vmatpush1.msra.mxu0 %v712
        %848 = vmatprep.subr.mxu0 0.0
        %849 = vmatpush1.msra.mxu0 %v711
        %850 = vmatprep.subr.mxu0 0.0
        %851 = vmatpush1.msra.mxu0 %v710
        %852 = vmatprep.subr.mxu0 0.0
        %853 = vmatpush1.msra.mxu0 %v709
        %854 = vmatprep.subr.mxu0 0.0
        %855 = vmatpush2.msra.mxu0 0.0
        %856 = vmatprep.subr.mxu0 0.0
        %857 = vmatpush2.msra.mxu0 0.0
        %858 = vmatprep.subr.mxu0 0.0
        %859 = vmatpush2.msra.mxu0 0.0
        %860 = vmatprep.subr.mxu0 0.0
        %861 = vmatpush2.msra.mxu0 0.0
        %862 = vmatprep.subr.mxu0 0.0
        %863 = vmatpush2.msra.mxu0 0.0
        %864 = vmatprep.subr.mxu0 0.0
        %865 = vmatpush2.msra.mxu0 0.0
        %866 = vmatprep.subr.mxu0 0.0
        %867 = vmatpush2.msra.mxu0 0.0
        %868 = vmatprep.subr.mxu0 0.0
        %869 = vmatpush2.msra.mxu0 0.0
        %870 = vmatprep.subr.mxu0 0.0
        %871 = vmatpush2.msra.mxu0 0.0
        %872 = vmatprep.subr.mxu0 0.0
        %873 = vmatpush2.msra.mxu0 0.0
        %874 = vmatprep.subr.mxu0 0.0
        %875 = vmatpush2.msra.mxu0 0.0
        %876 = vmatprep.subr.mxu0 0.0
        %877 = vmatpush2.msra.mxu0 0.0
        %878 = vmatprep.subr.mxu0 0.0
        %879 = vmatpush2.msra.mxu0 0.0
        %880 = vmatprep.subr.mxu0 0.0
        %881 = vmatpush2.msra.mxu0 0.0
        %882 = vmatprep.subr.mxu0 0.0
        %883 = vmatpush2.msra.mxu0 0.0
        %884 = vmatprep.subr.mxu0 0.0
        %885 = vmatpush2.msra.mxu0 0.0
        %886 = vmatprep.mubr.f32.mxu0 0.0
        %887 = vmatmul.mubr.f32.gmra.mxu0 %v820
        %v888 = vpop.f32.mrf.mxu0
        %v889 = vadd.f32 %v716, %v888
        %v890 = vpop.f32.mrf.mxu0
        %891 = vdwg.mxu0
        %v893 = vrot.slane %v889, 6
        %v895 = vadd.f32 %v691, %v893
        %v896 = vxor.u32 %v895, 2147483648
        %v897 = vmul.f32 %v896, 1.442695
        %v898 = vpow.pop %v897
        %v899 = vadd.f32 %v898, 1.0
        %v900 = vrcp.pop %v899
        %v901 = vmul.f32 1.0, %v900
        %902 = vrot.lane.b32.xlu0 %v893, 64
        %v903 = vpop.permute.xlu0 %902
        %v905 = vmul.f32 %v901, %v903
        %907 = vrot.lane.b32.xlu0 %v905, 64
        %v908 = vpop.permute.xlu0 %907
        %v910 = vadd.f32 %v691, %v908
        %v911 = vtanh.pop %v910
        %v912 = vsub.f32 1.0, %v901
        %914 = vrot.lane.b32.xlu0 %v911, 96
        %v915 = vpop.permute.xlu0 %914
        %v917 = vmul.f32 %v912, %v915
        %v918 = vrot.slane %v816, 6
        %v920 = vmul.f32 %v901, %v918
        %v921 = vadd.f32 %v917, %v920
        %v923 = vrot.slane %v921, 2
        %924 = vrot.lane.b32.xlu0 %v923, 96
        %v925 = vpop.permute.xlu0 %924
        %v926 = vsel %vm717, %v925, 0
        %928 = vmatprep.subr.mxu0 0.0
        %929 = vmatpush1.msra.mxu0 0.0
        %930 = vmatprep.subr.mxu0 0.0
        %931 = vmatpush1.msra.mxu0 0.0
        %932 = vmatprep.subr.mxu0 0.0
        %933 = vmatpush1.msra.mxu0 0.0
        %934 = vmatprep.subr.mxu0 0.0
        %935 = vmatpush1.msra.mxu0 0.0
        %936 = vmatprep.subr.mxu0 0.0
        %937 = vmatpush1.msra.mxu0 0.0
        %938 = vmatprep.subr.mxu0 0.0
        %939 = vmatpush1.msra.mxu0 0.0
        %940 = vmatprep.subr.mxu0 0.0
        %941 = vmatpush1.msra.mxu0 0.0
        %942 = vmatprep.subr.mxu0 0.0
        %943 = vmatpush1.msra.mxu0 0.0
        %944 = vmatprep.subr.mxu0 0.0
        %945 = vmatpush1.msra.mxu0 0.0
        %946 = vmatprep.subr.mxu0 0.0
        %947 = vmatpush1.msra.mxu0 0.0
        %948 = vmatprep.subr.mxu0 0.0
        %949 = vmatpush1.msra.mxu0 0.0
        %950 = vmatprep.subr.mxu0 0.0
        %951 = vmatpush1.msra.mxu0 0.0
        %952 = vmatprep.subr.mxu0 0.0
        %953 = vmatpush1.msra.mxu0 %v712
        %954 = vmatprep.subr.mxu0 0.0
        %955 = vmatpush1.msra.mxu0 %v711
        %956 = vmatprep.subr.mxu0 0.0
        %957 = vmatpush1.msra.mxu0 %v710
        %958 = vmatprep.subr.mxu0 0.0
        %959 = vmatpush1.msra.mxu0 %v709
        %960 = vmatprep.subr.mxu0 0.0
        %961 = vmatpush2.msra.mxu0 0.0
        %962 = vmatprep.subr.mxu0 0.0
        %963 = vmatpush2.msra.mxu0 0.0
        %964 = vmatprep.subr.mxu0 0.0
        %965 = vmatpush2.msra.mxu0 0.0
        %966 = vmatprep.subr.mxu0 0.0
        %967 = vmatpush2.msra.mxu0 0.0
        %968 = vmatprep.subr.mxu0 0.0
        %969 = vmatpush2.msra.mxu0 0.0
        %970 = vmatprep.subr.mxu0 0.0
        %971 = vmatpush2.msra.mxu0 0.0
        %972 = vmatprep.subr.mxu0 0.0
        %973 = vmatpush2.msra.mxu0 0.0
        %974 = vmatprep.subr.mxu0 0.0
        %975 = vmatpush2.msra.mxu0 0.0
        %976 = vmatprep.subr.mxu0 0.0
        %977 = vmatpush2.msra.mxu0 0.0
        %978 = vmatprep.subr.mxu0 0.0
        %979 = vmatpush2.msra.mxu0 0.0
        %980 = vmatprep.subr.mxu0 0.0
        %981 = vmatpush2.msra.mxu0 0.0
        %982 = vmatprep.subr.mxu0 0.0
        %983 = vmatpush2.msra.mxu0 0.0
        %984 = vmatprep.subr.mxu0 0.0
        %985 = vmatpush2.msra.mxu0 0.0
        %986 = vmatprep.subr.mxu0 0.0
        %987 = vmatpush2.msra.mxu0 0.0
        %988 = vmatprep.subr.mxu0 0.0
        %989 = vmatpush2.msra.mxu0 0.0
        %990 = vmatprep.subr.mxu0 0.0
        %991 = vmatpush2.msra.mxu0 0.0
        %992 = vmatprep.mubr.f32.mxu0 0.0
        %993 = vmatmul.mubr.f32.gmra.mxu0 %v926
        %v994 = vpop.f32.mrf.mxu0
        %v995 = vadd.f32 %v716, %v994
        %v996 = vpop.f32.mrf.mxu0
        %997 = vdwg.mxu0
        %v999 = vrot.slane %v995, 4
        %v1001 = vadd.f32 %v691, %v999
        %v1002 = vxor.u32 %v1001, 2147483648
        %v1003 = vmul.f32 %v1002, 1.442695
        %v1004 = vpow.pop %v1003
        %v1005 = vadd.f32 %v1004, 1.0
        %v1006 = vrcp.pop %v1005
        %v1007 = vmul.f32 1.0, %v1006
        %1008 = vrot.lane.b32.xlu0 %v999, 64
        %v1009 = vpop.permute.xlu0 %1008
        %v1011 = vmul.f32 %v1007, %v1009
        %1013 = vrot.lane.b32.xlu0 %v1011, 64
        %v1014 = vpop.permute.xlu0 %1013
        %v1016 = vadd.f32 %v691, %v1014
        %v1017 = vtanh.pop %v1016
        %v1018 = vsub.f32 1.0, %v1007
        %1020 = vrot.lane.b32.xlu0 %v1017, 96
        %v1021 = vpop.permute.xlu0 %1020
        %v1023 = vmul.f32 %v1018, %v1021
        %v1024 = vrot.slane %v921, 6
        %v1026 = vmul.f32 %v1007, %v1024
        %v1027 = vadd.f32 %v1023, %v1026
        %v1029 = vrot.slane %v1027, 4
        %1030 = vrot.lane.b32.xlu0 %v1029, 96
        %v1031 = vpop.permute.xlu0 %1030
        %v1032 = vsel %vm717, %v1031, 0
        %1034 = vmatprep.subr.mxu0 0.0
        %1035 = vmatpush1.msra.mxu0 0.0
        %1036 = vmatprep.subr.mxu0 0.0
        %1037 = vmatpush1.msra.mxu0 0.0
        %1038 = vmatprep.subr.mxu0 0.0
        %1039 = vmatpush1.msra.mxu0 0.0
        %1040 = vmatprep.subr.mxu0 0.0
        %1041 = vmatpush1.msra.mxu0 0.0
        %1042 = vmatprep.subr.mxu0 0.0
        %1043 = vmatpush1.msra.mxu0 0.0
        %1044 = vmatprep.subr.mxu0 0.0
        %1045 = vmatpush1.msra.mxu0 0.0
        %1046 = vmatprep.subr.mxu0 0.0
        %1047 = vmatpush1.msra.mxu0 0.0
        %1048 = vmatprep.subr.mxu0 0.0
        %1049 = vmatpush1.msra.mxu0 0.0
        %1050 = vmatprep.subr.mxu0 0.0
        %1051 = vmatpush1.msra.mxu0 0.0
        %1052 = vmatprep.subr.mxu0 0.0
        %1053 = vmatpush1.msra.mxu0 0.0
        %1054 = vmatprep.subr.mxu0 0.0
        %1055 = vmatpush1.msra.mxu0 0.0
        %1056 = vmatprep.subr.mxu0 0.0
        %1057 = vmatpush1.msra.mxu0 0.0
        %1058 = vmatprep.subr.mxu0 0.0
        %1059 = vmatpush1.msra.mxu0 %v712
        %1060 = vmatprep.subr.mxu0 0.0
        %1061 = vmatpush1.msra.mxu0 %v711
        %1062 = vmatprep.subr.mxu0 0.0
        %1063 = vmatpush1.msra.mxu0 %v710
        %1064 = vmatprep.subr.mxu0 0.0
        %1065 = vmatpush1.msra.mxu0 %v709
        %1066 = vmatprep.subr.mxu0 0.0
        %1067 = vmatpush2.msra.mxu0 0.0
        %1068 = vmatprep.subr.mxu0 0.0
        %1069 = vmatpush2.msra.mxu0 0.0
        %1070 = vmatprep.subr.mxu0 0.0
        %1071 = vmatpush2.msra.mxu0 0.0
        %1072 = vmatprep.subr.mxu0 0.0
        %1073 = vmatpush2.msra.mxu0 0.0
        %1074 = vmatprep.subr.mxu0 0.0
        %1075 = vmatpush2.msra.mxu0 0.0
        %1076 = vmatprep.subr.mxu0 0.0
        %1077 = vmatpush2.msra.mxu0 0.0
        %1078 = vmatprep.subr.mxu0 0.0
        %1079 = vmatpush2.msra.mxu0 0.0
        %1080 = vmatprep.subr.mxu0 0.0
        %1081 = vmatpush2.msra.mxu0 0.0
        %1082 = vmatprep.subr.mxu0 0.0
        %1083 = vmatpush2.msra.mxu0 0.0
        %1084 = vmatprep.subr.mxu0 0.0
        %1085 = vmatpush2.msra.mxu0 0.0
        %1086 = vmatprep.subr.mxu0 0.0
        %1087 = vmatpush2.msra.mxu0 0.0
        %1088 = vmatprep.subr.mxu0 0.0
        %1089 = vmatpush2.msra.mxu0 0.0
        %1090 = vmatprep.subr.mxu0 0.0
        %1091 = vmatpush2.msra.mxu0 0.0
        %1092 = vmatprep.subr.mxu0 0.0
        %1093 = vmatpush2.msra.mxu0 0.0
        %1094 = vmatprep.subr.mxu0 0.0
        %1095 = vmatpush2.msra.mxu0 0.0
        %1096 = vmatprep.subr.mxu0 0.0
        %1097 = vmatpush2.msra.mxu0 0.0
        %1098 = vmatprep.mubr.f32.mxu0 0.0
        %1099 = vmatmul.mubr.f32.gmra.mxu0 %v1032
        %v1100 = vpop.f32.mrf.mxu0
        %v1101 = vadd.f32 %v716, %v1100
        %v1102 = vpop.f32.mrf.mxu0
        %1103 = vdwg.mxu0
        %v1105 = vrot.slane %v1101, 2
        %v1107 = vadd.f32 %v691, %v1105
        %v1108 = vxor.u32 %v1107, 2147483648
        %v1109 = vmul.f32 %v1108, 1.442695
        %v1110 = vpow.pop %v1109
        %v1111 = vadd.f32 %v1110, 1.0
        %v1112 = vrcp.pop %v1111
        %v1113 = vmul.f32 1.0, %v1112
        %1114 = vrot.lane.b32.xlu0 %v1105, 64
        %v1115 = vpop.permute.xlu0 %1114
        %v1117 = vmul.f32 %v1113, %v1115
        %1119 = vrot.lane.b32.xlu0 %v1117, 64
        %v1120 = vpop.permute.xlu0 %1119
        %v1122 = vadd.f32 %v691, %v1120
        %v1123 = vtanh.pop %v1122
        %v1124 = vsub.f32 1.0, %v1113
        %1126 = vrot.lane.b32.xlu0 %v1123, 96
        %v1127 = vpop.permute.xlu0 %1126
        %v1129 = vmul.f32 %v1124, %v1127
        %v1130 = vrot.slane %v1027, 6
        %v1132 = vmul.f32 %v1113, %v1130
        %v1133 = vadd.f32 %v1129, %v1132
        %v1135 = vrot.slane %v1133, 6
        %1136 = vrot.lane.b32.xlu0 %v1135, 96
        %v1137 = vpop.permute.xlu0 %1136
        %v1138 = vsel %vm717, %v1137, 0
        %1140 = vmatprep.subr.mxu0 0.0
        %1141 = vmatpush1.msra.mxu0 0.0
        %1142 = vmatprep.subr.mxu0 0.0
        %1143 = vmatpush1.msra.mxu0 0.0
        %1144 = vmatprep.subr.mxu0 0.0
        %1145 = vmatpush1.msra.mxu0 0.0
        %1146 = vmatprep.subr.mxu0 0.0
        %1147 = vmatpush1.msra.mxu0 0.0
        %1148 = vmatprep.subr.mxu0 0.0
        %1149 = vmatpush1.msra.mxu0 0.0
        %1150 = vmatprep.subr.mxu0 0.0
        %1151 = vmatpush1.msra.mxu0 0.0
        %1152 = vmatprep.subr.mxu0 0.0
        %1153 = vmatpush1.msra.mxu0 0.0
        %1154 = vmatprep.subr.mxu0 0.0
        %1155 = vmatpush1.msra.mxu0 0.0
        %1156 = vmatprep.subr.mxu0 0.0
        %1157 = vmatpush1.msra.mxu0 0.0
        %1158 = vmatprep.subr.mxu0 0.0
        %1159 = vmatpush1.msra.mxu0 0.0
        %1160 = vmatprep.subr.mxu0 0.0
        %1161 = vmatpush1.msra.mxu0 0.0
        %1162 = vmatprep.subr.mxu0 0.0
        %1163 = vmatpush1.msra.mxu0 0.0
        %1164 = vmatprep.subr.mxu0 0.0
        %1165 = vmatpush1.msra.mxu0 %v712
        %1166 = vmatprep.subr.mxu0 0.0
        %1167 = vmatpush1.msra.mxu0 %v711
        %1168 = vmatprep.subr.mxu0 0.0
        %1169 = vmatpush1.msra.mxu0 %v710
        %1170 = vmatprep.subr.mxu0 0.0
        %1171 = vmatpush1.msra.mxu0 %v709
        %1172 = vmatprep.subr.mxu0 0.0
        %1173 = vmatpush2.msra.mxu0 0.0
        %1174 = vmatprep.subr.mxu0 0.0
        %1175 = vmatpush2.msra.mxu0 0.0
        %1176 = vmatprep.subr.mxu0 0.0
        %1177 = vmatpush2.msra.mxu0 0.0
        %1178 = vmatprep.subr.mxu0 0.0
        %1179 = vmatpush2.msra.mxu0 0.0
        %1180 = vmatprep.subr.mxu0 0.0
        %1181 = vmatpush2.msra.mxu0 0.0
        %1182 = vmatprep.subr.mxu0 0.0
        %1183 = vmatpush2.msra.mxu0 0.0
        %1184 = vmatprep.subr.mxu0 0.0
        %1185 = vmatpush2.msra.mxu0 0.0
        %1186 = vmatprep.subr.mxu0 0.0
        %1187 = vmatpush2.msra.mxu0 0.0
        %1188 = vmatprep.subr.mxu0 0.0
        %1189 = vmatpush2.msra.mxu0 0.0
        %1190 = vmatprep.subr.mxu0 0.0
        %1191 = vmatpush2.msra.mxu0 0.0
        %1192 = vmatprep.subr.mxu0 0.0
        %1193 = vmatpush2.msra.mxu0 0.0
        %1194 = vmatprep.subr.mxu0 0.0
        %1195 = vmatpush2.msra.mxu0 0.0
        %1196 = vmatprep.subr.mxu0 0.0
        %1197 = vmatpush2.msra.mxu0 0.0
        %1198 = vmatprep.subr.mxu0 0.0
        %1199 = vmatpush2.msra.mxu0 0.0
        %1200 = vmatprep.subr.mxu0 0.0
        %1201 = vmatpush2.msra.mxu0 0.0
        %1202 = vmatprep.subr.mxu0 0.0
        %1203 = vmatpush2.msra.mxu0 0.0
        %1204 = vmatprep.mubr.f32.mxu0 0.0
        %1205 = vmatmul.mubr.f32.gmra.mxu0 %v1138
        %v1206 = vpop.f32.mrf.mxu0
        %v1207 = vadd.f32 %v716, %v1206
        %v1208 = vpop.f32.mrf.mxu0
        %1209 = vdwg.mxu0
        %v1210 = vadd.f32 %v696, %v1207
        %v1211 = vxor.u32 %v1210, 2147483648
        %v1212 = vmul.f32 %v1211, 1.442695
        %v1213 = vpow.pop %v1212
        %v1214 = vadd.f32 %v1213, 1.0
        %v1215 = vrcp.pop %v1214
        %v1216 = vmul.f32 1.0, %v1215
        %1218 = vrot.lane.b32.xlu0 %v1207, 64
        %v1219 = vpop.permute.xlu0 %1218
        %v1221 = vmul.f32 %v1216, %v1219
        %1223 = vrot.lane.b32.xlu0 %v1221, 64
        %v1224 = vpop.permute.xlu0 %1223
        %v1226 = vadd.f32 %v696, %v1224
        %v1227 = vtanh.pop %v1226
        %v1228 = vsub.f32 1.0, %v1216
        %1230 = vrot.lane.b32.xlu0 %v1227, 96
        %v1231 = vpop.permute.xlu0 %1230
        %v1233 = vmul.f32 %v1228, %v1231
        %v1235 = vmul.f32 %v1216, %v1135
        %v1236 = vadd.f32 %v1233, %v1235
        %1238 = vrot.lane.b32.xlu0 %v1236, 96
        %v1239 = vpop.permute.xlu0 %1238
        %v1240 = vsel %vm717, %v1239, 0
        %1242 = vmatprep.subr.mxu0 0.0
        %1243 = vmatpush1.msra.mxu0 0.0
        %1244 = vmatprep.subr.mxu0 0.0
        %1245 = vmatpush1.msra.mxu0 0.0
        %1246 = vmatprep.subr.mxu0 0.0
        %1247 = vmatpush1.msra.mxu0 0.0
        %1248 = vmatprep.subr.mxu0 0.0
        %1249 = vmatpush1.msra.mxu0 0.0
        %1250 = vmatprep.subr.mxu0 0.0
        %1251 = vmatpush1.msra.mxu0 0.0
        %1252 = vmatprep.subr.mxu0 0.0
        %1253 = vmatpush1.msra.mxu0 0.0
        %1254 = vmatprep.subr.mxu0 0.0
        %1255 = vmatpush1.msra.mxu0 0.0
        %1256 = vmatprep.subr.mxu0 0.0
        %1257 = vmatpush1.msra.mxu0 0.0
        %1258 = vmatprep.subr.mxu0 0.0
        %1259 = vmatpush1.msra.mxu0 0.0
        %1260 = vmatprep.subr.mxu0 0.0
        %1261 = vmatpush1.msra.mxu0 0.0
        %1262 = vmatprep.subr.mxu0 0.0
        %1263 = vmatpush1.msra.mxu0 0.0
        %1264 = vmatprep.subr.mxu0 0.0
        %1265 = vmatpush1.msra.mxu0 0.0
        %1266 = vmatprep.subr.mxu0 0.0
        %1267 = vmatpush1.msra.mxu0 %v712
        %1268 = vmatprep.subr.mxu0 0.0
        %1269 = vmatpush1.msra.mxu0 %v711
        %1270 = vmatprep.subr.mxu0 0.0
        %1271 = vmatpush1.msra.mxu0 %v710
        %1272 = vmatprep.subr.mxu0 0.0
        %1273 = vmatpush1.msra.mxu0 %v709
        %1274 = vmatprep.subr.mxu0 0.0
        %1275 = vmatpush2.msra.mxu0 0.0
        %1276 = vmatprep.subr.mxu0 0.0
        %1277 = vmatpush2.msra.mxu0 0.0
        %1278 = vmatprep.subr.mxu0 0.0
        %1279 = vmatpush2.msra.mxu0 0.0
        %1280 = vmatprep.subr.mxu0 0.0
        %1281 = vmatpush2.msra.mxu0 0.0
        %1282 = vmatprep.subr.mxu0 0.0
        %1283 = vmatpush2.msra.mxu0 0.0
        %1284 = vmatprep.subr.mxu0 0.0
        %1285 = vmatpush2.msra.mxu0 0.0
        %1286 = vmatprep.subr.mxu0 0.0
        %1287 = vmatpush2.msra.mxu0 0.0
        %1288 = vmatprep.subr.mxu0 0.0
        %1289 = vmatpush2.msra.mxu0 0.0
        %1290 = vmatprep.subr.mxu0 0.0
        %1291 = vmatpush2.msra.mxu0 0.0
        %1292 = vmatprep.subr.mxu0 0.0
        %1293 = vmatpush2.msra.mxu0 0.0
        %1294 = vmatprep.subr.mxu0 0.0
        %1295 = vmatpush2.msra.mxu0 0.0
        %1296 = vmatprep.subr.mxu0 0.0
        %1297 = vmatpush2.msra.mxu0 0.0
        %1298 = vmatprep.subr.mxu0 0.0
        %1299 = vmatpush2.msra.mxu0 0.0
        %1300 = vmatprep.subr.mxu0 0.0
        %1301 = vmatpush2.msra.mxu0 0.0
        %1302 = vmatprep.subr.mxu0 0.0
        %1303 = vmatpush2.msra.mxu0 0.0
        %1304 = vmatprep.subr.mxu0 0.0
        %1305 = vmatpush2.msra.mxu0 0.0
        %1306 = vmatprep.mubr.f32.mxu0 0.0
        %1307 = vmatmul.mubr.f32.gmra.mxu0 %v1240
        %v1308 = vpop.f32.mrf.mxu0
        %v1309 = vadd.f32 %v716, %v1308
        %v1310 = vpop.f32.mrf.mxu0
        %1311 = vdwg.mxu0
        %v1313 = vrot.slane %v1309, 6
        %v1315 = vadd.f32 %v696, %v1313
        %v1316 = vxor.u32 %v1315, 2147483648
        %v1317 = vmul.f32 %v1316, 1.442695
        %v1318 = vpow.pop %v1317
        %v1319 = vadd.f32 %v1318, 1.0
        %v1320 = vrcp.pop %v1319
        %v1321 = vmul.f32 1.0, %v1320
        %1322 = vrot.lane.b32.xlu0 %v1313, 64
        %v1323 = vpop.permute.xlu0 %1322
        %v1325 = vmul.f32 %v1321, %v1323
        %1327 = vrot.lane.b32.xlu0 %v1325, 64
        %v1328 = vpop.permute.xlu0 %1327
        %v1330 = vadd.f32 %v696, %v1328
        %v1331 = vtanh.pop %v1330
        %v1332 = vsub.f32 1.0, %v1321
        %1334 = vrot.lane.b32.xlu0 %v1331, 96
        %v1335 = vpop.permute.xlu0 %1334
        %v1337 = vmul.f32 %v1332, %v1335
        %v1338 = vrot.slane %v1236, 6
        %v1340 = vmul.f32 %v1321, %v1338
        %v1341 = vadd.f32 %v1337, %v1340
        %v1343 = vrot.slane %v1341, 2
        %1344 = vrot.lane.b32.xlu0 %v1343, 96
        %v1345 = vpop.permute.xlu0 %1344
        %v1346 = vsel %vm717, %v1345, 0
        %1348 = vmatprep.subr.mxu0 0.0
        %1349 = vmatpush1.msra.mxu0 0.0
        %1350 = vmatprep.subr.mxu0 0.0
        %1351 = vmatpush1.msra.mxu0 0.0
        %1352 = vmatprep.subr.mxu0 0.0
        %1353 = vmatpush1.msra.mxu0 0.0
        %1354 = vmatprep.subr.mxu0 0.0
        %1355 = vmatpush1.msra.mxu0 0.0
        %1356 = vmatprep.subr.mxu0 0.0
        %1357 = vmatpush1.msra.mxu0 0.0
        %1358 = vmatprep.subr.mxu0 0.0
        %1359 = vmatpush1.msra.mxu0 0.0
        %1360 = vmatprep.subr.mxu0 0.0
        %1361 = vmatpush1.msra.mxu0 0.0
        %1362 = vmatprep.subr.mxu0 0.0
        %1363 = vmatpush1.msra.mxu0 0.0
        %1364 = vmatprep.subr.mxu0 0.0
        %1365 = vmatpush1.msra.mxu0 0.0
        %1366 = vmatprep.subr.mxu0 0.0
        %1367 = vmatpush1.msra.mxu0 0.0
        %1368 = vmatprep.subr.mxu0 0.0
        %1369 = vmatpush1.msra.mxu0 0.0
        %1370 = vmatprep.subr.mxu0 0.0
        %1371 = vmatpush1.msra.mxu0 0.0
        %1372 = vmatprep.subr.mxu0 0.0
        %1373 = vmatpush1.msra.mxu0 %v712
        %1374 = vmatprep.subr.mxu0 0.0
        %1375 = vmatpush1.msra.mxu0 %v711
        %1376 = vmatprep.subr.mxu0 0.0
        %1377 = vmatpush1.msra.mxu0 %v710
        %1378 = vmatprep.subr.mxu0 0.0
        %1379 = vmatpush1.msra.mxu0 %v709
        %1380 = vmatprep.subr.mxu0 0.0
        %1381 = vmatpush2.msra.mxu0 0.0
        %1382 = vmatprep.subr.mxu0 0.0
        %1383 = vmatpush2.msra.mxu0 0.0
        %1384 = vmatprep.subr.mxu0 0.0
        %1385 = vmatpush2.msra.mxu0 0.0
        %1386 = vmatprep.subr.mxu0 0.0
        %1387 = vmatpush2.msra.mxu0 0.0
        %1388 = vmatprep.subr.mxu0 0.0
        %1389 = vmatpush2.msra.mxu0 0.0
        %1390 = vmatprep.subr.mxu0 0.0
        %1391 = vmatpush2.msra.mxu0 0.0
        %1392 = vmatprep.subr.mxu0 0.0
        %1393 = vmatpush2.msra.mxu0 0.0
        %1394 = vmatprep.subr.mxu0 0.0
        %1395 = vmatpush2.msra.mxu0 0.0
        %1396 = vmatprep.subr.mxu0 0.0
        %1397 = vmatpush2.msra.mxu0 0.0
        %1398 = vmatprep.subr.mxu0 0.0
        %1399 = vmatpush2.msra.mxu0 0.0
        %1400 = vmatprep.subr.mxu0 0.0
        %1401 = vmatpush2.msra.mxu0 0.0
        %1402 = vmatprep.subr.mxu0 0.0
        %1403 = vmatpush2.msra.mxu0 0.0
        %1404 = vmatprep.subr.mxu0 0.0
        %1405 = vmatpush2.msra.mxu0 0.0
        %1406 = vmatprep.subr.mxu0 0.0
        %1407 = vmatpush2.msra.mxu0 0.0
        %1408 = vmatprep.subr.mxu0 0.0
        %1409 = vmatpush2.msra.mxu0 0.0
        %1410 = vmatprep.subr.mxu0 0.0
        %1411 = vmatpush2.msra.mxu0 0.0
        %1412 = vmatprep.mubr.f32.mxu0 0.0
        %1413 = vmatmul.mubr.f32.gmra.mxu0 %v1346
        %v1414 = vpop.f32.mrf.mxu0
        %v1415 = vadd.f32 %v716, %v1414
        %v1416 = vpop.f32.mrf.mxu0
        %1417 = vdwg.mxu0
        %v1419 = vrot.slane %v1415, 4
        %v1421 = vadd.f32 %v696, %v1419
        %v1422 = vxor.u32 %v1421, 2147483648
        %v1423 = vmul.f32 %v1422, 1.442695
        %v1424 = vpow.pop %v1423
        %v1425 = vadd.f32 %v1424, 1.0
        %v1426 = vrcp.pop %v1425
        %v1427 = vmul.f32 1.0, %v1426
        %1428 = vrot.lane.b32.xlu0 %v1419, 64
        %v1429 = vpop.permute.xlu0 %1428
        %v1431 = vmul.f32 %v1427, %v1429
        %1433 = vrot.lane.b32.xlu0 %v1431, 64
        %v1434 = vpop.permute.xlu0 %1433
        %v1436 = vadd.f32 %v696, %v1434
        %v1437 = vtanh.pop %v1436
        %v1438 = vsub.f32 1.0, %v1427
        %1440 = vrot.lane.b32.xlu0 %v1437, 96
        %v1441 = vpop.permute.xlu0 %1440
        %v1443 = vmul.f32 %v1438, %v1441
        %v1444 = vrot.slane %v1341, 6
        %v1446 = vmul.f32 %v1427, %v1444
        %v1447 = vadd.f32 %v1443, %v1446
        %v1449 = vrot.slane %v1447, 4
        %1450 = vrot.lane.b32.xlu0 %v1449, 96
        %v1451 = vpop.permute.xlu0 %1450
        %v1452 = vsel %vm717, %v1451, 0
        %1454 = vmatprep.subr.mxu0 0.0
        %1455 = vmatpush1.msra.mxu0 0.0
        %1456 = vmatprep.subr.mxu0 0.0
        %1457 = vmatpush1.msra.mxu0 0.0
        %1458 = vmatprep.subr.mxu0 0.0
        %1459 = vmatpush1.msra.mxu0 0.0
        %1460 = vmatprep.subr.mxu0 0.0
        %1461 = vmatpush1.msra.mxu0 0.0
        %1462 = vmatprep.subr.mxu0 0.0
        %1463 = vmatpush1.msra.mxu0 0.0
        %1464 = vmatprep.subr.mxu0 0.0
        %1465 = vmatpush1.msra.mxu0 0.0
        %1466 = vmatprep.subr.mxu0 0.0
        %1467 = vmatpush1.msra.mxu0 0.0
        %1468 = vmatprep.subr.mxu0 0.0
        %1469 = vmatpush1.msra.mxu0 0.0
        %1470 = vmatprep.subr.mxu0 0.0
        %1471 = vmatpush1.msra.mxu0 0.0
        %1472 = vmatprep.subr.mxu0 0.0
        %1473 = vmatpush1.msra.mxu0 0.0
        %1474 = vmatprep.subr.mxu0 0.0
        %1475 = vmatpush1.msra.mxu0 0.0
        %1476 = vmatprep.subr.mxu0 0.0
        %1477 = vmatpush1.msra.mxu0 0.0
        %1478 = vmatprep.subr.mxu0 0.0
        %1479 = vmatpush1.msra.mxu0 %v712
        %1480 = vmatprep.subr.mxu0 0.0
        %1481 = vmatpush1.msra.mxu0 %v711
        %1482 = vmatprep.subr.mxu0 0.0
        %1483 = vmatpush1.msra.mxu0 %v710
        %1484 = vmatprep.subr.mxu0 0.0
        %1485 = vmatpush1.msra.mxu0 %v709
        %1486 = vmatprep.subr.mxu0 0.0
        %1487 = vmatpush2.msra.mxu0 0.0
        %1488 = vmatprep.subr.mxu0 0.0
        %1489 = vmatpush2.msra.mxu0 0.0
        %1490 = vmatprep.subr.mxu0 0.0
        %1491 = vmatpush2.msra.mxu0 0.0
        %1492 = vmatprep.subr.mxu0 0.0
        %1493 = vmatpush2.msra.mxu0 0.0
        %1494 = vmatprep.subr.mxu0 0.0
        %1495 = vmatpush2.msra.mxu0 0.0
        %1496 = vmatprep.subr.mxu0 0.0
        %1497 = vmatpush2.msra.mxu0 0.0
        %1498 = vmatprep.subr.mxu0 0.0
        %1499 = vmatpush2.msra.mxu0 0.0
        %1500 = vmatprep.subr.mxu0 0.0
        %1501 = vmatpush2.msra.mxu0 0.0
        %1502 = vmatprep.subr.mxu0 0.0
        %1503 = vmatpush2.msra.mxu0 0.0
        %1504 = vmatprep.subr.mxu0 0.0
        %1505 = vmatpush2.msra.mxu0 0.0
        %1506 = vmatprep.subr.mxu0 0.0
        %1507 = vmatpush2.msra.mxu0 0.0
        %1508 = vmatprep.subr.mxu0 0.0
        %1509 = vmatpush2.msra.mxu0 0.0
        %1510 = vmatprep.subr.mxu0 0.0
        %1511 = vmatpush2.msra.mxu0 0.0
        %1512 = vmatprep.subr.mxu0 0.0
        %1513 = vmatpush2.msra.mxu0 0.0
        %1514 = vmatprep.subr.mxu0 0.0
        %1515 = vmatpush2.msra.mxu0 0.0
        %1516 = vmatprep.subr.mxu0 0.0
        %1517 = vmatpush2.msra.mxu0 0.0
        %1518 = vmatprep.mubr.f32.mxu0 0.0
        %1519 = vmatmul.mubr.f32.gmra.mxu0 %v1452
        %v1520 = vpop.f32.mrf.mxu0
        %v1521 = vadd.f32 %v716, %v1520
        %v1522 = vpop.f32.mrf.mxu0
        %1523 = vdwg.mxu0
        %v1525 = vrot.slane %v1521, 2
        %v1527 = vadd.f32 %v696, %v1525
        %v1528 = vxor.u32 %v1527, 2147483648
        %v1529 = vmul.f32 %v1528, 1.442695
        %v1530 = vpow.pop %v1529
        %v1531 = vadd.f32 %v1530, 1.0
        %v1532 = vrcp.pop %v1531
        %v1533 = vmul.f32 1.0, %v1532
        %1534 = vrot.lane.b32.xlu0 %v1525, 64
        %v1535 = vpop.permute.xlu0 %1534
        %v1537 = vmul.f32 %v1533, %v1535
        %1539 = vrot.lane.b32.xlu0 %v1537, 64
        %v1540 = vpop.permute.xlu0 %1539
        %v1542 = vadd.f32 %v696, %v1540
        %v1543 = vtanh.pop %v1542
        %v1544 = vsub.f32 1.0, %v1533
        %1546 = vrot.lane.b32.xlu0 %v1543, 96
        %v1547 = vpop.permute.xlu0 %1546
        %v1549 = vmul.f32 %v1544, %v1547
        %v1550 = vrot.slane %v1447, 6
        %v1552 = vmul.f32 %v1533, %v1550
        %v1553 = vadd.f32 %v1549, %v1552
        %v1555 = vrot.slane %v1553, 6
        %1556 = vrot.lane.b32.xlu0 %v1555, 96
        %v1557 = vpop.permute.xlu0 %1556
        %v1558 = vsel %vm717, %v1557, 0
        %1560 = vmatprep.subr.mxu0 0.0
        %1561 = vmatpush1.msra.mxu0 0.0
        %1562 = vmatprep.subr.mxu0 0.0
        %1563 = vmatpush1.msra.mxu0 0.0
        %1564 = vmatprep.subr.mxu0 0.0
        %1565 = vmatpush1.msra.mxu0 0.0
        %1566 = vmatprep.subr.mxu0 0.0
        %1567 = vmatpush1.msra.mxu0 0.0
        %1568 = vmatprep.subr.mxu0 0.0
        %1569 = vmatpush1.msra.mxu0 0.0
        %1570 = vmatprep.subr.mxu0 0.0
        %1571 = vmatpush1.msra.mxu0 0.0
        %1572 = vmatprep.subr.mxu0 0.0
        %1573 = vmatpush1.msra.mxu0 0.0
        %1574 = vmatprep.subr.mxu0 0.0
        %1575 = vmatpush1.msra.mxu0 0.0
        %1576 = vmatprep.subr.mxu0 0.0
        %1577 = vmatpush1.msra.mxu0 0.0
        %1578 = vmatprep.subr.mxu0 0.0
        %1579 = vmatpush1.msra.mxu0 0.0
        %1580 = vmatprep.subr.mxu0 0.0
        %1581 = vmatpush1.msra.mxu0 0.0
        %1582 = vmatprep.subr.mxu0 0.0
        %1583 = vmatpush1.msra.mxu0 0.0
        %1584 = vmatprep.subr.mxu0 0.0
        %1585 = vmatpush1.msra.mxu0 %v712
        %1586 = vmatprep.subr.mxu0 0.0
        %1587 = vmatpush1.msra.mxu0 %v711
        %1588 = vmatprep.subr.mxu0 0.0
        %1589 = vmatpush1.msra.mxu0 %v710
        %1590 = vmatprep.subr.mxu0 0.0
        %1591 = vmatpush1.msra.mxu0 %v709
        %1592 = vmatprep.subr.mxu0 0.0
        %1593 = vmatpush2.msra.mxu0 0.0
        %1594 = vmatprep.subr.mxu0 0.0
        %1595 = vmatpush2.msra.mxu0 0.0
        %1596 = vmatprep.subr.mxu0 0.0
        %1597 = vmatpush2.msra.mxu0 0.0
        %1598 = vmatprep.subr.mxu0 0.0
        %1599 = vmatpush2.msra.mxu0 0.0
        %1600 = vmatprep.subr.mxu0 0.0
        %1601 = vmatpush2.msra.mxu0 0.0
        %1602 = vmatprep.subr.mxu0 0.0
        %1603 = vmatpush2.msra.mxu0 0.0
        %1604 = vmatprep.subr.mxu0 0.0
        %1605 = vmatpush2.msra.mxu0 0.0
        %1606 = vmatprep.subr.mxu0 0.0
        %1607 = vmatpush2.msra.mxu0 0.0
        %1608 = vmatprep.subr.mxu0 0.0
        %1609 = vmatpush2.msra.mxu0 0.0
        %1610 = vmatprep.subr.mxu0 0.0
        %1611 = vmatpush2.msra.mxu0 0.0
        %1612 = vmatprep.subr.mxu0 0.0
        %1613 = vmatpush2.msra.mxu0 0.0
        %1614 = vmatprep.subr.mxu0 0.0
        %1615 = vmatpush2.msra.mxu0 0.0
        %1616 = vmatprep.subr.mxu0 0.0
        %1617 = vmatpush2.msra.mxu0 0.0
        %1618 = vmatprep.subr.mxu0 0.0
        %1619 = vmatpush2.msra.mxu0 0.0
        %1620 = vmatprep.subr.mxu0 0.0
        %1621 = vmatpush2.msra.mxu0 0.0
        %1622 = vmatprep.subr.mxu0 0.0
        %1623 = vmatpush2.msra.mxu0 0.0
        %1624 = vmatprep.mubr.f32.mxu0 0.0
        %1625 = vmatmul.mubr.f32.gmra.mxu0 %v1558
        %v1626 = vpop.f32.mrf.mxu0
        %v1627 = vadd.f32 %v716, %v1626
        %v1628 = vpop.f32.mrf.mxu0
        %1629 = vdwg.mxu0
        %v1630 = vadd.f32 %v701, %v1627
        %v1631 = vxor.u32 %v1630, 2147483648
        %v1632 = vmul.f32 %v1631, 1.442695
        %v1633 = vpow.pop %v1632
        %v1634 = vadd.f32 %v1633, 1.0
        %v1635 = vrcp.pop %v1634
        %v1636 = vmul.f32 1.0, %v1635
        %1638 = vrot.lane.b32.xlu0 %v1627, 64
        %v1639 = vpop.permute.xlu0 %1638
        %v1641 = vmul.f32 %v1636, %v1639
        %1643 = vrot.lane.b32.xlu0 %v1641, 64
        %v1644 = vpop.permute.xlu0 %1643
        %v1646 = vadd.f32 %v701, %v1644
        %v1647 = vtanh.pop %v1646
        %v1648 = vsub.f32 1.0, %v1636
        %1650 = vrot.lane.b32.xlu0 %v1647, 96
        %v1651 = vpop.permute.xlu0 %1650
        %v1653 = vmul.f32 %v1648, %v1651
        %v1655 = vmul.f32 %v1636, %v1555
        %v1656 = vadd.f32 %v1653, %v1655
        %1658 = vrot.lane.b32.xlu0 %v1656, 96
        %v1659 = vpop.permute.xlu0 %1658
        %v1660 = vsel %vm717, %v1659, 0
        %1662 = vmatprep.subr.mxu0 0.0
        %1663 = vmatpush1.msra.mxu0 0.0
        %1664 = vmatprep.subr.mxu0 0.0
        %1665 = vmatpush1.msra.mxu0 0.0
        %1666 = vmatprep.subr.mxu0 0.0
        %1667 = vmatpush1.msra.mxu0 0.0
        %1668 = vmatprep.subr.mxu0 0.0
        %1669 = vmatpush1.msra.mxu0 0.0
        %1670 = vmatprep.subr.mxu0 0.0
        %1671 = vmatpush1.msra.mxu0 0.0
        %1672 = vmatprep.subr.mxu0 0.0
        %1673 = vmatpush1.msra.mxu0 0.0
        %1674 = vmatprep.subr.mxu0 0.0
        %1675 = vmatpush1.msra.mxu0 0.0
        %1676 = vmatprep.subr.mxu0 0.0
        %1677 = vmatpush1.msra.mxu0 0.0
        %1678 = vmatprep.subr.mxu0 0.0
        %1679 = vmatpush1.msra.mxu0 0.0
        %1680 = vmatprep.subr.mxu0 0.0
        %1681 = vmatpush1.msra.mxu0 0.0
        %1682 = vmatprep.subr.mxu0 0.0
        %1683 = vmatpush1.msra.mxu0 0.0
        %1684 = vmatprep.subr.mxu0 0.0
        %1685 = vmatpush1.msra.mxu0 0.0
        %1686 = vmatprep.subr.mxu0 0.0
        %1687 = vmatpush1.msra.mxu0 %v712
        %1688 = vmatprep.subr.mxu0 0.0
        %1689 = vmatpush1.msra.mxu0 %v711
        %1690 = vmatprep.subr.mxu0 0.0
        %1691 = vmatpush1.msra.mxu0 %v710
        %1692 = vmatprep.subr.mxu0 0.0
        %1693 = vmatpush1.msra.mxu0 %v709
        %1694 = vmatprep.subr.mxu0 0.0
        %1695 = vmatpush2.msra.mxu0 0.0
        %1696 = vmatprep.subr.mxu0 0.0
        %1697 = vmatpush2.msra.mxu0 0.0
        %1698 = vmatprep.subr.mxu0 0.0
        %1699 = vmatpush2.msra.mxu0 0.0
        %1700 = vmatprep.subr.mxu0 0.0
        %1701 = vmatpush2.msra.mxu0 0.0
        %1702 = vmatprep.subr.mxu0 0.0
        %1703 = vmatpush2.msra.mxu0 0.0
        %1704 = vmatprep.subr.mxu0 0.0
        %1705 = vmatpush2.msra.mxu0 0.0
        %1706 = vmatprep.subr.mxu0 0.0
        %1707 = vmatpush2.msra.mxu0 0.0
        %1708 = vmatprep.subr.mxu0 0.0
        %1709 = vmatpush2.msra.mxu0 0.0
        %1710 = vmatprep.subr.mxu0 0.0
        %1711 = vmatpush2.msra.mxu0 0.0
        %1712 = vmatprep.subr.mxu0 0.0
        %1713 = vmatpush2.msra.mxu0 0.0
        %1714 = vmatprep.subr.mxu0 0.0
        %1715 = vmatpush2.msra.mxu0 0.0
        %1716 = vmatprep.subr.mxu0 0.0
        %1717 = vmatpush2.msra.mxu0 0.0
        %1718 = vmatprep.subr.mxu0 0.0
        %1719 = vmatpush2.msra.mxu0 0.0
        %1720 = vmatprep.subr.mxu0 0.0
        %1721 = vmatpush2.msra.mxu0 0.0
        %1722 = vmatprep.subr.mxu0 0.0
        %1723 = vmatpush2.msra.mxu0 0.0
        %1724 = vmatprep.subr.mxu0 0.0
        %1725 = vmatpush2.msra.mxu0 0.0
        %1726 = vmatprep.mubr.f32.mxu0 0.0
        %1727 = vmatmul.mubr.f32.gmra.mxu0 %v1660
        %v1728 = vpop.f32.mrf.mxu0
        %v1729 = vadd.f32 %v716, %v1728
        %v1730 = vpop.f32.mrf.mxu0
        %1731 = vdwg.mxu0
        %v1733 = vrot.slane %v1729, 6
        %v1735 = vadd.f32 %v701, %v1733
        %v1736 = vxor.u32 %v1735, 2147483648
        %v1737 = vmul.f32 %v1736, 1.442695
        %v1738 = vpow.pop %v1737
        %v1739 = vadd.f32 %v1738, 1.0
        %v1740 = vrcp.pop %v1739
        %v1741 = vmul.f32 1.0, %v1740
        %1742 = vrot.lane.b32.xlu0 %v1733, 64
        %v1743 = vpop.permute.xlu0 %1742
        %v1745 = vmul.f32 %v1741, %v1743
        %1747 = vrot.lane.b32.xlu0 %v1745, 64
        %v1748 = vpop.permute.xlu0 %1747
        %v1750 = vadd.f32 %v701, %v1748
        %v1751 = vtanh.pop %v1750
        %v1752 = vsub.f32 1.0, %v1741
        %1754 = vrot.lane.b32.xlu0 %v1751, 96
        %v1755 = vpop.permute.xlu0 %1754
        %v1757 = vmul.f32 %v1752, %v1755
        %v1758 = vrot.slane %v1656, 6
        %v1760 = vmul.f32 %v1741, %v1758
        %v1761 = vadd.f32 %v1757, %v1760
        %v1763 = vrot.slane %v1761, 2
        %1764 = vrot.lane.b32.xlu0 %v1763, 96
        %v1765 = vpop.permute.xlu0 %1764
        %v1766 = vsel %vm717, %v1765, 0
        %1768 = vmatprep.subr.mxu0 0.0
        %1769 = vmatpush1.msra.mxu0 0.0
        %1770 = vmatprep.subr.mxu0 0.0
        %1771 = vmatpush1.msra.mxu0 0.0
        %1772 = vmatprep.subr.mxu0 0.0
        %1773 = vmatpush1.msra.mxu0 0.0
        %1774 = vmatprep.subr.mxu0 0.0
        %1775 = vmatpush1.msra.mxu0 0.0
        %1776 = vmatprep.subr.mxu0 0.0
        %1777 = vmatpush1.msra.mxu0 0.0
        %1778 = vmatprep.subr.mxu0 0.0
        %1779 = vmatpush1.msra.mxu0 0.0
        %1780 = vmatprep.subr.mxu0 0.0
        %1781 = vmatpush1.msra.mxu0 0.0
        %1782 = vmatprep.subr.mxu0 0.0
        %1783 = vmatpush1.msra.mxu0 0.0
        %1784 = vmatprep.subr.mxu0 0.0
        %1785 = vmatpush1.msra.mxu0 0.0
        %1786 = vmatprep.subr.mxu0 0.0
        %1787 = vmatpush1.msra.mxu0 0.0
        %1788 = vmatprep.subr.mxu0 0.0
        %1789 = vmatpush1.msra.mxu0 0.0
        %1790 = vmatprep.subr.mxu0 0.0
        %1791 = vmatpush1.msra.mxu0 0.0
        %1792 = vmatprep.subr.mxu0 0.0
        %1793 = vmatpush1.msra.mxu0 %v712
        %1794 = vmatprep.subr.mxu0 0.0
        %1795 = vmatpush1.msra.mxu0 %v711
        %1796 = vmatprep.subr.mxu0 0.0
        %1797 = vmatpush1.msra.mxu0 %v710
        %1798 = vmatprep.subr.mxu0 0.0
        %1799 = vmatpush1.msra.mxu0 %v709
        %1800 = vmatprep.subr.mxu0 0.0
        %1801 = vmatpush2.msra.mxu0 0.0
        %1802 = vmatprep.subr.mxu0 0.0
        %1803 = vmatpush2.msra.mxu0 0.0
        %1804 = vmatprep.subr.mxu0 0.0
        %1805 = vmatpush2.msra.mxu0 0.0
        %1806 = vmatprep.subr.mxu0 0.0
        %1807 = vmatpush2.msra.mxu0 0.0
        %1808 = vmatprep.subr.mxu0 0.0
        %1809 = vmatpush2.msra.mxu0 0.0
        %1810 = vmatprep.subr.mxu0 0.0
        %1811 = vmatpush2.msra.mxu0 0.0
        %1812 = vmatprep.subr.mxu0 0.0
        %1813 = vmatpush2.msra.mxu0 0.0
        %1814 = vmatprep.subr.mxu0 0.0
        %1815 = vmatpush2.msra.mxu0 0.0
        %1816 = vmatprep.subr.mxu0 0.0
        %1817 = vmatpush2.msra.mxu0 0.0
        %1818 = vmatprep.subr.mxu0 0.0
        %1819 = vmatpush2.msra.mxu0 0.0
        %1820 = vmatprep.subr.mxu0 0.0
        %1821 = vmatpush2.msra.mxu0 0.0
        %1822 = vmatprep.subr.mxu0 0.0
        %1823 = vmatpush2.msra.mxu0 0.0
        %1824 = vmatprep.subr.mxu0 0.0
        %1825 = vmatpush2.msra.mxu0 0.0
        %1826 = vmatprep.subr.mxu0 0.0
        %1827 = vmatpush2.msra.mxu0 0.0
        %1828 = vmatprep.subr.mxu0 0.0
        %1829 = vmatpush2.msra.mxu0 0.0
        %1830 = vmatprep.subr.mxu0 0.0
        %1831 = vmatpush2.msra.mxu0 0.0
        %1832 = vmatprep.mubr.f32.mxu0 0.0
        %1833 = vmatmul.mubr.f32.gmra.mxu0 %v1766
        %v1834 = vpop.f32.mrf.mxu0
        %v1835 = vadd.f32 %v716, %v1834
        %v1836 = vpop.f32.mrf.mxu0
        %1837 = vdwg.mxu0
        %v1839 = vrot.slane %v1835, 4
        %v1841 = vadd.f32 %v701, %v1839
        %v1842 = vxor.u32 %v1841, 2147483648
        %v1843 = vmul.f32 %v1842, 1.442695
        %v1844 = vpow.pop %v1843
        %v1845 = vadd.f32 %v1844, 1.0
        %v1846 = vrcp.pop %v1845
        %v1847 = vmul.f32 1.0, %v1846
        %1848 = vrot.lane.b32.xlu0 %v1839, 64
        %v1849 = vpop.permute.xlu0 %1848
        %v1851 = vmul.f32 %v1847, %v1849
        %1853 = vrot.lane.b32.xlu0 %v1851, 64
        %v1854 = vpop.permute.xlu0 %1853
        %v1856 = vadd.f32 %v701, %v1854
        %v1857 = vtanh.pop %v1856
        %v1858 = vsub.f32 1.0, %v1847
        %1860 = vrot.lane.b32.xlu0 %v1857, 96
        %v1861 = vpop.permute.xlu0 %1860
        %v1863 = vmul.f32 %v1858, %v1861
        %v1864 = vrot.slane %v1761, 6
        %v1866 = vmul.f32 %v1847, %v1864
        %v1867 = vadd.f32 %v1863, %v1866
        %v1869 = vrot.slane %v1867, 4
        %1870 = vrot.lane.b32.xlu0 %v1869, 96
        %v1871 = vpop.permute.xlu0 %1870
        %v1872 = vsel %vm717, %v1871, 0
        %1874 = vmatprep.subr.mxu0 0.0
        %1875 = vmatpush1.msra.mxu0 0.0
        %1876 = vmatprep.subr.mxu0 0.0
        %1877 = vmatpush1.msra.mxu0 0.0
        %1878 = vmatprep.subr.mxu0 0.0
        %1879 = vmatpush1.msra.mxu0 0.0
        %1880 = vmatprep.subr.mxu0 0.0
        %1881 = vmatpush1.msra.mxu0 0.0
        %1882 = vmatprep.subr.mxu0 0.0
        %1883 = vmatpush1.msra.mxu0 0.0
        %1884 = vmatprep.subr.mxu0 0.0
        %1885 = vmatpush1.msra.mxu0 0.0
        %1886 = vmatprep.subr.mxu0 0.0
        %1887 = vmatpush1.msra.mxu0 0.0
        %1888 = vmatprep.subr.mxu0 0.0
        %1889 = vmatpush1.msra.mxu0 0.0
        %1890 = vmatprep.subr.mxu0 0.0
        %1891 = vmatpush1.msra.mxu0 0.0
        %1892 = vmatprep.subr.mxu0 0.0
        %1893 = vmatpush1.msra.mxu0 0.0
        %1894 = vmatprep.subr.mxu0 0.0
        %1895 = vmatpush1.msra.mxu0 0.0
        %1896 = vmatprep.subr.mxu0 0.0
        %1897 = vmatpush1.msra.mxu0 0.0
        %1898 = vmatprep.subr.mxu0 0.0
        %1899 = vmatpush1.msra.mxu0 %v712
        %1900 = vmatprep.subr.mxu0 0.0
        %1901 = vmatpush1.msra.mxu0 %v711
        %1902 = vmatprep.subr.mxu0 0.0
        %1903 = vmatpush1.msra.mxu0 %v710
        %1904 = vmatprep.subr.mxu0 0.0
        %1905 = vmatpush1.msra.mxu0 %v709
        %1906 = vmatprep.subr.mxu0 0.0
        %1907 = vmatpush2.msra.mxu0 0.0
        %1908 = vmatprep.subr.mxu0 0.0
        %1909 = vmatpush2.msra.mxu0 0.0
        %1910 = vmatprep.subr.mxu0 0.0
        %1911 = vmatpush2.msra.mxu0 0.0
        %1912 = vmatprep.subr.mxu0 0.0
        %1913 = vmatpush2.msra.mxu0 0.0
        %1914 = vmatprep.subr.mxu0 0.0
        %1915 = vmatpush2.msra.mxu0 0.0
        %1916 = vmatprep.subr.mxu0 0.0
        %1917 = vmatpush2.msra.mxu0 0.0
        %1918 = vmatprep.subr.mxu0 0.0
        %1919 = vmatpush2.msra.mxu0 0.0
        %1920 = vmatprep.subr.mxu0 0.0
        %1921 = vmatpush2.msra.mxu0 0.0
        %1922 = vmatprep.subr.mxu0 0.0
        %1923 = vmatpush2.msra.mxu0 0.0
        %1924 = vmatprep.subr.mxu0 0.0
        %1925 = vmatpush2.msra.mxu0 0.0
        %1926 = vmatprep.subr.mxu0 0.0
        %1927 = vmatpush2.msra.mxu0 0.0
        %1928 = vmatprep.subr.mxu0 0.0
        %1929 = vmatpush2.msra.mxu0 0.0
        %1930 = vmatprep.subr.mxu0 0.0
        %1931 = vmatpush2.msra.mxu0 0.0
        %1932 = vmatprep.subr.mxu0 0.0
        %1933 = vmatpush2.msra.mxu0 0.0
        %1934 = vmatprep.subr.mxu0 0.0
        %1935 = vmatpush2.msra.mxu0 0.0
        %1936 = vmatprep.subr.mxu0 0.0
        %1937 = vmatpush2.msra.mxu0 0.0
        %1938 = vmatprep.mubr.f32.mxu0 0.0
        %1939 = vmatmul.mubr.f32.gmra.mxu0 %v1872
        %v1940 = vpop.f32.mrf.mxu0
        %v1941 = vadd.f32 %v716, %v1940
        %v1942 = vpop.f32.mrf.mxu0
        %1943 = vdwg.mxu0
        %v1945 = vrot.slane %v1941, 2
        %v1947 = vadd.f32 %v701, %v1945
        %v1948 = vxor.u32 %v1947, 2147483648
        %v1949 = vmul.f32 %v1948, 1.442695
        %v1950 = vpow.pop %v1949
        %v1951 = vadd.f32 %v1950, 1.0
        %v1952 = vrcp.pop %v1951
        %v1953 = vmul.f32 1.0, %v1952
        %1954 = vrot.lane.b32.xlu0 %v1945, 64
        %v1955 = vpop.permute.xlu0 %1954
        %v1957 = vmul.f32 %v1953, %v1955
        %1959 = vrot.lane.b32.xlu0 %v1957, 64
        %v1960 = vpop.permute.xlu0 %1959
        %v1962 = vadd.f32 %v701, %v1960
        %v1963 = vtanh.pop %v1962
        %v1964 = vsub.f32 1.0, %v1953
        %1966 = vrot.lane.b32.xlu0 %v1963, 96
        %v1967 = vpop.permute.xlu0 %1966
        %v1969 = vmul.f32 %v1964, %v1967
        %v1970 = vrot.slane %v1867, 6
        %v1972 = vmul.f32 %v1953, %v1970
        %v1973 = vadd.f32 %v1969, %v1972
        %v1975 = vrot.slane %v1973, 6
        %1976 = vrot.lane.b32.xlu0 %v1975, 96
        %v1977 = vpop.permute.xlu0 %1976
        %v1978 = vsel %vm717, %v1977, 0
        %1980 = vmatprep.subr.mxu0 0.0
        %1981 = vmatpush1.msra.mxu0 0.0
        %1982 = vmatprep.subr.mxu0 0.0
        %1983 = vmatpush1.msra.mxu0 0.0
        %1984 = vmatprep.subr.mxu0 0.0
        %1985 = vmatpush1.msra.mxu0 0.0
        %1986 = vmatprep.subr.mxu0 0.0
        %1987 = vmatpush1.msra.mxu0 0.0
        %1988 = vmatprep.subr.mxu0 0.0
        %1989 = vmatpush1.msra.mxu0 0.0
        %1990 = vmatprep.subr.mxu0 0.0
        %1991 = vmatpush1.msra.mxu0 0.0
        %1992 = vmatprep.subr.mxu0 0.0
        %1993 = vmatpush1.msra.mxu0 0.0
        %1994 = vmatprep.subr.mxu0 0.0
        %1995 = vmatpush1.msra.mxu0 0.0
        %1996 = vmatprep.subr.mxu0 0.0
        %1997 = vmatpush1.msra.mxu0 0.0
        %1998 = vmatprep.subr.mxu0 0.0
        %1999 = vmatpush1.msra.mxu0 0.0
        %2000 = vmatprep.subr.mxu0 0.0
        %2001 = vmatpush1.msra.mxu0 0.0
        %2002 = vmatprep.subr.mxu0 0.0
        %2003 = vmatpush1.msra.mxu0 0.0
        %2004 = vmatprep.subr.mxu0 0.0
        %2005 = vmatpush1.msra.mxu0 %v712
        %2006 = vmatprep.subr.mxu0 0.0
        %2007 = vmatpush1.msra.mxu0 %v711
        %2008 = vmatprep.subr.mxu0 0.0
        %2009 = vmatpush1.msra.mxu0 %v710
        %2010 = vmatprep.subr.mxu0 0.0
        %2011 = vmatpush1.msra.mxu0 %v709
        %2012 = vmatprep.subr.mxu0 0.0
        %2013 = vmatpush2.msra.mxu0 0.0
        %2014 = vmatprep.subr.mxu0 0.0
        %2015 = vmatpush2.msra.mxu0 0.0
        %2016 = vmatprep.subr.mxu0 0.0
        %2017 = vmatpush2.msra.mxu0 0.0
        %2018 = vmatprep.subr.mxu0 0.0
        %2019 = vmatpush2.msra.mxu0 0.0
        %2020 = vmatprep.subr.mxu0 0.0
        %2021 = vmatpush2.msra.mxu0 0.0
        %2022 = vmatprep.subr.mxu0 0.0
        %2023 = vmatpush2.msra.mxu0 0.0
        %2024 = vmatprep.subr.mxu0 0.0
        %2025 = vmatpush2.msra.mxu0 0.0
        %2026 = vmatprep.subr.mxu0 0.0
        %2027 = vmatpush2.msra.mxu0 0.0
        %2028 = vmatprep.subr.mxu0 0.0
        %2029 = vmatpush2.msra.mxu0 0.0
        %2030 = vmatprep.subr.mxu0 0.0
        %2031 = vmatpush2.msra.mxu0 0.0
        %2032 = vmatprep.subr.mxu0 0.0
        %2033 = vmatpush2.msra.mxu0 0.0
        %2034 = vmatprep.subr.mxu0 0.0
        %2035 = vmatpush2.msra.mxu0 0.0
        %2036 = vmatprep.subr.mxu0 0.0
        %2037 = vmatpush2.msra.mxu0 0.0
        %2038 = vmatprep.subr.mxu0 0.0
        %2039 = vmatpush2.msra.mxu0 0.0
        %2040 = vmatprep.subr.mxu0 0.0
        %2041 = vmatpush2.msra.mxu0 0.0
        %2042 = vmatprep.subr.mxu0 0.0
        %2043 = vmatpush2.msra.mxu0 0.0
        %2044 = vmatprep.mubr.f32.mxu0 0.0
        %2045 = vmatmul.mubr.f32.gmra.mxu0 %v1978
        %v2046 = vpop.f32.mrf.mxu0
        %v2047 = vadd.f32 %v716, %v2046
        %v2048 = vpop.f32.mrf.mxu0
        %2049 = vdwg.mxu0
        %v2050 = vadd.f32 %v706, %v2047
        %v2051 = vxor.u32 %v2050, 2147483648
        %v2052 = vmul.f32 %v2051, 1.442695
        %v2053 = vpow.pop %v2052
        %v2054 = vadd.f32 %v2053, 1.0
        %v2055 = vrcp.pop %v2054
        %v2056 = vmul.f32 1.0, %v2055
        %2058 = vrot.lane.b32.xlu0 %v2047, 64
        %v2059 = vpop.permute.xlu0 %2058
        %v2061 = vmul.f32 %v2056, %v2059
        %2063 = vrot.lane.b32.xlu0 %v2061, 64
        %v2064 = vpop.permute.xlu0 %2063
        %v2066 = vadd.f32 %v706, %v2064
        %v2067 = vtanh.pop %v2066
        %v2068 = vsub.f32 1.0, %v2056
        %2070 = vrot.lane.b32.xlu0 %v2067, 96
        %v2071 = vpop.permute.xlu0 %2070
        %v2073 = vmul.f32 %v2068, %v2071
        %v2075 = vmul.f32 %v2056, %v1975
        %v2076 = vadd.f32 %v2073, %v2075
        %2078 = vrot.lane.b32.xlu0 %v2076, 96
        %v2079 = vpop.permute.xlu0 %2078
        %v2080 = vsel %vm717, %v2079, 0
        %2082 = vmatprep.subr.mxu0 0.0
        %2083 = vmatpush1.msra.mxu0 0.0
        %2084 = vmatprep.subr.mxu0 0.0
        %2085 = vmatpush1.msra.mxu0 0.0
        %2086 = vmatprep.subr.mxu0 0.0
        %2087 = vmatpush1.msra.mxu0 0.0
        %2088 = vmatprep.subr.mxu0 0.0
        %2089 = vmatpush1.msra.mxu0 0.0
        %2090 = vmatprep.subr.mxu0 0.0
        %2091 = vmatpush1.msra.mxu0 0.0
        %2092 = vmatprep.subr.mxu0 0.0
        %2093 = vmatpush1.msra.mxu0 0.0
        %2094 = vmatprep.subr.mxu0 0.0
        %2095 = vmatpush1.msra.mxu0 0.0
        %2096 = vmatprep.subr.mxu0 0.0
        %2097 = vmatpush1.msra.mxu0 0.0
        %2098 = vmatprep.subr.mxu0 0.0
        %2099 = vmatpush1.msra.mxu0 0.0
        %2100 = vmatprep.subr.mxu0 0.0
        %2101 = vmatpush1.msra.mxu0 0.0
        %2102 = vmatprep.subr.mxu0 0.0
        %2103 = vmatpush1.msra.mxu0 0.0
        %2104 = vmatprep.subr.mxu0 0.0
        %2105 = vmatpush1.msra.mxu0 0.0
        %2106 = vmatprep.subr.mxu0 0.0
        %2107 = vmatpush1.msra.mxu0 %v712
        %2108 = vmatprep.subr.mxu0 0.0
        %2109 = vmatpush1.msra.mxu0 %v711
        %2110 = vmatprep.subr.mxu0 0.0
        %2111 = vmatpush1.msra.mxu0 %v710
        %2112 = vmatprep.subr.mxu0 0.0
        %2113 = vmatpush1.msra.mxu0 %v709
        %2114 = vmatprep.subr.mxu0 0.0
        %2115 = vmatpush2.msra.mxu0 0.0
        %2116 = vmatprep.subr.mxu0 0.0
        %2117 = vmatpush2.msra.mxu0 0.0
        %2118 = vmatprep.subr.mxu0 0.0
        %2119 = vmatpush2.msra.mxu0 0.0
        %2120 = vmatprep.subr.mxu0 0.0
        %2121 = vmatpush2.msra.mxu0 0.0
        %2122 = vmatprep.subr.mxu0 0.0
        %2123 = vmatpush2.msra.mxu0 0.0
        %2124 = vmatprep.subr.mxu0 0.0
        %2125 = vmatpush2.msra.mxu0 0.0
        %2126 = vmatprep.subr.mxu0 0.0
        %2127 = vmatpush2.msra.mxu0 0.0
        %2128 = vmatprep.subr.mxu0 0.0
        %2129 = vmatpush2.msra.mxu0 0.0
        %2130 = vmatprep.subr.mxu0 0.0
        %2131 = vmatpush2.msra.mxu0 0.0
        %2132 = vmatprep.subr.mxu0 0.0
        %2133 = vmatpush2.msra.mxu0 0.0
        %2134 = vmatprep.subr.mxu0 0.0
        %2135 = vmatpush2.msra.mxu0 0.0
        %2136 = vmatprep.subr.mxu0 0.0
        %2137 = vmatpush2.msra.mxu0 0.0
        %2138 = vmatprep.subr.mxu0 0.0
        %2139 = vmatpush2.msra.mxu0 0.0
        %2140 = vmatprep.subr.mxu0 0.0
        %2141 = vmatpush2.msra.mxu0 0.0
        %2142 = vmatprep.subr.mxu0 0.0
        %2143 = vmatpush2.msra.mxu0 0.0
        %2144 = vmatprep.subr.mxu0 0.0
        %2145 = vmatpush2.msra.mxu0 0.0
        %2146 = vmatprep.mubr.f32.mxu0 0.0
        %2147 = vmatmul.mubr.f32.gmra.mxu0 %v2080
        %v2148 = vpop.f32.mrf.mxu0
        %v2149 = vadd.f32 %v716, %v2148
        %v2150 = vpop.f32.mrf.mxu0
        %2151 = vdwg.mxu0
        %v2153 = vrot.slane %v2149, 6
        %v2155 = vadd.f32 %v706, %v2153
        %v2156 = vxor.u32 %v2155, 2147483648
        %v2157 = vmul.f32 %v2156, 1.442695
        %v2158 = vpow.pop %v2157
        %v2159 = vadd.f32 %v2158, 1.0
        %v2160 = vrcp.pop %v2159
        %v2161 = vmul.f32 1.0, %v2160
        %2162 = vrot.lane.b32.xlu0 %v2153, 64
        %v2163 = vpop.permute.xlu0 %2162
        %v2165 = vmul.f32 %v2161, %v2163
        %2167 = vrot.lane.b32.xlu0 %v2165, 64
        %v2168 = vpop.permute.xlu0 %2167
        %v2170 = vadd.f32 %v706, %v2168
        %v2171 = vtanh.pop %v2170
        %v2172 = vsub.f32 1.0, %v2161
        %2174 = vrot.lane.b32.xlu0 %v2171, 96
        %v2175 = vpop.permute.xlu0 %2174
        %v2177 = vmul.f32 %v2172, %v2175
        %v2178 = vrot.slane %v2076, 6
        %v2180 = vmul.f32 %v2161, %v2178
        %v2181 = vadd.f32 %v2177, %v2180
        %v2183 = vrot.slane %v2181, 2
        %2184 = vrot.lane.b32.xlu0 %v2183, 96
        %v2185 = vpop.permute.xlu0 %2184
        %v2186 = vsel %vm717, %v2185, 0
        %2188 = vmatprep.subr.mxu0 0.0
        %2189 = vmatpush1.msra.mxu0 0.0
        %2190 = vmatprep.subr.mxu0 0.0
        %2191 = vmatpush1.msra.mxu0 0.0
        %2192 = vmatprep.subr.mxu0 0.0
        %2193 = vmatpush1.msra.mxu0 0.0
        %2194 = vmatprep.subr.mxu0 0.0
        %2195 = vmatpush1.msra.mxu0 0.0
        %2196 = vmatprep.subr.mxu0 0.0
        %2197 = vmatpush1.msra.mxu0 0.0
        %2198 = vmatprep.subr.mxu0 0.0
        %2199 = vmatpush1.msra.mxu0 0.0
        %2200 = vmatprep.subr.mxu0 0.0
        %2201 = vmatpush1.msra.mxu0 0.0
        %2202 = vmatprep.subr.mxu0 0.0
        %2203 = vmatpush1.msra.mxu0 0.0
        %2204 = vmatprep.subr.mxu0 0.0
        %2205 = vmatpush1.msra.mxu0 0.0
        %2206 = vmatprep.subr.mxu0 0.0
        %2207 = vmatpush1.msra.mxu0 0.0
        %2208 = vmatprep.subr.mxu0 0.0
        %2209 = vmatpush1.msra.mxu0 0.0
        %2210 = vmatprep.subr.mxu0 0.0
        %2211 = vmatpush1.msra.mxu0 0.0
        %2212 = vmatprep.subr.mxu0 0.0
        %2213 = vmatpush1.msra.mxu0 %v712
        %2214 = vmatprep.subr.mxu0 0.0
        %2215 = vmatpush1.msra.mxu0 %v711
        %2216 = vmatprep.subr.mxu0 0.0
        %2217 = vmatpush1.msra.mxu0 %v710
        %2218 = vmatprep.subr.mxu0 0.0
        %2219 = vmatpush1.msra.mxu0 %v709
        %2220 = vmatprep.subr.mxu0 0.0
        %2221 = vmatpush2.msra.mxu0 0.0
        %2222 = vmatprep.subr.mxu0 0.0
        %2223 = vmatpush2.msra.mxu0 0.0
        %2224 = vmatprep.subr.mxu0 0.0
        %2225 = vmatpush2.msra.mxu0 0.0
        %2226 = vmatprep.subr.mxu0 0.0
        %2227 = vmatpush2.msra.mxu0 0.0
        %2228 = vmatprep.subr.mxu0 0.0
        %2229 = vmatpush2.msra.mxu0 0.0
        %2230 = vmatprep.subr.mxu0 0.0
        %2231 = vmatpush2.msra.mxu0 0.0
        %2232 = vmatprep.subr.mxu0 0.0
        %2233 = vmatpush2.msra.mxu0 0.0
        %2234 = vmatprep.subr.mxu0 0.0
        %2235 = vmatpush2.msra.mxu0 0.0
        %2236 = vmatprep.subr.mxu0 0.0
        %2237 = vmatpush2.msra.mxu0 0.0
        %2238 = vmatprep.subr.mxu0 0.0
        %2239 = vmatpush2.msra.mxu0 0.0
        %2240 = vmatprep.subr.mxu0 0.0
        %2241 = vmatpush2.msra.mxu0 0.0
        %2242 = vmatprep.subr.mxu0 0.0
        %2243 = vmatpush2.msra.mxu0 0.0
        %2244 = vmatprep.subr.mxu0 0.0
        %2245 = vmatpush2.msra.mxu0 0.0
        %2246 = vmatprep.subr.mxu0 0.0
        %2247 = vmatpush2.msra.mxu0 0.0
        %2248 = vmatprep.subr.mxu0 0.0
        %2249 = vmatpush2.msra.mxu0 0.0
        %2250 = vmatprep.subr.mxu0 0.0
        %2251 = vmatpush2.msra.mxu0 0.0
        %2252 = vmatprep.mubr.f32.mxu0 0.0
        %2253 = vmatmul.mubr.f32.gmra.mxu0 %v2186
        %v2254 = vpop.f32.mrf.mxu0
        %v2255 = vadd.f32 %v716, %v2254
        %v2256 = vpop.f32.mrf.mxu0
        %2257 = vdwg.mxu0
        %v2259 = vrot.slane %v2255, 4
        %v2261 = vadd.f32 %v706, %v2259
        %v2262 = vxor.u32 %v2261, 2147483648
        %v2263 = vmul.f32 %v2262, 1.442695
        %v2264 = vpow.pop %v2263
        %v2265 = vadd.f32 %v2264, 1.0
        %v2266 = vrcp.pop %v2265
        %v2267 = vmul.f32 1.0, %v2266
        %2268 = vrot.lane.b32.xlu0 %v2259, 64
        %v2269 = vpop.permute.xlu0 %2268
        %v2271 = vmul.f32 %v2267, %v2269
        %2273 = vrot.lane.b32.xlu0 %v2271, 64
        %v2274 = vpop.permute.xlu0 %2273
        %v2276 = vadd.f32 %v706, %v2274
        %v2277 = vtanh.pop %v2276
        %v2278 = vsub.f32 1.0, %v2267
        %2280 = vrot.lane.b32.xlu0 %v2277, 96
        %v2281 = vpop.permute.xlu0 %2280
        %v2283 = vmul.f32 %v2278, %v2281
        %v2284 = vrot.slane %v2181, 6
        %v2286 = vmul.f32 %v2267, %v2284
        %v2287 = vadd.f32 %v2283, %v2286
        %v2289 = vrot.slane %v2287, 4
        %2290 = vrot.lane.b32.xlu0 %v2289, 96
        %v2291 = vpop.permute.xlu0 %2290
        %v2292 = vsel %vm717, %v2291, 0
        %2294 = vmatprep.subr.mxu0 0.0
        %2295 = vmatpush1.msra.mxu0 0.0
        %2296 = vmatprep.subr.mxu0 0.0
        %2297 = vmatpush1.msra.mxu0 0.0
        %2298 = vmatprep.subr.mxu0 0.0
        %2299 = vmatpush1.msra.mxu0 0.0
        %2300 = vmatprep.subr.mxu0 0.0
        %2301 = vmatpush1.msra.mxu0 0.0
        %2302 = vmatprep.subr.mxu0 0.0
        %2303 = vmatpush1.msra.mxu0 0.0
        %2304 = vmatprep.subr.mxu0 0.0
        %2305 = vmatpush1.msra.mxu0 0.0
        %2306 = vmatprep.subr.mxu0 0.0
        %2307 = vmatpush1.msra.mxu0 0.0
        %2308 = vmatprep.subr.mxu0 0.0
        %2309 = vmatpush1.msra.mxu0 0.0
        %2310 = vmatprep.subr.mxu0 0.0
        %2311 = vmatpush1.msra.mxu0 0.0
        %2312 = vmatprep.subr.mxu0 0.0
        %2313 = vmatpush1.msra.mxu0 0.0
        %2314 = vmatprep.subr.mxu0 0.0
        %2315 = vmatpush1.msra.mxu0 0.0
        %2316 = vmatprep.subr.mxu0 0.0
        %2317 = vmatpush1.msra.mxu0 0.0
        %2318 = vmatprep.subr.mxu0 0.0
        %2319 = vmatpush1.msra.mxu0 %v712
        %2320 = vmatprep.subr.mxu0 0.0
        %2321 = vmatpush1.msra.mxu0 %v711
        %2322 = vmatprep.subr.mxu0 0.0
        %2323 = vmatpush1.msra.mxu0 %v710
        %2324 = vmatprep.subr.mxu0 0.0
        %2325 = vmatpush1.msra.mxu0 %v709
        %2326 = vmatprep.subr.mxu0 0.0
        %2327 = vmatpush2.msra.mxu0 0.0
        %2328 = vmatprep.subr.mxu0 0.0
        %2329 = vmatpush2.msra.mxu0 0.0
        %2330 = vmatprep.subr.mxu0 0.0
        %2331 = vmatpush2.msra.mxu0 0.0
        %2332 = vmatprep.subr.mxu0 0.0
        %2333 = vmatpush2.msra.mxu0 0.0
        %2334 = vmatprep.subr.mxu0 0.0
        %2335 = vmatpush2.msra.mxu0 0.0
        %2336 = vmatprep.subr.mxu0 0.0
        %2337 = vmatpush2.msra.mxu0 0.0
        %2338 = vmatprep.subr.mxu0 0.0
        %2339 = vmatpush2.msra.mxu0 0.0
        %2340 = vmatprep.subr.mxu0 0.0
        %2341 = vmatpush2.msra.mxu0 0.0
        %2342 = vmatprep.subr.mxu0 0.0
        %2343 = vmatpush2.msra.mxu0 0.0
        %2344 = vmatprep.subr.mxu0 0.0
        %2345 = vmatpush2.msra.mxu0 0.0
        %2346 = vmatprep.subr.mxu0 0.0
        %2347 = vmatpush2.msra.mxu0 0.0
        %2348 = vmatprep.subr.mxu0 0.0
        %2349 = vmatpush2.msra.mxu0 0.0
        %2350 = vmatprep.subr.mxu0 0.0
        %2351 = vmatpush2.msra.mxu0 0.0
        %2352 = vmatprep.subr.mxu0 0.0
        %2353 = vmatpush2.msra.mxu0 0.0
        %2354 = vmatprep.subr.mxu0 0.0
        %2355 = vmatpush2.msra.mxu0 0.0
        %2356 = vmatprep.subr.mxu0 0.0
        %2357 = vmatpush2.msra.mxu0 0.0
        %2358 = vmatprep.mubr.f32.mxu0 0.0
        %2359 = vmatmul.mubr.f32.gmra.mxu0 %v2292
        %v2360 = vpop.f32.mrf.mxu0
        %v2361 = vadd.f32 %v716, %v2360
        %v2362 = vpop.f32.mrf.mxu0
        %2363 = vdwg.mxu0
        %v2365 = vrot.slane %v2361, 2
        %v2367 = vadd.f32 %v706, %v2365
        %v2368 = vxor.u32 %v2367, 2147483648
        %v2369 = vmul.f32 %v2368, 1.442695
        %v2370 = vpow.pop %v2369
        %v2371 = vadd.f32 %v2370, 1.0
        %v2372 = vrcp.pop %v2371
        %v2373 = vmul.f32 1.0, %v2372
        %2374 = vrot.lane.b32.xlu0 %v2365, 64
        %v2375 = vpop.permute.xlu0 %2374
        %v2377 = vmul.f32 %v2373, %v2375
        %2379 = vrot.lane.b32.xlu0 %v2377, 64
        %v2380 = vpop.permute.xlu0 %2379
        %v2382 = vadd.f32 %v706, %v2380
        %v2383 = vtanh.pop %v2382
        %v2384 = vsub.f32 1.0, %v2373
        %2386 = vrot.lane.b32.xlu0 %v2383, 96
        %v2387 = vpop.permute.xlu0 %2386
        %v2389 = vmul.f32 %v2384, %v2387
        %v2390 = vrot.slane %v2287, 6
        %v2392 = vmul.f32 %v2373, %v2390
        %v2393 = vadd.f32 %v2389, %v2392
        %v2394 = vld [vmem:[%s595] sm:$0x3]
        %2396 = vrot.lane.b32.xlu0 %v2393, 96
        %v2397 = vpop.permute.xlu0 %2396
        %v2400 = vrot.slane %v2394, 2
        %2401 = vrot.lane.b32.xlu0 %v2400, 32
        %v2402 = vpop.permute.xlu0 %2401
        %v2404 = vsel %vm717, %v2397, %v2402
        %v2405 = vld [vmem:[%s4] sm:$0xff]
        %v2406 = vld [vmem:[%s4 + $0x8] sm:$0xff]
        %v2407 = vld [vmem:[%s4 + $0x10] sm:$0xff]
        %v2408 = vld [vmem:[%s4 + $0x18] sm:$0xff]
        %v2409 = vld [vmem:[%s4 + $0x20] sm:$0xff]
        %v2410 = vld [vmem:[%s4 + $0x28] sm:$0xff]
        %v2411 = vld [vmem:[%s4 + $0x30] sm:$0xff]
        %v2412 = vld [vmem:[%s4 + $0x38] sm:$0xff]
        %v2413 = vld [vmem:[%s4 + $0x40] sm:$0xff]
        %v2414 = vld [vmem:[%s4 + $0x48] sm:$0xff]
        %v2415 = vld [vmem:[%s4 + $0x50] sm:$0xff]
        %v2416 = vld [vmem:[%s4 + $0x58] sm:$0xff]
        %v2417 = vld [vmem:[%s4 + $0x60] sm:$0xff]
        %v2418 = vld [vmem:[%s4 + $0x68] sm:$0xff]
        %v2419 = vld [vmem:[%s4 + $0x70] sm:$0xff]
        %v2420 = vld [vmem:[%s4 + $0x78] sm:$0xff]
        %v2421 = vld [vmem:[%s4 + $0x80] sm:$0x3]
        %v2422 = vld [vmem:[%s4 + $0x88] sm:$0x3]
        %v2423 = vld [vmem:[%s4 + $0x90] sm:$0x3]
        %v2424 = vld [vmem:[%s4 + $0x98] sm:$0x3]
        %v2425 = vlaneseq
        %v2426 = vshrl.u32 %v2425, 7
        %v2427 = vsub.s32 2, %v2426
        %v2428 = vrot.slane %v596, %v2427
        %v2429 = vlaneseq
        %v2430 = vshrl.u32 %v2429, 7
        %v2431 = vsub.s32 2, %v2430
        %v2432 = vrot.slane %v597, %v2431
        %v2433 = vlaneseq
        %v2434 = vshrl.u32 %v2433, 7
        %v2435 = vsub.s32 2, %v2434
        %v2436 = vrot.slane %v598, %v2435
        %v2437 = vlaneseq
        %v2438 = vshrl.u32 %v2437, 7
        %v2439 = vsub.s32 2, %v2438
        %v2440 = vrot.slane %v599, %v2439
        %v2442 = vrot.slane %v2404, 6
        %vm2443 = vcmask 277504
        %v2444 = vsel %vm2443, %v2442, 0
        %vm2446 = vcmask 1041408
        %v2448 = vsel %vm2446, %v2421, 0
        %v2451 = vsel %vm2446, %v2422, 0
        %v2454 = vsel %vm2446, %v2423, 0
        %v2457 = vsel %vm2446, %v2424, 0
        %2459 = vmatprep.subr.mxu0 0.0
        %2460 = vmatpush1.msra.mxu0 0.0
        %2461 = vmatprep.subr.mxu0 0.0
        %2462 = vmatpush1.msra.mxu0 0.0
        %2463 = vmatprep.subr.mxu0 0.0
        %2464 = vmatpush1.msra.mxu0 0.0
        %2465 = vmatprep.subr.mxu0 0.0
        %2466 = vmatpush1.msra.mxu0 0.0
        %2467 = vmatprep.subr.mxu0 0.0
        %2468 = vmatpush1.msra.mxu0 0.0
        %2469 = vmatprep.subr.mxu0 0.0
        %2470 = vmatpush1.msra.mxu0 0.0
        %2471 = vmatprep.subr.mxu0 0.0
        %2472 = vmatpush1.msra.mxu0 0.0
        %2473 = vmatprep.subr.mxu0 0.0
        %2474 = vmatpush1.msra.mxu0 0.0
        %2475 = vmatprep.subr.mxu0 0.0
        %2476 = vmatpush1.msra.mxu0 0.0
        %2477 = vmatprep.subr.mxu0 0.0
        %2478 = vmatpush1.msra.mxu0 0.0
        %2479 = vmatprep.subr.mxu0 0.0
        %2480 = vmatpush1.msra.mxu0 0.0
        %2481 = vmatprep.subr.mxu0 %v2451
        %2482 = vmatpush1.msra.mxu0 %v2448
        %2483 = vmatprep.subr.mxu0 %v2418
        %2484 = vmatpush1.msra.mxu0 %v2417
        %2485 = vmatprep.subr.mxu0 %v2414
        %2486 = vmatpush1.msra.mxu0 %v2413
        %2487 = vmatprep.subr.mxu0 %v2410
        %2488 = vmatpush1.msra.mxu0 %v2409
        %2489 = vmatprep.subr.mxu0 %v2406
        %2490 = vmatpush1.msra.mxu0 %v2405
        %2491 = vmatprep.subr.mxu0 0.0
        %2492 = vmatpush2.msra.mxu0 0.0
        %2493 = vmatprep.subr.mxu0 0.0
        %2494 = vmatpush2.msra.mxu0 0.0
        %2495 = vmatprep.subr.mxu0 0.0
        %2496 = vmatpush2.msra.mxu0 0.0
        %2497 = vmatprep.subr.mxu0 0.0
        %2498 = vmatpush2.msra.mxu0 0.0
        %2499 = vmatprep.subr.mxu0 0.0
        %2500 = vmatpush2.msra.mxu0 0.0
        %2501 = vmatprep.subr.mxu0 0.0
        %2502 = vmatpush2.msra.mxu0 0.0
        %2503 = vmatprep.subr.mxu0 0.0
        %2504 = vmatpush2.msra.mxu0 0.0
        %2505 = vmatprep.subr.mxu0 0.0
        %2506 = vmatpush2.msra.mxu0 0.0
        %2507 = vmatprep.subr.mxu0 0.0
        %2508 = vmatpush2.msra.mxu0 0.0
        %2509 = vmatprep.subr.mxu0 0.0
        %2510 = vmatpush2.msra.mxu0 0.0
        %2511 = vmatprep.subr.mxu0 0.0
        %2512 = vmatpush2.msra.mxu0 0.0
        %2513 = vmatprep.subr.mxu0 0.0
        %2514 = vmatpush2.msra.mxu0 0.0
        %2515 = vmatprep.subr.mxu0 0.0
        %2516 = vmatpush2.msra.mxu0 0.0
        %2517 = vmatprep.subr.mxu0 0.0
        %2518 = vmatpush2.msra.mxu0 0.0
        %2519 = vmatprep.subr.mxu0 0.0
        %2520 = vmatpush2.msra.mxu0 0.0
        %2521 = vmatprep.subr.mxu0 0.0
        %2522 = vmatpush2.msra.mxu0 0.0
        %2523 = vmatprep.mubr.f32.mxu0 0.0
        %2524 = vmatmul.mubr.f32.gmra.mxu0 %v2444
        %v2525 = vpop.f32.mrf.mxu0
        %v2526 = vadd.f32 %v2428, %v2525
        %v2527 = vpop.f32.mrf.mxu0
        %v2528 = vadd.f32 %v2432, %v2527
        %2529 = vdwg.mxu0
        %2530 = vmatprep.subr.mxu0 0.0
        %2531 = vmatpush1.msra.mxu0 0.0
        %2532 = vmatprep.subr.mxu0 0.0
        %2533 = vmatpush1.msra.mxu0 0.0
        %2534 = vmatprep.subr.mxu0 0.0
        %2535 = vmatpush1.msra.mxu0 0.0
        %2536 = vmatprep.subr.mxu0 0.0
        %2537 = vmatpush1.msra.mxu0 0.0
        %2538 = vmatprep.subr.mxu0 0.0
        %2539 = vmatpush1.msra.mxu0 0.0
        %2540 = vmatprep.subr.mxu0 0.0
        %2541 = vmatpush1.msra.mxu0 0.0
        %2542 = vmatprep.subr.mxu0 0.0
        %2543 = vmatpush1.msra.mxu0 0.0
        %2544 = vmatprep.subr.mxu0 0.0
        %2545 = vmatpush1.msra.mxu0 0.0
        %2546 = vmatprep.subr.mxu0 0.0
        %2547 = vmatpush1.msra.mxu0 0.0
        %2548 = vmatprep.subr.mxu0 0.0
        %2549 = vmatpush1.msra.mxu0 0.0
        %2550 = vmatprep.subr.mxu0 0.0
        %2551 = vmatpush1.msra.mxu0 0.0
        %2552 = vmatprep.subr.mxu0 %v2457
        %2553 = vmatpush1.msra.mxu0 %v2454
        %2554 = vmatprep.subr.mxu0 %v2420
        %2555 = vmatpush1.msra.mxu0 %v2419
        %2556 = vmatprep.subr.mxu0 %v2416
        %2557 = vmatpush1.msra.mxu0 %v2415
        %2558 = vmatprep.subr.mxu0 %v2412
        %2559 = vmatpush1.msra.mxu0 %v2411
        %2560 = vmatprep.subr.mxu0 %v2408
        %2561 = vmatpush1.msra.mxu0 %v2407
        %2562 = vmatprep.subr.mxu0 0.0
        %2563 = vmatpush2.msra.mxu0 0.0
        %2564 = vmatprep.subr.mxu0 0.0
        %2565 = vmatpush2.msra.mxu0 0.0
        %2566 = vmatprep.subr.mxu0 0.0
        %2567 = vmatpush2.msra.mxu0 0.0
        %2568 = vmatprep.subr.mxu0 0.0
        %2569 = vmatpush2.msra.mxu0 0.0
        %2570 = vmatprep.subr.mxu0 0.0
        %2571 = vmatpush2.msra.mxu0 0.0
        %2572 = vmatprep.subr.mxu0 0.0
        %2573 = vmatpush2.msra.mxu0 0.0
        %2574 = vmatprep.subr.mxu0 0.0
        %2575 = vmatpush2.msra.mxu0 0.0
        %2576 = vmatprep.subr.mxu0 0.0
        %2577 = vmatpush2.msra.mxu0 0.0
        %2578 = vmatprep.subr.mxu0 0.0
        %2579 = vmatpush2.msra.mxu0 0.0
        %2580 = vmatprep.subr.mxu0 0.0
        %2581 = vmatpush2.msra.mxu0 0.0
        %2582 = vmatprep.subr.mxu0 0.0
        %2583 = vmatpush2.msra.mxu0 0.0
        %2584 = vmatprep.subr.mxu0 0.0
        %2585 = vmatpush2.msra.mxu0 0.0
        %2586 = vmatprep.subr.mxu0 0.0
        %2587 = vmatpush2.msra.mxu0 0.0
        %2588 = vmatprep.subr.mxu0 0.0
        %2589 = vmatpush2.msra.mxu0 0.0
        %2590 = vmatprep.subr.mxu0 0.0
        %2591 = vmatpush2.msra.mxu0 0.0
        %2592 = vmatprep.subr.mxu0 0.0
        %2593 = vmatpush2.msra.mxu0 0.0
        %2594 = vmatprep.mubr.f32.mxu0 0.0
        %2595 = vmatmul.mubr.f32.gmra.mxu0 %v2444
        %v2596 = vpop.f32.mrf.mxu0
        %v2597 = vadd.f32 %v2436, %v2596
        %v2598 = vpop.f32.mrf.mxu0
        %v2599 = vadd.f32 %v2440, %v2598
        %2600 = vdwg.mxu0
        %vm2601 = vcmp.gt.f32.partialorder %v2526, 0.0
        %vm2602 = vcmp.gt.f32.partialorder %v2528, 0.0
        %vm2603 = vcmp.gt.f32.partialorder %v2597, 0.0
        %vm2604 = vcmp.gt.f32.partialorder %v2599, 0.0
        %v2605 = vmul.f32 %v2526, 0.5
        %v2606 = vmul.f32 %v2528, 0.5
        %v2607 = vmul.f32 %v2597, 0.5
        %v2608 = vmul.f32 %v2599, 0.5
        %v2609 = vsel %vm2601, %v2526, %v2605
        %v2610 = vsel %vm2602, %v2528, %v2606
        %v2611 = vsel %vm2603, %v2597, %v2607
        %v2612 = vsel %vm2604, %v2599, %v2608
        %v2613 = vld [vmem:[#allocation2] sm:$0xff]
        %v2614 = vld [vmem:[#allocation2 + $0x8] sm:$0xff]
        %v2615 = vld [vmem:[#allocation2 + $0x10] sm:$0xff]
        %v2616 = vld [vmem:[#allocation2 + $0x18] sm:$0xff]
        %v2617 = vld [vmem:[#allocation2 + $0x20] sm:$0xff]
        %v2618 = vld [vmem:[#allocation2 + $0x28] sm:$0xff]
        %v2619 = vld [vmem:[#allocation2 + $0x30] sm:$0xff]
        %v2620 = vld [vmem:[#allocation2 + $0x38] sm:$0xff]
        %v2621 = vld [vmem:[#allocation2 + $0x40] sm:$0xff]
        %v2622 = vld [vmem:[#allocation2 + $0x48] sm:$0xff]
        %v2623 = vld [vmem:[#allocation2 + $0x50] sm:$0xff]
        %v2624 = vld [vmem:[#allocation2 + $0x58] sm:$0xff]
        %v2625 = vld [vmem:[#allocation2 + $0x60] sm:$0xff]
        %v2626 = vld [vmem:[#allocation2 + $0x68] sm:$0xff]
        %v2627 = vld [vmem:[#allocation2 + $0x70] sm:$0xff]
        %v2628 = vld [vmem:[#allocation2 + $0x78] sm:$0xff]
        %v2629 = vld [vmem:[#allocation2 + $0x80] sm:$0xff]
        %v2630 = vld [vmem:[#allocation2 + $0x88] sm:$0xff]
        %v2631 = vld [vmem:[#allocation2 + $0x90] sm:$0xff]
        %v2632 = vld [vmem:[#allocation2 + $0x98] sm:$0xff]
        %v2633 = vld [vmem:[#allocation2 + $0xa0] sm:$0xff]
        %v2634 = vld [vmem:[#allocation2 + $0xa8] sm:$0xff]
        %v2635 = vld [vmem:[#allocation2 + $0xb0] sm:$0xff]
        %v2636 = vld [vmem:[#allocation2 + $0xb8] sm:$0xff]
        %v2637 = vld [vmem:[#allocation2 + $0xc0] sm:$0xff]
        %v2638 = vld [vmem:[#allocation2 + $0xc8] sm:$0xff]
        %v2639 = vld [vmem:[#allocation2 + $0xd0] sm:$0xff]
        %v2640 = vld [vmem:[#allocation2 + $0xd8] sm:$0xff]
        %v2641 = vld [vmem:[#allocation2 + $0xe0] sm:$0xff]
        %v2642 = vld [vmem:[#allocation2 + $0xe8] sm:$0xff]
        %v2643 = vld [vmem:[#allocation2 + $0xf0] sm:$0xff]
        %v2644 = vld [vmem:[#allocation2 + $0xf8] sm:$0xff]
        %v2645 = vld [vmem:[#allocation2 + $0x100] sm:$0xff]
        %v2646 = vld [vmem:[#allocation2 + $0x108] sm:$0xff]
        %v2647 = vld [vmem:[#allocation2 + $0x110] sm:$0xff]
        %v2648 = vld [vmem:[#allocation2 + $0x118] sm:$0xff]
        %v2649 = vld [vmem:[#allocation2 + $0x120] sm:$0xff]
        %v2650 = vld [vmem:[#allocation2 + $0x128] sm:$0xff]
        %v2651 = vld [vmem:[#allocation2 + $0x130] sm:$0xff]
        %v2652 = vld [vmem:[#allocation2 + $0x138] sm:$0xff]
        %v2653 = vld [vmem:[#allocation2 + $0x140] sm:$0xff]
        %v2654 = vld [vmem:[#allocation2 + $0x148] sm:$0xff]
        %v2655 = vld [vmem:[#allocation2 + $0x150] sm:$0xff]
        %v2656 = vld [vmem:[#allocation2 + $0x158] sm:$0xff]
        %v2657 = vld [vmem:[#allocation2 + $0x160] sm:$0xff]
        %v2658 = vld [vmem:[#allocation2 + $0x168] sm:$0xff]
        %v2659 = vld [vmem:[#allocation2 + $0x170] sm:$0xff]
        %v2660 = vld [vmem:[#allocation2 + $0x178] sm:$0xff]
        %v2661 = vld [vmem:[#allocation2 + $0x180] sm:$0xff]
        %v2662 = vld [vmem:[#allocation2 + $0x188] sm:$0xff]
        %v2663 = vld [vmem:[#allocation2 + $0x190] sm:$0xff]
        %v2664 = vld [vmem:[#allocation2 + $0x198] sm:$0xff]
        %v2665 = vld [vmem:[#allocation2 + $0x1a0] sm:$0xff]
        %v2666 = vld [vmem:[#allocation2 + $0x1a8] sm:$0xff]
        %v2667 = vld [vmem:[#allocation2 + $0x1b0] sm:$0xff]
        %v2668 = vld [vmem:[#allocation2 + $0x1b8] sm:$0xff]
        %v2669 = vld [vmem:[#allocation2 + $0x1c0] sm:$0xff]
        %v2670 = vld [vmem:[#allocation2 + $0x1c8] sm:$0xff]
        %v2671 = vld [vmem:[#allocation2 + $0x1d0] sm:$0xff]
        %v2672 = vld [vmem:[#allocation2 + $0x1d8] sm:$0xff]
        %v2673 = vld [vmem:[#allocation2 + $0x1e0] sm:$0xff]
        %v2674 = vld [vmem:[#allocation2 + $0x1e8] sm:$0xff]
        %v2675 = vld [vmem:[#allocation2 + $0x1f0] sm:$0xff]
        %v2676 = vld [vmem:[#allocation2 + $0x1f8] sm:$0xff]
        %v2677 = vld [vmem:[#allocation2 + $0x200] sm:$0xff]
        %v2678 = vld [vmem:[#allocation2 + $0x208] sm:$0xff]
        %v2679 = vld [vmem:[#allocation2 + $0x210] sm:$0xff]
        %v2680 = vld [vmem:[#allocation2 + $0x218] sm:$0xff]
        %v2681 = vld [vmem:[#allocation2 + $0x220] sm:$0xff]
        %v2682 = vld [vmem:[#allocation2 + $0x228] sm:$0xff]
        %v2683 = vld [vmem:[#allocation2 + $0x230] sm:$0xff]
        %v2684 = vld [vmem:[#allocation2 + $0x238] sm:$0xff]
        %v2685 = vld [vmem:[#allocation2 + $0x240] sm:$0xff]
        %v2686 = vld [vmem:[#allocation2 + $0x248] sm:$0xff]
        %v2687 = vld [vmem:[#allocation2 + $0x250] sm:$0xff]
        %v2688 = vld [vmem:[#allocation2 + $0x258] sm:$0xff]
        %v2689 = vld [vmem:[#allocation2 + $0x260] sm:$0xff]
        %v2690 = vld [vmem:[#allocation2 + $0x268] sm:$0xff]
        %v2691 = vld [vmem:[#allocation2 + $0x270] sm:$0xff]
        %v2692 = vld [vmem:[#allocation2 + $0x278] sm:$0xff]
        %v2693 = vld [vmem:[#allocation2 + $0x280] sm:$0xff]
        %v2694 = vld [vmem:[#allocation2 + $0x288] sm:$0xff]
        %v2695 = vld [vmem:[#allocation2 + $0x290] sm:$0xff]
        %v2696 = vld [vmem:[#allocation2 + $0x298] sm:$0xff]
        %v2697 = vld [vmem:[#allocation2 + $0x2a0] sm:$0xff]
        %v2698 = vld [vmem:[#allocation2 + $0x2a8] sm:$0xff]
        %v2699 = vld [vmem:[#allocation2 + $0x2b0] sm:$0xff]
        %v2700 = vld [vmem:[#allocation2 + $0x2b8] sm:$0xff]
        %v2701 = vld [vmem:[#allocation2 + $0x2c0] sm:$0xff]
        %v2702 = vld [vmem:[#allocation2 + $0x2c8] sm:$0xff]
        %v2703 = vld [vmem:[#allocation2 + $0x2d0] sm:$0xff]
        %v2704 = vld [vmem:[#allocation2 + $0x2d8] sm:$0xff]
        %v2705 = vld [vmem:[#allocation2 + $0x2e0] sm:$0xff]
        %v2706 = vld [vmem:[#allocation2 + $0x2e8] sm:$0xff]
        %v2707 = vld [vmem:[#allocation2 + $0x2f0] sm:$0xff]
        %v2708 = vld [vmem:[#allocation2 + $0x2f8] sm:$0xff]
        %v2709 = vld [vmem:[#allocation2 + $0x300] sm:$0xff]
        %v2710 = vld [vmem:[#allocation2 + $0x308] sm:$0xff]
        %v2711 = vld [vmem:[#allocation2 + $0x310] sm:$0xff]
        %v2712 = vld [vmem:[#allocation2 + $0x318] sm:$0xff]
        %v2713 = vld [vmem:[#allocation2 + $0x320] sm:$0xff]
        %v2714 = vld [vmem:[#allocation2 + $0x328] sm:$0xff]
        %v2715 = vld [vmem:[#allocation2 + $0x330] sm:$0xff]
        %v2716 = vld [vmem:[#allocation2 + $0x338] sm:$0xff]
        %v2717 = vld [vmem:[#allocation2 + $0x340] sm:$0xff]
        %v2718 = vld [vmem:[#allocation2 + $0x348] sm:$0xff]
        %v2719 = vld [vmem:[#allocation2 + $0x350] sm:$0xff]
        %v2720 = vld [vmem:[#allocation2 + $0x358] sm:$0xff]
        %v2721 = vld [vmem:[#allocation2 + $0x360] sm:$0xff]
        %v2722 = vld [vmem:[#allocation2 + $0x368] sm:$0xff]
        %v2723 = vld [vmem:[#allocation2 + $0x370] sm:$0xff]
        %v2724 = vld [vmem:[#allocation2 + $0x378] sm:$0xff]
        %v2725 = vld [vmem:[#allocation2 + $0x380] sm:$0xff]
        %v2726 = vld [vmem:[#allocation2 + $0x388] sm:$0xff]
        %v2727 = vld [vmem:[#allocation2 + $0x390] sm:$0xff]
        %v2728 = vld [vmem:[#allocation2 + $0x398] sm:$0xff]
        %v2729 = vld [vmem:[#allocation2 + $0x3a0] sm:$0xff]
        %v2730 = vld [vmem:[#allocation2 + $0x3a8] sm:$0xff]
        %v2731 = vld [vmem:[#allocation2 + $0x3b0] sm:$0xff]
        %v2732 = vld [vmem:[#allocation2 + $0x3b8] sm:$0xff]
        %v2733 = vld [vmem:[#allocation2 + $0x3c0] sm:$0xff]
        %v2734 = vld [vmem:[#allocation2 + $0x3c8] sm:$0xff]
        %v2735 = vld [vmem:[#allocation2 + $0x3d0] sm:$0xff]
        %v2736 = vld [vmem:[#allocation2 + $0x3d8] sm:$0xff]
        %v2737 = vld [vmem:[#allocation2 + $0x3e0] sm:$0xff]
        %v2738 = vld [vmem:[#allocation2 + $0x3e8] sm:$0xff]
        %v2739 = vld [vmem:[#allocation2 + $0x3f0] sm:$0xff]
        %v2740 = vld [vmem:[#allocation2 + $0x3f8] sm:$0xff]
        %v2741 = vld [vmem:[#allocation2 + $0x400] sm:$0xff]
        %v2742 = vld [vmem:[#allocation2 + $0x408] sm:$0xff]
        %v2743 = vld [vmem:[#allocation2 + $0x410] sm:$0xff]
        %v2744 = vld [vmem:[#allocation2 + $0x418] sm:$0xff]
        %v2745 = vld [vmem:[#allocation2 + $0x420] sm:$0xff]
        %v2746 = vld [vmem:[#allocation2 + $0x428] sm:$0xff]
        %v2747 = vld [vmem:[#allocation2 + $0x430] sm:$0xff]
        %v2748 = vld [vmem:[#allocation2 + $0x438] sm:$0xff]
        %v2749 = vld [vmem:[#allocation2 + $0x440] sm:$0xff]
        %v2750 = vld [vmem:[#allocation2 + $0x448] sm:$0xff]
        %v2751 = vld [vmem:[#allocation2 + $0x450] sm:$0xff]
        %v2752 = vld [vmem:[#allocation2 + $0x458] sm:$0xff]
        %v2753 = vld [vmem:[#allocation2 + $0x460] sm:$0xff]
        %v2754 = vld [vmem:[#allocation2 + $0x468] sm:$0xff]
        %v2755 = vld [vmem:[#allocation2 + $0x470] sm:$0xff]
        %v2756 = vld [vmem:[#allocation2 + $0x478] sm:$0xff]
        %v2757 = vld [vmem:[#allocation2 + $0x480] sm:$0xff]
        %v2758 = vld [vmem:[#allocation2 + $0x488] sm:$0xff]
        %v2759 = vld [vmem:[#allocation2 + $0x490] sm:$0xff]
        %v2760 = vld [vmem:[#allocation2 + $0x498] sm:$0xff]
        %v2761 = vld [vmem:[#allocation2 + $0x4a0] sm:$0xff]
        %v2762 = vld [vmem:[#allocation2 + $0x4a8] sm:$0xff]
        %v2763 = vld [vmem:[#allocation2 + $0x4b0] sm:$0xff]
        %v2764 = vld [vmem:[#allocation2 + $0x4b8] sm:$0xff]
        %v2765 = vld [vmem:[#allocation2 + $0x4c0] sm:$0xff]
        %v2766 = vld [vmem:[#allocation2 + $0x4c8] sm:$0xff]
        %v2767 = vld [vmem:[#allocation2 + $0x4d0] sm:$0xff]
        %v2768 = vld [vmem:[#allocation2 + $0x4d8] sm:$0xff]
        %v2769 = vld [vmem:[#allocation2 + $0x4e0] sm:$0xff]
        %v2770 = vld [vmem:[#allocation2 + $0x4e8] sm:$0xff]
        %v2771 = vld [vmem:[#allocation2 + $0x4f0] sm:$0xff]
        %v2772 = vld [vmem:[#allocation2 + $0x4f8] sm:$0xff]
        %v2773 = vld [vmem:[#allocation2 + $0x500] sm:$0xff]
        %v2774 = vld [vmem:[#allocation2 + $0x508] sm:$0xff]
        %v2775 = vld [vmem:[#allocation2 + $0x510] sm:$0xff]
        %v2776 = vld [vmem:[#allocation2 + $0x518] sm:$0xff]
        %v2777 = vld [vmem:[#allocation2 + $0x520] sm:$0xff]
        %v2778 = vld [vmem:[#allocation2 + $0x528] sm:$0xff]
        %v2779 = vld [vmem:[#allocation2 + $0x530] sm:$0xff]
        %v2780 = vld [vmem:[#allocation2 + $0x538] sm:$0xff]
        %v2781 = vld [vmem:[#allocation2 + $0x540] sm:$0xff]
        %v2782 = vld [vmem:[#allocation2 + $0x548] sm:$0xff]
        %v2783 = vld [vmem:[#allocation2 + $0x550] sm:$0xff]
        %v2784 = vld [vmem:[#allocation2 + $0x558] sm:$0xff]
        %v2785 = vld [vmem:[#allocation2 + $0x560] sm:$0xff]
        %v2786 = vld [vmem:[#allocation2 + $0x568] sm:$0xff]
        %v2787 = vld [vmem:[#allocation2 + $0x570] sm:$0xff]
        %v2788 = vld [vmem:[#allocation2 + $0x578] sm:$0xff]
        %v2789 = vld [vmem:[#allocation2 + $0x580] sm:$0xff]
        %v2790 = vld [vmem:[#allocation2 + $0x588] sm:$0xff]
        %v2791 = vld [vmem:[#allocation2 + $0x590] sm:$0xff]
        %v2792 = vld [vmem:[#allocation2 + $0x598] sm:$0xff]
        %v2793 = vld [vmem:[#allocation2 + $0x5a0] sm:$0xff]
        %v2794 = vld [vmem:[#allocation2 + $0x5a8] sm:$0xff]
        %v2795 = vld [vmem:[#allocation2 + $0x5b0] sm:$0xff]
        %v2796 = vld [vmem:[#allocation2 + $0x5b8] sm:$0xff]
        %v2797 = vld [vmem:[#allocation2 + $0x5c0] sm:$0xff]
        %v2798 = vld [vmem:[#allocation2 + $0x5c8] sm:$0xff]
        %v2799 = vld [vmem:[#allocation2 + $0x5d0] sm:$0xff]
        %v2800 = vld [vmem:[#allocation2 + $0x5d8] sm:$0xff]
        %v2801 = vld [vmem:[#allocation2 + $0x5e0] sm:$0xff]
        %v2802 = vld [vmem:[#allocation2 + $0x5e8] sm:$0xff]
        %v2803 = vld [vmem:[#allocation2 + $0x5f0] sm:$0xff]
        %v2804 = vld [vmem:[#allocation2 + $0x5f8] sm:$0xff]
        %v2805 = vld [vmem:[#allocation2 + $0x600] sm:$0xff]
        %v2806 = vld [vmem:[#allocation2 + $0x608] sm:$0xff]
        %v2807 = vld [vmem:[#allocation2 + $0x610] sm:$0xff]
        %v2808 = vld [vmem:[#allocation2 + $0x618] sm:$0xff]
        %v2809 = vld [vmem:[#allocation2 + $0x620] sm:$0xff]
        %v2810 = vld [vmem:[#allocation2 + $0x628] sm:$0xff]
        %v2811 = vld [vmem:[#allocation2 + $0x630] sm:$0xff]
        %v2812 = vld [vmem:[#allocation2 + $0x638] sm:$0xff]
        %v2813 = vld [vmem:[#allocation2 + $0x640] sm:$0xff]
        %v2814 = vld [vmem:[#allocation2 + $0x648] sm:$0xff]
        %v2815 = vld [vmem:[#allocation2 + $0x650] sm:$0xff]
        %v2816 = vld [vmem:[#allocation2 + $0x658] sm:$0xff]
        %v2817 = vld [vmem:[#allocation2 + $0x660] sm:$0xff]
        %v2818 = vld [vmem:[#allocation2 + $0x668] sm:$0xff]
        %v2819 = vld [vmem:[#allocation2 + $0x670] sm:$0xff]
        %v2820 = vld [vmem:[#allocation2 + $0x678] sm:$0xff]
        %v2821 = vld [vmem:[#allocation2 + $0x680] sm:$0xff]
        %v2822 = vld [vmem:[#allocation2 + $0x688] sm:$0xff]
        %v2823 = vld [vmem:[#allocation2 + $0x690] sm:$0xff]
        %v2824 = vld [vmem:[#allocation2 + $0x698] sm:$0xff]
        %v2825 = vld [vmem:[#allocation2 + $0x6a0] sm:$0xff]
        %v2826 = vld [vmem:[#allocation2 + $0x6a8] sm:$0xff]
        %v2827 = vld [vmem:[#allocation2 + $0x6b0] sm:$0xff]
        %v2828 = vld [vmem:[#allocation2 + $0x6b8] sm:$0xff]
        %v2829 = vld [vmem:[#allocation2 + $0x6c0] sm:$0xff]
        %v2830 = vld [vmem:[#allocation2 + $0x6c8] sm:$0xff]
        %v2831 = vld [vmem:[#allocation2 + $0x6d0] sm:$0xff]
        %v2832 = vld [vmem:[#allocation2 + $0x6d8] sm:$0xff]
        %v2833 = vld [vmem:[#allocation2 + $0x6e0] sm:$0xff]
        %v2834 = vld [vmem:[#allocation2 + $0x6e8] sm:$0xff]
        %v2835 = vld [vmem:[#allocation2 + $0x6f0] sm:$0xff]
        %v2836 = vld [vmem:[#allocation2 + $0x6f8] sm:$0xff]
        %v2837 = vld [vmem:[#allocation2 + $0x700] sm:$0xff]
        %v2838 = vld [vmem:[#allocation2 + $0x708] sm:$0xff]
        %v2839 = vld [vmem:[#allocation2 + $0x710] sm:$0xff]
        %v2840 = vld [vmem:[#allocation2 + $0x718] sm:$0xff]
        %v2841 = vld [vmem:[#allocation2 + $0x720] sm:$0xff]
        %v2842 = vld [vmem:[#allocation2 + $0x728] sm:$0xff]
        %v2843 = vld [vmem:[#allocation2 + $0x730] sm:$0xff]
        %v2844 = vld [vmem:[#allocation2 + $0x738] sm:$0xff]
        %v2845 = vld [vmem:[#allocation2 + $0x740] sm:$0xff]
        %v2846 = vld [vmem:[#allocation2 + $0x748] sm:$0xff]
        %v2847 = vld [vmem:[#allocation2 + $0x750] sm:$0xff]
        %v2848 = vld [vmem:[#allocation2 + $0x758] sm:$0xff]
        %v2849 = vld [vmem:[#allocation2 + $0x760] sm:$0xff]
        %v2850 = vld [vmem:[#allocation2 + $0x768] sm:$0xff]
        %v2851 = vld [vmem:[#allocation2 + $0x770] sm:$0xff]
        %v2852 = vld [vmem:[#allocation2 + $0x778] sm:$0xff]
        %v2853 = vld [vmem:[#allocation2 + $0x780] sm:$0xff]
        %v2854 = vld [vmem:[#allocation2 + $0x788] sm:$0xff]
        %v2855 = vld [vmem:[#allocation2 + $0x790] sm:$0xff]
        %v2856 = vld [vmem:[#allocation2 + $0x798] sm:$0xff]
        %v2857 = vld [vmem:[#allocation2 + $0x7a0] sm:$0xff]
        %v2858 = vld [vmem:[#allocation2 + $0x7a8] sm:$0xff]
        %v2859 = vld [vmem:[#allocation2 + $0x7b0] sm:$0xff]
        %v2860 = vld [vmem:[#allocation2 + $0x7b8] sm:$0xff]
        %v2861 = vld [vmem:[#allocation2 + $0x7c0] sm:$0xff]
        %v2862 = vld [vmem:[#allocation2 + $0x7c8] sm:$0xff]
        %v2863 = vld [vmem:[#allocation2 + $0x7d0] sm:$0xff]
        %v2864 = vld [vmem:[#allocation2 + $0x7d8] sm:$0xff]
        %v2865 = vld [vmem:[#allocation2 + $0x7e0] sm:$0xff]
        %v2866 = vld [vmem:[#allocation2 + $0x7e8] sm:$0xff]
        %v2867 = vld [vmem:[#allocation2 + $0x7f0] sm:$0xff]
        %v2868 = vld [vmem:[#allocation2 + $0x7f8] sm:$0xff]
        %v2869 = vlaneseq
        %v2870 = vshrl.u32 %v2869, 7
        %v2871 = vsub.s32 3, %v2870
        %v2872 = vrot.slane %v596, %v2871
        %v2873 = vlaneseq
        %v2874 = vshrl.u32 %v2873, 7
        %v2875 = vsub.s32 3, %v2874
        %v2876 = vrot.slane %v597, %v2875
        %v2877 = vlaneseq
        %v2878 = vshrl.u32 %v2877, 7
        %v2879 = vsub.s32 3, %v2878
        %v2880 = vrot.slane %v598, %v2879
        %v2881 = vlaneseq
        %v2882 = vshrl.u32 %v2881, 7
        %v2883 = vsub.s32 3, %v2882
        %v2884 = vrot.slane %v599, %v2883
        %2885 = vmatprep.subr.mxu0 %v2674
        %2886 = vmatpush1.msra.mxu0 %v2673
        %2887 = vmatprep.subr.mxu0 %v2670
        %2888 = vmatpush1.msra.mxu0 %v2669
        %2889 = vmatprep.subr.mxu0 %v2666
        %2890 = vmatpush1.msra.mxu0 %v2665
        %2891 = vmatprep.subr.mxu0 %v2662
        %2892 = vmatpush1.msra.mxu0 %v2661
        %2893 = vmatprep.subr.mxu0 %v2658
        %2894 = vmatpush1.msra.mxu0 %v2657
        %2895 = vmatprep.subr.mxu0 %v2654
        %2896 = vmatpush1.msra.mxu0 %v2653
        %2897 = vmatprep.subr.mxu0 %v2650
        %2898 = vmatpush1.msra.mxu0 %v2649
        %2899 = vmatprep.subr.mxu0 %v2646
        %2900 = vmatpush1.msra.mxu0 %v2645
        %2901 = vmatprep.subr.mxu0 %v2642
        %2902 = vmatpush1.msra.mxu0 %v2641
        %2903 = vmatprep.subr.mxu0 %v2638
        %2904 = vmatpush1.msra.mxu0 %v2637
        %2905 = vmatprep.subr.mxu0 %v2634
        %2906 = vmatpush1.msra.mxu0 %v2633
        %2907 = vmatprep.subr.mxu0 %v2630
        %2908 = vmatpush1.msra.mxu0 %v2629
        %2909 = vmatprep.subr.mxu0 %v2626
        %2910 = vmatpush1.msra.mxu0 %v2625
        %2911 = vmatprep.subr.mxu0 %v2622
        %2912 = vmatpush1.msra.mxu0 %v2621
        %2913 = vmatprep.subr.mxu0 %v2618
        %2914 = vmatpush1.msra.mxu0 %v2617
        %2915 = vmatprep.subr.mxu0 %v2614
        %2916 = vmatpush1.msra.mxu0 %v2613
        %2917 = vmatprep.subr.mxu0 %v2738
        %2918 = vmatpush2.msra.mxu0 %v2737
        %2919 = vmatprep.subr.mxu0 %v2734
        %2920 = vmatpush2.msra.mxu0 %v2733
        %2921 = vmatprep.subr.mxu0 %v2730
        %2922 = vmatpush2.msra.mxu0 %v2729
        %2923 = vmatprep.subr.mxu0 %v2726
        %2924 = vmatpush2.msra.mxu0 %v2725
        %2925 = vmatprep.subr.mxu0 %v2722
        %2926 = vmatpush2.msra.mxu0 %v2721
        %2927 = vmatprep.subr.mxu0 %v2718
        %2928 = vmatpush2.msra.mxu0 %v2717
        %2929 = vmatprep.subr.mxu0 %v2714
        %2930 = vmatpush2.msra.mxu0 %v2713
        %2931 = vmatprep.subr.mxu0 %v2710
        %2932 = vmatpush2.msra.mxu0 %v2709
        %2933 = vmatprep.subr.mxu0 %v2706
        %2934 = vmatpush2.msra.mxu0 %v2705
        %2935 = vmatprep.subr.mxu0 %v2702
        %2936 = vmatpush2.msra.mxu0 %v2701
        %2937 = vmatprep.subr.mxu0 %v2698
        %2938 = vmatpush2.msra.mxu0 %v2697
        %2939 = vmatprep.subr.mxu0 %v2694
        %2940 = vmatpush2.msra.mxu0 %v2693
        %2941 = vmatprep.subr.mxu0 %v2690
        %2942 = vmatpush2.msra.mxu0 %v2689
        %2943 = vmatprep.subr.mxu0 %v2686
        %2944 = vmatpush2.msra.mxu0 %v2685
        %2945 = vmatprep.subr.mxu0 %v2682
        %2946 = vmatpush2.msra.mxu0 %v2681
        %2947 = vmatprep.subr.mxu0 %v2678
        %2948 = vmatpush2.msra.mxu0 %v2677
        %2949 = vmatprep.mubr.f32.mxu0 %v2610
        %2950 = vmatmul.mubr.f32.gmra.mxu0 %v2609
        %v2951 = vpop.f32.mrf.mxu0
        %v2952 = vadd.f32 %v2872, %v2951
        %v2953 = vpop.f32.mrf.mxu0
        %v2954 = vadd.f32 %v2876, %v2953
        %2955 = vdwg.mxu0
        %2956 = vmatprep.subr.mxu0 %v2802
        %2957 = vmatpush1.msra.mxu0 %v2801
        %2958 = vmatprep.subr.mxu0 %v2798
        %2959 = vmatpush1.msra.mxu0 %v2797
        %2960 = vmatprep.subr.mxu0 %v2794
        %2961 = vmatpush1.msra.mxu0 %v2793
        %2962 = vmatprep.subr.mxu0 %v2790
        %2963 = vmatpush1.msra.mxu0 %v2789
        %2964 = vmatprep.subr.mxu0 %v2786
        %2965 = vmatpush1.msra.mxu0 %v2785
        %2966 = vmatprep.subr.mxu0 %v2782
        %2967 = vmatpush1.msra.mxu0 %v2781
        %2968 = vmatprep.subr.mxu0 %v2778
        %2969 = vmatpush1.msra.mxu0 %v2777
        %2970 = vmatprep.subr.mxu0 %v2774
        %2971 = vmatpush1.msra.mxu0 %v2773
        %2972 = vmatprep.subr.mxu0 %v2770
        %2973 = vmatpush1.msra.mxu0 %v2769
        %2974 = vmatprep.subr.mxu0 %v2766
        %2975 = vmatpush1.msra.mxu0 %v2765
        %2976 = vmatprep.subr.mxu0 %v2762
        %2977 = vmatpush1.msra.mxu0 %v2761
        %2978 = vmatprep.subr.mxu0 %v2758
        %2979 = vmatpush1.msra.mxu0 %v2757
        %2980 = vmatprep.subr.mxu0 %v2754
        %2981 = vmatpush1.msra.mxu0 %v2753
        %2982 = vmatprep.subr.mxu0 %v2750
        %2983 = vmatpush1.msra.mxu0 %v2749
        %2984 = vmatprep.subr.mxu0 %v2746
        %2985 = vmatpush1.msra.mxu0 %v2745
        %2986 = vmatprep.subr.mxu0 %v2742
        %2987 = vmatpush1.msra.mxu0 %v2741
        %2988 = vmatprep.subr.mxu0 %v2866
        %2989 = vmatpush2.msra.mxu0 %v2865
        %2990 = vmatprep.subr.mxu0 %v2862
        %2991 = vmatpush2.msra.mxu0 %v2861
        %2992 = vmatprep.subr.mxu0 %v2858
        %2993 = vmatpush2.msra.mxu0 %v2857
        %2994 = vmatprep.subr.mxu0 %v2854
        %2995 = vmatpush2.msra.mxu0 %v2853
        %2996 = vmatprep.subr.mxu0 %v2850
        %2997 = vmatpush2.msra.mxu0 %v2849
        %2998 = vmatprep.subr.mxu0 %v2846
        %2999 = vmatpush2.msra.mxu0 %v2845
        %3000 = vmatprep.subr.mxu0 %v2842
        %3001 = vmatpush2.msra.mxu0 %v2841
        %3002 = vmatprep.subr.mxu0 %v2838
        %3003 = vmatpush2.msra.mxu0 %v2837
        %3004 = vmatprep.subr.mxu0 %v2834
        %3005 = vmatpush2.msra.mxu0 %v2833
        %3006 = vmatprep.subr.mxu0 %v2830
        %3007 = vmatpush2.msra.mxu0 %v2829
        %3008 = vmatprep.subr.mxu0 %v2826
        %3009 = vmatpush2.msra.mxu0 %v2825
        %3010 = vmatprep.subr.mxu0 %v2822
        %3011 = vmatpush2.msra.mxu0 %v2821
        %3012 = vmatprep.subr.mxu0 %v2818
        %3013 = vmatpush2.msra.mxu0 %v2817
        %3014 = vmatprep.subr.mxu0 %v2814
        %3015 = vmatpush2.msra.mxu0 %v2813
        %3016 = vmatprep.subr.mxu0 %v2810
        %3017 = vmatpush2.msra.mxu0 %v2809
        %3018 = vmatprep.subr.mxu0 %v2806
        %3019 = vmatpush2.msra.mxu0 %v2805
        %3020 = vmatprep.mubr.f32.mxu0 %v2612
        %3021 = vmatmul.mubr.f32.gmra.mxu0 %v2611
        %v3022 = vpop.f32.mrf.mxu0
        %v3023 = vadd.f32 %v2952, %v3022
        %v3024 = vpop.f32.mrf.mxu0
        %v3025 = vadd.f32 %v2954, %v3024
        %3026 = vdwg.mxu0
        %3027 = vmatprep.subr.mxu0 %v2676
        %3028 = vmatpush1.msra.mxu0 %v2675
        %3029 = vmatprep.subr.mxu0 %v2672
        %3030 = vmatpush1.msra.mxu0 %v2671
        %3031 = vmatprep.subr.mxu0 %v2668
        %3032 = vmatpush1.msra.mxu0 %v2667
        %3033 = vmatprep.subr.mxu0 %v2664
        %3034 = vmatpush1.msra.mxu0 %v2663
        %3035 = vmatprep.subr.mxu0 %v2660
        %3036 = vmatpush1.msra.mxu0 %v2659
        %3037 = vmatprep.subr.mxu0 %v2656
        %3038 = vmatpush1.msra.mxu0 %v2655
        %3039 = vmatprep.subr.mxu0 %v2652
        %3040 = vmatpush1.msra.mxu0 %v2651
        %3041 = vmatprep.subr.mxu0 %v2648
        %3042 = vmatpush1.msra.mxu0 %v2647
        %3043 = vmatprep.subr.mxu0 %v2644
        %3044 = vmatpush1.msra.mxu0 %v2643
        %3045 = vmatprep.subr.mxu0 %v2640
        %3046 = vmatpush1.msra.mxu0 %v2639
        %3047 = vmatprep.subr.mxu0 %v2636
        %3048 = vmatpush1.msra.mxu0 %v2635
        %3049 = vmatprep.subr.mxu0 %v2632
        %3050 = vmatpush1.msra.mxu0 %v2631
        %3051 = vmatprep.subr.mxu0 %v2628
        %3052 = vmatpush1.msra.mxu0 %v2627
        %3053 = vmatprep.subr.mxu0 %v2624
        %3054 = vmatpush1.msra.mxu0 %v2623
        %3055 = vmatprep.subr.mxu0 %v2620
        %3056 = vmatpush1.msra.mxu0 %v2619
        %3057 = vmatprep.subr.mxu0 %v2616
        %3058 = vmatpush1.msra.mxu0 %v2615
        %3059 = vmatprep.subr.mxu0 %v2740
        %3060 = vmatpush2.msra.mxu0 %v2739
        %3061 = vmatprep.subr.mxu0 %v2736
        %3062 = vmatpush2.msra.mxu0 %v2735
        %3063 = vmatprep.subr.mxu0 %v2732
        %3064 = vmatpush2.msra.mxu0 %v2731
        %3065 = vmatprep.subr.mxu0 %v2728
        %3066 = vmatpush2.msra.mxu0 %v2727
        %3067 = vmatprep.subr.mxu0 %v2724
        %3068 = vmatpush2.msra.mxu0 %v2723
        %3069 = vmatprep.subr.mxu0 %v2720
        %3070 = vmatpush2.msra.mxu0 %v2719
        %3071 = vmatprep.subr.mxu0 %v2716
        %3072 = vmatpush2.msra.mxu0 %v2715
        %3073 = vmatprep.subr.mxu0 %v2712
        %3074 = vmatpush2.msra.mxu0 %v2711
        %3075 = vmatprep.subr.mxu0 %v2708
        %3076 = vmatpush2.msra.mxu0 %v2707
        %3077 = vmatprep.subr.mxu0 %v2704
        %3078 = vmatpush2.msra.mxu0 %v2703
        %3079 = vmatprep.subr.mxu0 %v2700
        %3080 = vmatpush2.msra.mxu0 %v2699
        %3081 = vmatprep.subr.mxu0 %v2696
        %3082 = vmatpush2.msra.mxu0 %v2695
        %3083 = vmatprep.subr.mxu0 %v2692
        %3084 = vmatpush2.msra.mxu0 %v2691
        %3085 = vmatprep.subr.mxu0 %v2688
        %3086 = vmatpush2.msra.mxu0 %v2687
        %3087 = vmatprep.subr.mxu0 %v2684
        %3088 = vmatpush2.msra.mxu0 %v2683
        %3089 = vmatprep.subr.mxu0 %v2680
        %3090 = vmatpush2.msra.mxu0 %v2679
        %3091 = vmatprep.mubr.f32.mxu0 %v2610
        %3092 = vmatmul.mubr.f32.gmra.mxu0 %v2609
        %v3093 = vpop.f32.mrf.mxu0
        %v3094 = vadd.f32 %v2880, %v3093
        %v3095 = vpop.f32.mrf.mxu0
        %v3096 = vadd.f32 %v2884, %v3095
        %3097 = vdwg.mxu0
        %3098 = vmatprep.subr.mxu0 %v2804
        %3099 = vmatpush1.msra.mxu0 %v2803
        %3100 = vmatprep.subr.mxu0 %v2800
        %3101 = vmatpush1.msra.mxu0 %v2799
        %3102 = vmatprep.subr.mxu0 %v2796
        %3103 = vmatpush1.msra.mxu0 %v2795
        %3104 = vmatprep.subr.mxu0 %v2792
        %3105 = vmatpush1.msra.mxu0 %v2791
        %3106 = vmatprep.subr.mxu0 %v2788
        %3107 = vmatpush1.msra.mxu0 %v2787
        %3108 = vmatprep.subr.mxu0 %v2784
        %3109 = vmatpush1.msra.mxu0 %v2783
        %3110 = vmatprep.subr.mxu0 %v2780
        %3111 = vmatpush1.msra.mxu0 %v2779
        %3112 = vmatprep.subr.mxu0 %v2776
        %3113 = vmatpush1.msra.mxu0 %v2775
        %3114 = vmatprep.subr.mxu0 %v2772
        %3115 = vmatpush1.msra.mxu0 %v2771
        %3116 = vmatprep.subr.mxu0 %v2768
        %3117 = vmatpush1.msra.mxu0 %v2767
        %3118 = vmatprep.subr.mxu0 %v2764
        %3119 = vmatpush1.msra.mxu0 %v2763
        %3120 = vmatprep.subr.mxu0 %v2760
        %3121 = vmatpush1.msra.mxu0 %v2759
        %3122 = vmatprep.subr.mxu0 %v2756
        %3123 = vmatpush1.msra.mxu0 %v2755
        %3124 = vmatprep.subr.mxu0 %v2752
        %3125 = vmatpush1.msra.mxu0 %v2751
        %3126 = vmatprep.subr.mxu0 %v2748
        %3127 = vmatpush1.msra.mxu0 %v2747
        %3128 = vmatprep.subr.mxu0 %v2744
        %3129 = vmatpush1.msra.mxu0 %v2743
        %3130 = vmatprep.subr.mxu0 %v2868
        %3131 = vmatpush2.msra.mxu0 %v2867
        %3132 = vmatprep.subr.mxu0 %v2864
        %3133 = vmatpush2.msra.mxu0 %v2863
        %3134 = vmatprep.subr.mxu0 %v2860
        %3135 = vmatpush2.msra.mxu0 %v2859
        %3136 = vmatprep.subr.mxu0 %v2856
        %3137 = vmatpush2.msra.mxu0 %v2855
        %3138 = vmatprep.subr.mxu0 %v2852
        %3139 = vmatpush2.msra.mxu0 %v2851
        %3140 = vmatprep.subr.mxu0 %v2848
        %3141 = vmatpush2.msra.mxu0 %v2847
        %3142 = vmatprep.subr.mxu0 %v2844
        %3143 = vmatpush2.msra.mxu0 %v2843
        %3144 = vmatprep.subr.mxu0 %v2840
        %3145 = vmatpush2.msra.mxu0 %v2839
        %3146 = vmatprep.subr.mxu0 %v2836
        %3147 = vmatpush2.msra.mxu0 %v2835
        %3148 = vmatprep.subr.mxu0 %v2832
        %3149 = vmatpush2.msra.mxu0 %v2831
        %3150 = vmatprep.subr.mxu0 %v2828
        %3151 = vmatpush2.msra.mxu0 %v2827
        %3152 = vmatprep.subr.mxu0 %v2824
        %3153 = vmatpush2.msra.mxu0 %v2823
        %3154 = vmatprep.subr.mxu0 %v2820
        %3155 = vmatpush2.msra.mxu0 %v2819
        %3156 = vmatprep.subr.mxu0 %v2816
        %3157 = vmatpush2.msra.mxu0 %v2815
        %3158 = vmatprep.subr.mxu0 %v2812
        %3159 = vmatpush2.msra.mxu0 %v2811
        %3160 = vmatprep.subr.mxu0 %v2808
        %3161 = vmatpush2.msra.mxu0 %v2807
        %3162 = vmatprep.mubr.f32.mxu0 %v2612
        %3163 = vmatmul.mubr.f32.gmra.mxu0 %v2611
        %v3164 = vpop.f32.mrf.mxu0
        %v3165 = vadd.f32 %v3094, %v3164
        %v3166 = vpop.f32.mrf.mxu0
        %v3167 = vadd.f32 %v3096, %v3166
        %3168 = vdwg.mxu0
        %vm3169 = vcmp.gt.f32.partialorder %v3023, 0.0
        %vm3170 = vcmp.gt.f32.partialorder %v3025, 0.0
        %vm3171 = vcmp.gt.f32.partialorder %v3165, 0.0
        %vm3172 = vcmp.gt.f32.partialorder %v3167, 0.0
        %v3173 = vmul.f32 %v3023, 0.5
        %v3174 = vmul.f32 %v3025, 0.5
        %v3175 = vmul.f32 %v3165, 0.5
        %v3176 = vmul.f32 %v3167, 0.5
        %v3177 = vsel %vm3169, %v3023, %v3173
        %v3178 = vsel %vm3170, %v3025, %v3174
        %v3179 = vsel %vm3171, %v3165, %v3175
        %v3180 = vsel %vm3172, %v3167, %v3176
        %v3181 = vld [vmem:[#allocation5] sm:$0xff]
        %v3182 = vld [vmem:[#allocation5 + $0x8] sm:$0xff]
        %v3183 = vld [vmem:[#allocation5 + $0x10] sm:$0xff]
        %v3184 = vld [vmem:[#allocation5 + $0x18] sm:$0xff]
        %v3185 = vld [vmem:[#allocation5 + $0x20] sm:$0xff]
        %v3186 = vld [vmem:[#allocation5 + $0x28] sm:$0xff]
        %v3187 = vld [vmem:[#allocation5 + $0x30] sm:$0xff]
        %v3188 = vld [vmem:[#allocation5 + $0x38] sm:$0xff]
        %v3189 = vld [vmem:[#allocation5 + $0x40] sm:$0xff]
        %v3190 = vld [vmem:[#allocation5 + $0x48] sm:$0xff]
        %v3191 = vld [vmem:[#allocation5 + $0x50] sm:$0xff]
        %v3192 = vld [vmem:[#allocation5 + $0x58] sm:$0xff]
        %v3193 = vld [vmem:[#allocation5 + $0x60] sm:$0xff]
        %v3194 = vld [vmem:[#allocation5 + $0x68] sm:$0xff]
        %v3195 = vld [vmem:[#allocation5 + $0x70] sm:$0xff]
        %v3196 = vld [vmem:[#allocation5 + $0x78] sm:$0xff]
        %v3197 = vld [vmem:[#allocation5 + $0x80] sm:$0xff]
        %v3198 = vld [vmem:[#allocation5 + $0x88] sm:$0xff]
        %v3199 = vld [vmem:[#allocation5 + $0x90] sm:$0xff]
        %v3200 = vld [vmem:[#allocation5 + $0x98] sm:$0xff]
        %v3201 = vld [vmem:[#allocation5 + $0xa0] sm:$0xff]
        %v3202 = vld [vmem:[#allocation5 + $0xa8] sm:$0xff]
        %v3203 = vld [vmem:[#allocation5 + $0xb0] sm:$0xff]
        %v3204 = vld [vmem:[#allocation5 + $0xb8] sm:$0xff]
        %v3205 = vld [vmem:[#allocation5 + $0xc0] sm:$0xff]
        %v3206 = vld [vmem:[#allocation5 + $0xc8] sm:$0xff]
        %v3207 = vld [vmem:[#allocation5 + $0xd0] sm:$0xff]
        %v3208 = vld [vmem:[#allocation5 + $0xd8] sm:$0xff]
        %v3209 = vld [vmem:[#allocation5 + $0xe0] sm:$0xff]
        %v3210 = vld [vmem:[#allocation5 + $0xe8] sm:$0xff]
        %v3211 = vld [vmem:[#allocation5 + $0xf0] sm:$0xff]
        %v3212 = vld [vmem:[#allocation5 + $0xf8] sm:$0xff]
        %v3213 = vld [vmem:[#allocation5 + $0x100] sm:$0xff]
        %v3214 = vld [vmem:[#allocation5 + $0x108] sm:$0xff]
        %v3215 = vld [vmem:[#allocation5 + $0x110] sm:$0xff]
        %v3216 = vld [vmem:[#allocation5 + $0x118] sm:$0xff]
        %v3217 = vld [vmem:[#allocation5 + $0x120] sm:$0xff]
        %v3218 = vld [vmem:[#allocation5 + $0x128] sm:$0xff]
        %v3219 = vld [vmem:[#allocation5 + $0x130] sm:$0xff]
        %v3220 = vld [vmem:[#allocation5 + $0x138] sm:$0xff]
        %v3221 = vld [vmem:[#allocation5 + $0x140] sm:$0xff]
        %v3222 = vld [vmem:[#allocation5 + $0x148] sm:$0xff]
        %v3223 = vld [vmem:[#allocation5 + $0x150] sm:$0xff]
        %v3224 = vld [vmem:[#allocation5 + $0x158] sm:$0xff]
        %v3225 = vld [vmem:[#allocation5 + $0x160] sm:$0xff]
        %v3226 = vld [vmem:[#allocation5 + $0x168] sm:$0xff]
        %v3227 = vld [vmem:[#allocation5 + $0x170] sm:$0xff]
        %v3228 = vld [vmem:[#allocation5 + $0x178] sm:$0xff]
        %v3229 = vld [vmem:[#allocation5 + $0x180] sm:$0xff]
        %v3230 = vld [vmem:[#allocation5 + $0x188] sm:$0xff]
        %v3231 = vld [vmem:[#allocation5 + $0x190] sm:$0xff]
        %v3232 = vld [vmem:[#allocation5 + $0x198] sm:$0xff]
        %v3233 = vld [vmem:[#allocation5 + $0x1a0] sm:$0xff]
        %v3234 = vld [vmem:[#allocation5 + $0x1a8] sm:$0xff]
        %v3235 = vld [vmem:[#allocation5 + $0x1b0] sm:$0xff]
        %v3236 = vld [vmem:[#allocation5 + $0x1b8] sm:$0xff]
        %v3237 = vld [vmem:[#allocation5 + $0x1c0] sm:$0xff]
        %v3238 = vld [vmem:[#allocation5 + $0x1c8] sm:$0xff]
        %v3239 = vld [vmem:[#allocation5 + $0x1d0] sm:$0xff]
        %v3240 = vld [vmem:[#allocation5 + $0x1d8] sm:$0xff]
        %v3241 = vld [vmem:[#allocation5 + $0x1e0] sm:$0xff]
        %v3242 = vld [vmem:[#allocation5 + $0x1e8] sm:$0xff]
        %v3243 = vld [vmem:[#allocation5 + $0x1f0] sm:$0xff]
        %v3244 = vld [vmem:[#allocation5 + $0x1f8] sm:$0xff]
        %v3245 = vld [vmem:[#allocation5 + $0x200] sm:$0xff]
        %v3246 = vld [vmem:[#allocation5 + $0x208] sm:$0xff]
        %v3247 = vld [vmem:[#allocation5 + $0x210] sm:$0xff]
        %v3248 = vld [vmem:[#allocation5 + $0x218] sm:$0xff]
        %v3249 = vld [vmem:[#allocation5 + $0x220] sm:$0xff]
        %v3250 = vld [vmem:[#allocation5 + $0x228] sm:$0xff]
        %v3251 = vld [vmem:[#allocation5 + $0x230] sm:$0xff]
        %v3252 = vld [vmem:[#allocation5 + $0x238] sm:$0xff]
        %v3253 = vld [vmem:[#allocation5 + $0x240] sm:$0xff]
        %v3254 = vld [vmem:[#allocation5 + $0x248] sm:$0xff]
        %v3255 = vld [vmem:[#allocation5 + $0x250] sm:$0xff]
        %v3256 = vld [vmem:[#allocation5 + $0x258] sm:$0xff]
        %v3257 = vld [vmem:[#allocation5 + $0x260] sm:$0xff]
        %v3258 = vld [vmem:[#allocation5 + $0x268] sm:$0xff]
        %v3259 = vld [vmem:[#allocation5 + $0x270] sm:$0xff]
        %v3260 = vld [vmem:[#allocation5 + $0x278] sm:$0xff]
        %v3261 = vld [vmem:[#allocation5 + $0x280] sm:$0xff]
        %v3262 = vld [vmem:[#allocation5 + $0x288] sm:$0xff]
        %v3263 = vld [vmem:[#allocation5 + $0x290] sm:$0xff]
        %v3264 = vld [vmem:[#allocation5 + $0x298] sm:$0xff]
        %v3265 = vld [vmem:[#allocation5 + $0x2a0] sm:$0xff]
        %v3266 = vld [vmem:[#allocation5 + $0x2a8] sm:$0xff]
        %v3267 = vld [vmem:[#allocation5 + $0x2b0] sm:$0xff]
        %v3268 = vld [vmem:[#allocation5 + $0x2b8] sm:$0xff]
        %v3269 = vld [vmem:[#allocation5 + $0x2c0] sm:$0xff]
        %v3270 = vld [vmem:[#allocation5 + $0x2c8] sm:$0xff]
        %v3271 = vld [vmem:[#allocation5 + $0x2d0] sm:$0xff]
        %v3272 = vld [vmem:[#allocation5 + $0x2d8] sm:$0xff]
        %v3273 = vld [vmem:[#allocation5 + $0x2e0] sm:$0xff]
        %v3274 = vld [vmem:[#allocation5 + $0x2e8] sm:$0xff]
        %v3275 = vld [vmem:[#allocation5 + $0x2f0] sm:$0xff]
        %v3276 = vld [vmem:[#allocation5 + $0x2f8] sm:$0xff]
        %v3277 = vld [vmem:[#allocation5 + $0x300] sm:$0xff]
        %v3278 = vld [vmem:[#allocation5 + $0x308] sm:$0xff]
        %v3279 = vld [vmem:[#allocation5 + $0x310] sm:$0xff]
        %v3280 = vld [vmem:[#allocation5 + $0x318] sm:$0xff]
        %v3281 = vld [vmem:[#allocation5 + $0x320] sm:$0xff]
        %v3282 = vld [vmem:[#allocation5 + $0x328] sm:$0xff]
        %v3283 = vld [vmem:[#allocation5 + $0x330] sm:$0xff]
        %v3284 = vld [vmem:[#allocation5 + $0x338] sm:$0xff]
        %v3285 = vld [vmem:[#allocation5 + $0x340] sm:$0xff]
        %v3286 = vld [vmem:[#allocation5 + $0x348] sm:$0xff]
        %v3287 = vld [vmem:[#allocation5 + $0x350] sm:$0xff]
        %v3288 = vld [vmem:[#allocation5 + $0x358] sm:$0xff]
        %v3289 = vld [vmem:[#allocation5 + $0x360] sm:$0xff]
        %v3290 = vld [vmem:[#allocation5 + $0x368] sm:$0xff]
        %v3291 = vld [vmem:[#allocation5 + $0x370] sm:$0xff]
        %v3292 = vld [vmem:[#allocation5 + $0x378] sm:$0xff]
        %v3293 = vld [vmem:[#allocation5 + $0x380] sm:$0xff]
        %v3294 = vld [vmem:[#allocation5 + $0x388] sm:$0xff]
        %v3295 = vld [vmem:[#allocation5 + $0x390] sm:$0xff]
        %v3296 = vld [vmem:[#allocation5 + $0x398] sm:$0xff]
        %v3297 = vld [vmem:[#allocation5 + $0x3a0] sm:$0xff]
        %v3298 = vld [vmem:[#allocation5 + $0x3a8] sm:$0xff]
        %v3299 = vld [vmem:[#allocation5 + $0x3b0] sm:$0xff]
        %v3300 = vld [vmem:[#allocation5 + $0x3b8] sm:$0xff]
        %v3301 = vld [vmem:[#allocation5 + $0x3c0] sm:$0xff]
        %v3302 = vld [vmem:[#allocation5 + $0x3c8] sm:$0xff]
        %v3303 = vld [vmem:[#allocation5 + $0x3d0] sm:$0xff]
        %v3304 = vld [vmem:[#allocation5 + $0x3d8] sm:$0xff]
        %v3305 = vld [vmem:[#allocation5 + $0x3e0] sm:$0xff]
        %v3306 = vld [vmem:[#allocation5 + $0x3e8] sm:$0xff]
        %v3307 = vld [vmem:[#allocation5 + $0x3f0] sm:$0xff]
        %v3308 = vld [vmem:[#allocation5 + $0x3f8] sm:$0xff]
        %v3309 = vlaneseq
        %v3310 = vshrl.u32 %v3309, 7
        %v3311 = vsub.s32 4, %v3310
        %v3312 = vrot.slane %v596, %v3311
        %v3313 = vlaneseq
        %v3314 = vshrl.u32 %v3313, 7
        %v3315 = vsub.s32 4, %v3314
        %v3316 = vrot.slane %v597, %v3315
        %3317 = vmatprep.subr.mxu0 %v3212
        %3318 = vmatpush1.msra.mxu0 %v3211
        %3319 = vmatprep.subr.mxu0 %v3210
        %3320 = vmatpush1.msra.mxu0 %v3209
        %3321 = vmatprep.subr.mxu0 %v3208
        %3322 = vmatpush1.msra.mxu0 %v3207
        %3323 = vmatprep.subr.mxu0 %v3206
        %3324 = vmatpush1.msra.mxu0 %v3205
        %3325 = vmatprep.subr.mxu0 %v3204
        %3326 = vmatpush1.msra.mxu0 %v3203
        %3327 = vmatprep.subr.mxu0 %v3202
        %3328 = vmatpush1.msra.mxu0 %v3201
        %3329 = vmatprep.subr.mxu0 %v3200
        %3330 = vmatpush1.msra.mxu0 %v3199
        %3331 = vmatprep.subr.mxu0 %v3198
        %3332 = vmatpush1.msra.mxu0 %v3197
        %3333 = vmatprep.subr.mxu0 %v3196
        %3334 = vmatpush1.msra.mxu0 %v3195
        %3335 = vmatprep.subr.mxu0 %v3194
        %3336 = vmatpush1.msra.mxu0 %v3193
        %3337 = vmatprep.subr.mxu0 %v3192
        %3338 = vmatpush1.msra.mxu0 %v3191
        %3339 = vmatprep.subr.mxu0 %v3190
        %3340 = vmatpush1.msra.mxu0 %v3189
        %3341 = vmatprep.subr.mxu0 %v3188
        %3342 = vmatpush1.msra.mxu0 %v3187
        %3343 = vmatprep.subr.mxu0 %v3186
        %3344 = vmatpush1.msra.mxu0 %v3185
        %3345 = vmatprep.subr.mxu0 %v3184
        %3346 = vmatpush1.msra.mxu0 %v3183
        %3347 = vmatprep.subr.mxu0 %v3182
        %3348 = vmatpush1.msra.mxu0 %v3181
        %3349 = vmatprep.subr.mxu0 %v3244
        %3350 = vmatpush2.msra.mxu0 %v3243
        %3351 = vmatprep.subr.mxu0 %v3242
        %3352 = vmatpush2.msra.mxu0 %v3241
        %3353 = vmatprep.subr.mxu0 %v3240
        %3354 = vmatpush2.msra.mxu0 %v3239
        %3355 = vmatprep.subr.mxu0 %v3238
        %3356 = vmatpush2.msra.mxu0 %v3237
        %3357 = vmatprep.subr.mxu0 %v3236
        %3358 = vmatpush2.msra.mxu0 %v3235
        %3359 = vmatprep.subr.mxu0 %v3234
        %3360 = vmatpush2.msra.mxu0 %v3233
        %3361 = vmatprep.subr.mxu0 %v3232
        %3362 = vmatpush2.msra.mxu0 %v3231
        %3363 = vmatprep.subr.mxu0 %v3230
        %3364 = vmatpush2.msra.mxu0 %v3229
        %3365 = vmatprep.subr.mxu0 %v3228
        %3366 = vmatpush2.msra.mxu0 %v3227
        %3367 = vmatprep.subr.mxu0 %v3226
        %3368 = vmatpush2.msra.mxu0 %v3225
        %3369 = vmatprep.subr.mxu0 %v3224
        %3370 = vmatpush2.msra.mxu0 %v3223
        %3371 = vmatprep.subr.mxu0 %v3222
        %3372 = vmatpush2.msra.mxu0 %v3221
        %3373 = vmatprep.subr.mxu0 %v3220
        %3374 = vmatpush2.msra.mxu0 %v3219
        %3375 = vmatprep.subr.mxu0 %v3218
        %3376 = vmatpush2.msra.mxu0 %v3217
        %3377 = vmatprep.subr.mxu0 %v3216
        %3378 = vmatpush2.msra.mxu0 %v3215
        %3379 = vmatprep.subr.mxu0 %v3214
        %3380 = vmatpush2.msra.mxu0 %v3213
        %3381 = vmatprep.mubr.f32.mxu0 %v3178
        %3382 = vmatmul.mubr.f32.gmra.mxu0 %v3177
        %v3383 = vpop.f32.mrf.mxu0
        %v3384 = vadd.f32 %v3312, %v3383
        %v3385 = vpop.f32.mrf.mxu0
        %v3386 = vadd.f32 %v3316, %v3385
        %3387 = vdwg.mxu0
        %3388 = vmatprep.subr.mxu0 %v3276
        %3389 = vmatpush1.msra.mxu0 %v3275
        %3390 = vmatprep.subr.mxu0 %v3274
        %3391 = vmatpush1.msra.mxu0 %v3273
        %3392 = vmatprep.subr.mxu0 %v3272
        %3393 = vmatpush1.msra.mxu0 %v3271
        %3394 = vmatprep.subr.mxu0 %v3270
        %3395 = vmatpush1.msra.mxu0 %v3269
        %3396 = vmatprep.subr.mxu0 %v3268
        %3397 = vmatpush1.msra.mxu0 %v3267
        %3398 = vmatprep.subr.mxu0 %v3266
        %3399 = vmatpush1.msra.mxu0 %v3265
        %3400 = vmatprep.subr.mxu0 %v3264
        %3401 = vmatpush1.msra.mxu0 %v3263
        %3402 = vmatprep.subr.mxu0 %v3262
        %3403 = vmatpush1.msra.mxu0 %v3261
        %3404 = vmatprep.subr.mxu0 %v3260
        %3405 = vmatpush1.msra.mxu0 %v3259
        %3406 = vmatprep.subr.mxu0 %v3258
        %3407 = vmatpush1.msra.mxu0 %v3257
        %3408 = vmatprep.subr.mxu0 %v3256
        %3409 = vmatpush1.msra.mxu0 %v3255
        %3410 = vmatprep.subr.mxu0 %v3254
        %3411 = vmatpush1.msra.mxu0 %v3253
        %3412 = vmatprep.subr.mxu0 %v3252
        %3413 = vmatpush1.msra.mxu0 %v3251
        %3414 = vmatprep.subr.mxu0 %v3250
        %3415 = vmatpush1.msra.mxu0 %v3249
        %3416 = vmatprep.subr.mxu0 %v3248
        %3417 = vmatpush1.msra.mxu0 %v3247
        %3418 = vmatprep.subr.mxu0 %v3246
        %3419 = vmatpush1.msra.mxu0 %v3245
        %3420 = vmatprep.subr.mxu0 %v3308
        %3421 = vmatpush2.msra.mxu0 %v3307
        %3422 = vmatprep.subr.mxu0 %v3306
        %3423 = vmatpush2.msra.mxu0 %v3305
        %3424 = vmatprep.subr.mxu0 %v3304
        %3425 = vmatpush2.msra.mxu0 %v3303
        %3426 = vmatprep.subr.mxu0 %v3302
        %3427 = vmatpush2.msra.mxu0 %v3301
        %3428 = vmatprep.subr.mxu0 %v3300
        %3429 = vmatpush2.msra.mxu0 %v3299
        %3430 = vmatprep.subr.mxu0 %v3298
        %3431 = vmatpush2.msra.mxu0 %v3297
        %3432 = vmatprep.subr.mxu0 %v3296
        %3433 = vmatpush2.msra.mxu0 %v3295
        %3434 = vmatprep.subr.mxu0 %v3294
        %3435 = vmatpush2.msra.mxu0 %v3293
        %3436 = vmatprep.subr.mxu0 %v3292
        %3437 = vmatpush2.msra.mxu0 %v3291
        %3438 = vmatprep.subr.mxu0 %v3290
        %3439 = vmatpush2.msra.mxu0 %v3289
        %3440 = vmatprep.subr.mxu0 %v3288
        %3441 = vmatpush2.msra.mxu0 %v3287
        %3442 = vmatprep.subr.mxu0 %v3286
        %3443 = vmatpush2.msra.mxu0 %v3285
        %3444 = vmatprep.subr.mxu0 %v3284
        %3445 = vmatpush2.msra.mxu0 %v3283
        %3446 = vmatprep.subr.mxu0 %v3282
        %3447 = vmatpush2.msra.mxu0 %v3281
        %3448 = vmatprep.subr.mxu0 %v3280
        %3449 = vmatpush2.msra.mxu0 %v3279
        %3450 = vmatprep.subr.mxu0 %v3278
        %3451 = vmatpush2.msra.mxu0 %v3277
        %3452 = vmatprep.mubr.f32.mxu0 %v3180
        %3453 = vmatmul.mubr.f32.gmra.mxu0 %v3179
        %v3454 = vpop.f32.mrf.mxu0
        %v3455 = vadd.f32 %v3384, %v3454
        %v3456 = vpop.f32.mrf.mxu0
        %v3457 = vadd.f32 %v3386, %v3456
        %3458 = vdwg.mxu0
        %vm3459 = vcmp.gt.f32.partialorder %v3455, 0.0
        %vm3460 = vcmp.gt.f32.partialorder %v3457, 0.0
        %v3461 = vmul.f32 %v3455, 0.5
        %v3462 = vmul.f32 %v3457, 0.5
        %v3463 = vsel %vm3459, %v3455, %v3461
        %v3464 = vsel %vm3460, %v3457, %v3462
        %v3465 = vld [vmem:[%s7] sm:$0xff]
        %v3466 = vld [vmem:[%s7 + $0x8] sm:$0xff]
        %v3467 = vld [vmem:[%s7 + $0x10] sm:$0xff]
        %v3468 = vld [vmem:[%s7 + $0x18] sm:$0xff]
        %v3469 = vld [vmem:[%s7 + $0x20] sm:$0xff]
        %v3470 = vld [vmem:[%s7 + $0x28] sm:$0xff]
        %v3471 = vld [vmem:[%s7 + $0x30] sm:$0xff]
        %v3472 = vld [vmem:[%s7 + $0x38] sm:$0xff]
        %v3473 = vld [vmem:[%s7 + $0x40] sm:$0xff]
        %v3474 = vld [vmem:[%s7 + $0x48] sm:$0xff]
        %v3475 = vld [vmem:[%s7 + $0x50] sm:$0xff]
        %v3476 = vld [vmem:[%s7 + $0x58] sm:$0xff]
        %v3477 = vld [vmem:[%s7 + $0x60] sm:$0xff]
        %v3478 = vld [vmem:[%s7 + $0x68] sm:$0xff]
        %v3479 = vld [vmem:[%s7 + $0x70] sm:$0xff]
        %v3480 = vld [vmem:[%s7 + $0x78] sm:$0xff]
        %v3481 = vld [vmem:[%s7 + $0x80] sm:$0xff]
        %v3482 = vld [vmem:[%s7 + $0x88] sm:$0xff]
        %v3483 = vld [vmem:[%s7 + $0x90] sm:$0xff]
        %v3484 = vld [vmem:[%s7 + $0x98] sm:$0xff]
        %v3485 = vld [vmem:[%s7 + $0xa0] sm:$0xff]
        %v3486 = vld [vmem:[%s7 + $0xa8] sm:$0xff]
        %v3487 = vld [vmem:[%s7 + $0xb0] sm:$0xff]
        %v3488 = vld [vmem:[%s7 + $0xb8] sm:$0xff]
        %v3489 = vld [vmem:[%s7 + $0xc0] sm:$0xff]
        %v3490 = vld [vmem:[%s7 + $0xc8] sm:$0xff]
        %v3491 = vld [vmem:[%s7 + $0xd0] sm:$0xff]
        %v3492 = vld [vmem:[%s7 + $0xd8] sm:$0xff]
        %v3493 = vld [vmem:[%s7 + $0xe0] sm:$0xff]
        %v3494 = vld [vmem:[%s7 + $0xe8] sm:$0xff]
        %v3495 = vld [vmem:[%s7 + $0xf0] sm:$0xff]
        %v3496 = vld [vmem:[%s7 + $0xf8] sm:$0xff]
        %v3497 = vlaneseq
        %v3498 = vshrl.u32 %v3497, 7
        %v3499 = vsub.s32 5, %v3498
        %v3500 = vrot.slane %v596, %v3499
        %3501 = vmatprep.subr.mxu0 0.0
        %3502 = vmatpush1.msra.mxu0 %v3480
        %3503 = vmatprep.subr.mxu0 0.0
        %3504 = vmatpush1.msra.mxu0 %v3479
        %3505 = vmatprep.subr.mxu0 0.0
        %3506 = vmatpush1.msra.mxu0 %v3478
        %3507 = vmatprep.subr.mxu0 0.0
        %3508 = vmatpush1.msra.mxu0 %v3477
        %3509 = vmatprep.subr.mxu0 0.0
        %3510 = vmatpush1.msra.mxu0 %v3476
        %3511 = vmatprep.subr.mxu0 0.0
        %3512 = vmatpush1.msra.mxu0 %v3475
        %3513 = vmatprep.subr.mxu0 0.0
        %3514 = vmatpush1.msra.mxu0 %v3474
        %3515 = vmatprep.subr.mxu0 0.0
        %3516 = vmatpush1.msra.mxu0 %v3473
        %3517 = vmatprep.subr.mxu0 0.0
        %3518 = vmatpush1.msra.mxu0 %v3472
        %3519 = vmatprep.subr.mxu0 0.0
        %3520 = vmatpush1.msra.mxu0 %v3471
        %3521 = vmatprep.subr.mxu0 0.0
        %3522 = vmatpush1.msra.mxu0 %v3470
        %3523 = vmatprep.subr.mxu0 0.0
        %3524 = vmatpush1.msra.mxu0 %v3469
        %3525 = vmatprep.subr.mxu0 0.0
        %3526 = vmatpush1.msra.mxu0 %v3468
        %3527 = vmatprep.subr.mxu0 0.0
        %3528 = vmatpush1.msra.mxu0 %v3467
        %3529 = vmatprep.subr.mxu0 0.0
        %3530 = vmatpush1.msra.mxu0 %v3466
        %3531 = vmatprep.subr.mxu0 0.0
        %3532 = vmatpush1.msra.mxu0 %v3465
        %3533 = vmatprep.subr.mxu0 0.0
        %3534 = vmatpush2.msra.mxu0 %v3496
        %3535 = vmatprep.subr.mxu0 0.0
        %3536 = vmatpush2.msra.mxu0 %v3495
        %3537 = vmatprep.subr.mxu0 0.0
        %3538 = vmatpush2.msra.mxu0 %v3494
        %3539 = vmatprep.subr.mxu0 0.0
        %3540 = vmatpush2.msra.mxu0 %v3493
        %3541 = vmatprep.subr.mxu0 0.0
        %3542 = vmatpush2.msra.mxu0 %v3492
        %3543 = vmatprep.subr.mxu0 0.0
        %3544 = vmatpush2.msra.mxu0 %v3491
        %3545 = vmatprep.subr.mxu0 0.0
        %3546 = vmatpush2.msra.mxu0 %v3490
        %3547 = vmatprep.subr.mxu0 0.0
        %3548 = vmatpush2.msra.mxu0 %v3489
        %3549 = vmatprep.subr.mxu0 0.0
        %3550 = vmatpush2.msra.mxu0 %v3488
        %3551 = vmatprep.subr.mxu0 0.0
        %3552 = vmatpush2.msra.mxu0 %v3487
        %3553 = vmatprep.subr.mxu0 0.0
        %3554 = vmatpush2.msra.mxu0 %v3486
        %3555 = vmatprep.subr.mxu0 0.0
        %3556 = vmatpush2.msra.mxu0 %v3485
        %3557 = vmatprep.subr.mxu0 0.0
        %3558 = vmatpush2.msra.mxu0 %v3484
        %3559 = vmatprep.subr.mxu0 0.0
        %3560 = vmatpush2.msra.mxu0 %v3483
        %3561 = vmatprep.subr.mxu0 0.0
        %3562 = vmatpush2.msra.mxu0 %v3482
        %3563 = vmatprep.subr.mxu0 0.0
        %3564 = vmatpush2.msra.mxu0 %v3481
        %3565 = vmatprep.mubr.f32.mxu0 %v3464
        %3566 = vmatmul.mubr.f32.gmra.mxu0 %v3463
        %v3567 = vpop.f32.mrf.mxu0
        %v3568 = vadd.f32 %v3500, %v3567
        %v3569 = vpop.f32.mrf.mxu0
        %3570 = vdwg.mxu0
        %vm3571 = vcmask 254976
        %v3572 = vsel %vm3571, %v3568, -inf
        %3573 = vmax.xlane.f32.xlu0 %v3572
        %v3574 = vpop.xlane.xlu0 %3573
        %v3575 = vsub.f32 %v3568, %v3574
        %v3576 = vmul.f32 %v3575, 1.442695
        %v3577 = vpow.pop %v3576
        %v3578 = vsel %vm3571, %v3577, 0.0
        %3579 = vadd.xlane.f32.xlu0 %v3578
        %v3580 = vpop.xlane.xlu0 %3579
        %v3581 = vrcp.pop %v3580
        %v3582 = vmul.f32 %v3577, %v3581
        %v3583 = vrot.slane %v2393, 6
        %3584 = vrot.lane.b32.xlu0 %v3583, 96
        %v3585 = vpop.permute.xlu0 %3584
        %v3587 = vmul.f32 %v3582, %v3585
        %v3589 = vrot.slane %v3587, 2
        %3590 = vrot.lane.b32.xlu0 %v3589, 32
        %v3591 = vpop.permute.xlu0 %3590
        %v3593 = vsel %vm717, %v2397, %v3591
        %v3595 = vrot.slane %v3593, 6
        %vm3597 = vcmask 517120
        %v3598 = vsel %vm3597, %v3595, 0.0
        %v3599 = vrot.slane %v3598, 4
        %v3600 = vadd.f32 %v3598, %v3599
        %v3601 = vrot.slane %v3600, 2
        %v3602 = vadd.f32 %v3600, %v3601
        %v3603 = vrot.slane %v3602, 1
        %v3604 = vadd.f32 %v3602, %v3603
        %v3605 = vrcp.pop 2.0
        %v3606 = vmul.f32 %v3604, %v3605
        %v3607 = vsub.f32 %v3593, %v3606
        %v3608 = vmul.f32 %v3607, %v3607
        %v3610 = vrot.slane %v3608, 6
        %v3612 = vsel %vm3597, %v3610, 0.0
        %v3613 = vrot.slane %v3612, 4
        %v3614 = vadd.f32 %v3612, %v3613
        %v3615 = vrot.slane %v3614, 2
        %v3616 = vadd.f32 %v3614, %v3615
        %v3617 = vrot.slane %v3616, 1
        %v3618 = vadd.f32 %v3616, %v3617
        %v3619 = vmul.f32 %v3618, %v3605
        %v3620 = vadd.f32 %v3619, 1e-05
        %v3621 = vrsqrt.pop %v3620
        %v3622 = vmul.f32 %v3607, %v3621
        %v3623 = vlaneseq
        %v3624 = vshrl.u32 %v3623, 7
        %v3625 = vsub.s32 2, %v3624
        %v3626 = vrot.slane %v600, %v3625
        %v3627 = vmul.f32 %v3622, %v3626
        %v3628 = vlaneseq
        %v3629 = vshrl.u32 %v3628, 7
        %v3630 = vsub.s32 3, %v3629
        %v3631 = vrot.slane %v600, %v3630
        %v3632 = vadd.f32 %v3627, %v3631
        %v3633 = vld [vmem:[%s8] sm:$0xff]
        %v3634 = vld [vmem:[%s8 + $0x8] sm:$0xff]
        %v3635 = vld [vmem:[%s8 + $0x10] sm:$0xff]
        %v3636 = vld [vmem:[%s8 + $0x18] sm:$0xff]
        %v3637 = vld [vmem:[%s8 + $0x20] sm:$0xff]
        %v3638 = vld [vmem:[%s8 + $0x28] sm:$0xff]
        %v3639 = vld [vmem:[%s8 + $0x30] sm:$0xff]
        %v3640 = vld [vmem:[%s8 + $0x38] sm:$0xff]
        %v3641 = vld [vmem:[%s8 + $0x40] sm:$0xff]
        %v3642 = vld [vmem:[%s8 + $0x48] sm:$0xff]
        %v3643 = vld [vmem:[%s8 + $0x50] sm:$0xff]
        %v3644 = vld [vmem:[%s8 + $0x58] sm:$0xff]
        %v3645 = vld [vmem:[%s8 + $0x60] sm:$0xff]
        %v3646 = vld [vmem:[%s8 + $0x68] sm:$0xff]
        %v3647 = vld [vmem:[%s8 + $0x70] sm:$0xff]
        %v3648 = vld [vmem:[%s8 + $0x78] sm:$0xff]
        %v3649 = vld [vmem:[%s8 + $0x80] sm:$0xff]
        %v3650 = vld [vmem:[%s8 + $0x88] sm:$0xff]
        %v3651 = vld [vmem:[%s8 + $0x90] sm:$0xff]
        %v3652 = vld [vmem:[%s8 + $0x98] sm:$0xff]
        %v3653 = vld [vmem:[%s8 + $0xa0] sm:$0xff]
        %v3654 = vld [vmem:[%s8 + $0xa8] sm:$0xff]
        %v3655 = vld [vmem:[%s8 + $0xb0] sm:$0xff]
        %v3656 = vld [vmem:[%s8 + $0xb8] sm:$0xff]
        %v3657 = vld [vmem:[%s8 + $0xc0] sm:$0xff]
        %v3658 = vld [vmem:[%s8 + $0xc8] sm:$0xff]
        %v3659 = vld [vmem:[%s8 + $0xd0] sm:$0xff]
        %v3660 = vld [vmem:[%s8 + $0xd8] sm:$0xff]
        %v3661 = vld [vmem:[%s8 + $0xe0] sm:$0xff]
        %v3662 = vld [vmem:[%s8 + $0xe8] sm:$0xff]
        %v3663 = vld [vmem:[%s8 + $0xf0] sm:$0xff]
        %v3664 = vld [vmem:[%s8 + $0xf8] sm:$0xff]
        %v3665 = vlaneseq
        %v3666 = vshrl.u32 %v3665, 7
        %v3667 = vsub.s32 6, %v3666
        %v3668 = vrot.slane %v596, %v3667
        %v3669 = vlaneseq
        %v3670 = vshrl.u32 %v3669, 7
        %v3671 = vsub.s32 6, %v3670
        %v3672 = vrot.slane %v597, %v3671
        %v3673 = vlaneseq
        %v3674 = vshrl.u32 %v3673, 7
        %v3675 = vsub.s32 6, %v3674
        %v3676 = vrot.slane %v598, %v3675
        %v3677 = vlaneseq
        %v3678 = vshrl.u32 %v3677, 7
        %v3679 = vsub.s32 6, %v3678
        %v3680 = vrot.slane %v599, %v3679
        %v3682 = vrot.slane %v3632, 6
        %vm3683 = vcmask 523264
        %v3684 = vsel %vm3683, %v3682, 0
        %3686 = vmatprep.subr.mxu0 0.0
        %3687 = vmatpush1.msra.mxu0 0.0
        %3688 = vmatprep.subr.mxu0 0.0
        %3689 = vmatpush1.msra.mxu0 0.0
        %3690 = vmatprep.subr.mxu0 0.0
        %3691 = vmatpush1.msra.mxu0 0.0
        %3692 = vmatprep.subr.mxu0 0.0
        %3693 = vmatpush1.msra.mxu0 0.0
        %3694 = vmatprep.subr.mxu0 0.0
        %3695 = vmatpush1.msra.mxu0 0.0
        %3696 = vmatprep.subr.mxu0 0.0
        %3697 = vmatpush1.msra.mxu0 0.0
        %3698 = vmatprep.subr.mxu0 0.0
        %3699 = vmatpush1.msra.mxu0 0.0
        %3700 = vmatprep.subr.mxu0 0.0
        %3701 = vmatpush1.msra.mxu0 0.0
        %3702 = vmatprep.subr.mxu0 %v3662
        %3703 = vmatpush1.msra.mxu0 %v3661
        %3704 = vmatprep.subr.mxu0 %v3658
        %3705 = vmatpush1.msra.mxu0 %v3657
        %3706 = vmatprep.subr.mxu0 %v3654
        %3707 = vmatpush1.msra.mxu0 %v3653
        %3708 = vmatprep.subr.mxu0 %v3650
        %3709 = vmatpush1.msra.mxu0 %v3649
        %3710 = vmatprep.subr.mxu0 %v3646
        %3711 = vmatpush1.msra.mxu0 %v3645
        %3712 = vmatprep.subr.mxu0 %v3642
        %3713 = vmatpush1.msra.mxu0 %v3641
        %3714 = vmatprep.subr.mxu0 %v3638
        %3715 = vmatpush1.msra.mxu0 %v3637
        %3716 = vmatprep.subr.mxu0 %v3634
        %3717 = vmatpush1.msra.mxu0 %v3633
        %3718 = vmatprep.subr.mxu0 0.0
        %3719 = vmatpush2.msra.mxu0 0.0
        %3720 = vmatprep.subr.mxu0 0.0
        %3721 = vmatpush2.msra.mxu0 0.0
        %3722 = vmatprep.subr.mxu0 0.0
        %3723 = vmatpush2.msra.mxu0 0.0
        %3724 = vmatprep.subr.mxu0 0.0
        %3725 = vmatpush2.msra.mxu0 0.0
        %3726 = vmatprep.subr.mxu0 0.0
        %3727 = vmatpush2.msra.mxu0 0.0
        %3728 = vmatprep.subr.mxu0 0.0
        %3729 = vmatpush2.msra.mxu0 0.0
        %3730 = vmatprep.subr.mxu0 0.0
        %3731 = vmatpush2.msra.mxu0 0.0
        %3732 = vmatprep.subr.mxu0 0.0
        %3733 = vmatpush2.msra.mxu0 0.0
        %3734 = vmatprep.subr.mxu0 0.0
        %3735 = vmatpush2.msra.mxu0 0.0
        %3736 = vmatprep.subr.mxu0 0.0
        %3737 = vmatpush2.msra.mxu0 0.0
        %3738 = vmatprep.subr.mxu0 0.0
        %3739 = vmatpush2.msra.mxu0 0.0
        %3740 = vmatprep.subr.mxu0 0.0
        %3741 = vmatpush2.msra.mxu0 0.0
        %3742 = vmatprep.subr.mxu0 0.0
        %3743 = vmatpush2.msra.mxu0 0.0
        %3744 = vmatprep.subr.mxu0 0.0
        %3745 = vmatpush2.msra.mxu0 0.0
        %3746 = vmatprep.subr.mxu0 0.0
        %3747 = vmatpush2.msra.mxu0 0.0
        %3748 = vmatprep.subr.mxu0 0.0
        %3749 = vmatpush2.msra.mxu0 0.0
        %3750 = vmatprep.mubr.f32.mxu0 0.0
        %3751 = vmatmul.mubr.f32.gmra.mxu0 %v3684
        %v3752 = vpop.f32.mrf.mxu0
        %v3753 = vadd.f32 %v3668, %v3752
        %v3754 = vpop.f32.mrf.mxu0
        %v3755 = vadd.f32 %v3672, %v3754
        %3756 = vdwg.mxu0
        %3757 = vmatprep.subr.mxu0 0.0
        %3758 = vmatpush1.msra.mxu0 0.0
        %3759 = vmatprep.subr.mxu0 0.0
        %3760 = vmatpush1.msra.mxu0 0.0
        %3761 = vmatprep.subr.mxu0 0.0
        %3762 = vmatpush1.msra.mxu0 0.0
        %3763 = vmatprep.subr.mxu0 0.0
        %3764 = vmatpush1.msra.mxu0 0.0
        %3765 = vmatprep.subr.mxu0 0.0
        %3766 = vmatpush1.msra.mxu0 0.0
        %3767 = vmatprep.subr.mxu0 0.0
        %3768 = vmatpush1.msra.mxu0 0.0
        %3769 = vmatprep.subr.mxu0 0.0
        %3770 = vmatpush1.msra.mxu0 0.0
        %3771 = vmatprep.subr.mxu0 0.0
        %3772 = vmatpush1.msra.mxu0 0.0
        %3773 = vmatprep.subr.mxu0 %v3664
        %3774 = vmatpush1.msra.mxu0 %v3663
        %3775 = vmatprep.subr.mxu0 %v3660
        %3776 = vmatpush1.msra.mxu0 %v3659
        %3777 = vmatprep.subr.mxu0 %v3656
        %3778 = vmatpush1.msra.mxu0 %v3655
        %3779 = vmatprep.subr.mxu0 %v3652
        %3780 = vmatpush1.msra.mxu0 %v3651
        %3781 = vmatprep.subr.mxu0 %v3648
        %3782 = vmatpush1.msra.mxu0 %v3647
        %3783 = vmatprep.subr.mxu0 %v3644
        %3784 = vmatpush1.msra.mxu0 %v3643
        %3785 = vmatprep.subr.mxu0 %v3640
        %3786 = vmatpush1.msra.mxu0 %v3639
        %3787 = vmatprep.subr.mxu0 %v3636
        %3788 = vmatpush1.msra.mxu0 %v3635
        %3789 = vmatprep.subr.mxu0 0.0
        %3790 = vmatpush2.msra.mxu0 0.0
        %3791 = vmatprep.subr.mxu0 0.0
        %3792 = vmatpush2.msra.mxu0 0.0
        %3793 = vmatprep.subr.mxu0 0.0
        %3794 = vmatpush2.msra.mxu0 0.0
        %3795 = vmatprep.subr.mxu0 0.0
        %3796 = vmatpush2.msra.mxu0 0.0
        %3797 = vmatprep.subr.mxu0 0.0
        %3798 = vmatpush2.msra.mxu0 0.0
        %3799 = vmatprep.subr.mxu0 0.0
        %3800 = vmatpush2.msra.mxu0 0.0
        %3801 = vmatprep.subr.mxu0 0.0
        %3802 = vmatpush2.msra.mxu0 0.0
        %3803 = vmatprep.subr.mxu0 0.0
        %3804 = vmatpush2.msra.mxu0 0.0
        %3805 = vmatprep.subr.mxu0 0.0
        %3806 = vmatpush2.msra.mxu0 0.0
        %3807 = vmatprep.subr.mxu0 0.0
        %3808 = vmatpush2.msra.mxu0 0.0
        %3809 = vmatprep.subr.mxu0 0.0
        %3810 = vmatpush2.msra.mxu0 0.0
        %3811 = vmatprep.subr.mxu0 0.0
        %3812 = vmatpush2.msra.mxu0 0.0
        %3813 = vmatprep.subr.mxu0 0.0
        %3814 = vmatpush2.msra.mxu0 0.0
        %3815 = vmatprep.subr.mxu0 0.0
        %3816 = vmatpush2.msra.mxu0 0.0
        %3817 = vmatprep.subr.mxu0 0.0
        %3818 = vmatpush2.msra.mxu0 0.0
        %3819 = vmatprep.subr.mxu0 0.0
        %3820 = vmatpush2.msra.mxu0 0.0
        %3821 = vmatprep.mubr.f32.mxu0 0.0
        %3822 = vmatmul.mubr.f32.gmra.mxu0 %v3684
        %v3823 = vpop.f32.mrf.mxu0
        %v3824 = vadd.f32 %v3676, %v3823
        %v3825 = vpop.f32.mrf.mxu0
        %v3826 = vadd.f32 %v3680, %v3825
        %3827 = vdwg.mxu0
        %vm3828 = vcmp.gt.f32.partialorder %v3753, 0.0
        %vm3829 = vcmp.gt.f32.partialorder %v3755, 0.0
        %vm3830 = vcmp.gt.f32.partialorder %v3824, 0.0
        %vm3831 = vcmp.gt.f32.partialorder %v3826, 0.0
        %v3832 = vmul.f32 %v3753, 0.5
        %v3833 = vmul.f32 %v3755, 0.5
        %v3834 = vmul.f32 %v3824, 0.5
        %v3835 = vmul.f32 %v3826, 0.5
        %v3836 = vsel %vm3828, %v3753, %v3832
        %v3837 = vsel %vm3829, %v3755, %v3833
        %v3838 = vsel %vm3830, %v3824, %v3834
        %v3839 = vsel %vm3831, %v3826, %v3835
        %v3840 = vld [vmem:[#allocation7] sm:$0xff]
        %v3841 = vld [vmem:[#allocation7 + $0x8] sm:$0xff]
        %v3842 = vld [vmem:[#allocation7 + $0x10] sm:$0xff]
        %v3843 = vld [vmem:[#allocation7 + $0x18] sm:$0xff]
        %v3844 = vld [vmem:[#allocation7 + $0x20] sm:$0xff]
        %v3845 = vld [vmem:[#allocation7 + $0x28] sm:$0xff]
        %v3846 = vld [vmem:[#allocation7 + $0x30] sm:$0xff]
        %v3847 = vld [vmem:[#allocation7 + $0x38] sm:$0xff]
        %v3848 = vld [vmem:[#allocation7 + $0x40] sm:$0xff]
        %v3849 = vld [vmem:[#allocation7 + $0x48] sm:$0xff]
        %v3850 = vld [vmem:[#allocation7 + $0x50] sm:$0xff]
        %v3851 = vld [vmem:[#allocation7 + $0x58] sm:$0xff]
        %v3852 = vld [vmem:[#allocation7 + $0x60] sm:$0xff]
        %v3853 = vld [vmem:[#allocation7 + $0x68] sm:$0xff]
        %v3854 = vld [vmem:[#allocation7 + $0x70] sm:$0xff]
        %v3855 = vld [vmem:[#allocation7 + $0x78] sm:$0xff]
        %v3856 = vld [vmem:[#allocation7 + $0x80] sm:$0xff]
        %v3857 = vld [vmem:[#allocation7 + $0x88] sm:$0xff]
        %v3858 = vld [vmem:[#allocation7 + $0x90] sm:$0xff]
        %v3859 = vld [vmem:[#allocation7 + $0x98] sm:$0xff]
        %v3860 = vld [vmem:[#allocation7 + $0xa0] sm:$0xff]
        %v3861 = vld [vmem:[#allocation7 + $0xa8] sm:$0xff]
        %v3862 = vld [vmem:[#allocation7 + $0xb0] sm:$0xff]
        %v3863 = vld [vmem:[#allocation7 + $0xb8] sm:$0xff]
        %v3864 = vld [vmem:[#allocation7 + $0xc0] sm:$0xff]
        %v3865 = vld [vmem:[#allocation7 + $0xc8] sm:$0xff]
        %v3866 = vld [vmem:[#allocation7 + $0xd0] sm:$0xff]
        %v3867 = vld [vmem:[#allocation7 + $0xd8] sm:$0xff]
        %v3868 = vld [vmem:[#allocation7 + $0xe0] sm:$0xff]
        %v3869 = vld [vmem:[#allocation7 + $0xe8] sm:$0xff]
        %v3870 = vld [vmem:[#allocation7 + $0xf0] sm:$0xff]
        %v3871 = vld [vmem:[#allocation7 + $0xf8] sm:$0xff]
        %v3872 = vld [vmem:[#allocation7 + $0x100] sm:$0xff]
        %v3873 = vld [vmem:[#allocation7 + $0x108] sm:$0xff]
        %v3874 = vld [vmem:[#allocation7 + $0x110] sm:$0xff]
        %v3875 = vld [vmem:[#allocation7 + $0x118] sm:$0xff]
        %v3876 = vld [vmem:[#allocation7 + $0x120] sm:$0xff]
        %v3877 = vld [vmem:[#allocation7 + $0x128] sm:$0xff]
        %v3878 = vld [vmem:[#allocation7 + $0x130] sm:$0xff]
        %v3879 = vld [vmem:[#allocation7 + $0x138] sm:$0xff]
        %v3880 = vld [vmem:[#allocation7 + $0x140] sm:$0xff]
        %v3881 = vld [vmem:[#allocation7 + $0x148] sm:$0xff]
        %v3882 = vld [vmem:[#allocation7 + $0x150] sm:$0xff]
        %v3883 = vld [vmem:[#allocation7 + $0x158] sm:$0xff]
        %v3884 = vld [vmem:[#allocation7 + $0x160] sm:$0xff]
        %v3885 = vld [vmem:[#allocation7 + $0x168] sm:$0xff]
        %v3886 = vld [vmem:[#allocation7 + $0x170] sm:$0xff]
        %v3887 = vld [vmem:[#allocation7 + $0x178] sm:$0xff]
        %v3888 = vld [vmem:[#allocation7 + $0x180] sm:$0xff]
        %v3889 = vld [vmem:[#allocation7 + $0x188] sm:$0xff]
        %v3890 = vld [vmem:[#allocation7 + $0x190] sm:$0xff]
        %v3891 = vld [vmem:[#allocation7 + $0x198] sm:$0xff]
        %v3892 = vld [vmem:[#allocation7 + $0x1a0] sm:$0xff]
        %v3893 = vld [vmem:[#allocation7 + $0x1a8] sm:$0xff]
        %v3894 = vld [vmem:[#allocation7 + $0x1b0] sm:$0xff]
        %v3895 = vld [vmem:[#allocation7 + $0x1b8] sm:$0xff]
        %v3896 = vld [vmem:[#allocation7 + $0x1c0] sm:$0xff]
        %v3897 = vld [vmem:[#allocation7 + $0x1c8] sm:$0xff]
        %v3898 = vld [vmem:[#allocation7 + $0x1d0] sm:$0xff]
        %v3899 = vld [vmem:[#allocation7 + $0x1d8] sm:$0xff]
        %v3900 = vld [vmem:[#allocation7 + $0x1e0] sm:$0xff]
        %v3901 = vld [vmem:[#allocation7 + $0x1e8] sm:$0xff]
        %v3902 = vld [vmem:[#allocation7 + $0x1f0] sm:$0xff]
        %v3903 = vld [vmem:[#allocation7 + $0x1f8] sm:$0xff]
        %v3904 = vld [vmem:[#allocation7 + $0x200] sm:$0xff]
        %v3905 = vld [vmem:[#allocation7 + $0x208] sm:$0xff]
        %v3906 = vld [vmem:[#allocation7 + $0x210] sm:$0xff]
        %v3907 = vld [vmem:[#allocation7 + $0x218] sm:$0xff]
        %v3908 = vld [vmem:[#allocation7 + $0x220] sm:$0xff]
        %v3909 = vld [vmem:[#allocation7 + $0x228] sm:$0xff]
        %v3910 = vld [vmem:[#allocation7 + $0x230] sm:$0xff]
        %v3911 = vld [vmem:[#allocation7 + $0x238] sm:$0xff]
        %v3912 = vld [vmem:[#allocation7 + $0x240] sm:$0xff]
        %v3913 = vld [vmem:[#allocation7 + $0x248] sm:$0xff]
        %v3914 = vld [vmem:[#allocation7 + $0x250] sm:$0xff]
        %v3915 = vld [vmem:[#allocation7 + $0x258] sm:$0xff]
        %v3916 = vld [vmem:[#allocation7 + $0x260] sm:$0xff]
        %v3917 = vld [vmem:[#allocation7 + $0x268] sm:$0xff]
        %v3918 = vld [vmem:[#allocation7 + $0x270] sm:$0xff]
        %v3919 = vld [vmem:[#allocation7 + $0x278] sm:$0xff]
        %v3920 = vld [vmem:[#allocation7 + $0x280] sm:$0xff]
        %v3921 = vld [vmem:[#allocation7 + $0x288] sm:$0xff]
        %v3922 = vld [vmem:[#allocation7 + $0x290] sm:$0xff]
        %v3923 = vld [vmem:[#allocation7 + $0x298] sm:$0xff]
        %v3924 = vld [vmem:[#allocation7 + $0x2a0] sm:$0xff]
        %v3925 = vld [vmem:[#allocation7 + $0x2a8] sm:$0xff]
        %v3926 = vld [vmem:[#allocation7 + $0x2b0] sm:$0xff]
        %v3927 = vld [vmem:[#allocation7 + $0x2b8] sm:$0xff]
        %v3928 = vld [vmem:[#allocation7 + $0x2c0] sm:$0xff]
        %v3929 = vld [vmem:[#allocation7 + $0x2c8] sm:$0xff]
        %v3930 = vld [vmem:[#allocation7 + $0x2d0] sm:$0xff]
        %v3931 = vld [vmem:[#allocation7 + $0x2d8] sm:$0xff]
        %v3932 = vld [vmem:[#allocation7 + $0x2e0] sm:$0xff]
        %v3933 = vld [vmem:[#allocation7 + $0x2e8] sm:$0xff]
        %v3934 = vld [vmem:[#allocation7 + $0x2f0] sm:$0xff]
        %v3935 = vld [vmem:[#allocation7 + $0x2f8] sm:$0xff]
        %v3936 = vld [vmem:[#allocation7 + $0x300] sm:$0xff]
        %v3937 = vld [vmem:[#allocation7 + $0x308] sm:$0xff]
        %v3938 = vld [vmem:[#allocation7 + $0x310] sm:$0xff]
        %v3939 = vld [vmem:[#allocation7 + $0x318] sm:$0xff]
        %v3940 = vld [vmem:[#allocation7 + $0x320] sm:$0xff]
        %v3941 = vld [vmem:[#allocation7 + $0x328] sm:$0xff]
        %v3942 = vld [vmem:[#allocation7 + $0x330] sm:$0xff]
        %v3943 = vld [vmem:[#allocation7 + $0x338] sm:$0xff]
        %v3944 = vld [vmem:[#allocation7 + $0x340] sm:$0xff]
        %v3945 = vld [vmem:[#allocation7 + $0x348] sm:$0xff]
        %v3946 = vld [vmem:[#allocation7 + $0x350] sm:$0xff]
        %v3947 = vld [vmem:[#allocation7 + $0x358] sm:$0xff]
        %v3948 = vld [vmem:[#allocation7 + $0x360] sm:$0xff]
        %v3949 = vld [vmem:[#allocation7 + $0x368] sm:$0xff]
        %v3950 = vld [vmem:[#allocation7 + $0x370] sm:$0xff]
        %v3951 = vld [vmem:[#allocation7 + $0x378] sm:$0xff]
        %v3952 = vld [vmem:[#allocation7 + $0x380] sm:$0xff]
        %v3953 = vld [vmem:[#allocation7 + $0x388] sm:$0xff]
        %v3954 = vld [vmem:[#allocation7 + $0x390] sm:$0xff]
        %v3955 = vld [vmem:[#allocation7 + $0x398] sm:$0xff]
        %v3956 = vld [vmem:[#allocation7 + $0x3a0] sm:$0xff]
        %v3957 = vld [vmem:[#allocation7 + $0x3a8] sm:$0xff]
        %v3958 = vld [vmem:[#allocation7 + $0x3b0] sm:$0xff]
        %v3959 = vld [vmem:[#allocation7 + $0x3b8] sm:$0xff]
        %v3960 = vld [vmem:[#allocation7 + $0x3c0] sm:$0xff]
        %v3961 = vld [vmem:[#allocation7 + $0x3c8] sm:$0xff]
        %v3962 = vld [vmem:[#allocation7 + $0x3d0] sm:$0xff]
        %v3963 = vld [vmem:[#allocation7 + $0x3d8] sm:$0xff]
        %v3964 = vld [vmem:[#allocation7 + $0x3e0] sm:$0xff]
        %v3965 = vld [vmem:[#allocation7 + $0x3e8] sm:$0xff]
        %v3966 = vld [vmem:[#allocation7 + $0x3f0] sm:$0xff]
        %v3967 = vld [vmem:[#allocation7 + $0x3f8] sm:$0xff]
        %v3968 = vld [vmem:[#allocation7 + $0x400] sm:$0xff]
        %v3969 = vld [vmem:[#allocation7 + $0x408] sm:$0xff]
        %v3970 = vld [vmem:[#allocation7 + $0x410] sm:$0xff]
        %v3971 = vld [vmem:[#allocation7 + $0x418] sm:$0xff]
        %v3972 = vld [vmem:[#allocation7 + $0x420] sm:$0xff]
        %v3973 = vld [vmem:[#allocation7 + $0x428] sm:$0xff]
        %v3974 = vld [vmem:[#allocation7 + $0x430] sm:$0xff]
        %v3975 = vld [vmem:[#allocation7 + $0x438] sm:$0xff]
        %v3976 = vld [vmem:[#allocation7 + $0x440] sm:$0xff]
        %v3977 = vld [vmem:[#allocation7 + $0x448] sm:$0xff]
        %v3978 = vld [vmem:[#allocation7 + $0x450] sm:$0xff]
        %v3979 = vld [vmem:[#allocation7 + $0x458] sm:$0xff]
        %v3980 = vld [vmem:[#allocation7 + $0x460] sm:$0xff]
        %v3981 = vld [vmem:[#allocation7 + $0x468] sm:$0xff]
        %v3982 = vld [vmem:[#allocation7 + $0x470] sm:$0xff]
        %v3983 = vld [vmem:[#allocation7 + $0x478] sm:$0xff]
        %v3984 = vld [vmem:[#allocation7 + $0x480] sm:$0xff]
        %v3985 = vld [vmem:[#allocation7 + $0x488] sm:$0xff]
        %v3986 = vld [vmem:[#allocation7 + $0x490] sm:$0xff]
        %v3987 = vld [vmem:[#allocation7 + $0x498] sm:$0xff]
        %v3988 = vld [vmem:[#allocation7 + $0x4a0] sm:$0xff]
        %v3989 = vld [vmem:[#allocation7 + $0x4a8] sm:$0xff]
        %v3990 = vld [vmem:[#allocation7 + $0x4b0] sm:$0xff]
        %v3991 = vld [vmem:[#allocation7 + $0x4b8] sm:$0xff]
        %v3992 = vld [vmem:[#allocation7 + $0x4c0] sm:$0xff]
        %v3993 = vld [vmem:[#allocation7 + $0x4c8] sm:$0xff]
        %v3994 = vld [vmem:[#allocation7 + $0x4d0] sm:$0xff]
        %v3995 = vld [vmem:[#allocation7 + $0x4d8] sm:$0xff]
        %v3996 = vld [vmem:[#allocation7 + $0x4e0] sm:$0xff]
        %v3997 = vld [vmem:[#allocation7 + $0x4e8] sm:$0xff]
        %v3998 = vld [vmem:[#allocation7 + $0x4f0] sm:$0xff]
        %v3999 = vld [vmem:[#allocation7 + $0x4f8] sm:$0xff]
        %v4000 = vld [vmem:[#allocation7 + $0x500] sm:$0xff]
        %v4001 = vld [vmem:[#allocation7 + $0x508] sm:$0xff]
        %v4002 = vld [vmem:[#allocation7 + $0x510] sm:$0xff]
        %v4003 = vld [vmem:[#allocation7 + $0x518] sm:$0xff]
        %v4004 = vld [vmem:[#allocation7 + $0x520] sm:$0xff]
        %v4005 = vld [vmem:[#allocation7 + $0x528] sm:$0xff]
        %v4006 = vld [vmem:[#allocation7 + $0x530] sm:$0xff]
        %v4007 = vld [vmem:[#allocation7 + $0x538] sm:$0xff]
        %v4008 = vld [vmem:[#allocation7 + $0x540] sm:$0xff]
        %v4009 = vld [vmem:[#allocation7 + $0x548] sm:$0xff]
        %v4010 = vld [vmem:[#allocation7 + $0x550] sm:$0xff]
        %v4011 = vld [vmem:[#allocation7 + $0x558] sm:$0xff]
        %v4012 = vld [vmem:[#allocation7 + $0x560] sm:$0xff]
        %v4013 = vld [vmem:[#allocation7 + $0x568] sm:$0xff]
        %v4014 = vld [vmem:[#allocation7 + $0x570] sm:$0xff]
        %v4015 = vld [vmem:[#allocation7 + $0x578] sm:$0xff]
        %v4016 = vld [vmem:[#allocation7 + $0x580] sm:$0xff]
        %v4017 = vld [vmem:[#allocation7 + $0x588] sm:$0xff]
        %v4018 = vld [vmem:[#allocation7 + $0x590] sm:$0xff]
        %v4019 = vld [vmem:[#allocation7 + $0x598] sm:$0xff]
        %v4020 = vld [vmem:[#allocation7 + $0x5a0] sm:$0xff]
        %v4021 = vld [vmem:[#allocation7 + $0x5a8] sm:$0xff]
        %v4022 = vld [vmem:[#allocation7 + $0x5b0] sm:$0xff]
        %v4023 = vld [vmem:[#allocation7 + $0x5b8] sm:$0xff]
        %v4024 = vld [vmem:[#allocation7 + $0x5c0] sm:$0xff]
        %v4025 = vld [vmem:[#allocation7 + $0x5c8] sm:$0xff]
        %v4026 = vld [vmem:[#allocation7 + $0x5d0] sm:$0xff]
        %v4027 = vld [vmem:[#allocation7 + $0x5d8] sm:$0xff]
        %v4028 = vld [vmem:[#allocation7 + $0x5e0] sm:$0xff]
        %v4029 = vld [vmem:[#allocation7 + $0x5e8] sm:$0xff]
        %v4030 = vld [vmem:[#allocation7 + $0x5f0] sm:$0xff]
        %v4031 = vld [vmem:[#allocation7 + $0x5f8] sm:$0xff]
        %v4032 = vld [vmem:[#allocation7 + $0x600] sm:$0xff]
        %v4033 = vld [vmem:[#allocation7 + $0x608] sm:$0xff]
        %v4034 = vld [vmem:[#allocation7 + $0x610] sm:$0xff]
        %v4035 = vld [vmem:[#allocation7 + $0x618] sm:$0xff]
        %v4036 = vld [vmem:[#allocation7 + $0x620] sm:$0xff]
        %v4037 = vld [vmem:[#allocation7 + $0x628] sm:$0xff]
        %v4038 = vld [vmem:[#allocation7 + $0x630] sm:$0xff]
        %v4039 = vld [vmem:[#allocation7 + $0x638] sm:$0xff]
        %v4040 = vld [vmem:[#allocation7 + $0x640] sm:$0xff]
        %v4041 = vld [vmem:[#allocation7 + $0x648] sm:$0xff]
        %v4042 = vld [vmem:[#allocation7 + $0x650] sm:$0xff]
        %v4043 = vld [vmem:[#allocation7 + $0x658] sm:$0xff]
        %v4044 = vld [vmem:[#allocation7 + $0x660] sm:$0xff]
        %v4045 = vld [vmem:[#allocation7 + $0x668] sm:$0xff]
        %v4046 = vld [vmem:[#allocation7 + $0x670] sm:$0xff]
        %v4047 = vld [vmem:[#allocation7 + $0x678] sm:$0xff]
        %v4048 = vld [vmem:[#allocation7 + $0x680] sm:$0xff]
        %v4049 = vld [vmem:[#allocation7 + $0x688] sm:$0xff]
        %v4050 = vld [vmem:[#allocation7 + $0x690] sm:$0xff]
        %v4051 = vld [vmem:[#allocation7 + $0x698] sm:$0xff]
        %v4052 = vld [vmem:[#allocation7 + $0x6a0] sm:$0xff]
        %v4053 = vld [vmem:[#allocation7 + $0x6a8] sm:$0xff]
        %v4054 = vld [vmem:[#allocation7 + $0x6b0] sm:$0xff]
        %v4055 = vld [vmem:[#allocation7 + $0x6b8] sm:$0xff]
        %v4056 = vld [vmem:[#allocation7 + $0x6c0] sm:$0xff]
        %v4057 = vld [vmem:[#allocation7 + $0x6c8] sm:$0xff]
        %v4058 = vld [vmem:[#allocation7 + $0x6d0] sm:$0xff]
        %v4059 = vld [vmem:[#allocation7 + $0x6d8] sm:$0xff]
        %v4060 = vld [vmem:[#allocation7 + $0x6e0] sm:$0xff]
        %v4061 = vld [vmem:[#allocation7 + $0x6e8] sm:$0xff]
        %v4062 = vld [vmem:[#allocation7 + $0x6f0] sm:$0xff]
        %v4063 = vld [vmem:[#allocation7 + $0x6f8] sm:$0xff]
        %v4064 = vld [vmem:[#allocation7 + $0x700] sm:$0xff]
        %v4065 = vld [vmem:[#allocation7 + $0x708] sm:$0xff]
        %v4066 = vld [vmem:[#allocation7 + $0x710] sm:$0xff]
        %v4067 = vld [vmem:[#allocation7 + $0x718] sm:$0xff]
        %v4068 = vld [vmem:[#allocation7 + $0x720] sm:$0xff]
        %v4069 = vld [vmem:[#allocation7 + $0x728] sm:$0xff]
        %v4070 = vld [vmem:[#allocation7 + $0x730] sm:$0xff]
        %v4071 = vld [vmem:[#allocation7 + $0x738] sm:$0xff]
        %v4072 = vld [vmem:[#allocation7 + $0x740] sm:$0xff]
        %v4073 = vld [vmem:[#allocation7 + $0x748] sm:$0xff]
        %v4074 = vld [vmem:[#allocation7 + $0x750] sm:$0xff]
        %v4075 = vld [vmem:[#allocation7 + $0x758] sm:$0xff]
        %v4076 = vld [vmem:[#allocation7 + $0x760] sm:$0xff]
        %v4077 = vld [vmem:[#allocation7 + $0x768] sm:$0xff]
        %v4078 = vld [vmem:[#allocation7 + $0x770] sm:$0xff]
        %v4079 = vld [vmem:[#allocation7 + $0x778] sm:$0xff]
        %v4080 = vld [vmem:[#allocation7 + $0x780] sm:$0xff]
        %v4081 = vld [vmem:[#allocation7 + $0x788] sm:$0xff]
        %v4082 = vld [vmem:[#allocation7 + $0x790] sm:$0xff]
        %v4083 = vld [vmem:[#allocation7 + $0x798] sm:$0xff]
        %v4084 = vld [vmem:[#allocation7 + $0x7a0] sm:$0xff]
        %v4085 = vld [vmem:[#allocation7 + $0x7a8] sm:$0xff]
        %v4086 = vld [vmem:[#allocation7 + $0x7b0] sm:$0xff]
        %v4087 = vld [vmem:[#allocation7 + $0x7b8] sm:$0xff]
        %v4088 = vld [vmem:[#allocation7 + $0x7c0] sm:$0xff]
        %v4089 = vld [vmem:[#allocation7 + $0x7c8] sm:$0xff]
        %v4090 = vld [vmem:[#allocation7 + $0x7d0] sm:$0xff]
        %v4091 = vld [vmem:[#allocation7 + $0x7d8] sm:$0xff]
        %v4092 = vld [vmem:[#allocation7 + $0x7e0] sm:$0xff]
        %v4093 = vld [vmem:[#allocation7 + $0x7e8] sm:$0xff]
        %v4094 = vld [vmem:[#allocation7 + $0x7f0] sm:$0xff]
        %v4095 = vld [vmem:[#allocation7 + $0x7f8] sm:$0xff]
        %v4096 = vlaneseq
        %v4097 = vshrl.u32 %v4096, 7
        %v4098 = vsub.s32 7, %v4097
        %v4099 = vrot.slane %v596, %v4098
        %v4100 = vlaneseq
        %v4101 = vshrl.u32 %v4100, 7
        %v4102 = vsub.s32 7, %v4101
        %v4103 = vrot.slane %v597, %v4102
        %v4104 = vlaneseq
        %v4105 = vshrl.u32 %v4104, 7
        %v4106 = vsub.s32 7, %v4105
        %v4107 = vrot.slane %v598, %v4106
        %v4108 = vlaneseq
        %v4109 = vshrl.u32 %v4108, 7
        %v4110 = vsub.s32 7, %v4109
        %v4111 = vrot.slane %v599, %v4110
        %4112 = vmatprep.subr.mxu0 %v3901
        %4113 = vmatpush1.msra.mxu0 %v3900
        %4114 = vmatprep.subr.mxu0 %v3897
        %4115 = vmatpush1.msra.mxu0 %v3896
        %4116 = vmatprep.subr.mxu0 %v3893
        %4117 = vmatpush1.msra.mxu0 %v3892
        %4118 = vmatprep.subr.mxu0 %v3889
        %4119 = vmatpush1.msra.mxu0 %v3888
        %4120 = vmatprep.subr.mxu0 %v3885
        %4121 = vmatpush1.msra.mxu0 %v3884
        %4122 = vmatprep.subr.mxu0 %v3881
        %4123 = vmatpush1.msra.mxu0 %v3880
        %4124 = vmatprep.subr.mxu0 %v3877
        %4125 = vmatpush1.msra.mxu0 %v3876
        %4126 = vmatprep.subr.mxu0 %v3873
        %4127 = vmatpush1.msra.mxu0 %v3872
        %4128 = vmatprep.subr.mxu0 %v3869
        %4129 = vmatpush1.msra.mxu0 %v3868
        %4130 = vmatprep.subr.mxu0 %v3865
        %4131 = vmatpush1.msra.mxu0 %v3864
        %4132 = vmatprep.subr.mxu0 %v3861
        %4133 = vmatpush1.msra.mxu0 %v3860
        %4134 = vmatprep.subr.mxu0 %v3857
        %4135 = vmatpush1.msra.mxu0 %v3856
        %4136 = vmatprep.subr.mxu0 %v3853
        %4137 = vmatpush1.msra.mxu0 %v3852
        %4138 = vmatprep.subr.mxu0 %v3849
        %4139 = vmatpush1.msra.mxu0 %v3848
        %4140 = vmatprep.subr.mxu0 %v3845
        %4141 = vmatpush1.msra.mxu0 %v3844
        %4142 = vmatprep.subr.mxu0 %v3841
        %4143 = vmatpush1.msra.mxu0 %v3840
        %4144 = vmatprep.subr.mxu0 %v3965
        %4145 = vmatpush2.msra.mxu0 %v3964
        %4146 = vmatprep.subr.mxu0 %v3961
        %4147 = vmatpush2.msra.mxu0 %v3960
        %4148 = vmatprep.subr.mxu0 %v3957
        %4149 = vmatpush2.msra.mxu0 %v3956
        %4150 = vmatprep.subr.mxu0 %v3953
        %4151 = vmatpush2.msra.mxu0 %v3952
        %4152 = vmatprep.subr.mxu0 %v3949
        %4153 = vmatpush2.msra.mxu0 %v3948
        %4154 = vmatprep.subr.mxu0 %v3945
        %4155 = vmatpush2.msra.mxu0 %v3944
        %4156 = vmatprep.subr.mxu0 %v3941
        %4157 = vmatpush2.msra.mxu0 %v3940
        %4158 = vmatprep.subr.mxu0 %v3937
        %4159 = vmatpush2.msra.mxu0 %v3936
        %4160 = vmatprep.subr.mxu0 %v3933
        %4161 = vmatpush2.msra.mxu0 %v3932
        %4162 = vmatprep.subr.mxu0 %v3929
        %4163 = vmatpush2.msra.mxu0 %v3928
        %4164 = vmatprep.subr.mxu0 %v3925
        %4165 = vmatpush2.msra.mxu0 %v3924
        %4166 = vmatprep.subr.mxu0 %v3921
        %4167 = vmatpush2.msra.mxu0 %v3920
        %4168 = vmatprep.subr.mxu0 %v3917
        %4169 = vmatpush2.msra.mxu0 %v3916
        %4170 = vmatprep.subr.mxu0 %v3913
        %4171 = vmatpush2.msra.mxu0 %v3912
        %4172 = vmatprep.subr.mxu0 %v3909
        %4173 = vmatpush2.msra.mxu0 %v3908
        %4174 = vmatprep.subr.mxu0 %v3905
        %4175 = vmatpush2.msra.mxu0 %v3904
        %4176 = vmatprep.mubr.f32.mxu0 %v3837
        %4177 = vmatmul.mubr.f32.gmra.mxu0 %v3836
        %v4178 = vpop.f32.mrf.mxu0
        %v4179 = vadd.f32 %v4099, %v4178
        %v4180 = vpop.f32.mrf.mxu0
        %v4181 = vadd.f32 %v4103, %v4180
        %4182 = vdwg.mxu0
        %4183 = vmatprep.subr.mxu0 %v4029
        %4184 = vmatpush1.msra.mxu0 %v4028
        %4185 = vmatprep.subr.mxu0 %v4025
        %4186 = vmatpush1.msra.mxu0 %v4024
        %4187 = vmatprep.subr.mxu0 %v4021
        %4188 = vmatpush1.msra.mxu0 %v4020
        %4189 = vmatprep.subr.mxu0 %v4017
        %4190 = vmatpush1.msra.mxu0 %v4016
        %4191 = vmatprep.subr.mxu0 %v4013
        %4192 = vmatpush1.msra.mxu0 %v4012
        %4193 = vmatprep.subr.mxu0 %v4009
        %4194 = vmatpush1.msra.mxu0 %v4008
        %4195 = vmatprep.subr.mxu0 %v4005
        %4196 = vmatpush1.msra.mxu0 %v4004
        %4197 = vmatprep.subr.mxu0 %v4001
        %4198 = vmatpush1.msra.mxu0 %v4000
        %4199 = vmatprep.subr.mxu0 %v3997
        %4200 = vmatpush1.msra.mxu0 %v3996
        %4201 = vmatprep.subr.mxu0 %v3993
        %4202 = vmatpush1.msra.mxu0 %v3992
        %4203 = vmatprep.subr.mxu0 %v3989
        %4204 = vmatpush1.msra.mxu0 %v3988
        %4205 = vmatprep.subr.mxu0 %v3985
        %4206 = vmatpush1.msra.mxu0 %v3984
        %4207 = vmatprep.subr.mxu0 %v3981
        %4208 = vmatpush1.msra.mxu0 %v3980
        %4209 = vmatprep.subr.mxu0 %v3977
        %4210 = vmatpush1.msra.mxu0 %v3976
        %4211 = vmatprep.subr.mxu0 %v3973
        %4212 = vmatpush1.msra.mxu0 %v3972
        %4213 = vmatprep.subr.mxu0 %v3969
        %4214 = vmatpush1.msra.mxu0 %v3968
        %4215 = vmatprep.subr.mxu0 %v4093
        %4216 = vmatpush2.msra.mxu0 %v4092
        %4217 = vmatprep.subr.mxu0 %v4089
        %4218 = vmatpush2.msra.mxu0 %v4088
        %4219 = vmatprep.subr.mxu0 %v4085
        %4220 = vmatpush2.msra.mxu0 %v4084
        %4221 = vmatprep.subr.mxu0 %v4081
        %4222 = vmatpush2.msra.mxu0 %v4080
        %4223 = vmatprep.subr.mxu0 %v4077
        %4224 = vmatpush2.msra.mxu0 %v4076
        %4225 = vmatprep.subr.mxu0 %v4073
        %4226 = vmatpush2.msra.mxu0 %v4072
        %4227 = vmatprep.subr.mxu0 %v4069
        %4228 = vmatpush2.msra.mxu0 %v4068
        %4229 = vmatprep.subr.mxu0 %v4065
        %4230 = vmatpush2.msra.mxu0 %v4064
        %4231 = vmatprep.subr.mxu0 %v4061
        %4232 = vmatpush2.msra.mxu0 %v4060
        %4233 = vmatprep.subr.mxu0 %v4057
        %4234 = vmatpush2.msra.mxu0 %v4056
        %4235 = vmatprep.subr.mxu0 %v4053
        %4236 = vmatpush2.msra.mxu0 %v4052
        %4237 = vmatprep.subr.mxu0 %v4049
        %4238 = vmatpush2.msra.mxu0 %v4048
        %4239 = vmatprep.subr.mxu0 %v4045
        %4240 = vmatpush2.msra.mxu0 %v4044
        %4241 = vmatprep.subr.mxu0 %v4041
        %4242 = vmatpush2.msra.mxu0 %v4040
        %4243 = vmatprep.subr.mxu0 %v4037
        %4244 = vmatpush2.msra.mxu0 %v4036
        %4245 = vmatprep.subr.mxu0 %v4033
        %4246 = vmatpush2.msra.mxu0 %v4032
        %4247 = vmatprep.mubr.f32.mxu0 %v3839
        %4248 = vmatmul.mubr.f32.gmra.mxu0 %v3838
        %v4249 = vpop.f32.mrf.mxu0
        %v4250 = vadd.f32 %v4179, %v4249
        %v4251 = vpop.f32.mrf.mxu0
        %v4252 = vadd.f32 %v4181, %v4251
        %4253 = vdwg.mxu0
        %4254 = vmatprep.subr.mxu0 %v3903
        %4255 = vmatpush1.msra.mxu0 %v3902
        %4256 = vmatprep.subr.mxu0 %v3899
        %4257 = vmatpush1.msra.mxu0 %v3898
        %4258 = vmatprep.subr.mxu0 %v3895
        %4259 = vmatpush1.msra.mxu0 %v3894
        %4260 = vmatprep.subr.mxu0 %v3891
        %4261 = vmatpush1.msra.mxu0 %v3890
        %4262 = vmatprep.subr.mxu0 %v3887
        %4263 = vmatpush1.msra.mxu0 %v3886
        %4264 = vmatprep.subr.mxu0 %v3883
        %4265 = vmatpush1.msra.mxu0 %v3882
        %4266 = vmatprep.subr.mxu0 %v3879
        %4267 = vmatpush1.msra.mxu0 %v3878
        %4268 = vmatprep.subr.mxu0 %v3875
        %4269 = vmatpush1.msra.mxu0 %v3874
        %4270 = vmatprep.subr.mxu0 %v3871
        %4271 = vmatpush1.msra.mxu0 %v3870
        %4272 = vmatprep.subr.mxu0 %v3867
        %4273 = vmatpush1.msra.mxu0 %v3866
        %4274 = vmatprep.subr.mxu0 %v3863
        %4275 = vmatpush1.msra.mxu0 %v3862
        %4276 = vmatprep.subr.mxu0 %v3859
        %4277 = vmatpush1.msra.mxu0 %v3858
        %4278 = vmatprep.subr.mxu0 %v3855
        %4279 = vmatpush1.msra.mxu0 %v3854
        %4280 = vmatprep.subr.mxu0 %v3851
        %4281 = vmatpush1.msra.mxu0 %v3850
        %4282 = vmatprep.subr.mxu0 %v3847
        %4283 = vmatpush1.msra.mxu0 %v3846
        %4284 = vmatprep.subr.mxu0 %v3843
        %4285 = vmatpush1.msra.mxu0 %v3842
        %4286 = vmatprep.subr.mxu0 %v3967
        %4287 = vmatpush2.msra.mxu0 %v3966
        %4288 = vmatprep.subr.mxu0 %v3963
        %4289 = vmatpush2.msra.mxu0 %v3962
        %4290 = vmatprep.subr.mxu0 %v3959
        %4291 = vmatpush2.msra.mxu0 %v3958
        %4292 = vmatprep.subr.mxu0 %v3955
        %4293 = vmatpush2.msra.mxu0 %v3954
        %4294 = vmatprep.subr.mxu0 %v3951
        %4295 = vmatpush2.msra.mxu0 %v3950
        %4296 = vmatprep.subr.mxu0 %v3947
        %4297 = vmatpush2.msra.mxu0 %v3946
        %4298 = vmatprep.subr.mxu0 %v3943
        %4299 = vmatpush2.msra.mxu0 %v3942
        %4300 = vmatprep.subr.mxu0 %v3939
        %4301 = vmatpush2.msra.mxu0 %v3938
        %4302 = vmatprep.subr.mxu0 %v3935
        %4303 = vmatpush2.msra.mxu0 %v3934
        %4304 = vmatprep.subr.mxu0 %v3931
        %4305 = vmatpush2.msra.mxu0 %v3930
        %4306 = vmatprep.subr.mxu0 %v3927
        %4307 = vmatpush2.msra.mxu0 %v3926
        %4308 = vmatprep.subr.mxu0 %v3923
        %4309 = vmatpush2.msra.mxu0 %v3922
        %4310 = vmatprep.subr.mxu0 %v3919
        %4311 = vmatpush2.msra.mxu0 %v3918
        %4312 = vmatprep.subr.mxu0 %v3915
        %4313 = vmatpush2.msra.mxu0 %v3914
        %4314 = vmatprep.subr.mxu0 %v3911
        %4315 = vmatpush2.msra.mxu0 %v3910
        %4316 = vmatprep.subr.mxu0 %v3907
        %4317 = vmatpush2.msra.mxu0 %v3906
        %4318 = vmatprep.mubr.f32.mxu0 %v3837
        %4319 = vmatmul.mubr.f32.gmra.mxu0 %v3836
        %v4320 = vpop.f32.mrf.mxu0
        %v4321 = vadd.f32 %v4107, %v4320
        %v4322 = vpop.f32.mrf.mxu0
        %v4323 = vadd.f32 %v4111, %v4322
        %4324 = vdwg.mxu0
        %4325 = vmatprep.subr.mxu0 %v4031
        %4326 = vmatpush1.msra.mxu0 %v4030
        %4327 = vmatprep.subr.mxu0 %v4027
        %4328 = vmatpush1.msra.mxu0 %v4026
        %4329 = vmatprep.subr.mxu0 %v4023
        %4330 = vmatpush1.msra.mxu0 %v4022
        %4331 = vmatprep.subr.mxu0 %v4019
        %4332 = vmatpush1.msra.mxu0 %v4018
        %4333 = vmatprep.subr.mxu0 %v4015
        %4334 = vmatpush1.msra.mxu0 %v4014
        %4335 = vmatprep.subr.mxu0 %v4011
        %4336 = vmatpush1.msra.mxu0 %v4010
        %4337 = vmatprep.subr.mxu0 %v4007
        %4338 = vmatpush1.msra.mxu0 %v4006
        %4339 = vmatprep.subr.mxu0 %v4003
        %4340 = vmatpush1.msra.mxu0 %v4002
        %4341 = vmatprep.subr.mxu0 %v3999
        %4342 = vmatpush1.msra.mxu0 %v3998
        %4343 = vmatprep.subr.mxu0 %v3995
        %4344 = vmatpush1.msra.mxu0 %v3994
        %4345 = vmatprep.subr.mxu0 %v3991
        %4346 = vmatpush1.msra.mxu0 %v3990
        %4347 = vmatprep.subr.mxu0 %v3987
        %4348 = vmatpush1.msra.mxu0 %v3986
        %4349 = vmatprep.subr.mxu0 %v3983
        %4350 = vmatpush1.msra.mxu0 %v3982
        %4351 = vmatprep.subr.mxu0 %v3979
        %4352 = vmatpush1.msra.mxu0 %v3978
        %4353 = vmatprep.subr.mxu0 %v3975
        %4354 = vmatpush1.msra.mxu0 %v3974
        %4355 = vmatprep.subr.mxu0 %v3971
        %4356 = vmatpush1.msra.mxu0 %v3970
        %4357 = vmatprep.subr.mxu0 %v4095
        %4358 = vmatpush2.msra.mxu0 %v4094
        %4359 = vmatprep.subr.mxu0 %v4091
        %4360 = vmatpush2.msra.mxu0 %v4090
        %4361 = vmatprep.subr.mxu0 %v4087
        %4362 = vmatpush2.msra.mxu0 %v4086
        %4363 = vmatprep.subr.mxu0 %v4083
        %4364 = vmatpush2.msra.mxu0 %v4082
        %4365 = vmatprep.subr.mxu0 %v4079
        %4366 = vmatpush2.msra.mxu0 %v4078
        %4367 = vmatprep.subr.mxu0 %v4075
        %4368 = vmatpush2.msra.mxu0 %v4074
        %4369 = vmatprep.subr.mxu0 %v4071
        %4370 = vmatpush2.msra.mxu0 %v4070
        %4371 = vmatprep.subr.mxu0 %v4067
        %4372 = vmatpush2.msra.mxu0 %v4066
        %4373 = vmatprep.subr.mxu0 %v4063
        %4374 = vmatpush2.msra.mxu0 %v4062
        %4375 = vmatprep.subr.mxu0 %v4059
        %4376 = vmatpush2.msra.mxu0 %v4058
        %4377 = vmatprep.subr.mxu0 %v4055
        %4378 = vmatpush2.msra.mxu0 %v4054
        %4379 = vmatprep.subr.mxu0 %v4051
        %4380 = vmatpush2.msra.mxu0 %v4050
        %4381 = vmatprep.subr.mxu0 %v4047
        %4382 = vmatpush2.msra.mxu0 %v4046
        %4383 = vmatprep.subr.mxu0 %v4043
        %4384 = vmatpush2.msra.mxu0 %v4042
        %4385 = vmatprep.subr.mxu0 %v4039
        %4386 = vmatpush2.msra.mxu0 %v4038
        %4387 = vmatprep.subr.mxu0 %v4035
        %4388 = vmatpush2.msra.mxu0 %v4034
        %4389 = vmatprep.mubr.f32.mxu0 %v3839
        %4390 = vmatmul.mubr.f32.gmra.mxu0 %v3838
        %v4391 = vpop.f32.mrf.mxu0
        %v4392 = vadd.f32 %v4321, %v4391
        %v4393 = vpop.f32.mrf.mxu0
        %v4394 = vadd.f32 %v4323, %v4393
        %4395 = vdwg.mxu0
        %vm4396 = vcmp.gt.f32.partialorder %v4250, 0.0
        %vm4397 = vcmp.gt.f32.partialorder %v4252, 0.0
        %vm4398 = vcmp.gt.f32.partialorder %v4392, 0.0
        %vm4399 = vcmp.gt.f32.partialorder %v4394, 0.0
        %v4400 = vmul.f32 %v4250, 0.5
        %v4401 = vmul.f32 %v4252, 0.5
        %v4402 = vmul.f32 %v4392, 0.5
        %v4403 = vmul.f32 %v4394, 0.5
        %v4404 = vsel %vm4396, %v4250, %v4400
        %v4405 = vsel %vm4397, %v4252, %v4401
        %v4406 = vsel %vm4398, %v4392, %v4402
        %v4407 = vsel %vm4399, %v4394, %v4403
        %v4408 = vld [vmem:[#allocation8] sm:$0xff]
        %v4409 = vld [vmem:[#allocation8 + $0x8] sm:$0xff]
        %v4410 = vld [vmem:[#allocation8 + $0x10] sm:$0xff]
        %v4411 = vld [vmem:[#allocation8 + $0x18] sm:$0xff]
        %v4412 = vld [vmem:[#allocation8 + $0x20] sm:$0xff]
        %v4413 = vld [vmem:[#allocation8 + $0x28] sm:$0xff]
        %v4414 = vld [vmem:[#allocation8 + $0x30] sm:$0xff]
        %v4415 = vld [vmem:[#allocation8 + $0x38] sm:$0xff]
        %v4416 = vld [vmem:[#allocation8 + $0x40] sm:$0xff]
        %v4417 = vld [vmem:[#allocation8 + $0x48] sm:$0xff]
        %v4418 = vld [vmem:[#allocation8 + $0x50] sm:$0xff]
        %v4419 = vld [vmem:[#allocation8 + $0x58] sm:$0xff]
        %v4420 = vld [vmem:[#allocation8 + $0x60] sm:$0xff]
        %v4421 = vld [vmem:[#allocation8 + $0x68] sm:$0xff]
        %v4422 = vld [vmem:[#allocation8 + $0x70] sm:$0xff]
        %v4423 = vld [vmem:[#allocation8 + $0x78] sm:$0xff]
        %v4424 = vld [vmem:[#allocation8 + $0x80] sm:$0xff]
        %v4425 = vld [vmem:[#allocation8 + $0x88] sm:$0xff]
        %v4426 = vld [vmem:[#allocation8 + $0x90] sm:$0xff]
        %v4427 = vld [vmem:[#allocation8 + $0x98] sm:$0xff]
        %v4428 = vld [vmem:[#allocation8 + $0xa0] sm:$0xff]
        %v4429 = vld [vmem:[#allocation8 + $0xa8] sm:$0xff]
        %v4430 = vld [vmem:[#allocation8 + $0xb0] sm:$0xff]
        %v4431 = vld [vmem:[#allocation8 + $0xb8] sm:$0xff]
        %v4432 = vld [vmem:[#allocation8 + $0xc0] sm:$0xff]
        %v4433 = vld [vmem:[#allocation8 + $0xc8] sm:$0xff]
        %v4434 = vld [vmem:[#allocation8 + $0xd0] sm:$0xff]
        %v4435 = vld [vmem:[#allocation8 + $0xd8] sm:$0xff]
        %v4436 = vld [vmem:[#allocation8 + $0xe0] sm:$0xff]
        %v4437 = vld [vmem:[#allocation8 + $0xe8] sm:$0xff]
        %v4438 = vld [vmem:[#allocation8 + $0xf0] sm:$0xff]
        %v4439 = vld [vmem:[#allocation8 + $0xf8] sm:$0xff]
        %v4440 = vld [vmem:[#allocation8 + $0x100] sm:$0xff]
        %v4441 = vld [vmem:[#allocation8 + $0x108] sm:$0xff]
        %v4442 = vld [vmem:[#allocation8 + $0x110] sm:$0xff]
        %v4443 = vld [vmem:[#allocation8 + $0x118] sm:$0xff]
        %v4444 = vld [vmem:[#allocation8 + $0x120] sm:$0xff]
        %v4445 = vld [vmem:[#allocation8 + $0x128] sm:$0xff]
        %v4446 = vld [vmem:[#allocation8 + $0x130] sm:$0xff]
        %v4447 = vld [vmem:[#allocation8 + $0x138] sm:$0xff]
        %v4448 = vld [vmem:[#allocation8 + $0x140] sm:$0xff]
        %v4449 = vld [vmem:[#allocation8 + $0x148] sm:$0xff]
        %v4450 = vld [vmem:[#allocation8 + $0x150] sm:$0xff]
        %v4451 = vld [vmem:[#allocation8 + $0x158] sm:$0xff]
        %v4452 = vld [vmem:[#allocation8 + $0x160] sm:$0xff]
        %v4453 = vld [vmem:[#allocation8 + $0x168] sm:$0xff]
        %v4454 = vld [vmem:[#allocation8 + $0x170] sm:$0xff]
        %v4455 = vld [vmem:[#allocation8 + $0x178] sm:$0xff]
        %v4456 = vld [vmem:[#allocation8 + $0x180] sm:$0xff]
        %v4457 = vld [vmem:[#allocation8 + $0x188] sm:$0xff]
        %v4458 = vld [vmem:[#allocation8 + $0x190] sm:$0xff]
        %v4459 = vld [vmem:[#allocation8 + $0x198] sm:$0xff]
        %v4460 = vld [vmem:[#allocation8 + $0x1a0] sm:$0xff]
        %v4461 = vld [vmem:[#allocation8 + $0x1a8] sm:$0xff]
        %v4462 = vld [vmem:[#allocation8 + $0x1b0] sm:$0xff]
        %v4463 = vld [vmem:[#allocation8 + $0x1b8] sm:$0xff]
        %v4464 = vld [vmem:[#allocation8 + $0x1c0] sm:$0xff]
        %v4465 = vld [vmem:[#allocation8 + $0x1c8] sm:$0xff]
        %v4466 = vld [vmem:[#allocation8 + $0x1d0] sm:$0xff]
        %v4467 = vld [vmem:[#allocation8 + $0x1d8] sm:$0xff]
        %v4468 = vld [vmem:[#allocation8 + $0x1e0] sm:$0xff]
        %v4469 = vld [vmem:[#allocation8 + $0x1e8] sm:$0xff]
        %v4470 = vld [vmem:[#allocation8 + $0x1f0] sm:$0xff]
        %v4471 = vld [vmem:[#allocation8 + $0x1f8] sm:$0xff]
        %v4472 = vld [vmem:[#allocation8 + $0x200] sm:$0xff]
        %v4473 = vld [vmem:[#allocation8 + $0x208] sm:$0xff]
        %v4474 = vld [vmem:[#allocation8 + $0x210] sm:$0xff]
        %v4475 = vld [vmem:[#allocation8 + $0x218] sm:$0xff]
        %v4476 = vld [vmem:[#allocation8 + $0x220] sm:$0xff]
        %v4477 = vld [vmem:[#allocation8 + $0x228] sm:$0xff]
        %v4478 = vld [vmem:[#allocation8 + $0x230] sm:$0xff]
        %v4479 = vld [vmem:[#allocation8 + $0x238] sm:$0xff]
        %v4480 = vld [vmem:[#allocation8 + $0x240] sm:$0xff]
        %v4481 = vld [vmem:[#allocation8 + $0x248] sm:$0xff]
        %v4482 = vld [vmem:[#allocation8 + $0x250] sm:$0xff]
        %v4483 = vld [vmem:[#allocation8 + $0x258] sm:$0xff]
        %v4484 = vld [vmem:[#allocation8 + $0x260] sm:$0xff]
        %v4485 = vld [vmem:[#allocation8 + $0x268] sm:$0xff]
        %v4486 = vld [vmem:[#allocation8 + $0x270] sm:$0xff]
        %v4487 = vld [vmem:[#allocation8 + $0x278] sm:$0xff]
        %v4488 = vld [vmem:[#allocation8 + $0x280] sm:$0xff]
        %v4489 = vld [vmem:[#allocation8 + $0x288] sm:$0xff]
        %v4490 = vld [vmem:[#allocation8 + $0x290] sm:$0xff]
        %v4491 = vld [vmem:[#allocation8 + $0x298] sm:$0xff]
        %v4492 = vld [vmem:[#allocation8 + $0x2a0] sm:$0xff]
        %v4493 = vld [vmem:[#allocation8 + $0x2a8] sm:$0xff]
        %v4494 = vld [vmem:[#allocation8 + $0x2b0] sm:$0xff]
        %v4495 = vld [vmem:[#allocation8 + $0x2b8] sm:$0xff]
        %v4496 = vld [vmem:[#allocation8 + $0x2c0] sm:$0xff]
        %v4497 = vld [vmem:[#allocation8 + $0x2c8] sm:$0xff]
        %v4498 = vld [vmem:[#allocation8 + $0x2d0] sm:$0xff]
        %v4499 = vld [vmem:[#allocation8 + $0x2d8] sm:$0xff]
        %v4500 = vld [vmem:[#allocation8 + $0x2e0] sm:$0xff]
        %v4501 = vld [vmem:[#allocation8 + $0x2e8] sm:$0xff]
        %v4502 = vld [vmem:[#allocation8 + $0x2f0] sm:$0xff]
        %v4503 = vld [vmem:[#allocation8 + $0x2f8] sm:$0xff]
        %v4504 = vld [vmem:[#allocation8 + $0x300] sm:$0xff]
        %v4505 = vld [vmem:[#allocation8 + $0x308] sm:$0xff]
        %v4506 = vld [vmem:[#allocation8 + $0x310] sm:$0xff]
        %v4507 = vld [vmem:[#allocation8 + $0x318] sm:$0xff]
        %v4508 = vld [vmem:[#allocation8 + $0x320] sm:$0xff]
        %v4509 = vld [vmem:[#allocation8 + $0x328] sm:$0xff]
        %v4510 = vld [vmem:[#allocation8 + $0x330] sm:$0xff]
        %v4511 = vld [vmem:[#allocation8 + $0x338] sm:$0xff]
        %v4512 = vld [vmem:[#allocation8 + $0x340] sm:$0xff]
        %v4513 = vld [vmem:[#allocation8 + $0x348] sm:$0xff]
        %v4514 = vld [vmem:[#allocation8 + $0x350] sm:$0xff]
        %v4515 = vld [vmem:[#allocation8 + $0x358] sm:$0xff]
        %v4516 = vld [vmem:[#allocation8 + $0x360] sm:$0xff]
        %v4517 = vld [vmem:[#allocation8 + $0x368] sm:$0xff]
        %v4518 = vld [vmem:[#allocation8 + $0x370] sm:$0xff]
        %v4519 = vld [vmem:[#allocation8 + $0x378] sm:$0xff]
        %v4520 = vld [vmem:[#allocation8 + $0x380] sm:$0xff]
        %v4521 = vld [vmem:[#allocation8 + $0x388] sm:$0xff]
        %v4522 = vld [vmem:[#allocation8 + $0x390] sm:$0xff]
        %v4523 = vld [vmem:[#allocation8 + $0x398] sm:$0xff]
        %v4524 = vld [vmem:[#allocation8 + $0x3a0] sm:$0xff]
        %v4525 = vld [vmem:[#allocation8 + $0x3a8] sm:$0xff]
        %v4526 = vld [vmem:[#allocation8 + $0x3b0] sm:$0xff]
        %v4527 = vld [vmem:[#allocation8 + $0x3b8] sm:$0xff]
        %v4528 = vld [vmem:[#allocation8 + $0x3c0] sm:$0xff]
        %v4529 = vld [vmem:[#allocation8 + $0x3c8] sm:$0xff]
        %v4530 = vld [vmem:[#allocation8 + $0x3d0] sm:$0xff]
        %v4531 = vld [vmem:[#allocation8 + $0x3d8] sm:$0xff]
        %v4532 = vld [vmem:[#allocation8 + $0x3e0] sm:$0xff]
        %v4533 = vld [vmem:[#allocation8 + $0x3e8] sm:$0xff]
        %v4534 = vld [vmem:[#allocation8 + $0x3f0] sm:$0xff]
        %v4535 = vld [vmem:[#allocation8 + $0x3f8] sm:$0xff]
        %v4536 = vlaneseq
        %v4537 = vshrl.u32 %v4536, 7
        %v4538 = vsub.s32 0, %v4537
        %v4539 = vrot.slane %v600, %v4538
        %v4540 = vlaneseq
        %v4541 = vshrl.u32 %v4540, 7
        %v4542 = vsub.s32 0, %v4541
        %v4543 = vrot.slane %v601, %v4542
        %4544 = vmatprep.subr.mxu0 %v4439
        %4545 = vmatpush1.msra.mxu0 %v4438
        %4546 = vmatprep.subr.mxu0 %v4437
        %4547 = vmatpush1.msra.mxu0 %v4436
        %4548 = vmatprep.subr.mxu0 %v4435
        %4549 = vmatpush1.msra.mxu0 %v4434
        %4550 = vmatprep.subr.mxu0 %v4433
        %4551 = vmatpush1.msra.mxu0 %v4432
        %4552 = vmatprep.subr.mxu0 %v4431
        %4553 = vmatpush1.msra.mxu0 %v4430
        %4554 = vmatprep.subr.mxu0 %v4429
        %4555 = vmatpush1.msra.mxu0 %v4428
        %4556 = vmatprep.subr.mxu0 %v4427
        %4557 = vmatpush1.msra.mxu0 %v4426
        %4558 = vmatprep.subr.mxu0 %v4425
        %4559 = vmatpush1.msra.mxu0 %v4424
        %4560 = vmatprep.subr.mxu0 %v4423
        %4561 = vmatpush1.msra.mxu0 %v4422
        %4562 = vmatprep.subr.mxu0 %v4421
        %4563 = vmatpush1.msra.mxu0 %v4420
        %4564 = vmatprep.subr.mxu0 %v4419
        %4565 = vmatpush1.msra.mxu0 %v4418
        %4566 = vmatprep.subr.mxu0 %v4417
        %4567 = vmatpush1.msra.mxu0 %v4416
        %4568 = vmatprep.subr.mxu0 %v4415
        %4569 = vmatpush1.msra.mxu0 %v4414
        %4570 = vmatprep.subr.mxu0 %v4413
        %4571 = vmatpush1.msra.mxu0 %v4412
        %4572 = vmatprep.subr.mxu0 %v4411
        %4573 = vmatpush1.msra.mxu0 %v4410
        %4574 = vmatprep.subr.mxu0 %v4409
        %4575 = vmatpush1.msra.mxu0 %v4408
        %4576 = vmatprep.subr.mxu0 %v4471
        %4577 = vmatpush2.msra.mxu0 %v4470
        %4578 = vmatprep.subr.mxu0 %v4469
        %4579 = vmatpush2.msra.mxu0 %v4468
        %4580 = vmatprep.subr.mxu0 %v4467
        %4581 = vmatpush2.msra.mxu0 %v4466
        %4582 = vmatprep.subr.mxu0 %v4465
        %4583 = vmatpush2.msra.mxu0 %v4464
        %4584 = vmatprep.subr.mxu0 %v4463
        %4585 = vmatpush2.msra.mxu0 %v4462
        %4586 = vmatprep.subr.mxu0 %v4461
        %4587 = vmatpush2.msra.mxu0 %v4460
        %4588 = vmatprep.subr.mxu0 %v4459
        %4589 = vmatpush2.msra.mxu0 %v4458
        %4590 = vmatprep.subr.mxu0 %v4457
        %4591 = vmatpush2.msra.mxu0 %v4456
        %4592 = vmatprep.subr.mxu0 %v4455
        %4593 = vmatpush2.msra.mxu0 %v4454
        %4594 = vmatprep.subr.mxu0 %v4453
        %4595 = vmatpush2.msra.mxu0 %v4452
        %4596 = vmatprep.subr.mxu0 %v4451
        %4597 = vmatpush2.msra.mxu0 %v4450
        %4598 = vmatprep.subr.mxu0 %v4449
        %4599 = vmatpush2.msra.mxu0 %v4448
        %4600 = vmatprep.subr.mxu0 %v4447
        %4601 = vmatpush2.msra.mxu0 %v4446
        %4602 = vmatprep.subr.mxu0 %v4445
        %4603 = vmatpush2.msra.mxu0 %v4444
        %4604 = vmatprep.subr.mxu0 %v4443
        %4605 = vmatpush2.msra.mxu0 %v4442
        %4606 = vmatprep.subr.mxu0 %v4441
        %4607 = vmatpush2.msra.mxu0 %v4440
        %4608 = vmatprep.mubr.f32.mxu0 %v4405
        %4609 = vmatmul.mubr.f32.gmra.mxu0 %v4404
        %v4610 = vpop.f32.mrf.mxu0
        %v4611 = vadd.f32 %v4539, %v4610
        %v4612 = vpop.f32.mrf.mxu0
        %v4613 = vadd.f32 %v4543, %v4612
        %4614 = vdwg.mxu0
        %4615 = vmatprep.subr.mxu0 %v4503
        %4616 = vmatpush1.msra.mxu0 %v4502
        %4617 = vmatprep.subr.mxu0 %v4501
        %4618 = vmatpush1.msra.mxu0 %v4500
        %4619 = vmatprep.subr.mxu0 %v4499
        %4620 = vmatpush1.msra.mxu0 %v4498
        %4621 = vmatprep.subr.mxu0 %v4497
        %4622 = vmatpush1.msra.mxu0 %v4496
        %4623 = vmatprep.subr.mxu0 %v4495
        %4624 = vmatpush1.msra.mxu0 %v4494
        %4625 = vmatprep.subr.mxu0 %v4493
        %4626 = vmatpush1.msra.mxu0 %v4492
        %4627 = vmatprep.subr.mxu0 %v4491
        %4628 = vmatpush1.msra.mxu0 %v4490
        %4629 = vmatprep.subr.mxu0 %v4489
        %4630 = vmatpush1.msra.mxu0 %v4488
        %4631 = vmatprep.subr.mxu0 %v4487
        %4632 = vmatpush1.msra.mxu0 %v4486
        %4633 = vmatprep.subr.mxu0 %v4485
        %4634 = vmatpush1.msra.mxu0 %v4484
        %4635 = vmatprep.subr.mxu0 %v4483
        %4636 = vmatpush1.msra.mxu0 %v4482
        %4637 = vmatprep.subr.mxu0 %v4481
        %4638 = vmatpush1.msra.mxu0 %v4480
        %4639 = vmatprep.subr.mxu0 %v4479
        %4640 = vmatpush1.msra.mxu0 %v4478
        %4641 = vmatprep.subr.mxu0 %v4477
        %4642 = vmatpush1.msra.mxu0 %v4476
        %4643 = vmatprep.subr.mxu0 %v4475
        %4644 = vmatpush1.msra.mxu0 %v4474
        %4645 = vmatprep.subr.mxu0 %v4473
        %4646 = vmatpush1.msra.mxu0 %v4472
        %4647 = vmatprep.subr.mxu0 %v4535
        %4648 = vmatpush2.msra.mxu0 %v4534
        %4649 = vmatprep.subr.mxu0 %v4533
        %4650 = vmatpush2.msra.mxu0 %v4532
        %4651 = vmatprep.subr.mxu0 %v4531
        %4652 = vmatpush2.msra.mxu0 %v4530
        %4653 = vmatprep.subr.mxu0 %v4529
        %4654 = vmatpush2.msra.mxu0 %v4528
        %4655 = vmatprep.subr.mxu0 %v4527
        %4656 = vmatpush2.msra.mxu0 %v4526
        %4657 = vmatprep.subr.mxu0 %v4525
        %4658 = vmatpush2.msra.mxu0 %v4524
        %4659 = vmatprep.subr.mxu0 %v4523
        %4660 = vmatpush2.msra.mxu0 %v4522
        %4661 = vmatprep.subr.mxu0 %v4521
        %4662 = vmatpush2.msra.mxu0 %v4520
        %4663 = vmatprep.subr.mxu0 %v4519
        %4664 = vmatpush2.msra.mxu0 %v4518
        %4665 = vmatprep.subr.mxu0 %v4517
        %4666 = vmatpush2.msra.mxu0 %v4516
        %4667 = vmatprep.subr.mxu0 %v4515
        %4668 = vmatpush2.msra.mxu0 %v4514
        %4669 = vmatprep.subr.mxu0 %v4513
        %4670 = vmatpush2.msra.mxu0 %v4512
        %4671 = vmatprep.subr.mxu0 %v4511
        %4672 = vmatpush2.msra.mxu0 %v4510
        %4673 = vmatprep.subr.mxu0 %v4509
        %4674 = vmatpush2.msra.mxu0 %v4508
        %4675 = vmatprep.subr.mxu0 %v4507
        %4676 = vmatpush2.msra.mxu0 %v4506
        %4677 = vmatprep.subr.mxu0 %v4505
        %4678 = vmatpush2.msra.mxu0 %v4504
        %4679 = vmatprep.mubr.f32.mxu0 %v4407
        %4680 = vmatmul.mubr.f32.gmra.mxu0 %v4406
        %v4681 = vpop.f32.mrf.mxu0
        %v4682 = vadd.f32 %v4611, %v4681
        %v4683 = vpop.f32.mrf.mxu0
        %v4684 = vadd.f32 %v4613, %v4683
        %4685 = vdwg.mxu0
        %vm4686 = vcmp.gt.f32.partialorder %v4682, 0.0
        %vm4687 = vcmp.gt.f32.partialorder %v4684, 0.0
        %v4688 = vmul.f32 %v4682, 0.5
        %v4689 = vmul.f32 %v4684, 0.5
        %v4690 = vsel %vm4686, %v4682, %v4688
        %v4691 = vsel %vm4687, %v4684, %v4689
        %v4692 = vld [vmem:[%s11] sm:$0xff]
        %v4693 = vld [vmem:[%s11 + $0x8] sm:$0xff]
        %v4694 = vld [vmem:[%s11 + $0x10] sm:$0xff]
        %v4695 = vld [vmem:[%s11 + $0x18] sm:$0xff]
        %v4696 = vld [vmem:[%s11 + $0x20] sm:$0xff]
        %v4697 = vld [vmem:[%s11 + $0x28] sm:$0xff]
        %v4698 = vld [vmem:[%s11 + $0x30] sm:$0xff]
        %v4699 = vld [vmem:[%s11 + $0x38] sm:$0xff]
        %v4700 = vld [vmem:[%s11 + $0x40] sm:$0xff]
        %v4701 = vld [vmem:[%s11 + $0x48] sm:$0xff]
        %v4702 = vld [vmem:[%s11 + $0x50] sm:$0xff]
        %v4703 = vld [vmem:[%s11 + $0x58] sm:$0xff]
        %v4704 = vld [vmem:[%s11 + $0x60] sm:$0xff]
        %v4705 = vld [vmem:[%s11 + $0x68] sm:$0xff]
        %v4706 = vld [vmem:[%s11 + $0x70] sm:$0xff]
        %v4707 = vld [vmem:[%s11 + $0x78] sm:$0xff]
        %v4708 = vld [vmem:[%s11 + $0x80] sm:$0xff]
        %v4709 = vld [vmem:[%s11 + $0x88] sm:$0xff]
        %v4710 = vld [vmem:[%s11 + $0x90] sm:$0xff]
        %v4711 = vld [vmem:[%s11 + $0x98] sm:$0xff]
        %v4712 = vld [vmem:[%s11 + $0xa0] sm:$0xff]
        %v4713 = vld [vmem:[%s11 + $0xa8] sm:$0xff]
        %v4714 = vld [vmem:[%s11 + $0xb0] sm:$0xff]
        %v4715 = vld [vmem:[%s11 + $0xb8] sm:$0xff]
        %v4716 = vld [vmem:[%s11 + $0xc0] sm:$0xff]
        %v4717 = vld [vmem:[%s11 + $0xc8] sm:$0xff]
        %v4718 = vld [vmem:[%s11 + $0xd0] sm:$0xff]
        %v4719 = vld [vmem:[%s11 + $0xd8] sm:$0xff]
        %v4720 = vld [vmem:[%s11 + $0xe0] sm:$0xff]
        %v4721 = vld [vmem:[%s11 + $0xe8] sm:$0xff]
        %v4722 = vld [vmem:[%s11 + $0xf0] sm:$0xff]
        %v4723 = vld [vmem:[%s11 + $0xf8] sm:$0xff]
        %v4724 = vlaneseq
        %v4725 = vshrl.u32 %v4724, 7
        %v4726 = vsub.s32 1, %v4725
        %v4727 = vrot.slane %v600, %v4726
        %4728 = vmatprep.subr.mxu0 0.0
        %4729 = vmatpush1.msra.mxu0 %v4707
        %4730 = vmatprep.subr.mxu0 0.0
        %4731 = vmatpush1.msra.mxu0 %v4706
        %4732 = vmatprep.subr.mxu0 0.0
        %4733 = vmatpush1.msra.mxu0 %v4705
        %4734 = vmatprep.subr.mxu0 0.0
        %4735 = vmatpush1.msra.mxu0 %v4704
        %4736 = vmatprep.subr.mxu0 0.0
        %4737 = vmatpush1.msra.mxu0 %v4703
        %4738 = vmatprep.subr.mxu0 0.0
        %4739 = vmatpush1.msra.mxu0 %v4702
        %4740 = vmatprep.subr.mxu0 0.0
        %4741 = vmatpush1.msra.mxu0 %v4701
        %4742 = vmatprep.subr.mxu0 0.0
        %4743 = vmatpush1.msra.mxu0 %v4700
        %4744 = vmatprep.subr.mxu0 0.0
        %4745 = vmatpush1.msra.mxu0 %v4699
        %4746 = vmatprep.subr.mxu0 0.0
        %4747 = vmatpush1.msra.mxu0 %v4698
        %4748 = vmatprep.subr.mxu0 0.0
        %4749 = vmatpush1.msra.mxu0 %v4697
        %4750 = vmatprep.subr.mxu0 0.0
        %4751 = vmatpush1.msra.mxu0 %v4696
        %4752 = vmatprep.subr.mxu0 0.0
        %4753 = vmatpush1.msra.mxu0 %v4695
        %4754 = vmatprep.subr.mxu0 0.0
        %4755 = vmatpush1.msra.mxu0 %v4694
        %4756 = vmatprep.subr.mxu0 0.0
        %4757 = vmatpush1.msra.mxu0 %v4693
        %4758 = vmatprep.subr.mxu0 0.0
        %4759 = vmatpush1.msra.mxu0 %v4692
        %4760 = vmatprep.subr.mxu0 0.0
        %4761 = vmatpush2.msra.mxu0 %v4723
        %4762 = vmatprep.subr.mxu0 0.0
        %4763 = vmatpush2.msra.mxu0 %v4722
        %4764 = vmatprep.subr.mxu0 0.0
        %4765 = vmatpush2.msra.mxu0 %v4721
        %4766 = vmatprep.subr.mxu0 0.0
        %4767 = vmatpush2.msra.mxu0 %v4720
        %4768 = vmatprep.subr.mxu0 0.0
        %4769 = vmatpush2.msra.mxu0 %v4719
        %4770 = vmatprep.subr.mxu0 0.0
        %4771 = vmatpush2.msra.mxu0 %v4718
        %4772 = vmatprep.subr.mxu0 0.0
        %4773 = vmatpush2.msra.mxu0 %v4717
        %4774 = vmatprep.subr.mxu0 0.0
        %4775 = vmatpush2.msra.mxu0 %v4716
        %4776 = vmatprep.subr.mxu0 0.0
        %4777 = vmatpush2.msra.mxu0 %v4715
        %4778 = vmatprep.subr.mxu0 0.0
        %4779 = vmatpush2.msra.mxu0 %v4714
        %4780 = vmatprep.subr.mxu0 0.0
        %4781 = vmatpush2.msra.mxu0 %v4713
        %4782 = vmatprep.subr.mxu0 0.0
        %4783 = vmatpush2.msra.mxu0 %v4712
        %4784 = vmatprep.subr.mxu0 0.0
        %4785 = vmatpush2.msra.mxu0 %v4711
        %4786 = vmatprep.subr.mxu0 0.0
        %4787 = vmatpush2.msra.mxu0 %v4710
        %4788 = vmatprep.subr.mxu0 0.0
        %4789 = vmatpush2.msra.mxu0 %v4709
        %4790 = vmatprep.subr.mxu0 0.0
        %4791 = vmatpush2.msra.mxu0 %v4708
        %4792 = vmatprep.mubr.f32.mxu0 %v4691
        %4793 = vmatmul.mubr.f32.gmra.mxu0 %v4690
        %v4794 = vpop.f32.mrf.mxu0
        %v4795 = vadd.f32 %v4727, %v4794
        %v4796 = vpop.f32.mrf.mxu0
        %4797 = vdwg.mxu0
        %v4798 = vmax.f32 %v4795, 0.0
        %v4799 = vld [vmem:[%s12] sm:$0xff]
        %v4800 = vld [vmem:[%s12 + $0x8] sm:$0xff]
        %v4801 = vld [vmem:[%s12 + $0x10] sm:$0xff]
        %v4802 = vld [vmem:[%s12 + $0x18] sm:$0xff]
        %v4803 = vlaneseq
        %v4804 = vshrl.u32 %v4803, 7
        %v4805 = vsub.s32 4, %v4804
        %v4806 = vrot.slane %v600, %v4805
        %v4808 = vsel %vm717, %v4798, 0
        %4810 = vmatprep.subr.mxu0 0.0
        %4811 = vmatpush1.msra.mxu0 0.0
        %4812 = vmatprep.subr.mxu0 0.0
        %4813 = vmatpush1.msra.mxu0 0.0
        %4814 = vmatprep.subr.mxu0 0.0
        %4815 = vmatpush1.msra.mxu0 0.0
        %4816 = vmatprep.subr.mxu0 0.0
        %4817 = vmatpush1.msra.mxu0 0.0
        %4818 = vmatprep.subr.mxu0 0.0
        %4819 = vmatpush1.msra.mxu0 0.0
        %4820 = vmatprep.subr.mxu0 0.0
        %4821 = vmatpush1.msra.mxu0 0.0
        %4822 = vmatprep.subr.mxu0 0.0
        %4823 = vmatpush1.msra.mxu0 0.0
        %4824 = vmatprep.subr.mxu0 0.0
        %4825 = vmatpush1.msra.mxu0 0.0
        %4826 = vmatprep.subr.mxu0 0.0
        %4827 = vmatpush1.msra.mxu0 0.0
        %4828 = vmatprep.subr.mxu0 0.0
        %4829 = vmatpush1.msra.mxu0 0.0
        %4830 = vmatprep.subr.mxu0 0.0
        %4831 = vmatpush1.msra.mxu0 0.0
        %4832 = vmatprep.subr.mxu0 0.0
        %4833 = vmatpush1.msra.mxu0 0.0
        %4834 = vmatprep.subr.mxu0 0.0
        %4835 = vmatpush1.msra.mxu0 %v4802
        %4836 = vmatprep.subr.mxu0 0.0
        %4837 = vmatpush1.msra.mxu0 %v4801
        %4838 = vmatprep.subr.mxu0 0.0
        %4839 = vmatpush1.msra.mxu0 %v4800
        %4840 = vmatprep.subr.mxu0 0.0
        %4841 = vmatpush1.msra.mxu0 %v4799
        %4842 = vmatprep.subr.mxu0 0.0
        %4843 = vmatpush2.msra.mxu0 0.0
        %4844 = vmatprep.subr.mxu0 0.0
        %4845 = vmatpush2.msra.mxu0 0.0
        %4846 = vmatprep.subr.mxu0 0.0
        %4847 = vmatpush2.msra.mxu0 0.0
        %4848 = vmatprep.subr.mxu0 0.0
        %4849 = vmatpush2.msra.mxu0 0.0
        %4850 = vmatprep.subr.mxu0 0.0
        %4851 = vmatpush2.msra.mxu0 0.0
        %4852 = vmatprep.subr.mxu0 0.0
        %4853 = vmatpush2.msra.mxu0 0.0
        %4854 = vmatprep.subr.mxu0 0.0
        %4855 = vmatpush2.msra.mxu0 0.0
        %4856 = vmatprep.subr.mxu0 0.0
        %4857 = vmatpush2.msra.mxu0 0.0
        %4858 = vmatprep.subr.mxu0 0.0
        %4859 = vmatpush2.msra.mxu0 0.0
        %4860 = vmatprep.subr.mxu0 0.0
        %4861 = vmatpush2.msra.mxu0 0.0
        %4862 = vmatprep.subr.mxu0 0.0
        %4863 = vmatpush2.msra.mxu0 0.0
        %4864 = vmatprep.subr.mxu0 0.0
        %4865 = vmatpush2.msra.mxu0 0.0
        %4866 = vmatprep.subr.mxu0 0.0
        %4867 = vmatpush2.msra.mxu0 0.0
        %4868 = vmatprep.subr.mxu0 0.0
        %4869 = vmatpush2.msra.mxu0 0.0
        %4870 = vmatprep.subr.mxu0 0.0
        %4871 = vmatpush2.msra.mxu0 0.0
        %4872 = vmatprep.subr.mxu0 0.0
        %4873 = vmatpush2.msra.mxu0 0.0
        %4874 = vmatprep.mubr.f32.mxu0 0.0
        %4875 = vmatmul.mubr.f32.gmra.mxu0 %v4808
        %v4876 = vpop.f32.mrf.mxu0
        %v4877 = vadd.f32 %v4806, %v4876
        %v4878 = vpop.f32.mrf.mxu0
        %4879 = vdwg.mxu0
        %v4880 = vld [vmem:[%s13] sm:$0xff]
        %v4881 = vld [vmem:[%s13 + $0x8] sm:$0xff]
        %v4882 = vld [vmem:[%s13 + $0x10] sm:$0xff]
        %v4883 = vld [vmem:[%s13 + $0x18] sm:$0xff]
        %v4884 = vlaneseq
        %v4885 = vshrl.u32 %v4884, 7
        %v4886 = vsub.s32 5, %v4885
        %v4887 = vrot.slane %v600, %v4886
        %v4888 = vsel %vm717, %v3585, 0
        %4890 = vmatprep.subr.mxu0 0.0
        %4891 = vmatpush1.msra.mxu0 0.0
        %4892 = vmatprep.subr.mxu0 0.0
        %4893 = vmatpush1.msra.mxu0 0.0
        %4894 = vmatprep.subr.mxu0 0.0
        %4895 = vmatpush1.msra.mxu0 0.0
        %4896 = vmatprep.subr.mxu0 0.0
        %4897 = vmatpush1.msra.mxu0 0.0
        %4898 = vmatprep.subr.mxu0 0.0
        %4899 = vmatpush1.msra.mxu0 0.0
        %4900 = vmatprep.subr.mxu0 0.0
        %4901 = vmatpush1.msra.mxu0 0.0
        %4902 = vmatprep.subr.mxu0 0.0
        %4903 = vmatpush1.msra.mxu0 0.0
        %4904 = vmatprep.subr.mxu0 0.0
        %4905 = vmatpush1.msra.mxu0 0.0
        %4906 = vmatprep.subr.mxu0 0.0
        %4907 = vmatpush1.msra.mxu0 0.0
        %4908 = vmatprep.subr.mxu0 0.0
        %4909 = vmatpush1.msra.mxu0 0.0
        %4910 = vmatprep.subr.mxu0 0.0
        %4911 = vmatpush1.msra.mxu0 0.0
        %4912 = vmatprep.subr.mxu0 0.0
        %4913 = vmatpush1.msra.mxu0 0.0
        %4914 = vmatprep.subr.mxu0 0.0
        %4915 = vmatpush1.msra.mxu0 %v4883
        %4916 = vmatprep.subr.mxu0 0.0
        %4917 = vmatpush1.msra.mxu0 %v4882
        %4918 = vmatprep.subr.mxu0 0.0
        %4919 = vmatpush1.msra.mxu0 %v4881
        %4920 = vmatprep.subr.mxu0 0.0
        %4921 = vmatpush1.msra.mxu0 %v4880
        %4922 = vmatprep.subr.mxu0 0.0
        %4923 = vmatpush2.msra.mxu0 0.0
        %4924 = vmatprep.subr.mxu0 0.0
        %4925 = vmatpush2.msra.mxu0 0.0
        %4926 = vmatprep.subr.mxu0 0.0
        %4927 = vmatpush2.msra.mxu0 0.0
        %4928 = vmatprep.subr.mxu0 0.0
        %4929 = vmatpush2.msra.mxu0 0.0
        %4930 = vmatprep.subr.mxu0 0.0
        %4931 = vmatpush2.msra.mxu0 0.0
        %4932 = vmatprep.subr.mxu0 0.0
        %4933 = vmatpush2.msra.mxu0 0.0
        %4934 = vmatprep.subr.mxu0 0.0
        %4935 = vmatpush2.msra.mxu0 0.0
        %4936 = vmatprep.subr.mxu0 0.0
        %4937 = vmatpush2.msra.mxu0 0.0
        %4938 = vmatprep.subr.mxu0 0.0
        %4939 = vmatpush2.msra.mxu0 0.0
        %4940 = vmatprep.subr.mxu0 0.0
        %4941 = vmatpush2.msra.mxu0 0.0
        %4942 = vmatprep.subr.mxu0 0.0
        %4943 = vmatpush2.msra.mxu0 0.0
        %4944 = vmatprep.subr.mxu0 0.0
        %4945 = vmatpush2.msra.mxu0 0.0
        %4946 = vmatprep.subr.mxu0 0.0
        %4947 = vmatpush2.msra.mxu0 0.0
        %4948 = vmatprep.subr.mxu0 0.0
        %4949 = vmatpush2.msra.mxu0 0.0
        %4950 = vmatprep.subr.mxu0 0.0
        %4951 = vmatpush2.msra.mxu0 0.0
        %4952 = vmatprep.subr.mxu0 0.0
        %4953 = vmatpush2.msra.mxu0 0.0
        %4954 = vmatprep.mubr.f32.mxu0 0.0
        %4955 = vmatmul.mubr.f32.gmra.mxu0 %v4888
        %v4956 = vpop.f32.mrf.mxu0
        %v4957 = vadd.f32 %v4887, %v4956
        %v4958 = vpop.f32.mrf.mxu0
        %4959 = vdwg.mxu0
        %v4960 = vadd.f32 %v4877, %v4957
        %v4961 = vxor.u32 %v4960, 2147483648
        %v4962 = vmul.f32 %v4961, 1.442695
        %v4963 = vpow.pop %v4962
        %v4964 = vadd.f32 %v4963, 1.0
        %v4965 = vrcp.pop %v4964
        %v4966 = vmul.f32 1.0, %v4965
        %4968 = vrot.lane.b32.xlu0 %v4957, 64
        %v4969 = vpop.permute.xlu0 %4968
        %v4971 = vmul.f32 %v4966, %v4969
        %4973 = vrot.lane.b32.xlu0 %v4971, 64
        %v4974 = vpop.permute.xlu0 %4973
        %v4976 = vadd.f32 %v4877, %v4974
        %v4977 = vtanh.pop %v4976
        %v4978 = vsub.f32 1.0, %v4966
        %4980 = vrot.lane.b32.xlu0 %v4977, 96
        %v4981 = vpop.permute.xlu0 %4980
        %v4983 = vmul.f32 %v4978, %v4981
        %v4985 = vmul.f32 %v4966, %v3583
        %v4986 = vadd.f32 %v4983, %v4985
        %v4987 = vld [vmem:[%s14] sm:$0xff]
        %v4988 = vld [vmem:[%s14 + $0x8] sm:$0xff]
        %v4989 = vld [vmem:[%s14 + $0x10] sm:$0xff]
        %v4990 = vld [vmem:[%s14 + $0x18] sm:$0xff]
        %v4991 = vlaneseq
        %v4992 = vshrl.u32 %v4991, 7
        %v4993 = vsub.s32 6, %v4992
        %v4994 = vrot.slane %v600, %v4993
        %4996 = vrot.lane.b32.xlu0 %v4986, 96
        %v4997 = vpop.permute.xlu0 %4996
        %v4998 = vsel %vm717, %v4997, 0
        %5000 = vmatprep.subr.mxu0 0.0
        %5001 = vmatpush1.msra.mxu0 0.0
        %5002 = vmatprep.subr.mxu0 0.0
        %5003 = vmatpush1.msra.mxu0 0.0
        %5004 = vmatprep.subr.mxu0 0.0
        %5005 = vmatpush1.msra.mxu0 0.0
        %5006 = vmatprep.subr.mxu0 0.0
        %5007 = vmatpush1.msra.mxu0 0.0
        %5008 = vmatprep.subr.mxu0 0.0
        %5009 = vmatpush1.msra.mxu0 0.0
        %5010 = vmatprep.subr.mxu0 0.0
        %5011 = vmatpush1.msra.mxu0 0.0
        %5012 = vmatprep.subr.mxu0 0.0
        %5013 = vmatpush1.msra.mxu0 0.0
        %5014 = vmatprep.subr.mxu0 0.0
        %5015 = vmatpush1.msra.mxu0 0.0
        %5016 = vmatprep.subr.mxu0 0.0
        %5017 = vmatpush1.msra.mxu0 0.0
        %5018 = vmatprep.subr.mxu0 0.0
        %5019 = vmatpush1.msra.mxu0 0.0
        %5020 = vmatprep.subr.mxu0 0.0
        %5021 = vmatpush1.msra.mxu0 0.0
        %5022 = vmatprep.subr.mxu0 0.0
        %5023 = vmatpush1.msra.mxu0 0.0
        %5024 = vmatprep.subr.mxu0 0.0
        %5025 = vmatpush1.msra.mxu0 %v4990
        %5026 = vmatprep.subr.mxu0 0.0
        %5027 = vmatpush1.msra.mxu0 %v4989
        %5028 = vmatprep.subr.mxu0 0.0
        %5029 = vmatpush1.msra.mxu0 %v4988
        %5030 = vmatprep.subr.mxu0 0.0
        %5031 = vmatpush1.msra.mxu0 %v4987
        %5032 = vmatprep.subr.mxu0 0.0
        %5033 = vmatpush2.msra.mxu0 0.0
        %5034 = vmatprep.subr.mxu0 0.0
        %5035 = vmatpush2.msra.mxu0 0.0
        %5036 = vmatprep.subr.mxu0 0.0
        %5037 = vmatpush2.msra.mxu0 0.0
        %5038 = vmatprep.subr.mxu0 0.0
        %5039 = vmatpush2.msra.mxu0 0.0
        %5040 = vmatprep.subr.mxu0 0.0
        %5041 = vmatpush2.msra.mxu0 0.0
        %5042 = vmatprep.subr.mxu0 0.0
        %5043 = vmatpush2.msra.mxu0 0.0
        %5044 = vmatprep.subr.mxu0 0.0
        %5045 = vmatpush2.msra.mxu0 0.0
        %5046 = vmatprep.subr.mxu0 0.0
        %5047 = vmatpush2.msra.mxu0 0.0
        %5048 = vmatprep.subr.mxu0 0.0
        %5049 = vmatpush2.msra.mxu0 0.0
        %5050 = vmatprep.subr.mxu0 0.0
        %5051 = vmatpush2.msra.mxu0 0.0
        %5052 = vmatprep.subr.mxu0 0.0
        %5053 = vmatpush2.msra.mxu0 0.0
        %5054 = vmatprep.subr.mxu0 0.0
        %5055 = vmatpush2.msra.mxu0 0.0
        %5056 = vmatprep.subr.mxu0 0.0
        %5057 = vmatpush2.msra.mxu0 0.0
        %5058 = vmatprep.subr.mxu0 0.0
        %5059 = vmatpush2.msra.mxu0 0.0
        %5060 = vmatprep.subr.mxu0 0.0
        %5061 = vmatpush2.msra.mxu0 0.0
        %5062 = vmatprep.subr.mxu0 0.0
        %5063 = vmatpush2.msra.mxu0 0.0
        %5064 = vmatprep.mubr.f32.mxu0 0.0
        %5065 = vmatmul.mubr.f32.gmra.mxu0 %v4998
        %v5066 = vpop.f32.mrf.mxu0
        %v5067 = vadd.f32 %v4994, %v5066
        %v5068 = vpop.f32.mrf.mxu0
        %5069 = vdwg.mxu0
        %vm5070 = vcmask 25600
        %5071 = vst.msk [vmem:[%s586] sm:$0x3] %vm5070, %v5067
        %s5072 = sand.u32 %s387, 1
        %s5073 = scalar_lea.sflag [#allocation4], %s5072
        %s5074 = sand.u32 %s387, 1
        %s5075 = smul.addr %s5074, 2
        %s5076 = scalar_lea.vmem [#allocation10], %s5075
        // Predicated region
        $region101: #{tpu_custom_call.1} parent=83 // pred_check
          %p5077 = pneg %p397
        $region102: #{tpu_custom_call.1} parent=83 // pred_check_branch
          %5079 = sbr.rel (%p5077) target = $region104
        $region103: #{tpu_custom_call.1} parent=83 // pred_region
          %s5081 = ssub.s32 32, 32
          %5082 = vsyncadd %s5073, %s5081
          %s5083 = smul.addr %s33, 32
          %s5084 = scalar_lea.hbm %s16, %s5083
          %s5086 = sshll.u32 %s5076, 4
          %s5087 = int_to_ptr.vmem [resolvable:$true] %s5086
          %5089 = dma.vmem_to_hbm [thread:$0]  %s5087, 32, %s5084, %s5073
        $region104: #{tpu_custom_call.1} parent=83 // pred_fallthru
          _
      $region84: #{tpu_custom_call.1} parent=5 // pred_fallthru
        _
      %p5090 = scmp.le.s32.totalorder 2, %s28
      // Predicated region
      $region105: #{tpu_custom_call.1} parent=5 // pred_check
        %p5091 = pneg %p5090
      $region106: #{tpu_custom_call.1} parent=5 // pred_check_branch
        %5093 = sbr.rel (%p5091) target = $region108
      $region107: #{tpu_custom_call.1} parent=5 // pred_region
        %s5094 = ssub.s32 %s28, 2
        // Predicated region
        $region109: #{tpu_custom_call.1} parent=107 // pred_check
          %p5095 = pneg %p403
        $region110: #{tpu_custom_call.1} parent=107 // pred_check_branch
          %5097 = sbr.rel (%p5095) target = $region112
        $region111: #{tpu_custom_call.1} parent=107 // pred_region
          %s5098 = sand.u32 %s388, 1
          %s5099 = scalar_lea.sflag [#allocation4], %s5098
          %s5100 = sand.u32 %s388, 1
          %s5101 = smul.addr %s5100, 2
          %s5102 = scalar_lea.vmem [#allocation10], %s5101
          %5103 = dma.done %s5099, 32
        $region112: #{tpu_custom_call.1} parent=107 // pred_fallthru
          _
      $region108: #{tpu_custom_call.1} parent=5 // pred_fallthru
        _
    $region6: #{tpu_custom_call.1} parent=1 // loop_footer
      %s32 = sadd.s32 1, %s28
    $region7: #{tpu_custom_call.1} parent=1 // loop_footer_branch
      %27 = sbr.rel target = $region3
    $region8: #{tpu_custom_call.1} parent=1 // loop_exit
      _
    %5104 = vsyncpa [#allocation3], 1
    %s5105 = scalar_lea.sflag [#allocation3], 1
    %5106 = vsyncpa %s5105, 1
    %5107 = vsyncpa [#allocation6], 1
    %5108 = vsyncpa [#allocation9], 1
    %5109 = vsyncpa [#allocation4], 1
    %s5110 = scalar_lea.sflag [#allocation4], 1
    %5111 = vsyncpa %s5110, 1

</llo_original>
